<compile_context>
chip_gen: v5e
topology: v5e:2x2
jax: 0.10.0
libtpu: 0.0.40
codegen_flags: <defaults>
</compile_context>

<pallas_src>
import functools

import jax
import jax.numpy as jnp
from jax import lax
from jax.experimental import pallas as pl
from jax.experimental.pallas import tpu as pltpu

_LANE = 128


def _optnet_kernel(QG_ref, QiGQi_ref, W0inv_ref, Gt_ref, QiGt_ref, K_ref, hT_ref,
                   xT_ref, out_ref,
                   z_s, s_s, lam_s, bz_s, br_s, S_s, *, max_iter):
    f32 = jnp.float32
    nz, Bt = xT_ref.shape
    nineq = K_ref.shape[0]

    QG = QG_ref[...]            # [Q; G]          (nz+nineq, nz)
    QiGQi = QiGQi_ref[...]      # [Qinv; G Qinv]  (nz+nineq, nz)
    Gt = Gt_ref[...]            # (nz, nineq)
    QiGt = QiGt_ref[...]        # Qinv G'
    K = K_ref[...]              # G Qinv G'
    hT = hT_ref[...]            # (nineq, 1): broadcasts over batch lanes
    pT = xT_ref[...]            # (nz, Bt):  QP linear term, batch in lanes

    # ---- loop-invariant constants (hoisted: JAX does not CSE iota/broadcast in loops) ----
    ii = lax.broadcasted_iota(jnp.int32, (nineq, nineq), 0)
    jj = lax.broadcasted_iota(jnp.int32, (nineq, nineq), 1)
    eye3 = jnp.where(ii == jj, 1.0, 0.0).astype(f32)[:, :, None]     # (nineq, nineq, 1)
    K3 = K[:, :, None]
    inv_m = f32(1.0 / nineq)
    BIG = f32(1e30)

    def residuals(z, s, lam):
        qgz = jnp.dot(QG, z, preferred_element_type=f32)             # one MXU push: [Qz; Gz]
        qzp = qgz[:nz] + pT
        rd = qzp + jnp.dot(Gt, lam, preferred_element_type=f32)      # dual residual
        rp = qgz[nz:] + s - hT                                       # primal residual
        mu = jnp.sum(s * lam, axis=0, keepdims=True) * inv_m
        res = (jnp.sqrt(jnp.sum(rp * rp, axis=0, keepdims=True))
               + jnp.sqrt(jnp.sum(rd * rd, axis=0, keepdims=True)) + mu)
        return qzp, rd, rp, mu, res

    def step_len(v, dv):
        safe = jnp.where(dv < 0.0, dv, -1.0)
        ratio = jnp.where(dv < 0.0, -v / safe, BIG)
        return jnp.min(ratio, axis=0, keepdims=True)

    def apply_Hinv(rhs):
        # (Q + G' D G)^{-1} rhs via Woodbury; S_s holds (D^{-1} + G Qinv G')^{-1} in place.
        uv = jnp.dot(QiGQi, rhs, preferred_element_type=f32)         # one push: [Qinv r; G Qinv r]
        u = uv[:nz]                                                   # (nz, Bt)
        v = uv[nz:]                                                   # (nineq, Bt)
        w = jnp.sum(S_s[...] * v[None, :, :], axis=1)                 # batched S^{-1} v
        dz = u - jnp.dot(QiGt, w, preferred_element_type=f32)
        Gdz = v - jnp.dot(K, w, preferred_element_type=f32)           # G dz without a fresh matmul
        return dz, Gdz

    # ---- PDIPM initialization: d = 1 KKT solve, then shift into the interior ----
    rhs0 = jnp.dot(Gt, hT, preferred_element_type=f32) - pT
    z = jnp.dot(W0inv_ref[...], rhs0, preferred_element_type=f32)    # (Q + G'G)^{-1} rhs0
    s = hT - jnp.dot(QG, z, preferred_element_type=f32)[nz:]         # h - Gz
    lam = -s
    smin = jnp.min(s, axis=0, keepdims=True)
    s = jnp.where(smin < 1e-8, s - smin + 1.0, s)
    lmin = jnp.min(lam, axis=0, keepdims=True)
    lam = jnp.where(lmin < 1e-8, lam - lmin + 1.0, lam)
    z_s[...] = z
    s_s[...] = s
    lam_s[...] = lam
    bz_s[...] = z
    br_s[...] = jnp.full((1, Bt), BIG, f32)

    @pl.loop(0, max_iter)
    def _(it):
        z = z_s[...]
        s = s_s[...]
        lam = lam_s[...]
        qzp, rd, rp, mu, res = residuals(z, s, lam)
        better = res < br_s[...]
        br_s[...] = jnp.where(better, res, br_s[...])
        bz_s[...] = jnp.where(better, z, bz_s[...])

        s_safe = jnp.maximum(s, 1e-8)                 # consistent division guards
        lam_safe = jnp.maximum(lam, 1e-8)
        d = lam_safe / s_safe
        dinv = s_safe / lam_safe

        # S = D^{-1} + G Qinv G'  (SPD, nineq x nineq, batch in lanes)
        S_s[...] = K3 + eye3 * dinv[:, None, :]

        # ---- in-place batched Gauss-Jordan inverse of S (NR gaussj, no pivoting: SPD).
        #      Fully unrolled over the compile-time-constant nineq so every slice is
        #      static; each S vreg is written exactly once per pivot (single fused store,
        #      no identity buffer, no second Schur tensor). ----
        for k in range(nineq):
            A = S_s[...]                              # (nineq, nineq, Bt)
            rowA = A[k:k + 1, :, :]                   # pivot row    (1, nineq, Bt)
            colA = A[:, k:k + 1, :]                   # pivot column (nineq, 1, Bt)
            piv = rowA[:, k:k + 1, :]                 # pivot        (1, 1, Bt)
            pivinv = 1.0 / jnp.maximum(piv, 1e-12)    # SPD -> pivots > 0
            csel = jj[:1, :, None] == k               # (1, nineq, 1)
            rsel = ii[:, :1, None] == k               # (nineq, 1, 1)
            row_new = jnp.where(csel, pivinv, rowA * pivinv)
            S_s[...] = jnp.where(rsel, row_new,
                                 jnp.where(csel, 0.0, A) - colA * row_new)
        # S_s now holds S^{-1}.

        # ---- affine (predictor) direction ----
        rhs_a = -(qzp + jnp.dot(Gt, d * rp, preferred_element_type=f32))
        dz_a, Gdz_a = apply_Hinv(rhs_a)
        ds_a = -rp - Gdz_a
        dl_a = -lam - d * ds_a

        alpha_a = jnp.minimum(jnp.minimum(step_len(s, ds_a), step_len(lam, dl_a)), 1.0)
        t1 = jnp.sum((s + alpha_a * ds_a) * (lam + alpha_a * dl_a), axis=0, keepdims=True)
        t2 = jnp.sum(s * lam, axis=0, keepdims=True)
        sig = (t1 / jnp.maximum(t2, 1e-12)) ** 3

        # ---- combined Mehrotra corrector direction ----
        r_comp = -s * lam - ds_a * dl_a + sig * mu
        rhs_c = -rd - jnp.dot(Gt, (r_comp + lam * rp) / s_safe, preferred_element_type=f32)
        dz, Gdz = apply_Hinv(rhs_c)
        ds = -rp - Gdz
        dl = (r_comp - lam * ds) / s_safe

        alpha = jnp.minimum(1.0, 0.999 * jnp.minimum(step_len(s, ds), step_len(lam, dl)))
        z_s[...] = z + alpha * dz
        s_s[...] = s + alpha * ds
        lam_s[...] = lam + alpha * dl

    # best-iterate selection, including the final iterate
    z = z_s[...]
    _, _, _, _, res = residuals(z, s_s[...], lam_s[...])
    better = res < br_s[...]
    out_ref[...] = jnp.where(better, z, bz_s[...]).astype(out_ref.dtype)


def optnet_forward(M, L, G, z0, s0, x, *, eps=1e-4, max_iter=20, block_b=1024):
    """OptNet.forward: x is the QP linear term p; returns zhat (B, out_features)."""
    f32 = jnp.float32
    M, L, G, z0, s0, x = (a.astype(f32) for a in (M, L, G, z0, s0, x))
    B, nz = x.shape
    nineq = G.shape[0]

    # ---- batch-independent prep in plain XLA (done once, not per batch tile) ----
    Lmat = M * L
    Q = Lmat @ Lmat.T + f32(eps) * jnp.eye(nz, dtype=f32)
    Gt = G.T
    Qinv = jnp.linalg.inv(Q)
    QiGt = Qinv @ Gt                            # Qinv G'
    K = G @ QiGt                                # G Qinv G'
    W0inv = jnp.linalg.inv(Q + Gt @ G)          # init KKT solve with d = 1
    hT = (z0 @ Gt + s0).T                       # (nineq, 1)
    QG = jnp.concatenate([Q, G], axis=0)        # [Q; G]           (nz+nineq, nz)
    QiGQi = jnp.concatenate([Qinv, QiGt.T], axis=0)   # [Qinv; G Qinv]  (Qinv is symmetric)

    # ---- batch tiling: batch in lanes, always a multiple of 128 lanes ----
    # Cap the lane tile so Schur + state scratch stays well inside the per-generation
    # VMEM budget (v7x has only 64 MiB physical VMEM).
    bytes_per_lane = 4 * (nineq * nineq + 2 * nz + 2 * nineq + 1)
    bt_cap = max(_LANE, ((40 << 20) // bytes_per_lane // _LANE) * _LANE)
    block_b = min(max(_LANE, (block_b // _LANE) * _LANE), bt_cap)
    if B <= _LANE:
        Bt = _LANE
    elif B <= 2 * block_b:
        # >= 2 lane-aligned grid tiles so both v7x TensorCores get work
        Bt = (((B + 1) // 2 + _LANE - 1) // _LANE) * _LANE
    else:
        Bt = block_b
    Bp = ((B + Bt - 1) // Bt) * Bt
    xT = jnp.pad(x, ((0, Bp - B), (0, 0))).T    # (nz, Bp); padded cols solve a p=0 QP

    vmem_need = (bytes_per_lane * Bt                              # persistent scratch
                 + 4 * 4 * nz * Bt                                # double-buffered in/out tiles
                 + 8 * (2 * (nz + nineq) * nz + nz * nz
                        + 2 * nz * nineq + nineq * nineq + nineq))  # constants (x2 buffers)
    vmem_limit = int(min(48 << 20, max(32 << 20, 2 * vmem_need)))

    kernel = functools.partial(_optnet_kernel, max_iter=int(max_iter))
    const = lambda i: (0, 0)
    outT = pl.pallas_call(
        kernel,
        out_shape=jax.ShapeDtypeStruct((nz, Bp), f32),
        grid=(Bp // Bt,),
        in_specs=[
            pl.BlockSpec((nz + nineq, nz), const),        # [Q; G]
            pl.BlockSpec((nz + nineq, nz), const),        # [Qinv; G Qinv]
            pl.BlockSpec((nz, nz), const),                # (Q + G'G)^{-1}
            pl.BlockSpec((nz, nineq), const),             # G'
            pl.BlockSpec((nz, nineq), const),             # Qinv G'
            pl.BlockSpec((nineq, nineq), const),          # G Qinv G'
            pl.BlockSpec((nineq, 1), const),              # h'
            pl.BlockSpec((nz, Bt), lambda i: (0, i)),     # x' tile (batch in lanes)
        ],
        out_specs=pl.BlockSpec((nz, Bt), lambda i: (0, i)),
        scratch_shapes=[
            pltpu.VMEM((nz, Bt), jnp.float32),            # z
            pltpu.VMEM((nineq, Bt), jnp.float32),         # s
            pltpu.VMEM((nineq, Bt), jnp.float32),         # lam
            pltpu.VMEM((nz, Bt), jnp.float32),            # best z
            pltpu.VMEM((1, Bt), jnp.float32),             # best residual
            pltpu.VMEM((nineq, nineq, Bt), jnp.float32),  # Schur complement / its inverse (in place)
        ],
        compiler_params=pltpu.CompilerParams(
            dimension_semantics=("parallel",),
            vmem_limit_bytes=vmem_limit),
    )(QG, QiGQi, W0inv, Gt, QiGt, K, hT, xT)

    return outT.T[:B]


if __name__ == "__main__":
    # OptNet(in_features=out_features=32, neq=0, nineq=16) at a small batch.
    B, nz, nineq = 8, 32, 16
    key = jax.random.PRNGKey(0)
    k_l, k_g, k_x = jax.random.split(key, 3)

    # deterministic parameter init mirroring OptNet.__init__
    M = jnp.tril(jnp.ones((nz, nz), jnp.float32))                        # tril(ones)
    L = jnp.tril(jax.random.uniform(k_l, (nz, nz), dtype=jnp.float32))   # tril(rand)
    G = jax.random.uniform(k_g, (nineq, nz), dtype=jnp.float32,
                           minval=-1.0, maxval=1.0)                      # U(-1, 1)
    s0 = jnp.ones((1, nineq), jnp.float32)
    z0 = jnp.zeros((1, nz), jnp.float32)

    x = jax.random.normal(k_x, (B, nz), dtype=jnp.float32)

    zhat = optnet_forward(M, L, G, z0, s0, x, eps=1e-4, max_iter=20)
    zhat = jax.block_until_ready(zhat)

    assert zhat.shape == (B, nz)
    assert bool(jnp.all(jnp.isfinite(zhat)))
    print("KERNEL_OK")
</pallas_src>

<mosaic_0001>
module attributes {stable_mosaic.version = 11 : i64} {
  func.func @_optnet_kernel(%arg0: i32, %arg1: memref<48x32xf32, #tpu.memory_space<vmem>>, %arg2: memref<48x32xf32, #tpu.memory_space<vmem>>, %arg3: memref<32x32xf32, #tpu.memory_space<vmem>>, %arg4: memref<32x16xf32, #tpu.memory_space<vmem>>, %arg5: memref<32x16xf32, #tpu.memory_space<vmem>>, %arg6: memref<16x16xf32, #tpu.memory_space<vmem>>, %arg7: memref<16x1xf32, #tpu.memory_space<vmem>>, %arg8: memref<32x128xf32, #tpu.memory_space<vmem>>, %arg9: memref<32x128xf32, #tpu.memory_space<vmem>>, %arg10: memref<32x128xf32, #tpu.memory_space<vmem>>, %arg11: memref<16x128xf32, #tpu.memory_space<vmem>>, %arg12: memref<16x128xf32, #tpu.memory_space<vmem>>, %arg13: memref<32x128xf32, #tpu.memory_space<vmem>>, %arg14: memref<1x128xf32, #tpu.memory_space<vmem>>, %arg15: memref<16x16x128xf32, #tpu.memory_space<vmem>>) attributes {dimension_semantics = [#tpu.dimension_semantics<parallel>], iteration_bounds = array<i64: 1>, scalar_prefetch = 0 : i64, scratch_operands = 6 : i64, tpu.core_type = #tpu.core_type<tc>, window_params = [{pipeline_mode = #tpu.pipeline_mode<synchronous>, transform_indices = @transform_0, window_bounds = array<i64: 48, 32>}, {pipeline_mode = #tpu.pipeline_mode<synchronous>, transform_indices = @transform_1, window_bounds = array<i64: 48, 32>}, {pipeline_mode = #tpu.pipeline_mode<synchronous>, transform_indices = @transform_2, window_bounds = array<i64: 32, 32>}, {pipeline_mode = #tpu.pipeline_mode<synchronous>, transform_indices = @transform_3, window_bounds = array<i64: 32, 16>}, {pipeline_mode = #tpu.pipeline_mode<synchronous>, transform_indices = @transform_4, window_bounds = array<i64: 32, 16>}, {pipeline_mode = #tpu.pipeline_mode<synchronous>, transform_indices = @transform_5, window_bounds = array<i64: 16, 16>}, {pipeline_mode = #tpu.pipeline_mode<synchronous>, transform_indices = @transform_6, window_bounds = array<i64: 16, 1>}, {transform_indices = @transform_7, window_bounds = array<i64: 32, 128>}, {transform_indices = @transform_8, window_bounds = array<i64: 32, 128>}]} {
    %c0 = arith.constant 0 : index
    %c0_0 = arith.constant 0 : index
    %0 = vector.load %arg1[%c0, %c0_0] : memref<48x32xf32, #tpu.memory_space<vmem>>, vector<48x32xf32>
    %c0_1 = arith.constant 0 : index
    %c0_2 = arith.constant 0 : index
    %1 = vector.load %arg2[%c0_1, %c0_2] : memref<48x32xf32, #tpu.memory_space<vmem>>, vector<48x32xf32>
    %c0_3 = arith.constant 0 : index
    %c0_4 = arith.constant 0 : index
    %2 = vector.load %arg4[%c0_3, %c0_4] : memref<32x16xf32, #tpu.memory_space<vmem>>, vector<32x16xf32>
    %c0_5 = arith.constant 0 : index
    %c0_6 = arith.constant 0 : index
    %3 = vector.load %arg5[%c0_5, %c0_6] : memref<32x16xf32, #tpu.memory_space<vmem>>, vector<32x16xf32>
    %c0_7 = arith.constant 0 : index
    %c0_8 = arith.constant 0 : index
    %4 = vector.load %arg6[%c0_7, %c0_8] : memref<16x16xf32, #tpu.memory_space<vmem>>, vector<16x16xf32>
    %c0_9 = arith.constant 0 : index
    %c0_10 = arith.constant 0 : index
    %5 = vector.load %arg7[%c0_9, %c0_10] : memref<16x1xf32, #tpu.memory_space<vmem>>, vector<16x1xf32>
    %c0_11 = arith.constant 0 : index
    %c0_12 = arith.constant 0 : index
    %6 = vector.load %arg8[%c0_11, %c0_12] : memref<32x128xf32, #tpu.memory_space<vmem>>, vector<32x128xf32>
    %7 = tpu.iota {dimensions = array<i32: 0>} : vector<16x16xi32>
    %8 = tpu.iota {dimensions = array<i32: 1>} : vector<16x16xi32>
    %9 = arith.cmpi eq, %7, %8 : vector<16x16xi32>
    %cst = arith.constant 1.000000e+00 : f32
    %cst_13 = arith.constant 0.000000e+00 : f32
    %10 = vector.broadcast %cst : f32 to vector<16x16xf32>
    %11 = vector.broadcast %cst_13 : f32 to vector<16x16xf32>
    %12 = arith.select %9, %10, %11 : vector<16x16xi1>, vector<16x16xf32>
    %13 = vector.shape_cast %12 : vector<16x16xf32> to vector<16x16x1xf32>
    %14 = vector.shape_cast %4 : vector<16x16xf32> to vector<16x16x1xf32>
    %cst_14 = arith.constant dense<0.000000e+00> : vector<32x1xf32>
    %15 = tpu.matmul %2, %5, %cst_14 {dimension_numbers = #tpu.dot_dimension_numbers<[1], [0], [0], [1], [0, 0, 1, 1], [], []>} : vector<32x16xf32>, vector<16x1xf32>, vector<32x1xf32> -> vector<32x1xf32>
    %16 = vector.broadcast %15 : vector<32x1xf32> to vector<32x128xf32>
    %17 = arith.subf %16, %6 : vector<32x128xf32>
    %c0_15 = arith.constant 0 : index
    %c0_16 = arith.constant 0 : index
    %18 = vector.load %arg3[%c0_15, %c0_16] : memref<32x32xf32, #tpu.memory_space<vmem>>, vector<32x32xf32>
    %cst_17 = arith.constant dense<0.000000e+00> : vector<32x128xf32>
    %19 = tpu.matmul %18, %17, %cst_17 {dimension_numbers = #tpu.dot_dimension_numbers<[1], [0], [0], [1], [0, 0, 1, 1], [], []>} : vector<32x32xf32>, vector<32x128xf32>, vector<32x128xf32> -> vector<32x128xf32>
    %cst_18 = arith.constant dense<0.000000e+00> : vector<48x128xf32>
    %20 = tpu.matmul %0, %19, %cst_18 {dimension_numbers = #tpu.dot_dimension_numbers<[1], [0], [0], [1], [0, 0, 1, 1], [], []>} : vector<48x32xf32>, vector<32x128xf32>, vector<48x128xf32> -> vector<48x128xf32>
    %21 = vector.extract_strided_slice %20 {offsets = [32, 0], sizes = [16, 128], strides = [1, 1]} : vector<48x128xf32> to vector<16x128xf32>
    %22 = vector.broadcast %5 : vector<16x1xf32> to vector<16x128xf32>
    %23 = arith.subf %22, %21 : vector<16x128xf32>
    %cst_19 = arith.constant 0.000000e+00 : f32
    %24 = vector.broadcast %cst_19 : f32 to vector<16x128xf32>
    %25 = arith.subf %24, %23 : vector<16x128xf32>
    %cst_20 = arith.constant dense<0x7F800000> : vector<128xf32>
    %26 = vector.multi_reduction <minimumf>, %23, %cst_20 [0] : vector<16x128xf32> to vector<128xf32>
    %27 = vector.shape_cast %26 : vector<128xf32> to vector<1x128xf32>
    %cst_21 = arith.constant 9.99999993E-9 : f32
    %28 = vector.broadcast %cst_21 : f32 to vector<1x128xf32>
    %29 = arith.cmpf olt, %27, %28 : vector<1x128xf32>
    %30 = vector.broadcast %27 : vector<1x128xf32> to vector<16x128xf32>
    %31 = arith.subf %23, %30 : vector<16x128xf32>
    %cst_22 = arith.constant 1.000000e+00 : f32
    %32 = vector.broadcast %cst_22 : f32 to vector<16x128xf32>
    %33 = arith.addf %31, %32 : vector<16x128xf32>
    %34 = vector.shape_cast %29 : vector<1x128xi1> to vector<1x128xi1>
    %35 = vector.broadcast %34 : vector<1x128xi1> to vector<16x128xi1>
    %36 = arith.select %35, %33, %23 : vector<16x128xi1>, vector<16x128xf32>
    %cst_23 = arith.constant dense<0x7F800000> : vector<128xf32>
    %37 = vector.multi_reduction <minimumf>, %25, %cst_23 [0] : vector<16x128xf32> to vector<128xf32>
    %38 = vector.shape_cast %37 : vector<128xf32> to vector<1x128xf32>
    %cst_24 = arith.constant 9.99999993E-9 : f32
    %39 = vector.broadcast %cst_24 : f32 to vector<1x128xf32>
    %40 = arith.cmpf olt, %38, %39 : vector<1x128xf32>
    %41 = vector.broadcast %38 : vector<1x128xf32> to vector<16x128xf32>
    %42 = arith.subf %25, %41 : vector<16x128xf32>
    %cst_25 = arith.constant 1.000000e+00 : f32
    %43 = vector.broadcast %cst_25 : f32 to vector<16x128xf32>
    %44 = arith.addf %42, %43 : vector<16x128xf32>
    %45 = vector.shape_cast %40 : vector<1x128xi1> to vector<1x128xi1>
    %46 = vector.broadcast %45 : vector<1x128xi1> to vector<16x128xi1>
    %47 = arith.select %46, %44, %25 : vector<16x128xi1>, vector<16x128xf32>
    %c0_26 = arith.constant 0 : index
    %c0_27 = arith.constant 0 : index
    %48 = vector.load %arg10[%c0_26, %c0_27] : memref<32x128xf32, #tpu.memory_space<vmem>>, vector<32x128xf32>
    tpu.vector_store %arg10[%c0_26, %c0_27], %19 {strides = array<i32>} : memref<32x128xf32, #tpu.memory_space<vmem>>, vector<32x128xf32>,
    %c0_28 = arith.constant 0 : index
    %c0_29 = arith.constant 0 : index
    %49 = vector.load %arg11[%c0_28, %c0_29] : memref<16x128xf32, #tpu.memory_space<vmem>>, vector<16x128xf32>
    tpu.vector_store %arg11[%c0_28, %c0_29], %36 {strides = array<i32>} : memref<16x128xf32, #tpu.memory_space<vmem>>, vector<16x128xf32>,
    %c0_30 = arith.constant 0 : index
    %c0_31 = arith.constant 0 : index
    %50 = vector.load %arg12[%c0_30, %c0_31] : memref<16x128xf32, #tpu.memory_space<vmem>>, vector<16x128xf32>
    tpu.vector_store %arg12[%c0_30, %c0_31], %47 {strides = array<i32>} : memref<16x128xf32, #tpu.memory_space<vmem>>, vector<16x128xf32>,
    %c0_32 = arith.constant 0 : index
    %c0_33 = arith.constant 0 : index
    %51 = vector.load %arg13[%c0_32, %c0_33] : memref<32x128xf32, #tpu.memory_space<vmem>>, vector<32x128xf32>
    tpu.vector_store %arg13[%c0_32, %c0_33], %19 {strides = array<i32>} : memref<32x128xf32, #tpu.memory_space<vmem>>, vector<32x128xf32>,
    %cst_34 = arith.constant 1.000000e+30 : f32
    %52 = vector.broadcast %cst_34 : f32 to vector<1x128xf32>
    %c0_35 = arith.constant 0 : index
    %c0_36 = arith.constant 0 : index
    %53 = vector.load %arg14[%c0_35, %c0_36] : memref<1x128xf32, #tpu.memory_space<vmem>>, vector<1x128xf32>
    tpu.vector_store %arg14[%c0_35, %c0_36], %52 {strides = array<i32>} : memref<1x128xf32, #tpu.memory_space<vmem>>, vector<1x128xf32>,
    %cst_37 = arith.constant 6.250000e-02 : f32
    %cst_38 = arith.constant 1.000000e+30 : f32
    %c0_i32 = arith.constant 0 : i32
    %c20_i32 = arith.constant 20 : i32
    %54 = arith.addi %c0_i32, %c20_i32 : i32
    %c1_i32 = arith.constant 1 : i32
    scf.for %arg16 = %c0_i32 to %54 step %c1_i32  : i32 {
      %c0_57 = arith.constant 0 : index
      %c0_58 = arith.constant 0 : index
      %89 = vector.load %arg10[%c0_57, %c0_58] : memref<32x128xf32, #tpu.memory_space<vmem>>, vector<32x128xf32>
      %c0_59 = arith.constant 0 : index
      %c0_60 = arith.constant 0 : index
      %90 = vector.load %arg11[%c0_59, %c0_60] : memref<16x128xf32, #tpu.memory_space<vmem>>, vector<16x128xf32>
      %c0_61 = arith.constant 0 : index
      %c0_62 = arith.constant 0 : index
      %91 = vector.load %arg12[%c0_61, %c0_62] : memref<16x128xf32, #tpu.memory_space<vmem>>, vector<16x128xf32>
      %cst_63 = arith.constant dense<0.000000e+00> : vector<48x128xf32>
      %92 = tpu.matmul %0, %89, %cst_63 {dimension_numbers = #tpu.dot_dimension_numbers<[1], [0], [0], [1], [0, 0, 1, 1], [], []>} : vector<48x32xf32>, vector<32x128xf32>, vector<48x128xf32> -> vector<48x128xf32>
      %93 = vector.extract_strided_slice %92 {offsets = [0, 0], sizes = [32, 128], strides = [1, 1]} : vector<48x128xf32> to vector<32x128xf32>
      %94 = arith.addf %93, %6 : vector<32x128xf32>
      %cst_64 = arith.constant dense<0.000000e+00> : vector<32x128xf32>
      %95 = tpu.matmul %2, %91, %cst_64 {dimension_numbers = #tpu.dot_dimension_numbers<[1], [0], [0], [1], [0, 0, 1, 1], [], []>} : vector<32x16xf32>, vector<16x128xf32>, vector<32x128xf32> -> vector<32x128xf32>
      %96 = arith.addf %94, %95 : vector<32x128xf32>
      %97 = vector.extract_strided_slice %92 {offsets = [32, 0], sizes = [16, 128], strides = [1, 1]} : vector<48x128xf32> to vector<16x128xf32>
      %98 = arith.addf %97, %90 : vector<16x128xf32>
      %99 = vector.broadcast %5 : vector<16x1xf32> to vector<16x128xf32>
      %100 = arith.subf %98, %99 : vector<16x128xf32>
      %101 = arith.mulf %90, %91 : vector<16x128xf32>
      %cst_65 = arith.constant dense<0.000000e+00> : vector<128xf32>
      %102 = vector.multi_reduction <add>, %101, %cst_65 [0] : vector<16x128xf32> to vector<128xf32>
      %103 = vector.shape_cast %102 : vector<128xf32> to vector<1x128xf32>
      %104 = vector.broadcast %cst_37 : f32 to vector<1x128xf32>
      %105 = arith.mulf %103, %104 : vector<1x128xf32>
      %106 = arith.mulf %100, %100 : vector<16x128xf32>
      %cst_66 = arith.constant dense<0.000000e+00> : vector<128xf32>
      %107 = vector.multi_reduction <add>, %106, %cst_66 [0] : vector<16x128xf32> to vector<128xf32>
      %108 = vector.shape_cast %107 : vector<128xf32> to vector<1x128xf32>
      %109 = math.sqrt %108 : vector<1x128xf32>
      %110 = arith.mulf %96, %96 : vector<32x128xf32>
      %cst_67 = arith.constant dense<0.000000e+00> : vector<128xf32>
      %111 = vector.multi_reduction <add>, %110, %cst_67 [0] : vector<32x128xf32> to vector<128xf32>
      %112 = vector.shape_cast %111 : vector<128xf32> to vector<1x128xf32>
      %113 = math.sqrt %112 : vector<1x128xf32>
      %114 = arith.addf %109, %113 : vector<1x128xf32>
      %115 = arith.addf %114, %105 : vector<1x128xf32>
      %c0_68 = arith.constant 0 : index
      %c0_69 = arith.constant 0 : index
      %116 = vector.load %arg14[%c0_68, %c0_69] : memref<1x128xf32, #tpu.memory_space<vmem>>, vector<1x128xf32>
      %117 = arith.cmpf olt, %115, %116 : vector<1x128xf32>
      %c0_70 = arith.constant 0 : index
      %c0_71 = arith.constant 0 : index
      %118 = vector.load %arg14[%c0_70, %c0_71] : memref<1x128xf32, #tpu.memory_space<vmem>>, vector<1x128xf32>
      %119 = arith.select %117, %115, %118 : vector<1x128xi1>, vector<1x128xf32>
      %c0_72 = arith.constant 0 : index
      %c0_73 = arith.constant 0 : index
      %120 = vector.load %arg14[%c0_72, %c0_73] : memref<1x128xf32, #tpu.memory_space<vmem>>, vector<1x128xf32>
      tpu.vector_store %arg14[%c0_72, %c0_73], %119 {strides = array<i32>} : memref<1x128xf32, #tpu.memory_space<vmem>>, vector<1x128xf32>,
      %c0_74 = arith.constant 0 : index
      %c0_75 = arith.constant 0 : index
      %121 = vector.load %arg13[%c0_74, %c0_75] : memref<32x128xf32, #tpu.memory_space<vmem>>, vector<32x128xf32>
      %122 = vector.shape_cast %117 : vector<1x128xi1> to vector<1x128xi1>
      %123 = vector.broadcast %122 : vector<1x128xi1> to vector<32x128xi1>
      %124 = arith.select %123, %89, %121 : vector<32x128xi1>, vector<32x128xf32>
      %c0_76 = arith.constant 0 : index
      %c0_77 = arith.constant 0 : index
      %125 = vector.load %arg13[%c0_76, %c0_77] : memref<32x128xf32, #tpu.memory_space<vmem>>, vector<32x128xf32>
      tpu.vector_store %arg13[%c0_76, %c0_77], %124 {strides = array<i32>} : memref<32x128xf32, #tpu.memory_space<vmem>>, vector<32x128xf32>,
      %cst_78 = arith.constant 9.99999993E-9 : f32
      %126 = vector.broadcast %cst_78 : f32 to vector<16x128xf32>
      %127 = arith.maximumf %90, %126 : vector<16x128xf32>
      %cst_79 = arith.constant 9.99999993E-9 : f32
      %128 = vector.broadcast %cst_79 : f32 to vector<16x128xf32>
      %129 = arith.maximumf %91, %128 : vector<16x128xf32>
      %130 = arith.divf %129, %127 : vector<16x128xf32>
      %131 = arith.divf %127, %129 : vector<16x128xf32>
      %132 = vector.shape_cast %131 : vector<16x128xf32> to vector<16x1x128xf32>
      %133 = vector.broadcast %13 : vector<16x16x1xf32> to vector<16x16x128xf32>
      %134 = vector.broadcast %132 : vector<16x1x128xf32> to vector<16x16x128xf32>
      %135 = arith.mulf %133, %134 : vector<16x16x128xf32>
      %136 = vector.broadcast %14 : vector<16x16x1xf32> to vector<16x16x128xf32>
      %137 = arith.addf %136, %135 : vector<16x16x128xf32>
      %c0_80 = arith.constant 0 : index
      %c0_81 = arith.constant 0 : index
      %c0_82 = arith.constant 0 : index
      %138 = vector.load %arg15[%c0_80, %c0_81, %c0_82] : memref<16x16x128xf32, #tpu.memory_space<vmem>>, vector<16x16x128xf32>
      tpu.vector_store %arg15[%c0_80, %c0_81, %c0_82], %137 {strides = array<i32>} : memref<16x16x128xf32, #tpu.memory_space<vmem>>, vector<16x16x128xf32>,
      %c0_83 = arith.constant 0 : index
      %c0_84 = arith.constant 0 : index
      %c0_85 = arith.constant 0 : index
      %139 = vector.load %arg15[%c0_83, %c0_84, %c0_85] : memref<16x16x128xf32, #tpu.memory_space<vmem>>, vector<16x16x128xf32>
      %140 = vector.extract_strided_slice %139 {offsets = [0, 0, 0], sizes = [1, 16, 128], strides = [1, 1, 1]} : vector<16x16x128xf32> to vector<1x16x128xf32>
      %141 = vector.extract_strided_slice %139 {offsets = [0, 0, 0], sizes = [16, 1, 128], strides = [1, 1, 1]} : vector<16x16x128xf32> to vector<16x1x128xf32>
      %142 = vector.extract_strided_slice %140 {offsets = [0, 0, 0], sizes = [1, 1, 128], strides = [1, 1, 1]} : vector<1x16x128xf32> to vector<1x1x128xf32>
      %cst_86 = arith.constant 9.99999996E-13 : f32
      %143 = vector.broadcast %cst_86 : f32 to vector<1x1x128xf32>
      %144 = arith.maximumf %142, %143 : vector<1x1x128xf32>
      %cst_87 = arith.constant 1.000000e+00 : f32
      %145 = vector.broadcast %cst_87 : f32 to vector<1x1x128xf32>
      %146 = arith.divf %145, %144 : vector<1x1x128xf32>
      %147 = vector.extract_strided_slice %8 {offsets = [0, 0], sizes = [1, 16], strides = [1, 1]} : vector<16x16xi32> to vector<1x16xi32>
      %148 = vector.shape_cast %147 : vector<1x16xi32> to vector<1x16x1xi32>
      %c0_i32_88 = arith.constant 0 : i32
      %149 = vector.broadcast %c0_i32_88 : i32 to vector<1x16x1xi32>
      %150 = arith.cmpi eq, %148, %149 : vector<1x16x1xi32>
      %151 = vector.extract_strided_slice %7 {offsets = [0, 0], sizes = [16, 1], strides = [1, 1]} : vector<16x16xi32> to vector<16x1xi32>
      %152 = vector.shape_cast %151 : vector<16x1xi32> to vector<16x1x1xi32>
      %c0_i32_89 = arith.constant 0 : i32
      %153 = vector.broadcast %c0_i32_89 : i32 to vector<16x1x1xi32>
      %154 = arith.cmpi eq, %152, %153 : vector<16x1x1xi32>
      %155 = vector.broadcast %146 : vector<1x1x128xf32> to vector<1x16x128xf32>
      %156 = arith.mulf %140, %155 : vector<1x16x128xf32>
      %157 = vector.shape_cast %150 : vector<1x16x1xi1> to vector<1x16x1xi1>
      %158 = vector.broadcast %157 : vector<1x16x1xi1> to vector<1x16x128xi1>
      %159 = vector.shape_cast %146 : vector<1x1x128xf32> to vector<1x1x128xf32>
      %160 = vector.broadcast %159 : vector<1x1x128xf32> to vector<1x16x128xf32>
      %161 = arith.select %158, %160, %156 : vector<1x16x128xi1>, vector<1x16x128xf32>
      %cst_90 = arith.constant 0.000000e+00 : f32
      %162 = vector.shape_cast %150 : vector<1x16x1xi1> to vector<1x16x1xi1>
      %163 = vector.broadcast %162 : vector<1x16x1xi1> to vector<16x16x128xi1>
      %164 = vector.broadcast %cst_90 : f32 to vector<16x16x128xf32>
      %165 = arith.select %163, %164, %139 : vector<16x16x128xi1>, vector<16x16x128xf32>
      %166 = vector.broadcast %141 : vector<16x1x128xf32> to vector<16x16x128xf32>
      %167 = vector.broadcast %161 : vector<1x16x128xf32> to vector<16x16x128xf32>
      %168 = arith.mulf %166, %167 : vector<16x16x128xf32>
      %169 = arith.subf %165, %168 : vector<16x16x128xf32>
      %170 = vector.shape_cast %154 : vector<16x1x1xi1> to vector<16x1x1xi1>
      %171 = vector.broadcast %170 : vector<16x1x1xi1> to vector<16x16x128xi1>
      %172 = vector.shape_cast %161 : vector<1x16x128xf32> to vector<1x16x128xf32>
      %173 = vector.broadcast %172 : vector<1x16x128xf32> to vector<16x16x128xf32>
      %174 = arith.select %171, %173, %169 : vector<16x16x128xi1>, vector<16x16x128xf32>
      %c0_91 = arith.constant 0 : index
      %c0_92 = arith.constant 0 : index
      %c0_93 = arith.constant 0 : index
      %175 = vector.load %arg15[%c0_91, %c0_92, %c0_93] : memref<16x16x128xf32, #tpu.memory_space<vmem>>, vector<16x16x128xf32>
      tpu.vector_store %arg15[%c0_91, %c0_92, %c0_93], %174 {strides = array<i32>} : memref<16x16x128xf32, #tpu.memory_space<vmem>>, vector<16x16x128xf32>,
      %c0_94 = arith.constant 0 : index
      %c0_95 = arith.constant 0 : index
      %c0_96 = arith.constant 0 : index
      %176 = vector.load %arg15[%c0_94, %c0_95, %c0_96] : memref<16x16x128xf32, #tpu.memory_space<vmem>>, vector<16x16x128xf32>
      %177 = vector.extract_strided_slice %176 {offsets = [1, 0, 0], sizes = [1, 16, 128], strides = [1, 1, 1]} : vector<16x16x128xf32> to vector<1x16x128xf32>
      %178 = vector.extract_strided_slice %176 {offsets = [0, 1, 0], sizes = [16, 1, 128], strides = [1, 1, 1]} : vector<16x16x128xf32> to vector<16x1x128xf32>
      %179 = vector.extract_strided_slice %177 {offsets = [0, 1, 0], sizes = [1, 1, 128], strides = [1, 1, 1]} : vector<1x16x128xf32> to vector<1x1x128xf32>
      %cst_97 = arith.constant 9.99999996E-13 : f32
      %180 = vector.broadcast %cst_97 : f32 to vector<1x1x128xf32>
      %181 = arith.maximumf %179, %180 : vector<1x1x128xf32>
      %cst_98 = arith.constant 1.000000e+00 : f32
      %182 = vector.broadcast %cst_98 : f32 to vector<1x1x128xf32>
      %183 = arith.divf %182, %181 : vector<1x1x128xf32>
      %184 = vector.extract_strided_slice %8 {offsets = [0, 0], sizes = [1, 16], strides = [1, 1]} : vector<16x16xi32> to vector<1x16xi32>
      %185 = vector.shape_cast %184 : vector<1x16xi32> to vector<1x16x1xi32>
      %c1_i32_99 = arith.constant 1 : i32
      %186 = vector.broadcast %c1_i32_99 : i32 to vector<1x16x1xi32>
      %187 = arith.cmpi eq, %185, %186 : vector<1x16x1xi32>
      %188 = vector.extract_strided_slice %7 {offsets = [0, 0], sizes = [16, 1], strides = [1, 1]} : vector<16x16xi32> to vector<16x1xi32>
      %189 = vector.shape_cast %188 : vector<16x1xi32> to vector<16x1x1xi32>
      %c1_i32_100 = arith.constant 1 : i32
      %190 = vector.broadcast %c1_i32_100 : i32 to vector<16x1x1xi32>
      %191 = arith.cmpi eq, %189, %190 : vector<16x1x1xi32>
      %192 = vector.broadcast %183 : vector<1x1x128xf32> to vector<1x16x128xf32>
      %193 = arith.mulf %177, %192 : vector<1x16x128xf32>
      %194 = vector.shape_cast %187 : vector<1x16x1xi1> to vector<1x16x1xi1>
      %195 = vector.broadcast %194 : vector<1x16x1xi1> to vector<1x16x128xi1>
      %196 = vector.shape_cast %183 : vector<1x1x128xf32> to vector<1x1x128xf32>
      %197 = vector.broadcast %196 : vector<1x1x128xf32> to vector<1x16x128xf32>
      %198 = arith.select %195, %197, %193 : vector<1x16x128xi1>, vector<1x16x128xf32>
      %cst_101 = arith.constant 0.000000e+00 : f32
      %199 = vector.shape_cast %187 : vector<1x16x1xi1> to vector<1x16x1xi1>
      %200 = vector.broadcast %199 : vector<1x16x1xi1> to vector<16x16x128xi1>
      %201 = vector.broadcast %cst_101 : f32 to vector<16x16x128xf32>
      %202 = arith.select %200, %201, %176 : vector<16x16x128xi1>, vector<16x16x128xf32>
      %203 = vector.broadcast %178 : vector<16x1x128xf32> to vector<16x16x128xf32>
      %204 = vector.broadcast %198 : vector<1x16x128xf32> to vector<16x16x128xf32>
      %205 = arith.mulf %203, %204 : vector<16x16x128xf32>
      %206 = arith.subf %202, %205 : vector<16x16x128xf32>
      %207 = vector.shape_cast %191 : vector<16x1x1xi1> to vector<16x1x1xi1>
      %208 = vector.broadcast %207 : vector<16x1x1xi1> to vector<16x16x128xi1>
      %209 = vector.shape_cast %198 : vector<1x16x128xf32> to vector<1x16x128xf32>
      %210 = vector.broadcast %209 : vector<1x16x128xf32> to vector<16x16x128xf32>
      %211 = arith.select %208, %210, %206 : vector<16x16x128xi1>, vector<16x16x128xf32>
      %c0_102 = arith.constant 0 : index
      %c0_103 = arith.constant 0 : index
      %c0_104 = arith.constant 0 : index
      %212 = vector.load %arg15[%c0_102, %c0_103, %c0_104] : memref<16x16x128xf32, #tpu.memory_space<vmem>>, vector<16x16x128xf32>
      tpu.vector_store %arg15[%c0_102, %c0_103, %c0_104], %211 {strides = array<i32>} : memref<16x16x128xf32, #tpu.memory_space<vmem>>, vector<16x16x128xf32>,
      %c0_105 = arith.constant 0 : index
      %c0_106 = arith.constant 0 : index
      %c0_107 = arith.constant 0 : index
      %213 = vector.load %arg15[%c0_105, %c0_106, %c0_107] : memref<16x16x128xf32, #tpu.memory_space<vmem>>, vector<16x16x128xf32>
      %214 = vector.extract_strided_slice %213 {offsets = [2, 0, 0], sizes = [1, 16, 128], strides = [1, 1, 1]} : vector<16x16x128xf32> to vector<1x16x128xf32>
      %215 = vector.extract_strided_slice %213 {offsets = [0, 2, 0], sizes = [16, 1, 128], strides = [1, 1, 1]} : vector<16x16x128xf32> to vector<16x1x128xf32>
      %216 = vector.extract_strided_slice %214 {offsets = [0, 2, 0], sizes = [1, 1, 128], strides = [1, 1, 1]} : vector<1x16x128xf32> to vector<1x1x128xf32>
      %cst_108 = arith.constant 9.99999996E-13 : f32
      %217 = vector.broadcast %cst_108 : f32 to vector<1x1x128xf32>
      %218 = arith.maximumf %216, %217 : vector<1x1x128xf32>
      %cst_109 = arith.constant 1.000000e+00 : f32
      %219 = vector.broadcast %cst_109 : f32 to vector<1x1x128xf32>
      %220 = arith.divf %219, %218 : vector<1x1x128xf32>
      %221 = vector.extract_strided_slice %8 {offsets = [0, 0], sizes = [1, 16], strides = [1, 1]} : vector<16x16xi32> to vector<1x16xi32>
      %222 = vector.shape_cast %221 : vector<1x16xi32> to vector<1x16x1xi32>
      %c2_i32 = arith.constant 2 : i32
      %223 = vector.broadcast %c2_i32 : i32 to vector<1x16x1xi32>
      %224 = arith.cmpi eq, %222, %223 : vector<1x16x1xi32>
      %225 = vector.extract_strided_slice %7 {offsets = [0, 0], sizes = [16, 1], strides = [1, 1]} : vector<16x16xi32> to vector<16x1xi32>
      %226 = vector.shape_cast %225 : vector<16x1xi32> to vector<16x1x1xi32>
      %c2_i32_110 = arith.constant 2 : i32
      %227 = vector.broadcast %c2_i32_110 : i32 to vector<16x1x1xi32>
      %228 = arith.cmpi eq, %226, %227 : vector<16x1x1xi32>
      %229 = vector.broadcast %220 : vector<1x1x128xf32> to vector<1x16x128xf32>
      %230 = arith.mulf %214, %229 : vector<1x16x128xf32>
      %231 = vector.shape_cast %224 : vector<1x16x1xi1> to vector<1x16x1xi1>
      %232 = vector.broadcast %231 : vector<1x16x1xi1> to vector<1x16x128xi1>
      %233 = vector.shape_cast %220 : vector<1x1x128xf32> to vector<1x1x128xf32>
      %234 = vector.broadcast %233 : vector<1x1x128xf32> to vector<1x16x128xf32>
      %235 = arith.select %232, %234, %230 : vector<1x16x128xi1>, vector<1x16x128xf32>
      %cst_111 = arith.constant 0.000000e+00 : f32
      %236 = vector.shape_cast %224 : vector<1x16x1xi1> to vector<1x16x1xi1>
      %237 = vector.broadcast %236 : vector<1x16x1xi1> to vector<16x16x128xi1>
      %238 = vector.broadcast %cst_111 : f32 to vector<16x16x128xf32>
      %239 = arith.select %237, %238, %213 : vector<16x16x128xi1>, vector<16x16x128xf32>
      %240 = vector.broadcast %215 : vector<16x1x128xf32> to vector<16x16x128xf32>
      %241 = vector.broadcast %235 : vector<1x16x128xf32> to vector<16x16x128xf32>
      %242 = arith.mulf %240, %241 : vector<16x16x128xf32>
      %243 = arith.subf %239, %242 : vector<16x16x128xf32>
      %244 = vector.shape_cast %228 : vector<16x1x1xi1> to vector<16x1x1xi1>
      %245 = vector.broadcast %244 : vector<16x1x1xi1> to vector<16x16x128xi1>
      %246 = vector.shape_cast %235 : vector<1x16x128xf32> to vector<1x16x128xf32>
      %247 = vector.broadcast %246 : vector<1x16x128xf32> to vector<16x16x128xf32>
      %248 = arith.select %245, %247, %243 : vector<16x16x128xi1>, vector<16x16x128xf32>
      %c0_112 = arith.constant 0 : index
      %c0_113 = arith.constant 0 : index
      %c0_114 = arith.constant 0 : index
      %249 = vector.load %arg15[%c0_112, %c0_113, %c0_114] : memref<16x16x128xf32, #tpu.memory_space<vmem>>, vector<16x16x128xf32>
      tpu.vector_store %arg15[%c0_112, %c0_113, %c0_114], %248 {strides = array<i32>} : memref<16x16x128xf32, #tpu.memory_space<vmem>>, vector<16x16x128xf32>,
      %c0_115 = arith.constant 0 : index
      %c0_116 = arith.constant 0 : index
      %c0_117 = arith.constant 0 : index
      %250 = vector.load %arg15[%c0_115, %c0_116, %c0_117] : memref<16x16x128xf32, #tpu.memory_space<vmem>>, vector<16x16x128xf32>
      %251 = vector.extract_strided_slice %250 {offsets = [3, 0, 0], sizes = [1, 16, 128], strides = [1, 1, 1]} : vector<16x16x128xf32> to vector<1x16x128xf32>
      %252 = vector.extract_strided_slice %250 {offsets = [0, 3, 0], sizes = [16, 1, 128], strides = [1, 1, 1]} : vector<16x16x128xf32> to vector<16x1x128xf32>
      %253 = vector.extract_strided_slice %251 {offsets = [0, 3, 0], sizes = [1, 1, 128], strides = [1, 1, 1]} : vector<1x16x128xf32> to vector<1x1x128xf32>
      %cst_118 = arith.constant 9.99999996E-13 : f32
      %254 = vector.broadcast %cst_118 : f32 to vector<1x1x128xf32>
      %255 = arith.maximumf %253, %254 : vector<1x1x128xf32>
      %cst_119 = arith.constant 1.000000e+00 : f32
      %256 = vector.broadcast %cst_119 : f32 to vector<1x1x128xf32>
      %257 = arith.divf %256, %255 : vector<1x1x128xf32>
      %258 = vector.extract_strided_slice %8 {offsets = [0, 0], sizes = [1, 16], strides = [1, 1]} : vector<16x16xi32> to vector<1x16xi32>
      %259 = vector.shape_cast %258 : vector<1x16xi32> to vector<1x16x1xi32>
      %c3_i32 = arith.constant 3 : i32
      %260 = vector.broadcast %c3_i32 : i32 to vector<1x16x1xi32>
      %261 = arith.cmpi eq, %259, %260 : vector<1x16x1xi32>
      %262 = vector.extract_strided_slice %7 {offsets = [0, 0], sizes = [16, 1], strides = [1, 1]} : vector<16x16xi32> to vector<16x1xi32>
      %263 = vector.shape_cast %262 : vector<16x1xi32> to vector<16x1x1xi32>
      %c3_i32_120 = arith.constant 3 : i32
      %264 = vector.broadcast %c3_i32_120 : i32 to vector<16x1x1xi32>
      %265 = arith.cmpi eq, %263, %264 : vector<16x1x1xi32>
      %266 = vector.broadcast %257 : vector<1x1x128xf32> to vector<1x16x128xf32>
      %267 = arith.mulf %251, %266 : vector<1x16x128xf32>
      %268 = vector.shape_cast %261 : vector<1x16x1xi1> to vector<1x16x1xi1>
      %269 = vector.broadcast %268 : vector<1x16x1xi1> to vector<1x16x128xi1>
      %270 = vector.shape_cast %257 : vector<1x1x128xf32> to vector<1x1x128xf32>
      %271 = vector.broadcast %270 : vector<1x1x128xf32> to vector<1x16x128xf32>
      %272 = arith.select %269, %271, %267 : vector<1x16x128xi1>, vector<1x16x128xf32>
      %cst_121 = arith.constant 0.000000e+00 : f32
      %273 = vector.shape_cast %261 : vector<1x16x1xi1> to vector<1x16x1xi1>
      %274 = vector.broadcast %273 : vector<1x16x1xi1> to vector<16x16x128xi1>
      %275 = vector.broadcast %cst_121 : f32 to vector<16x16x128xf32>
      %276 = arith.select %274, %275, %250 : vector<16x16x128xi1>, vector<16x16x128xf32>
      %277 = vector.broadcast %252 : vector<16x1x128xf32> to vector<16x16x128xf32>
      %278 = vector.broadcast %272 : vector<1x16x128xf32> to vector<16x16x128xf32>
      %279 = arith.mulf %277, %278 : vector<16x16x128xf32>
      %280 = arith.subf %276, %279 : vector<16x16x128xf32>
      %281 = vector.shape_cast %265 : vector<16x1x1xi1> to vector<16x1x1xi1>
      %282 = vector.broadcast %281 : vector<16x1x1xi1> to vector<16x16x128xi1>
      %283 = vector.shape_cast %272 : vector<1x16x128xf32> to vector<1x16x128xf32>
      %284 = vector.broadcast %283 : vector<1x16x128xf32> to vector<16x16x128xf32>
      %285 = arith.select %282, %284, %280 : vector<16x16x128xi1>, vector<16x16x128xf32>
      %c0_122 = arith.constant 0 : index
      %c0_123 = arith.constant 0 : index
      %c0_124 = arith.constant 0 : index
      %286 = vector.load %arg15[%c0_122, %c0_123, %c0_124] : memref<16x16x128xf32, #tpu.memory_space<vmem>>, vector<16x16x128xf32>
      tpu.vector_store %arg15[%c0_122, %c0_123, %c0_124], %285 {strides = array<i32>} : memref<16x16x128xf32, #tpu.memory_space<vmem>>, vector<16x16x128xf32>,
      %c0_125 = arith.constant 0 : index
      %c0_126 = arith.constant 0 : index
      %c0_127 = arith.constant 0 : index
      %287 = vector.load %arg15[%c0_125, %c0_126, %c0_127] : memref<16x16x128xf32, #tpu.memory_space<vmem>>, vector<16x16x128xf32>
      %288 = vector.extract_strided_slice %287 {offsets = [4, 0, 0], sizes = [1, 16, 128], strides = [1, 1, 1]} : vector<16x16x128xf32> to vector<1x16x128xf32>
      %289 = vector.extract_strided_slice %287 {offsets = [0, 4, 0], sizes = [16, 1, 128], strides = [1, 1, 1]} : vector<16x16x128xf32> to vector<16x1x128xf32>
      %290 = vector.extract_strided_slice %288 {offsets = [0, 4, 0], sizes = [1, 1, 128], strides = [1, 1, 1]} : vector<1x16x128xf32> to vector<1x1x128xf32>
      %cst_128 = arith.constant 9.99999996E-13 : f32
      %291 = vector.broadcast %cst_128 : f32 to vector<1x1x128xf32>
      %292 = arith.maximumf %290, %291 : vector<1x1x128xf32>
      %cst_129 = arith.constant 1.000000e+00 : f32
      %293 = vector.broadcast %cst_129 : f32 to vector<1x1x128xf32>
      %294 = arith.divf %293, %292 : vector<1x1x128xf32>
      %295 = vector.extract_strided_slice %8 {offsets = [0, 0], sizes = [1, 16], strides = [1, 1]} : vector<16x16xi32> to vector<1x16xi32>
      %296 = vector.shape_cast %295 : vector<1x16xi32> to vector<1x16x1xi32>
      %c4_i32 = arith.constant 4 : i32
      %297 = vector.broadcast %c4_i32 : i32 to vector<1x16x1xi32>
      %298 = arith.cmpi eq, %296, %297 : vector<1x16x1xi32>
      %299 = vector.extract_strided_slice %7 {offsets = [0, 0], sizes = [16, 1], strides = [1, 1]} : vector<16x16xi32> to vector<16x1xi32>
      %300 = vector.shape_cast %299 : vector<16x1xi32> to vector<16x1x1xi32>
      %c4_i32_130 = arith.constant 4 : i32
      %301 = vector.broadcast %c4_i32_130 : i32 to vector<16x1x1xi32>
      %302 = arith.cmpi eq, %300, %301 : vector<16x1x1xi32>
      %303 = vector.broadcast %294 : vector<1x1x128xf32> to vector<1x16x128xf32>
      %304 = arith.mulf %288, %303 : vector<1x16x128xf32>
      %305 = vector.shape_cast %298 : vector<1x16x1xi1> to vector<1x16x1xi1>
      %306 = vector.broadcast %305 : vector<1x16x1xi1> to vector<1x16x128xi1>
      %307 = vector.shape_cast %294 : vector<1x1x128xf32> to vector<1x1x128xf32>
      %308 = vector.broadcast %307 : vector<1x1x128xf32> to vector<1x16x128xf32>
      %309 = arith.select %306, %308, %304 : vector<1x16x128xi1>, vector<1x16x128xf32>
      %cst_131 = arith.constant 0.000000e+00 : f32
      %310 = vector.shape_cast %298 : vector<1x16x1xi1> to vector<1x16x1xi1>
      %311 = vector.broadcast %310 : vector<1x16x1xi1> to vector<16x16x128xi1>
      %312 = vector.broadcast %cst_131 : f32 to vector<16x16x128xf32>
      %313 = arith.select %311, %312, %287 : vector<16x16x128xi1>, vector<16x16x128xf32>
      %314 = vector.broadcast %289 : vector<16x1x128xf32> to vector<16x16x128xf32>
      %315 = vector.broadcast %309 : vector<1x16x128xf32> to vector<16x16x128xf32>
      %316 = arith.mulf %314, %315 : vector<16x16x128xf32>
      %317 = arith.subf %313, %316 : vector<16x16x128xf32>
      %318 = vector.shape_cast %302 : vector<16x1x1xi1> to vector<16x1x1xi1>
      %319 = vector.broadcast %318 : vector<16x1x1xi1> to vector<16x16x128xi1>
      %320 = vector.shape_cast %309 : vector<1x16x128xf32> to vector<1x16x128xf32>
      %321 = vector.broadcast %320 : vector<1x16x128xf32> to vector<16x16x128xf32>
      %322 = arith.select %319, %321, %317 : vector<16x16x128xi1>, vector<16x16x128xf32>
      %c0_132 = arith.constant 0 : index
      %c0_133 = arith.constant 0 : index
      %c0_134 = arith.constant 0 : index
      %323 = vector.load %arg15[%c0_132, %c0_133, %c0_134] : memref<16x16x128xf32, #tpu.memory_space<vmem>>, vector<16x16x128xf32>
      tpu.vector_store %arg15[%c0_132, %c0_133, %c0_134], %322 {strides = array<i32>} : memref<16x16x128xf32, #tpu.memory_space<vmem>>, vector<16x16x128xf32>,
      %c0_135 = arith.constant 0 : index
      %c0_136 = arith.constant 0 : index
      %c0_137 = arith.constant 0 : index
      %324 = vector.load %arg15[%c0_135, %c0_136, %c0_137] : memref<16x16x128xf32, #tpu.memory_space<vmem>>, vector<16x16x128xf32>
      %325 = vector.extract_strided_slice %324 {offsets = [5, 0, 0], sizes = [1, 16, 128], strides = [1, 1, 1]} : vector<16x16x128xf32> to vector<1x16x128xf32>
      %326 = vector.extract_strided_slice %324 {offsets = [0, 5, 0], sizes = [16, 1, 128], strides = [1, 1, 1]} : vector<16x16x128xf32> to vector<16x1x128xf32>
      %327 = vector.extract_strided_slice %325 {offsets = [0, 5, 0], sizes = [1, 1, 128], strides = [1, 1, 1]} : vector<1x16x128xf32> to vector<1x1x128xf32>
      %cst_138 = arith.constant 9.99999996E-13 : f32
      %328 = vector.broadcast %cst_138 : f32 to vector<1x1x128xf32>
      %329 = arith.maximumf %327, %328 : vector<1x1x128xf32>
      %cst_139 = arith.constant 1.000000e+00 : f32
      %330 = vector.broadcast %cst_139 : f32 to vector<1x1x128xf32>
      %331 = arith.divf %330, %329 : vector<1x1x128xf32>
      %332 = vector.extract_strided_slice %8 {offsets = [0, 0], sizes = [1, 16], strides = [1, 1]} : vector<16x16xi32> to vector<1x16xi32>
      %333 = vector.shape_cast %332 : vector<1x16xi32> to vector<1x16x1xi32>
      %c5_i32 = arith.constant 5 : i32
      %334 = vector.broadcast %c5_i32 : i32 to vector<1x16x1xi32>
      %335 = arith.cmpi eq, %333, %334 : vector<1x16x1xi32>
      %336 = vector.extract_strided_slice %7 {offsets = [0, 0], sizes = [16, 1], strides = [1, 1]} : vector<16x16xi32> to vector<16x1xi32>
      %337 = vector.shape_cast %336 : vector<16x1xi32> to vector<16x1x1xi32>
      %c5_i32_140 = arith.constant 5 : i32
      %338 = vector.broadcast %c5_i32_140 : i32 to vector<16x1x1xi32>
      %339 = arith.cmpi eq, %337, %338 : vector<16x1x1xi32>
      %340 = vector.broadcast %331 : vector<1x1x128xf32> to vector<1x16x128xf32>
      %341 = arith.mulf %325, %340 : vector<1x16x128xf32>
      %342 = vector.shape_cast %335 : vector<1x16x1xi1> to vector<1x16x1xi1>
      %343 = vector.broadcast %342 : vector<1x16x1xi1> to vector<1x16x128xi1>
      %344 = vector.shape_cast %331 : vector<1x1x128xf32> to vector<1x1x128xf32>
      %345 = vector.broadcast %344 : vector<1x1x128xf32> to vector<1x16x128xf32>
      %346 = arith.select %343, %345, %341 : vector<1x16x128xi1>, vector<1x16x128xf32>
      %cst_141 = arith.constant 0.000000e+00 : f32
      %347 = vector.shape_cast %335 : vector<1x16x1xi1> to vector<1x16x1xi1>
      %348 = vector.broadcast %347 : vector<1x16x1xi1> to vector<16x16x128xi1>
      %349 = vector.broadcast %cst_141 : f32 to vector<16x16x128xf32>
      %350 = arith.select %348, %349, %324 : vector<16x16x128xi1>, vector<16x16x128xf32>
      %351 = vector.broadcast %326 : vector<16x1x128xf32> to vector<16x16x128xf32>
      %352 = vector.broadcast %346 : vector<1x16x128xf32> to vector<16x16x128xf32>
      %353 = arith.mulf %351, %352 : vector<16x16x128xf32>
      %354 = arith.subf %350, %353 : vector<16x16x128xf32>
      %355 = vector.shape_cast %339 : vector<16x1x1xi1> to vector<16x1x1xi1>
      %356 = vector.broadcast %355 : vector<16x1x1xi1> to vector<16x16x128xi1>
      %357 = vector.shape_cast %346 : vector<1x16x128xf32> to vector<1x16x128xf32>
      %358 = vector.broadcast %357 : vector<1x16x128xf32> to vector<16x16x128xf32>
      %359 = arith.select %356, %358, %354 : vector<16x16x128xi1>, vector<16x16x128xf32>
      %c0_142 = arith.constant 0 : index
      %c0_143 = arith.constant 0 : index
      %c0_144 = arith.constant 0 : index
      %360 = vector.load %arg15[%c0_142, %c0_143, %c0_144] : memref<16x16x128xf32, #tpu.memory_space<vmem>>, vector<16x16x128xf32>
      tpu.vector_store %arg15[%c0_142, %c0_143, %c0_144], %359 {strides = array<i32>} : memref<16x16x128xf32, #tpu.memory_space<vmem>>, vector<16x16x128xf32>,
      %c0_145 = arith.constant 0 : index
      %c0_146 = arith.constant 0 : index
      %c0_147 = arith.constant 0 : index
      %361 = vector.load %arg15[%c0_145, %c0_146, %c0_147] : memref<16x16x128xf32, #tpu.memory_space<vmem>>, vector<16x16x128xf32>
      %362 = vector.extract_strided_slice %361 {offsets = [6, 0, 0], sizes = [1, 16, 128], strides = [1, 1, 1]} : vector<16x16x128xf32> to vector<1x16x128xf32>
      %363 = vector.extract_strided_slice %361 {offsets = [0, 6, 0], sizes = [16, 1, 128], strides = [1, 1, 1]} : vector<16x16x128xf32> to vector<16x1x128xf32>
      %364 = vector.extract_strided_slice %362 {offsets = [0, 6, 0], sizes = [1, 1, 128], strides = [1, 1, 1]} : vector<1x16x128xf32> to vector<1x1x128xf32>
      %cst_148 = arith.constant 9.99999996E-13 : f32
      %365 = vector.broadcast %cst_148 : f32 to vector<1x1x128xf32>
      %366 = arith.maximumf %364, %365 : vector<1x1x128xf32>
      %cst_149 = arith.constant 1.000000e+00 : f32
      %367 = vector.broadcast %cst_149 : f32 to vector<1x1x128xf32>
      %368 = arith.divf %367, %366 : vector<1x1x128xf32>
      %369 = vector.extract_strided_slice %8 {offsets = [0, 0], sizes = [1, 16], strides = [1, 1]} : vector<16x16xi32> to vector<1x16xi32>
      %370 = vector.shape_cast %369 : vector<1x16xi32> to vector<1x16x1xi32>
      %c6_i32 = arith.constant 6 : i32
      %371 = vector.broadcast %c6_i32 : i32 to vector<1x16x1xi32>
      %372 = arith.cmpi eq, %370, %371 : vector<1x16x1xi32>
      %373 = vector.extract_strided_slice %7 {offsets = [0, 0], sizes = [16, 1], strides = [1, 1]} : vector<16x16xi32> to vector<16x1xi32>
      %374 = vector.shape_cast %373 : vector<16x1xi32> to vector<16x1x1xi32>
      %c6_i32_150 = arith.constant 6 : i32
      %375 = vector.broadcast %c6_i32_150 : i32 to vector<16x1x1xi32>
      %376 = arith.cmpi eq, %374, %375 : vector<16x1x1xi32>
      %377 = vector.broadcast %368 : vector<1x1x128xf32> to vector<1x16x128xf32>
      %378 = arith.mulf %362, %377 : vector<1x16x128xf32>
      %379 = vector.shape_cast %372 : vector<1x16x1xi1> to vector<1x16x1xi1>
      %380 = vector.broadcast %379 : vector<1x16x1xi1> to vector<1x16x128xi1>
      %381 = vector.shape_cast %368 : vector<1x1x128xf32> to vector<1x1x128xf32>
      %382 = vector.broadcast %381 : vector<1x1x128xf32> to vector<1x16x128xf32>
      %383 = arith.select %380, %382, %378 : vector<1x16x128xi1>, vector<1x16x128xf32>
      %cst_151 = arith.constant 0.000000e+00 : f32
      %384 = vector.shape_cast %372 : vector<1x16x1xi1> to vector<1x16x1xi1>
      %385 = vector.broadcast %384 : vector<1x16x1xi1> to vector<16x16x128xi1>
      %386 = vector.broadcast %cst_151 : f32 to vector<16x16x128xf32>
      %387 = arith.select %385, %386, %361 : vector<16x16x128xi1>, vector<16x16x128xf32>
      %388 = vector.broadcast %363 : vector<16x1x128xf32> to vector<16x16x128xf32>
      %389 = vector.broadcast %383 : vector<1x16x128xf32> to vector<16x16x128xf32>
      %390 = arith.mulf %388, %389 : vector<16x16x128xf32>
      %391 = arith.subf %387, %390 : vector<16x16x128xf32>
      %392 = vector.shape_cast %376 : vector<16x1x1xi1> to vector<16x1x1xi1>
      %393 = vector.broadcast %392 : vector<16x1x1xi1> to vector<16x16x128xi1>
      %394 = vector.shape_cast %383 : vector<1x16x128xf32> to vector<1x16x128xf32>
      %395 = vector.broadcast %394 : vector<1x16x128xf32> to vector<16x16x128xf32>
      %396 = arith.select %393, %395, %391 : vector<16x16x128xi1>, vector<16x16x128xf32>
      %c0_152 = arith.constant 0 : index
      %c0_153 = arith.constant 0 : index
      %c0_154 = arith.constant 0 : index
      %397 = vector.load %arg15[%c0_152, %c0_153, %c0_154] : memref<16x16x128xf32, #tpu.memory_space<vmem>>, vector<16x16x128xf32>
      tpu.vector_store %arg15[%c0_152, %c0_153, %c0_154], %396 {strides = array<i32>} : memref<16x16x128xf32, #tpu.memory_space<vmem>>, vector<16x16x128xf32>,
      %c0_155 = arith.constant 0 : index
      %c0_156 = arith.constant 0 : index
      %c0_157 = arith.constant 0 : index
      %398 = vector.load %arg15[%c0_155, %c0_156, %c0_157] : memref<16x16x128xf32, #tpu.memory_space<vmem>>, vector<16x16x128xf32>
      %399 = vector.extract_strided_slice %398 {offsets = [7, 0, 0], sizes = [1, 16, 128], strides = [1, 1, 1]} : vector<16x16x128xf32> to vector<1x16x128xf32>
      %400 = vector.extract_strided_slice %398 {offsets = [0, 7, 0], sizes = [16, 1, 128], strides = [1, 1, 1]} : vector<16x16x128xf32> to vector<16x1x128xf32>
      %401 = vector.extract_strided_slice %399 {offsets = [0, 7, 0], sizes = [1, 1, 128], strides = [1, 1, 1]} : vector<1x16x128xf32> to vector<1x1x128xf32>
      %cst_158 = arith.constant 9.99999996E-13 : f32
      %402 = vector.broadcast %cst_158 : f32 to vector<1x1x128xf32>
      %403 = arith.maximumf %401, %402 : vector<1x1x128xf32>
      %cst_159 = arith.constant 1.000000e+00 : f32
      %404 = vector.broadcast %cst_159 : f32 to vector<1x1x128xf32>
      %405 = arith.divf %404, %403 : vector<1x1x128xf32>
      %406 = vector.extract_strided_slice %8 {offsets = [0, 0], sizes = [1, 16], strides = [1, 1]} : vector<16x16xi32> to vector<1x16xi32>
      %407 = vector.shape_cast %406 : vector<1x16xi32> to vector<1x16x1xi32>
      %c7_i32 = arith.constant 7 : i32
      %408 = vector.broadcast %c7_i32 : i32 to vector<1x16x1xi32>
      %409 = arith.cmpi eq, %407, %408 : vector<1x16x1xi32>
      %410 = vector.extract_strided_slice %7 {offsets = [0, 0], sizes = [16, 1], strides = [1, 1]} : vector<16x16xi32> to vector<16x1xi32>
      %411 = vector.shape_cast %410 : vector<16x1xi32> to vector<16x1x1xi32>
      %c7_i32_160 = arith.constant 7 : i32
      %412 = vector.broadcast %c7_i32_160 : i32 to vector<16x1x1xi32>
      %413 = arith.cmpi eq, %411, %412 : vector<16x1x1xi32>
      %414 = vector.broadcast %405 : vector<1x1x128xf32> to vector<1x16x128xf32>
      %415 = arith.mulf %399, %414 : vector<1x16x128xf32>
      %416 = vector.shape_cast %409 : vector<1x16x1xi1> to vector<1x16x1xi1>
      %417 = vector.broadcast %416 : vector<1x16x1xi1> to vector<1x16x128xi1>
      %418 = vector.shape_cast %405 : vector<1x1x128xf32> to vector<1x1x128xf32>
      %419 = vector.broadcast %418 : vector<1x1x128xf32> to vector<1x16x128xf32>
      %420 = arith.select %417, %419, %415 : vector<1x16x128xi1>, vector<1x16x128xf32>
      %cst_161 = arith.constant 0.000000e+00 : f32
      %421 = vector.shape_cast %409 : vector<1x16x1xi1> to vector<1x16x1xi1>
      %422 = vector.broadcast %421 : vector<1x16x1xi1> to vector<16x16x128xi1>
      %423 = vector.broadcast %cst_161 : f32 to vector<16x16x128xf32>
      %424 = arith.select %422, %423, %398 : vector<16x16x128xi1>, vector<16x16x128xf32>
      %425 = vector.broadcast %400 : vector<16x1x128xf32> to vector<16x16x128xf32>
      %426 = vector.broadcast %420 : vector<1x16x128xf32> to vector<16x16x128xf32>
      %427 = arith.mulf %425, %426 : vector<16x16x128xf32>
      %428 = arith.subf %424, %427 : vector<16x16x128xf32>
      %429 = vector.shape_cast %413 : vector<16x1x1xi1> to vector<16x1x1xi1>
      %430 = vector.broadcast %429 : vector<16x1x1xi1> to vector<16x16x128xi1>
      %431 = vector.shape_cast %420 : vector<1x16x128xf32> to vector<1x16x128xf32>
      %432 = vector.broadcast %431 : vector<1x16x128xf32> to vector<16x16x128xf32>
      %433 = arith.select %430, %432, %428 : vector<16x16x128xi1>, vector<16x16x128xf32>
      %c0_162 = arith.constant 0 : index
      %c0_163 = arith.constant 0 : index
      %c0_164 = arith.constant 0 : index
      %434 = vector.load %arg15[%c0_162, %c0_163, %c0_164] : memref<16x16x128xf32, #tpu.memory_space<vmem>>, vector<16x16x128xf32>
      tpu.vector_store %arg15[%c0_162, %c0_163, %c0_164], %433 {strides = array<i32>} : memref<16x16x128xf32, #tpu.memory_space<vmem>>, vector<16x16x128xf32>,
      %c0_165 = arith.constant 0 : index
      %c0_166 = arith.constant 0 : index
      %c0_167 = arith.constant 0 : index
      %435 = vector.load %arg15[%c0_165, %c0_166, %c0_167] : memref<16x16x128xf32, #tpu.memory_space<vmem>>, vector<16x16x128xf32>
      %436 = vector.extract_strided_slice %435 {offsets = [8, 0, 0], sizes = [1, 16, 128], strides = [1, 1, 1]} : vector<16x16x128xf32> to vector<1x16x128xf32>
      %437 = vector.extract_strided_slice %435 {offsets = [0, 8, 0], sizes = [16, 1, 128], strides = [1, 1, 1]} : vector<16x16x128xf32> to vector<16x1x128xf32>
      %438 = vector.extract_strided_slice %436 {offsets = [0, 8, 0], sizes = [1, 1, 128], strides = [1, 1, 1]} : vector<1x16x128xf32> to vector<1x1x128xf32>
      %cst_168 = arith.constant 9.99999996E-13 : f32
      %439 = vector.broadcast %cst_168 : f32 to vector<1x1x128xf32>
      %440 = arith.maximumf %438, %439 : vector<1x1x128xf32>
      %cst_169 = arith.constant 1.000000e+00 : f32
      %441 = vector.broadcast %cst_169 : f32 to vector<1x1x128xf32>
      %442 = arith.divf %441, %440 : vector<1x1x128xf32>
      %443 = vector.extract_strided_slice %8 {offsets = [0, 0], sizes = [1, 16], strides = [1, 1]} : vector<16x16xi32> to vector<1x16xi32>
      %444 = vector.shape_cast %443 : vector<1x16xi32> to vector<1x16x1xi32>
      %c8_i32 = arith.constant 8 : i32
      %445 = vector.broadcast %c8_i32 : i32 to vector<1x16x1xi32>
      %446 = arith.cmpi eq, %444, %445 : vector<1x16x1xi32>
      %447 = vector.extract_strided_slice %7 {offsets = [0, 0], sizes = [16, 1], strides = [1, 1]} : vector<16x16xi32> to vector<16x1xi32>
      %448 = vector.shape_cast %447 : vector<16x1xi32> to vector<16x1x1xi32>
      %c8_i32_170 = arith.constant 8 : i32
      %449 = vector.broadcast %c8_i32_170 : i32 to vector<16x1x1xi32>
      %450 = arith.cmpi eq, %448, %449 : vector<16x1x1xi32>
      %451 = vector.broadcast %442 : vector<1x1x128xf32> to vector<1x16x128xf32>
      %452 = arith.mulf %436, %451 : vector<1x16x128xf32>
      %453 = vector.shape_cast %446 : vector<1x16x1xi1> to vector<1x16x1xi1>
      %454 = vector.broadcast %453 : vector<1x16x1xi1> to vector<1x16x128xi1>
      %455 = vector.shape_cast %442 : vector<1x1x128xf32> to vector<1x1x128xf32>
      %456 = vector.broadcast %455 : vector<1x1x128xf32> to vector<1x16x128xf32>
      %457 = arith.select %454, %456, %452 : vector<1x16x128xi1>, vector<1x16x128xf32>
      %cst_171 = arith.constant 0.000000e+00 : f32
      %458 = vector.shape_cast %446 : vector<1x16x1xi1> to vector<1x16x1xi1>
      %459 = vector.broadcast %458 : vector<1x16x1xi1> to vector<16x16x128xi1>
      %460 = vector.broadcast %cst_171 : f32 to vector<16x16x128xf32>
      %461 = arith.select %459, %460, %435 : vector<16x16x128xi1>, vector<16x16x128xf32>
      %462 = vector.broadcast %437 : vector<16x1x128xf32> to vector<16x16x128xf32>
      %463 = vector.broadcast %457 : vector<1x16x128xf32> to vector<16x16x128xf32>
      %464 = arith.mulf %462, %463 : vector<16x16x128xf32>
      %465 = arith.subf %461, %464 : vector<16x16x128xf32>
      %466 = vector.shape_cast %450 : vector<16x1x1xi1> to vector<16x1x1xi1>
      %467 = vector.broadcast %466 : vector<16x1x1xi1> to vector<16x16x128xi1>
      %468 = vector.shape_cast %457 : vector<1x16x128xf32> to vector<1x16x128xf32>
      %469 = vector.broadcast %468 : vector<1x16x128xf32> to vector<16x16x128xf32>
      %470 = arith.select %467, %469, %465 : vector<16x16x128xi1>, vector<16x16x128xf32>
      %c0_172 = arith.constant 0 : index
      %c0_173 = arith.constant 0 : index
      %c0_174 = arith.constant 0 : index
      %471 = vector.load %arg15[%c0_172, %c0_173, %c0_174] : memref<16x16x128xf32, #tpu.memory_space<vmem>>, vector<16x16x128xf32>
      tpu.vector_store %arg15[%c0_172, %c0_173, %c0_174], %470 {strides = array<i32>} : memref<16x16x128xf32, #tpu.memory_space<vmem>>, vector<16x16x128xf32>,
      %c0_175 = arith.constant 0 : index
      %c0_176 = arith.constant 0 : index
      %c0_177 = arith.constant 0 : index
      %472 = vector.load %arg15[%c0_175, %c0_176, %c0_177] : memref<16x16x128xf32, #tpu.memory_space<vmem>>, vector<16x16x128xf32>
      %473 = vector.extract_strided_slice %472 {offsets = [9, 0, 0], sizes = [1, 16, 128], strides = [1, 1, 1]} : vector<16x16x128xf32> to vector<1x16x128xf32>
      %474 = vector.extract_strided_slice %472 {offsets = [0, 9, 0], sizes = [16, 1, 128], strides = [1, 1, 1]} : vector<16x16x128xf32> to vector<16x1x128xf32>
      %475 = vector.extract_strided_slice %473 {offsets = [0, 9, 0], sizes = [1, 1, 128], strides = [1, 1, 1]} : vector<1x16x128xf32> to vector<1x1x128xf32>
      %cst_178 = arith.constant 9.99999996E-13 : f32
      %476 = vector.broadcast %cst_178 : f32 to vector<1x1x128xf32>
      %477 = arith.maximumf %475, %476 : vector<1x1x128xf32>
      %cst_179 = arith.constant 1.000000e+00 : f32
      %478 = vector.broadcast %cst_179 : f32 to vector<1x1x128xf32>
      %479 = arith.divf %478, %477 : vector<1x1x128xf32>
      %480 = vector.extract_strided_slice %8 {offsets = [0, 0], sizes = [1, 16], strides = [1, 1]} : vector<16x16xi32> to vector<1x16xi32>
      %481 = vector.shape_cast %480 : vector<1x16xi32> to vector<1x16x1xi32>
      %c9_i32 = arith.constant 9 : i32
      %482 = vector.broadcast %c9_i32 : i32 to vector<1x16x1xi32>
      %483 = arith.cmpi eq, %481, %482 : vector<1x16x1xi32>
      %484 = vector.extract_strided_slice %7 {offsets = [0, 0], sizes = [16, 1], strides = [1, 1]} : vector<16x16xi32> to vector<16x1xi32>
      %485 = vector.shape_cast %484 : vector<16x1xi32> to vector<16x1x1xi32>
      %c9_i32_180 = arith.constant 9 : i32
      %486 = vector.broadcast %c9_i32_180 : i32 to vector<16x1x1xi32>
      %487 = arith.cmpi eq, %485, %486 : vector<16x1x1xi32>
      %488 = vector.broadcast %479 : vector<1x1x128xf32> to vector<1x16x128xf32>
      %489 = arith.mulf %473, %488 : vector<1x16x128xf32>
      %490 = vector.shape_cast %483 : vector<1x16x1xi1> to vector<1x16x1xi1>
      %491 = vector.broadcast %490 : vector<1x16x1xi1> to vector<1x16x128xi1>
      %492 = vector.shape_cast %479 : vector<1x1x128xf32> to vector<1x1x128xf32>
      %493 = vector.broadcast %492 : vector<1x1x128xf32> to vector<1x16x128xf32>
      %494 = arith.select %491, %493, %489 : vector<1x16x128xi1>, vector<1x16x128xf32>
      %cst_181 = arith.constant 0.000000e+00 : f32
      %495 = vector.shape_cast %483 : vector<1x16x1xi1> to vector<1x16x1xi1>
      %496 = vector.broadcast %495 : vector<1x16x1xi1> to vector<16x16x128xi1>
      %497 = vector.broadcast %cst_181 : f32 to vector<16x16x128xf32>
      %498 = arith.select %496, %497, %472 : vector<16x16x128xi1>, vector<16x16x128xf32>
      %499 = vector.broadcast %474 : vector<16x1x128xf32> to vector<16x16x128xf32>
      %500 = vector.broadcast %494 : vector<1x16x128xf32> to vector<16x16x128xf32>
      %501 = arith.mulf %499, %500 : vector<16x16x128xf32>
      %502 = arith.subf %498, %501 : vector<16x16x128xf32>
      %503 = vector.shape_cast %487 : vector<16x1x1xi1> to vector<16x1x1xi1>
      %504 = vector.broadcast %503 : vector<16x1x1xi1> to vector<16x16x128xi1>
      %505 = vector.shape_cast %494 : vector<1x16x128xf32> to vector<1x16x128xf32>
      %506 = vector.broadcast %505 : vector<1x16x128xf32> to vector<16x16x128xf32>
      %507 = arith.select %504, %506, %502 : vector<16x16x128xi1>, vector<16x16x128xf32>
      %c0_182 = arith.constant 0 : index
      %c0_183 = arith.constant 0 : index
      %c0_184 = arith.constant 0 : index
      %508 = vector.load %arg15[%c0_182, %c0_183, %c0_184] : memref<16x16x128xf32, #tpu.memory_space<vmem>>, vector<16x16x128xf32>
      tpu.vector_store %arg15[%c0_182, %c0_183, %c0_184], %507 {strides = array<i32>} : memref<16x16x128xf32, #tpu.memory_space<vmem>>, vector<16x16x128xf32>,
      %c0_185 = arith.constant 0 : index
      %c0_186 = arith.constant 0 : index
      %c0_187 = arith.constant 0 : index
      %509 = vector.load %arg15[%c0_185, %c0_186, %c0_187] : memref<16x16x128xf32, #tpu.memory_space<vmem>>, vector<16x16x128xf32>
      %510 = vector.extract_strided_slice %509 {offsets = [10, 0, 0], sizes = [1, 16, 128], strides = [1, 1, 1]} : vector<16x16x128xf32> to vector<1x16x128xf32>
      %511 = vector.extract_strided_slice %509 {offsets = [0, 10, 0], sizes = [16, 1, 128], strides = [1, 1, 1]} : vector<16x16x128xf32> to vector<16x1x128xf32>
      %512 = vector.extract_strided_slice %510 {offsets = [0, 10, 0], sizes = [1, 1, 128], strides = [1, 1, 1]} : vector<1x16x128xf32> to vector<1x1x128xf32>
      %cst_188 = arith.constant 9.99999996E-13 : f32
      %513 = vector.broadcast %cst_188 : f32 to vector<1x1x128xf32>
      %514 = arith.maximumf %512, %513 : vector<1x1x128xf32>
      %cst_189 = arith.constant 1.000000e+00 : f32
      %515 = vector.broadcast %cst_189 : f32 to vector<1x1x128xf32>
      %516 = arith.divf %515, %514 : vector<1x1x128xf32>
      %517 = vector.extract_strided_slice %8 {offsets = [0, 0], sizes = [1, 16], strides = [1, 1]} : vector<16x16xi32> to vector<1x16xi32>
      %518 = vector.shape_cast %517 : vector<1x16xi32> to vector<1x16x1xi32>
      %c10_i32 = arith.constant 10 : i32
      %519 = vector.broadcast %c10_i32 : i32 to vector<1x16x1xi32>
      %520 = arith.cmpi eq, %518, %519 : vector<1x16x1xi32>
      %521 = vector.extract_strided_slice %7 {offsets = [0, 0], sizes = [16, 1], strides = [1, 1]} : vector<16x16xi32> to vector<16x1xi32>
      %522 = vector.shape_cast %521 : vector<16x1xi32> to vector<16x1x1xi32>
      %c10_i32_190 = arith.constant 10 : i32
      %523 = vector.broadcast %c10_i32_190 : i32 to vector<16x1x1xi32>
      %524 = arith.cmpi eq, %522, %523 : vector<16x1x1xi32>
      %525 = vector.broadcast %516 : vector<1x1x128xf32> to vector<1x16x128xf32>
      %526 = arith.mulf %510, %525 : vector<1x16x128xf32>
      %527 = vector.shape_cast %520 : vector<1x16x1xi1> to vector<1x16x1xi1>
      %528 = vector.broadcast %527 : vector<1x16x1xi1> to vector<1x16x128xi1>
      %529 = vector.shape_cast %516 : vector<1x1x128xf32> to vector<1x1x128xf32>
      %530 = vector.broadcast %529 : vector<1x1x128xf32> to vector<1x16x128xf32>
      %531 = arith.select %528, %530, %526 : vector<1x16x128xi1>, vector<1x16x128xf32>
      %cst_191 = arith.constant 0.000000e+00 : f32
      %532 = vector.shape_cast %520 : vector<1x16x1xi1> to vector<1x16x1xi1>
      %533 = vector.broadcast %532 : vector<1x16x1xi1> to vector<16x16x128xi1>
      %534 = vector.broadcast %cst_191 : f32 to vector<16x16x128xf32>
      %535 = arith.select %533, %534, %509 : vector<16x16x128xi1>, vector<16x16x128xf32>
      %536 = vector.broadcast %511 : vector<16x1x128xf32> to vector<16x16x128xf32>
      %537 = vector.broadcast %531 : vector<1x16x128xf32> to vector<16x16x128xf32>
      %538 = arith.mulf %536, %537 : vector<16x16x128xf32>
      %539 = arith.subf %535, %538 : vector<16x16x128xf32>
      %540 = vector.shape_cast %524 : vector<16x1x1xi1> to vector<16x1x1xi1>
      %541 = vector.broadcast %540 : vector<16x1x1xi1> to vector<16x16x128xi1>
      %542 = vector.shape_cast %531 : vector<1x16x128xf32> to vector<1x16x128xf32>
      %543 = vector.broadcast %542 : vector<1x16x128xf32> to vector<16x16x128xf32>
      %544 = arith.select %541, %543, %539 : vector<16x16x128xi1>, vector<16x16x128xf32>
      %c0_192 = arith.constant 0 : index
      %c0_193 = arith.constant 0 : index
      %c0_194 = arith.constant 0 : index
      %545 = vector.load %arg15[%c0_192, %c0_193, %c0_194] : memref<16x16x128xf32, #tpu.memory_space<vmem>>, vector<16x16x128xf32>
      tpu.vector_store %arg15[%c0_192, %c0_193, %c0_194], %544 {strides = array<i32>} : memref<16x16x128xf32, #tpu.memory_space<vmem>>, vector<16x16x128xf32>,
      %c0_195 = arith.constant 0 : index
      %c0_196 = arith.constant 0 : index
      %c0_197 = arith.constant 0 : index
      %546 = vector.load %arg15[%c0_195, %c0_196, %c0_197] : memref<16x16x128xf32, #tpu.memory_space<vmem>>, vector<16x16x128xf32>
      %547 = vector.extract_strided_slice %546 {offsets = [11, 0, 0], sizes = [1, 16, 128], strides = [1, 1, 1]} : vector<16x16x128xf32> to vector<1x16x128xf32>
      %548 = vector.extract_strided_slice %546 {offsets = [0, 11, 0], sizes = [16, 1, 128], strides = [1, 1, 1]} : vector<16x16x128xf32> to vector<16x1x128xf32>
      %549 = vector.extract_strided_slice %547 {offsets = [0, 11, 0], sizes = [1, 1, 128], strides = [1, 1, 1]} : vector<1x16x128xf32> to vector<1x1x128xf32>
      %cst_198 = arith.constant 9.99999996E-13 : f32
      %550 = vector.broadcast %cst_198 : f32 to vector<1x1x128xf32>
      %551 = arith.maximumf %549, %550 : vector<1x1x128xf32>
      %cst_199 = arith.constant 1.000000e+00 : f32
      %552 = vector.broadcast %cst_199 : f32 to vector<1x1x128xf32>
      %553 = arith.divf %552, %551 : vector<1x1x128xf32>
      %554 = vector.extract_strided_slice %8 {offsets = [0, 0], sizes = [1, 16], strides = [1, 1]} : vector<16x16xi32> to vector<1x16xi32>
      %555 = vector.shape_cast %554 : vector<1x16xi32> to vector<1x16x1xi32>
      %c11_i32 = arith.constant 11 : i32
      %556 = vector.broadcast %c11_i32 : i32 to vector<1x16x1xi32>
      %557 = arith.cmpi eq, %555, %556 : vector<1x16x1xi32>
      %558 = vector.extract_strided_slice %7 {offsets = [0, 0], sizes = [16, 1], strides = [1, 1]} : vector<16x16xi32> to vector<16x1xi32>
      %559 = vector.shape_cast %558 : vector<16x1xi32> to vector<16x1x1xi32>
      %c11_i32_200 = arith.constant 11 : i32
      %560 = vector.broadcast %c11_i32_200 : i32 to vector<16x1x1xi32>
      %561 = arith.cmpi eq, %559, %560 : vector<16x1x1xi32>
      %562 = vector.broadcast %553 : vector<1x1x128xf32> to vector<1x16x128xf32>
      %563 = arith.mulf %547, %562 : vector<1x16x128xf32>
      %564 = vector.shape_cast %557 : vector<1x16x1xi1> to vector<1x16x1xi1>
      %565 = vector.broadcast %564 : vector<1x16x1xi1> to vector<1x16x128xi1>
      %566 = vector.shape_cast %553 : vector<1x1x128xf32> to vector<1x1x128xf32>
      %567 = vector.broadcast %566 : vector<1x1x128xf32> to vector<1x16x128xf32>
      %568 = arith.select %565, %567, %563 : vector<1x16x128xi1>, vector<1x16x128xf32>
      %cst_201 = arith.constant 0.000000e+00 : f32
      %569 = vector.shape_cast %557 : vector<1x16x1xi1> to vector<1x16x1xi1>
      %570 = vector.broadcast %569 : vector<1x16x1xi1> to vector<16x16x128xi1>
      %571 = vector.broadcast %cst_201 : f32 to vector<16x16x128xf32>
      %572 = arith.select %570, %571, %546 : vector<16x16x128xi1>, vector<16x16x128xf32>
      %573 = vector.broadcast %548 : vector<16x1x128xf32> to vector<16x16x128xf32>
      %574 = vector.broadcast %568 : vector<1x16x128xf32> to vector<16x16x128xf32>
      %575 = arith.mulf %573, %574 : vector<16x16x128xf32>
      %576 = arith.subf %572, %575 : vector<16x16x128xf32>
      %577 = vector.shape_cast %561 : vector<16x1x1xi1> to vector<16x1x1xi1>
      %578 = vector.broadcast %577 : vector<16x1x1xi1> to vector<16x16x128xi1>
      %579 = vector.shape_cast %568 : vector<1x16x128xf32> to vector<1x16x128xf32>
      %580 = vector.broadcast %579 : vector<1x16x128xf32> to vector<16x16x128xf32>
      %581 = arith.select %578, %580, %576 : vector<16x16x128xi1>, vector<16x16x128xf32>
      %c0_202 = arith.constant 0 : index
      %c0_203 = arith.constant 0 : index
      %c0_204 = arith.constant 0 : index
      %582 = vector.load %arg15[%c0_202, %c0_203, %c0_204] : memref<16x16x128xf32, #tpu.memory_space<vmem>>, vector<16x16x128xf32>
      tpu.vector_store %arg15[%c0_202, %c0_203, %c0_204], %581 {strides = array<i32>} : memref<16x16x128xf32, #tpu.memory_space<vmem>>, vector<16x16x128xf32>,
      %c0_205 = arith.constant 0 : index
      %c0_206 = arith.constant 0 : index
      %c0_207 = arith.constant 0 : index
      %583 = vector.load %arg15[%c0_205, %c0_206, %c0_207] : memref<16x16x128xf32, #tpu.memory_space<vmem>>, vector<16x16x128xf32>
      %584 = vector.extract_strided_slice %583 {offsets = [12, 0, 0], sizes = [1, 16, 128], strides = [1, 1, 1]} : vector<16x16x128xf32> to vector<1x16x128xf32>
      %585 = vector.extract_strided_slice %583 {offsets = [0, 12, 0], sizes = [16, 1, 128], strides = [1, 1, 1]} : vector<16x16x128xf32> to vector<16x1x128xf32>
      %586 = vector.extract_strided_slice %584 {offsets = [0, 12, 0], sizes = [1, 1, 128], strides = [1, 1, 1]} : vector<1x16x128xf32> to vector<1x1x128xf32>
      %cst_208 = arith.constant 9.99999996E-13 : f32
      %587 = vector.broadcast %cst_208 : f32 to vector<1x1x128xf32>
      %588 = arith.maximumf %586, %587 : vector<1x1x128xf32>
      %cst_209 = arith.constant 1.000000e+00 : f32
      %589 = vector.broadcast %cst_209 : f32 to vector<1x1x128xf32>
      %590 = arith.divf %589, %588 : vector<1x1x128xf32>
      %591 = vector.extract_strided_slice %8 {offsets = [0, 0], sizes = [1, 16], strides = [1, 1]} : vector<16x16xi32> to vector<1x16xi32>
      %592 = vector.shape_cast %591 : vector<1x16xi32> to vector<1x16x1xi32>
      %c12_i32 = arith.constant 12 : i32
      %593 = vector.broadcast %c12_i32 : i32 to vector<1x16x1xi32>
      %594 = arith.cmpi eq, %592, %593 : vector<1x16x1xi32>
      %595 = vector.extract_strided_slice %7 {offsets = [0, 0], sizes = [16, 1], strides = [1, 1]} : vector<16x16xi32> to vector<16x1xi32>
      %596 = vector.shape_cast %595 : vector<16x1xi32> to vector<16x1x1xi32>
      %c12_i32_210 = arith.constant 12 : i32
      %597 = vector.broadcast %c12_i32_210 : i32 to vector<16x1x1xi32>
      %598 = arith.cmpi eq, %596, %597 : vector<16x1x1xi32>
      %599 = vector.broadcast %590 : vector<1x1x128xf32> to vector<1x16x128xf32>
      %600 = arith.mulf %584, %599 : vector<1x16x128xf32>
      %601 = vector.shape_cast %594 : vector<1x16x1xi1> to vector<1x16x1xi1>
      %602 = vector.broadcast %601 : vector<1x16x1xi1> to vector<1x16x128xi1>
      %603 = vector.shape_cast %590 : vector<1x1x128xf32> to vector<1x1x128xf32>
      %604 = vector.broadcast %603 : vector<1x1x128xf32> to vector<1x16x128xf32>
      %605 = arith.select %602, %604, %600 : vector<1x16x128xi1>, vector<1x16x128xf32>
      %cst_211 = arith.constant 0.000000e+00 : f32
      %606 = vector.shape_cast %594 : vector<1x16x1xi1> to vector<1x16x1xi1>
      %607 = vector.broadcast %606 : vector<1x16x1xi1> to vector<16x16x128xi1>
      %608 = vector.broadcast %cst_211 : f32 to vector<16x16x128xf32>
      %609 = arith.select %607, %608, %583 : vector<16x16x128xi1>, vector<16x16x128xf32>
      %610 = vector.broadcast %585 : vector<16x1x128xf32> to vector<16x16x128xf32>
      %611 = vector.broadcast %605 : vector<1x16x128xf32> to vector<16x16x128xf32>
      %612 = arith.mulf %610, %611 : vector<16x16x128xf32>
      %613 = arith.subf %609, %612 : vector<16x16x128xf32>
      %614 = vector.shape_cast %598 : vector<16x1x1xi1> to vector<16x1x1xi1>
      %615 = vector.broadcast %614 : vector<16x1x1xi1> to vector<16x16x128xi1>
      %616 = vector.shape_cast %605 : vector<1x16x128xf32> to vector<1x16x128xf32>
      %617 = vector.broadcast %616 : vector<1x16x128xf32> to vector<16x16x128xf32>
      %618 = arith.select %615, %617, %613 : vector<16x16x128xi1>, vector<16x16x128xf32>
      %c0_212 = arith.constant 0 : index
      %c0_213 = arith.constant 0 : index
      %c0_214 = arith.constant 0 : index
      %619 = vector.load %arg15[%c0_212, %c0_213, %c0_214] : memref<16x16x128xf32, #tpu.memory_space<vmem>>, vector<16x16x128xf32>
      tpu.vector_store %arg15[%c0_212, %c0_213, %c0_214], %618 {strides = array<i32>} : memref<16x16x128xf32, #tpu.memory_space<vmem>>, vector<16x16x128xf32>,
      %c0_215 = arith.constant 0 : index
      %c0_216 = arith.constant 0 : index
      %c0_217 = arith.constant 0 : index
      %620 = vector.load %arg15[%c0_215, %c0_216, %c0_217] : memref<16x16x128xf32, #tpu.memory_space<vmem>>, vector<16x16x128xf32>
      %621 = vector.extract_strided_slice %620 {offsets = [13, 0, 0], sizes = [1, 16, 128], strides = [1, 1, 1]} : vector<16x16x128xf32> to vector<1x16x128xf32>
      %622 = vector.extract_strided_slice %620 {offsets = [0, 13, 0], sizes = [16, 1, 128], strides = [1, 1, 1]} : vector<16x16x128xf32> to vector<16x1x128xf32>
      %623 = vector.extract_strided_slice %621 {offsets = [0, 13, 0], sizes = [1, 1, 128], strides = [1, 1, 1]} : vector<1x16x128xf32> to vector<1x1x128xf32>
      %cst_218 = arith.constant 9.99999996E-13 : f32
      %624 = vector.broadcast %cst_218 : f32 to vector<1x1x128xf32>
      %625 = arith.maximumf %623, %624 : vector<1x1x128xf32>
      %cst_219 = arith.constant 1.000000e+00 : f32
      %626 = vector.broadcast %cst_219 : f32 to vector<1x1x128xf32>
      %627 = arith.divf %626, %625 : vector<1x1x128xf32>
      %628 = vector.extract_strided_slice %8 {offsets = [0, 0], sizes = [1, 16], strides = [1, 1]} : vector<16x16xi32> to vector<1x16xi32>
      %629 = vector.shape_cast %628 : vector<1x16xi32> to vector<1x16x1xi32>
      %c13_i32 = arith.constant 13 : i32
      %630 = vector.broadcast %c13_i32 : i32 to vector<1x16x1xi32>
      %631 = arith.cmpi eq, %629, %630 : vector<1x16x1xi32>
      %632 = vector.extract_strided_slice %7 {offsets = [0, 0], sizes = [16, 1], strides = [1, 1]} : vector<16x16xi32> to vector<16x1xi32>
      %633 = vector.shape_cast %632 : vector<16x1xi32> to vector<16x1x1xi32>
      %c13_i32_220 = arith.constant 13 : i32
      %634 = vector.broadcast %c13_i32_220 : i32 to vector<16x1x1xi32>
      %635 = arith.cmpi eq, %633, %634 : vector<16x1x1xi32>
      %636 = vector.broadcast %627 : vector<1x1x128xf32> to vector<1x16x128xf32>
      %637 = arith.mulf %621, %636 : vector<1x16x128xf32>
      %638 = vector.shape_cast %631 : vector<1x16x1xi1> to vector<1x16x1xi1>
      %639 = vector.broadcast %638 : vector<1x16x1xi1> to vector<1x16x128xi1>
      %640 = vector.shape_cast %627 : vector<1x1x128xf32> to vector<1x1x128xf32>
      %641 = vector.broadcast %640 : vector<1x1x128xf32> to vector<1x16x128xf32>
      %642 = arith.select %639, %641, %637 : vector<1x16x128xi1>, vector<1x16x128xf32>
      %cst_221 = arith.constant 0.000000e+00 : f32
      %643 = vector.shape_cast %631 : vector<1x16x1xi1> to vector<1x16x1xi1>
      %644 = vector.broadcast %643 : vector<1x16x1xi1> to vector<16x16x128xi1>
      %645 = vector.broadcast %cst_221 : f32 to vector<16x16x128xf32>
      %646 = arith.select %644, %645, %620 : vector<16x16x128xi1>, vector<16x16x128xf32>
      %647 = vector.broadcast %622 : vector<16x1x128xf32> to vector<16x16x128xf32>
      %648 = vector.broadcast %642 : vector<1x16x128xf32> to vector<16x16x128xf32>
      %649 = arith.mulf %647, %648 : vector<16x16x128xf32>
      %650 = arith.subf %646, %649 : vector<16x16x128xf32>
      %651 = vector.shape_cast %635 : vector<16x1x1xi1> to vector<16x1x1xi1>
      %652 = vector.broadcast %651 : vector<16x1x1xi1> to vector<16x16x128xi1>
      %653 = vector.shape_cast %642 : vector<1x16x128xf32> to vector<1x16x128xf32>
      %654 = vector.broadcast %653 : vector<1x16x128xf32> to vector<16x16x128xf32>
      %655 = arith.select %652, %654, %650 : vector<16x16x128xi1>, vector<16x16x128xf32>
      %c0_222 = arith.constant 0 : index
      %c0_223 = arith.constant 0 : index
      %c0_224 = arith.constant 0 : index
      %656 = vector.load %arg15[%c0_222, %c0_223, %c0_224] : memref<16x16x128xf32, #tpu.memory_space<vmem>>, vector<16x16x128xf32>
      tpu.vector_store %arg15[%c0_222, %c0_223, %c0_224], %655 {strides = array<i32>} : memref<16x16x128xf32, #tpu.memory_space<vmem>>, vector<16x16x128xf32>,
      %c0_225 = arith.constant 0 : index
      %c0_226 = arith.constant 0 : index
      %c0_227 = arith.constant 0 : index
      %657 = vector.load %arg15[%c0_225, %c0_226, %c0_227] : memref<16x16x128xf32, #tpu.memory_space<vmem>>, vector<16x16x128xf32>
      %658 = vector.extract_strided_slice %657 {offsets = [14, 0, 0], sizes = [1, 16, 128], strides = [1, 1, 1]} : vector<16x16x128xf32> to vector<1x16x128xf32>
      %659 = vector.extract_strided_slice %657 {offsets = [0, 14, 0], sizes = [16, 1, 128], strides = [1, 1, 1]} : vector<16x16x128xf32> to vector<16x1x128xf32>
      %660 = vector.extract_strided_slice %658 {offsets = [0, 14, 0], sizes = [1, 1, 128], strides = [1, 1, 1]} : vector<1x16x128xf32> to vector<1x1x128xf32>
      %cst_228 = arith.constant 9.99999996E-13 : f32
      %661 = vector.broadcast %cst_228 : f32 to vector<1x1x128xf32>
      %662 = arith.maximumf %660, %661 : vector<1x1x128xf32>
      %cst_229 = arith.constant 1.000000e+00 : f32
      %663 = vector.broadcast %cst_229 : f32 to vector<1x1x128xf32>
      %664 = arith.divf %663, %662 : vector<1x1x128xf32>
      %665 = vector.extract_strided_slice %8 {offsets = [0, 0], sizes = [1, 16], strides = [1, 1]} : vector<16x16xi32> to vector<1x16xi32>
      %666 = vector.shape_cast %665 : vector<1x16xi32> to vector<1x16x1xi32>
      %c14_i32 = arith.constant 14 : i32
      %667 = vector.broadcast %c14_i32 : i32 to vector<1x16x1xi32>
      %668 = arith.cmpi eq, %666, %667 : vector<1x16x1xi32>
      %669 = vector.extract_strided_slice %7 {offsets = [0, 0], sizes = [16, 1], strides = [1, 1]} : vector<16x16xi32> to vector<16x1xi32>
      %670 = vector.shape_cast %669 : vector<16x1xi32> to vector<16x1x1xi32>
      %c14_i32_230 = arith.constant 14 : i32
      %671 = vector.broadcast %c14_i32_230 : i32 to vector<16x1x1xi32>
      %672 = arith.cmpi eq, %670, %671 : vector<16x1x1xi32>
      %673 = vector.broadcast %664 : vector<1x1x128xf32> to vector<1x16x128xf32>
      %674 = arith.mulf %658, %673 : vector<1x16x128xf32>
      %675 = vector.shape_cast %668 : vector<1x16x1xi1> to vector<1x16x1xi1>
      %676 = vector.broadcast %675 : vector<1x16x1xi1> to vector<1x16x128xi1>
      %677 = vector.shape_cast %664 : vector<1x1x128xf32> to vector<1x1x128xf32>
      %678 = vector.broadcast %677 : vector<1x1x128xf32> to vector<1x16x128xf32>
      %679 = arith.select %676, %678, %674 : vector<1x16x128xi1>, vector<1x16x128xf32>
      %cst_231 = arith.constant 0.000000e+00 : f32
      %680 = vector.shape_cast %668 : vector<1x16x1xi1> to vector<1x16x1xi1>
      %681 = vector.broadcast %680 : vector<1x16x1xi1> to vector<16x16x128xi1>
      %682 = vector.broadcast %cst_231 : f32 to vector<16x16x128xf32>
      %683 = arith.select %681, %682, %657 : vector<16x16x128xi1>, vector<16x16x128xf32>
      %684 = vector.broadcast %659 : vector<16x1x128xf32> to vector<16x16x128xf32>
      %685 = vector.broadcast %679 : vector<1x16x128xf32> to vector<16x16x128xf32>
      %686 = arith.mulf %684, %685 : vector<16x16x128xf32>
      %687 = arith.subf %683, %686 : vector<16x16x128xf32>
      %688 = vector.shape_cast %672 : vector<16x1x1xi1> to vector<16x1x1xi1>
      %689 = vector.broadcast %688 : vector<16x1x1xi1> to vector<16x16x128xi1>
      %690 = vector.shape_cast %679 : vector<1x16x128xf32> to vector<1x16x128xf32>
      %691 = vector.broadcast %690 : vector<1x16x128xf32> to vector<16x16x128xf32>
      %692 = arith.select %689, %691, %687 : vector<16x16x128xi1>, vector<16x16x128xf32>
      %c0_232 = arith.constant 0 : index
      %c0_233 = arith.constant 0 : index
      %c0_234 = arith.constant 0 : index
      %693 = vector.load %arg15[%c0_232, %c0_233, %c0_234] : memref<16x16x128xf32, #tpu.memory_space<vmem>>, vector<16x16x128xf32>
      tpu.vector_store %arg15[%c0_232, %c0_233, %c0_234], %692 {strides = array<i32>} : memref<16x16x128xf32, #tpu.memory_space<vmem>>, vector<16x16x128xf32>,
      %c0_235 = arith.constant 0 : index
      %c0_236 = arith.constant 0 : index
      %c0_237 = arith.constant 0 : index
      %694 = vector.load %arg15[%c0_235, %c0_236, %c0_237] : memref<16x16x128xf32, #tpu.memory_space<vmem>>, vector<16x16x128xf32>
      %695 = vector.extract_strided_slice %694 {offsets = [15, 0, 0], sizes = [1, 16, 128], strides = [1, 1, 1]} : vector<16x16x128xf32> to vector<1x16x128xf32>
      %696 = vector.extract_strided_slice %694 {offsets = [0, 15, 0], sizes = [16, 1, 128], strides = [1, 1, 1]} : vector<16x16x128xf32> to vector<16x1x128xf32>
      %697 = vector.extract_strided_slice %695 {offsets = [0, 15, 0], sizes = [1, 1, 128], strides = [1, 1, 1]} : vector<1x16x128xf32> to vector<1x1x128xf32>
      %cst_238 = arith.constant 9.99999996E-13 : f32
      %698 = vector.broadcast %cst_238 : f32 to vector<1x1x128xf32>
      %699 = arith.maximumf %697, %698 : vector<1x1x128xf32>
      %cst_239 = arith.constant 1.000000e+00 : f32
      %700 = vector.broadcast %cst_239 : f32 to vector<1x1x128xf32>
      %701 = arith.divf %700, %699 : vector<1x1x128xf32>
      %702 = vector.extract_strided_slice %8 {offsets = [0, 0], sizes = [1, 16], strides = [1, 1]} : vector<16x16xi32> to vector<1x16xi32>
      %703 = vector.shape_cast %702 : vector<1x16xi32> to vector<1x16x1xi32>
      %c15_i32 = arith.constant 15 : i32
      %704 = vector.broadcast %c15_i32 : i32 to vector<1x16x1xi32>
      %705 = arith.cmpi eq, %703, %704 : vector<1x16x1xi32>
      %706 = vector.extract_strided_slice %7 {offsets = [0, 0], sizes = [16, 1], strides = [1, 1]} : vector<16x16xi32> to vector<16x1xi32>
      %707 = vector.shape_cast %706 : vector<16x1xi32> to vector<16x1x1xi32>
      %c15_i32_240 = arith.constant 15 : i32
      %708 = vector.broadcast %c15_i32_240 : i32 to vector<16x1x1xi32>
      %709 = arith.cmpi eq, %707, %708 : vector<16x1x1xi32>
      %710 = vector.broadcast %701 : vector<1x1x128xf32> to vector<1x16x128xf32>
      %711 = arith.mulf %695, %710 : vector<1x16x128xf32>
      %712 = vector.shape_cast %705 : vector<1x16x1xi1> to vector<1x16x1xi1>
      %713 = vector.broadcast %712 : vector<1x16x1xi1> to vector<1x16x128xi1>
      %714 = vector.shape_cast %701 : vector<1x1x128xf32> to vector<1x1x128xf32>
      %715 = vector.broadcast %714 : vector<1x1x128xf32> to vector<1x16x128xf32>
      %716 = arith.select %713, %715, %711 : vector<1x16x128xi1>, vector<1x16x128xf32>
      %cst_241 = arith.constant 0.000000e+00 : f32
      %717 = vector.shape_cast %705 : vector<1x16x1xi1> to vector<1x16x1xi1>
      %718 = vector.broadcast %717 : vector<1x16x1xi1> to vector<16x16x128xi1>
      %719 = vector.broadcast %cst_241 : f32 to vector<16x16x128xf32>
      %720 = arith.select %718, %719, %694 : vector<16x16x128xi1>, vector<16x16x128xf32>
      %721 = vector.broadcast %696 : vector<16x1x128xf32> to vector<16x16x128xf32>
      %722 = vector.broadcast %716 : vector<1x16x128xf32> to vector<16x16x128xf32>
      %723 = arith.mulf %721, %722 : vector<16x16x128xf32>
      %724 = arith.subf %720, %723 : vector<16x16x128xf32>
      %725 = vector.shape_cast %709 : vector<16x1x1xi1> to vector<16x1x1xi1>
      %726 = vector.broadcast %725 : vector<16x1x1xi1> to vector<16x16x128xi1>
      %727 = vector.shape_cast %716 : vector<1x16x128xf32> to vector<1x16x128xf32>
      %728 = vector.broadcast %727 : vector<1x16x128xf32> to vector<16x16x128xf32>
      %729 = arith.select %726, %728, %724 : vector<16x16x128xi1>, vector<16x16x128xf32>
      %c0_242 = arith.constant 0 : index
      %c0_243 = arith.constant 0 : index
      %c0_244 = arith.constant 0 : index
      %730 = vector.load %arg15[%c0_242, %c0_243, %c0_244] : memref<16x16x128xf32, #tpu.memory_space<vmem>>, vector<16x16x128xf32>
      tpu.vector_store %arg15[%c0_242, %c0_243, %c0_244], %729 {strides = array<i32>} : memref<16x16x128xf32, #tpu.memory_space<vmem>>, vector<16x16x128xf32>,
      %731 = arith.mulf %130, %100 : vector<16x128xf32>
      %cst_245 = arith.constant dense<0.000000e+00> : vector<32x128xf32>
      %732 = tpu.matmul %2, %731, %cst_245 {dimension_numbers = #tpu.dot_dimension_numbers<[1], [0], [0], [1], [0, 0, 1, 1], [], []>} : vector<32x16xf32>, vector<16x128xf32>, vector<32x128xf32> -> vector<32x128xf32>
      %733 = arith.addf %94, %732 : vector<32x128xf32>
      %cst_246 = arith.constant 0.000000e+00 : f32
      %734 = vector.broadcast %cst_246 : f32 to vector<32x128xf32>
      %735 = arith.subf %734, %733 : vector<32x128xf32>
      %cst_247 = arith.constant dense<0.000000e+00> : vector<48x128xf32>
      %736 = tpu.matmul %1, %735, %cst_247 {dimension_numbers = #tpu.dot_dimension_numbers<[1], [0], [0], [1], [0, 0, 1, 1], [], []>} : vector<48x32xf32>, vector<32x128xf32>, vector<48x128xf32> -> vector<48x128xf32>
      %737 = vector.extract_strided_slice %736 {offsets = [32, 0], sizes = [16, 128], strides = [1, 1]} : vector<48x128xf32> to vector<16x128xf32>
      %c0_248 = arith.constant 0 : index
      %c0_249 = arith.constant 0 : index
      %c0_250 = arith.constant 0 : index
      %738 = vector.load %arg15[%c0_248, %c0_249, %c0_250] : memref<16x16x128xf32, #tpu.memory_space<vmem>>, vector<16x16x128xf32>
      %739 = vector.shape_cast %737 : vector<16x128xf32> to vector<1x16x128xf32>
      %740 = vector.broadcast %739 : vector<1x16x128xf32> to vector<16x16x128xf32>
      %741 = arith.mulf %738, %740 : vector<16x16x128xf32>
      %cst_251 = arith.constant dense<0.000000e+00> : vector<16x128xf32>
      %742 = vector.multi_reduction <add>, %741, %cst_251 [1] : vector<16x16x128xf32> to vector<16x128xf32>
      %cst_252 = arith.constant dense<0.000000e+00> : vector<16x128xf32>
      %743 = tpu.matmul %4, %742, %cst_252 {dimension_numbers = #tpu.dot_dimension_numbers<[1], [0], [0], [1], [0, 0, 1, 1], [], []>} : vector<16x16xf32>, vector<16x128xf32>, vector<16x128xf32> -> vector<16x128xf32>
      %744 = arith.subf %737, %743 : vector<16x128xf32>
      %cst_253 = arith.constant 0.000000e+00 : f32
      %745 = vector.broadcast %cst_253 : f32 to vector<16x128xf32>
      %746 = arith.subf %745, %100 : vector<16x128xf32>
      %747 = arith.subf %746, %744 : vector<16x128xf32>
      %cst_254 = arith.constant 0.000000e+00 : f32
      %748 = vector.broadcast %cst_254 : f32 to vector<16x128xf32>
      %749 = arith.subf %748, %91 : vector<16x128xf32>
      %750 = arith.mulf %130, %747 : vector<16x128xf32>
      %751 = arith.subf %749, %750 : vector<16x128xf32>
      %cst_255 = arith.constant 0.000000e+00 : f32
      %752 = vector.broadcast %cst_255 : f32 to vector<16x128xf32>
      %753 = arith.cmpf olt, %747, %752 : vector<16x128xf32>
      %cst_256 = arith.constant -1.000000e+00 : f32
      %754 = vector.broadcast %cst_256 : f32 to vector<16x128xf32>
      %755 = arith.select %753, %747, %754 : vector<16x128xi1>, vector<16x128xf32>
      %cst_257 = arith.constant 0.000000e+00 : f32
      %756 = vector.broadcast %cst_257 : f32 to vector<16x128xf32>
      %757 = arith.cmpf olt, %747, %756 : vector<16x128xf32>
      %cst_258 = arith.constant 0.000000e+00 : f32
      %758 = vector.broadcast %cst_258 : f32 to vector<16x128xf32>
      %759 = arith.subf %758, %90 : vector<16x128xf32>
      %760 = arith.divf %759, %755 : vector<16x128xf32>
      %761 = vector.broadcast %cst_38 : f32 to vector<16x128xf32>
      %762 = arith.select %757, %760, %761 : vector<16x128xi1>, vector<16x128xf32>
      %cst_259 = arith.constant dense<0x7F800000> : vector<128xf32>
      %763 = vector.multi_reduction <minimumf>, %762, %cst_259 [0] : vector<16x128xf32> to vector<128xf32>
      %764 = vector.shape_cast %763 : vector<128xf32> to vector<1x128xf32>
      %cst_260 = arith.constant 0.000000e+00 : f32
      %765 = vector.broadcast %cst_260 : f32 to vector<16x128xf32>
      %766 = arith.cmpf olt, %751, %765 : vector<16x128xf32>
      %cst_261 = arith.constant -1.000000e+00 : f32
      %767 = vector.broadcast %cst_261 : f32 to vector<16x128xf32>
      %768 = arith.select %766, %751, %767 : vector<16x128xi1>, vector<16x128xf32>
      %cst_262 = arith.constant 0.000000e+00 : f32
      %769 = vector.broadcast %cst_262 : f32 to vector<16x128xf32>
      %770 = arith.cmpf olt, %751, %769 : vector<16x128xf32>
      %cst_263 = arith.constant 0.000000e+00 : f32
      %771 = vector.broadcast %cst_263 : f32 to vector<16x128xf32>
      %772 = arith.subf %771, %91 : vector<16x128xf32>
      %773 = arith.divf %772, %768 : vector<16x128xf32>
      %774 = vector.broadcast %cst_38 : f32 to vector<16x128xf32>
      %775 = arith.select %770, %773, %774 : vector<16x128xi1>, vector<16x128xf32>
      %cst_264 = arith.constant dense<0x7F800000> : vector<128xf32>
      %776 = vector.multi_reduction <minimumf>, %775, %cst_264 [0] : vector<16x128xf32> to vector<128xf32>
      %777 = vector.shape_cast %776 : vector<128xf32> to vector<1x128xf32>
      %778 = arith.minimumf %764, %777 : vector<1x128xf32>
      %cst_265 = arith.constant 1.000000e+00 : f32
      %779 = vector.broadcast %cst_265 : f32 to vector<1x128xf32>
      %780 = arith.minimumf %778, %779 : vector<1x128xf32>
      %781 = vector.broadcast %780 : vector<1x128xf32> to vector<16x128xf32>
      %782 = arith.mulf %781, %747 : vector<16x128xf32>
      %783 = arith.addf %90, %782 : vector<16x128xf32>
      %784 = vector.broadcast %780 : vector<1x128xf32> to vector<16x128xf32>
      %785 = arith.mulf %784, %751 : vector<16x128xf32>
      %786 = arith.addf %91, %785 : vector<16x128xf32>
      %787 = arith.mulf %783, %786 : vector<16x128xf32>
      %cst_266 = arith.constant dense<0.000000e+00> : vector<128xf32>
      %788 = vector.multi_reduction <add>, %787, %cst_266 [0] : vector<16x128xf32> to vector<128xf32>
      %789 = vector.shape_cast %788 : vector<128xf32> to vector<1x128xf32>
      %790 = arith.mulf %90, %91 : vector<16x128xf32>
      %cst_267 = arith.constant dense<0.000000e+00> : vector<128xf32>
      %791 = vector.multi_reduction <add>, %790, %cst_267 [0] : vector<16x128xf32> to vector<128xf32>
      %792 = vector.shape_cast %791 : vector<128xf32> to vector<1x128xf32>
      %cst_268 = arith.constant 9.99999996E-13 : f32
      %793 = vector.broadcast %cst_268 : f32 to vector<1x128xf32>
      %794 = arith.maximumf %792, %793 : vector<1x128xf32>
      %795 = arith.divf %789, %794 : vector<1x128xf32>
      %796 = arith.mulf %795, %795 : vector<1x128xf32>
      %797 = arith.mulf %795, %796 : vector<1x128xf32>
      %cst_269 = arith.constant 0.000000e+00 : f32
      %798 = vector.broadcast %cst_269 : f32 to vector<16x128xf32>
      %799 = arith.subf %798, %90 : vector<16x128xf32>
      %800 = arith.mulf %799, %91 : vector<16x128xf32>
      %801 = arith.mulf %747, %751 : vector<16x128xf32>
      %802 = arith.subf %800, %801 : vector<16x128xf32>
      %803 = arith.mulf %797, %105 : vector<1x128xf32>
      %804 = vector.broadcast %803 : vector<1x128xf32> to vector<16x128xf32>
      %805 = arith.addf %802, %804 : vector<16x128xf32>
      %cst_270 = arith.constant 0.000000e+00 : f32
      %806 = vector.broadcast %cst_270 : f32 to vector<32x128xf32>
      %807 = arith.subf %806, %96 : vector<32x128xf32>
      %808 = arith.mulf %91, %100 : vector<16x128xf32>
      %809 = arith.addf %805, %808 : vector<16x128xf32>
      %810 = arith.divf %809, %127 : vector<16x128xf32>
      %cst_271 = arith.constant dense<0.000000e+00> : vector<32x128xf32>
      %811 = tpu.matmul %2, %810, %cst_271 {dimension_numbers = #tpu.dot_dimension_numbers<[1], [0], [0], [1], [0, 0, 1, 1], [], []>} : vector<32x16xf32>, vector<16x128xf32>, vector<32x128xf32> -> vector<32x128xf32>
      %812 = arith.subf %807, %811 : vector<32x128xf32>
      %cst_272 = arith.constant dense<0.000000e+00> : vector<48x128xf32>
      %813 = tpu.matmul %1, %812, %cst_272 {dimension_numbers = #tpu.dot_dimension_numbers<[1], [0], [0], [1], [0, 0, 1, 1], [], []>} : vector<48x32xf32>, vector<32x128xf32>, vector<48x128xf32> -> vector<48x128xf32>
      %814 = vector.extract_strided_slice %813 {offsets = [0, 0], sizes = [32, 128], strides = [1, 1]} : vector<48x128xf32> to vector<32x128xf32>
      %815 = vector.extract_strided_slice %813 {offsets = [32, 0], sizes = [16, 128], strides = [1, 1]} : vector<48x128xf32> to vector<16x128xf32>
      %c0_273 = arith.constant 0 : index
      %c0_274 = arith.constant 0 : index
      %c0_275 = arith.constant 0 : index
      %816 = vector.load %arg15[%c0_273, %c0_274, %c0_275] : memref<16x16x128xf32, #tpu.memory_space<vmem>>, vector<16x16x128xf32>
      %817 = vector.shape_cast %815 : vector<16x128xf32> to vector<1x16x128xf32>
      %818 = vector.broadcast %817 : vector<1x16x128xf32> to vector<16x16x128xf32>
      %819 = arith.mulf %816, %818 : vector<16x16x128xf32>
      %cst_276 = arith.constant dense<0.000000e+00> : vector<16x128xf32>
      %820 = vector.multi_reduction <add>, %819, %cst_276 [1] : vector<16x16x128xf32> to vector<16x128xf32>
      %cst_277 = arith.constant dense<0.000000e+00> : vector<32x128xf32>
      %821 = tpu.matmul %3, %820, %cst_277 {dimension_numbers = #tpu.dot_dimension_numbers<[1], [0], [0], [1], [0, 0, 1, 1], [], []>} : vector<32x16xf32>, vector<16x128xf32>, vector<32x128xf32> -> vector<32x128xf32>
      %822 = arith.subf %814, %821 : vector<32x128xf32>
      %cst_278 = arith.constant dense<0.000000e+00> : vector<16x128xf32>
      %823 = tpu.matmul %4, %820, %cst_278 {dimension_numbers = #tpu.dot_dimension_numbers<[1], [0], [0], [1], [0, 0, 1, 1], [], []>} : vector<16x16xf32>, vector<16x128xf32>, vector<16x128xf32> -> vector<16x128xf32>
      %824 = arith.subf %815, %823 : vector<16x128xf32>
      %cst_279 = arith.constant 0.000000e+00 : f32
      %825 = vector.broadcast %cst_279 : f32 to vector<16x128xf32>
      %826 = arith.subf %825, %100 : vector<16x128xf32>
      %827 = arith.subf %826, %824 : vector<16x128xf32>
      %828 = arith.mulf %91, %827 : vector<16x128xf32>
      %829 = arith.subf %805, %828 : vector<16x128xf32>
      %830 = arith.divf %829, %127 : vector<16x128xf32>
      %cst_280 = arith.constant 0.000000e+00 : f32
      %831 = vector.broadcast %cst_280 : f32 to vector<16x128xf32>
      %832 = arith.cmpf olt, %827, %831 : vector<16x128xf32>
      %cst_281 = arith.constant -1.000000e+00 : f32
      %833 = vector.broadcast %cst_281 : f32 to vector<16x128xf32>
      %834 = arith.select %832, %827, %833 : vector<16x128xi1>, vector<16x128xf32>
      %cst_282 = arith.constant 0.000000e+00 : f32
      %835 = vector.broadcast %cst_282 : f32 to vector<16x128xf32>
      %836 = arith.cmpf olt, %827, %835 : vector<16x128xf32>
      %cst_283 = arith.constant 0.000000e+00 : f32
      %837 = vector.broadcast %cst_283 : f32 to vector<16x128xf32>
      %838 = arith.subf %837, %90 : vector<16x128xf32>
      %839 = arith.divf %838, %834 : vector<16x128xf32>
      %840 = vector.broadcast %cst_38 : f32 to vector<16x128xf32>
      %841 = arith.select %836, %839, %840 : vector<16x128xi1>, vector<16x128xf32>
      %cst_284 = arith.constant dense<0x7F800000> : vector<128xf32>
      %842 = vector.multi_reduction <minimumf>, %841, %cst_284 [0] : vector<16x128xf32> to vector<128xf32>
      %843 = vector.shape_cast %842 : vector<128xf32> to vector<1x128xf32>
      %cst_285 = arith.constant 0.000000e+00 : f32
      %844 = vector.broadcast %cst_285 : f32 to vector<16x128xf32>
      %845 = arith.cmpf olt, %830, %844 : vector<16x128xf32>
      %cst_286 = arith.constant -1.000000e+00 : f32
      %846 = vector.broadcast %cst_286 : f32 to vector<16x128xf32>
      %847 = arith.select %845, %830, %846 : vector<16x128xi1>, vector<16x128xf32>
      %cst_287 = arith.constant 0.000000e+00 : f32
      %848 = vector.broadcast %cst_287 : f32 to vector<16x128xf32>
      %849 = arith.cmpf olt, %830, %848 : vector<16x128xf32>
      %cst_288 = arith.constant 0.000000e+00 : f32
      %850 = vector.broadcast %cst_288 : f32 to vector<16x128xf32>
      %851 = arith.subf %850, %91 : vector<16x128xf32>
      %852 = arith.divf %851, %847 : vector<16x128xf32>
      %853 = vector.broadcast %cst_38 : f32 to vector<16x128xf32>
      %854 = arith.select %849, %852, %853 : vector<16x128xi1>, vector<16x128xf32>
      %cst_289 = arith.constant dense<0x7F800000> : vector<128xf32>
      %855 = vector.multi_reduction <minimumf>, %854, %cst_289 [0] : vector<16x128xf32> to vector<128xf32>
      %856 = vector.shape_cast %855 : vector<128xf32> to vector<1x128xf32>
      %857 = arith.minimumf %843, %856 : vector<1x128xf32>
      %cst_290 = arith.constant 9.990000e-01 : f32
      %858 = vector.broadcast %cst_290 : f32 to vector<1x128xf32>
      %859 = arith.mulf %858, %857 : vector<1x128xf32>
      %cst_291 = arith.constant 1.000000e+00 : f32
      %860 = vector.broadcast %cst_291 : f32 to vector<1x128xf32>
      %861 = arith.minimumf %860, %859 : vector<1x128xf32>
      %862 = vector.broadcast %861 : vector<1x128xf32> to vector<32x128xf32>
      %863 = arith.mulf %862, %822 : vector<32x128xf32>
      %864 = arith.addf %89, %863 : vector<32x128xf32>
      %c0_292 = arith.constant 0 : index
      %c0_293 = arith.constant 0 : index
      %865 = vector.load %arg10[%c0_292, %c0_293] : memref<32x128xf32, #tpu.memory_space<vmem>>, vector<32x128xf32>
      tpu.vector_store %arg10[%c0_292, %c0_293], %864 {strides = array<i32>} : memref<32x128xf32, #tpu.memory_space<vmem>>, vector<32x128xf32>,
      %866 = vector.broadcast %861 : vector<1x128xf32> to vector<16x128xf32>
      %867 = arith.mulf %866, %827 : vector<16x128xf32>
      %868 = arith.addf %90, %867 : vector<16x128xf32>
      %c0_294 = arith.constant 0 : index
      %c0_295 = arith.constant 0 : index
      %869 = vector.load %arg11[%c0_294, %c0_295] : memref<16x128xf32, #tpu.memory_space<vmem>>, vector<16x128xf32>
      tpu.vector_store %arg11[%c0_294, %c0_295], %868 {strides = array<i32>} : memref<16x128xf32, #tpu.memory_space<vmem>>, vector<16x128xf32>,
      %870 = vector.broadcast %861 : vector<1x128xf32> to vector<16x128xf32>
      %871 = arith.mulf %870, %830 : vector<16x128xf32>
      %872 = arith.addf %91, %871 : vector<16x128xf32>
      %c0_296 = arith.constant 0 : index
      %c0_297 = arith.constant 0 : index
      %873 = vector.load %arg12[%c0_296, %c0_297] : memref<16x128xf32, #tpu.memory_space<vmem>>, vector<16x128xf32>
      tpu.vector_store %arg12[%c0_296, %c0_297], %872 {strides = array<i32>} : memref<16x128xf32, #tpu.memory_space<vmem>>, vector<16x128xf32>,
    }
    %c0_39 = arith.constant 0 : index
    %c0_40 = arith.constant 0 : index
    %55 = vector.load %arg10[%c0_39, %c0_40] : memref<32x128xf32, #tpu.memory_space<vmem>>, vector<32x128xf32>
    %c0_41 = arith.constant 0 : index
    %c0_42 = arith.constant 0 : index
    %56 = vector.load %arg11[%c0_41, %c0_42] : memref<16x128xf32, #tpu.memory_space<vmem>>, vector<16x128xf32>
    %c0_43 = arith.constant 0 : index
    %c0_44 = arith.constant 0 : index
    %57 = vector.load %arg12[%c0_43, %c0_44] : memref<16x128xf32, #tpu.memory_space<vmem>>, vector<16x128xf32>
    %cst_45 = arith.constant dense<0.000000e+00> : vector<48x128xf32>
    %58 = tpu.matmul %0, %55, %cst_45 {dimension_numbers = #tpu.dot_dimension_numbers<[1], [0], [0], [1], [0, 0, 1, 1], [], []>} : vector<48x32xf32>, vector<32x128xf32>, vector<48x128xf32> -> vector<48x128xf32>
    %59 = vector.extract_strided_slice %58 {offsets = [0, 0], sizes = [32, 128], strides = [1, 1]} : vector<48x128xf32> to vector<32x128xf32>
    %60 = arith.addf %59, %6 : vector<32x128xf32>
    %cst_46 = arith.constant dense<0.000000e+00> : vector<32x128xf32>
    %61 = tpu.matmul %2, %57, %cst_46 {dimension_numbers = #tpu.dot_dimension_numbers<[1], [0], [0], [1], [0, 0, 1, 1], [], []>} : vector<32x16xf32>, vector<16x128xf32>, vector<32x128xf32> -> vector<32x128xf32>
    %62 = arith.addf %60, %61 : vector<32x128xf32>
    %63 = vector.extract_strided_slice %58 {offsets = [32, 0], sizes = [16, 128], strides = [1, 1]} : vector<48x128xf32> to vector<16x128xf32>
    %64 = arith.addf %63, %56 : vector<16x128xf32>
    %65 = vector.broadcast %5 : vector<16x1xf32> to vector<16x128xf32>
    %66 = arith.subf %64, %65 : vector<16x128xf32>
    %67 = arith.mulf %56, %57 : vector<16x128xf32>
    %cst_47 = arith.constant dense<0.000000e+00> : vector<128xf32>
    %68 = vector.multi_reduction <add>, %67, %cst_47 [0] : vector<16x128xf32> to vector<128xf32>
    %69 = vector.shape_cast %68 : vector<128xf32> to vector<1x128xf32>
    %cst_48 = arith.constant 6.250000e-02 : f32
    %70 = vector.broadcast %cst_48 : f32 to vector<1x128xf32>
    %71 = arith.mulf %69, %70 : vector<1x128xf32>
    %72 = arith.mulf %66, %66 : vector<16x128xf32>
    %cst_49 = arith.constant dense<0.000000e+00> : vector<128xf32>
    %73 = vector.multi_reduction <add>, %72, %cst_49 [0] : vector<16x128xf32> to vector<128xf32>
    %74 = vector.shape_cast %73 : vector<128xf32> to vector<1x128xf32>
    %75 = math.sqrt %74 : vector<1x128xf32>
    %76 = arith.mulf %62, %62 : vector<32x128xf32>
    %cst_50 = arith.constant dense<0.000000e+00> : vector<128xf32>
    %77 = vector.multi_reduction <add>, %76, %cst_50 [0] : vector<32x128xf32> to vector<128xf32>
    %78 = vector.shape_cast %77 : vector<128xf32> to vector<1x128xf32>
    %79 = math.sqrt %78 : vector<1x128xf32>
    %80 = arith.addf %75, %79 : vector<1x128xf32>
    %81 = arith.addf %80, %71 : vector<1x128xf32>
    %c0_51 = arith.constant 0 : index
    %c0_52 = arith.constant 0 : index
    %82 = vector.load %arg14[%c0_51, %c0_52] : memref<1x128xf32, #tpu.memory_space<vmem>>, vector<1x128xf32>
    %83 = arith.cmpf olt, %81, %82 : vector<1x128xf32>
    %c0_53 = arith.constant 0 : index
    %c0_54 = arith.constant 0 : index
    %84 = vector.load %arg13[%c0_53, %c0_54] : memref<32x128xf32, #tpu.memory_space<vmem>>, vector<32x128xf32>
    %85 = vector.shape_cast %83 : vector<1x128xi1> to vector<1x128xi1>
    %86 = vector.broadcast %85 : vector<1x128xi1> to vector<32x128xi1>
    %87 = arith.select %86, %55, %84 : vector<32x128xi1>, vector<32x128xf32>
    %c0_55 = arith.constant 0 : index
    %c0_56 = arith.constant 0 : index
    %88 = vector.load %arg9[%c0_55, %c0_56] : memref<32x128xf32, #tpu.memory_space<vmem>>, vector<32x128xf32>
    tpu.vector_store %arg9[%c0_55, %c0_56], %87 {strides = array<i32>} : memref<32x128xf32, #tpu.memory_space<vmem>>, vector<32x128xf32>,
    return
  }
  func.func @transform_0(%arg0: i32) -> (i32, i32) {
    %c0_i32 = arith.constant 0 : i32
    %c0_i32_0 = arith.constant 0 : i32
    %c0_i32_1 = arith.constant 0 : i32
    return %c0_i32, %c0_i32_0 : i32, i32
  }
  func.func @transform_1(%arg0: i32) -> (i32, i32) {
    %c0_i32 = arith.constant 0 : i32
    %c0_i32_0 = arith.constant 0 : i32
    %c0_i32_1 = arith.constant 0 : i32
    return %c0_i32, %c0_i32_0 : i32, i32
  }
  func.func @transform_2(%arg0: i32) -> (i32, i32) {
    %c0_i32 = arith.constant 0 : i32
    %c0_i32_0 = arith.constant 0 : i32
    %c0_i32_1 = arith.constant 0 : i32
    return %c0_i32, %c0_i32_0 : i32, i32
  }
  func.func @transform_3(%arg0: i32) -> (i32, i32) {
    %c0_i32 = arith.constant 0 : i32
    %c0_i32_0 = arith.constant 0 : i32
    %c0_i32_1 = arith.constant 0 : i32
    return %c0_i32, %c0_i32_0 : i32, i32
  }
  func.func @transform_4(%arg0: i32) -> (i32, i32) {
    %c0_i32 = arith.constant 0 : i32
    %c0_i32_0 = arith.constant 0 : i32
    %c0_i32_1 = arith.constant 0 : i32
    return %c0_i32, %c0_i32_0 : i32, i32
  }
  func.func @transform_5(%arg0: i32) -> (i32, i32) {
    %c0_i32 = arith.constant 0 : i32
    %c0_i32_0 = arith.constant 0 : i32
    %c0_i32_1 = arith.constant 0 : i32
    return %c0_i32, %c0_i32_0 : i32, i32
  }
  func.func @transform_6(%arg0: i32) -> (i32, i32) {
    %c0_i32 = arith.constant 0 : i32
    %c0_i32_0 = arith.constant 0 : i32
    %c0_i32_1 = arith.constant 0 : i32
    return %c0_i32, %c0_i32_0 : i32, i32
  }
  func.func @transform_7(%arg0: i32) -> (i32, i32) {
    %c0_i32 = arith.constant 0 : i32
    %c0_i32_0 = arith.constant 0 : i32
    return %c0_i32, %arg0 : i32, i32
  }
  func.func @transform_8(%arg0: i32) -> (i32, i32) {
    %c0_i32 = arith.constant 0 : i32
    %c0_i32_0 = arith.constant 0 : i32
    return %c0_i32, %arg0 : i32, i32
  }
}

</mosaic_0001>

<llo_original>
// kernel: tpu_custom_call.1
$region0: #{tpu_custom_call.1}
  #allocation0 [shape = 'u32[]', space=smem, size = 0x4, offset = 0x4, fixed_abs, tag = 'smem constant byte address 0x4 - core index']
  #allocation1 [shape = 'u32[72,128]{1,0:T(1,128)}', space=vmem, size = 0x9000, scoped, tag = 'internal scratch']
  #allocation2 [shape = 'f32[32,128]{1,0:T(8,128)}', space=vmem, size = 0x4000, scoped, tag = 'scratch operand']
  #allocation3 [shape = 'f32[16,128]{1,0:T(8,128)}', space=vmem, size = 0x2000, scoped, tag = 'scratch operand']
  #allocation4 [shape = 'f32[16,128]{1,0:T(8,128)}', space=vmem, size = 0x2000, scoped, tag = 'scratch operand']
  #allocation5 [shape = 'f32[32,128]{1,0:T(8,128)}', space=vmem, size = 0x4000, scoped, tag = 'scratch operand']
  #allocation6 [shape = 'f32[1,128]{1,0:T(1,128)}', space=vmem, size = 0x200, scoped, tag = 'scratch operand']
  #allocation7 [shape = 'f32[16,16,128]{2,1,0:T(8,128)}', space=vmem, size = 0x20000, scoped, tag = 'scratch operand']
  %s0 = inlined_call_operand.vmem [shape: f32[48,32], index: 0, kind: input, shape index: {}]
  %s1 = inlined_call_operand.vmem [shape: f32[48,32], index: 1, kind: input, shape index: {}]
  %s2 = inlined_call_operand.vmem [shape: f32[32,32], index: 2, kind: input, shape index: {}]
  %s3 = inlined_call_operand.vmem [shape: f32[32,16], index: 3, kind: input, shape index: {}]
  %s4 = inlined_call_operand.vmem [shape: f32[32,16], index: 4, kind: input, shape index: {}]
  %s5 = inlined_call_operand.vmem [shape: f32[16,16], index: 5, kind: input, shape index: {}]
  %s6 = inlined_call_operand.vmem [shape: f32[16,1], index: 6, kind: input, shape index: {}]
  %s7 = inlined_call_operand.vmem [shape: f32[32,128], index: 7, kind: input, shape index: {}]
  %s8 = inlined_call_operand.hbm [shape: f32[32,128], index: 8, kind: output, shape index: {}]
  %s9 = sld [smem:[#allocation0]]
  $region49: #{tpu_custom_call.1} parent=0
    _
  %s11 = ssub.s32 1, %s9
  %s12 = scalar_select 0, %s11, %s9
  $region1: #{tpu_custom_call.1} parent=0
    #allocation8 [shape = 'u8[16384]{0}', space=vmem, size = 0x4000, scoped, tag = 'output window, operand 0, single buffered']
    #allocation9 [shape = 's32[1]{0}', space=sflag, size = 0x4, scoped, tag = 'scoped memory for tpu_custom_call.1']
    %13 = vsyncpa [#allocation9], 0
    // Predicated region
    $region2: #{tpu_custom_call.1} parent=1 // pred_check
      _
    $region3: #{tpu_custom_call.1} parent=1 // pred_check_branch
      %15 = sbr.rel (0) target = $region5
    $region4: #{tpu_custom_call.1} parent=1 // pred_region
      _
    $region5: #{tpu_custom_call.1} parent=1 // pred_fallthru
      _
    // Predicated region
    $region6: #{tpu_custom_call.1} parent=1 // pred_check
      _
    $region7: #{tpu_custom_call.1} parent=1 // pred_check_branch
      %17 = sbr.rel (0) target = $region9
    $region8: #{tpu_custom_call.1} parent=1 // pred_region
      _
    $region9: #{tpu_custom_call.1} parent=1 // pred_fallthru
      _
    // Predicated region
    $region10: #{tpu_custom_call.1} parent=1 // pred_check
      _
    $region11: #{tpu_custom_call.1} parent=1 // pred_check_branch
      %19 = sbr.rel (0) target = $region13
    $region12: #{tpu_custom_call.1} parent=1 // pred_region
      _
    $region13: #{tpu_custom_call.1} parent=1 // pred_fallthru
      _
    // Predicated region
    $region14: #{tpu_custom_call.1} parent=1 // pred_check
      _
    $region15: #{tpu_custom_call.1} parent=1 // pred_check_branch
      %21 = sbr.rel (0) target = $region17
    $region16: #{tpu_custom_call.1} parent=1 // pred_region
      _
    $region17: #{tpu_custom_call.1} parent=1 // pred_fallthru
      _
    // Predicated region
    $region18: #{tpu_custom_call.1} parent=1 // pred_check
      _
    $region19: #{tpu_custom_call.1} parent=1 // pred_check_branch
      %23 = sbr.rel (0) target = $region21
    $region20: #{tpu_custom_call.1} parent=1 // pred_region
      _
    $region21: #{tpu_custom_call.1} parent=1 // pred_fallthru
      _
    // Predicated region
    $region22: #{tpu_custom_call.1} parent=1 // pred_check
      _
    $region23: #{tpu_custom_call.1} parent=1 // pred_check_branch
      %25 = sbr.rel (0) target = $region25
    $region24: #{tpu_custom_call.1} parent=1 // pred_region
      _
    $region25: #{tpu_custom_call.1} parent=1 // pred_fallthru
      _
    // Predicated region
    $region26: #{tpu_custom_call.1} parent=1 // pred_check
      _
    $region27: #{tpu_custom_call.1} parent=1 // pred_check_branch
      %27 = sbr.rel (0) target = $region29
    $region28: #{tpu_custom_call.1} parent=1 // pred_region
      _
    $region29: #{tpu_custom_call.1} parent=1 // pred_fallthru
      _
    // Predicated region
    $region30: #{tpu_custom_call.1} parent=1 // pred_check
      _
    $region31: #{tpu_custom_call.1} parent=1 // pred_check_branch
      %29 = sbr.rel (0) target = $region33
    $region32: #{tpu_custom_call.1} parent=1 // pred_region
      _
    $region33: #{tpu_custom_call.1} parent=1 // pred_fallthru
      _
    %v30 = vld [vmem:[%s0] sm:$0xff]
    %v31 = vld [vmem:[%s0 + $0x8] sm:$0xff]
    %v32 = vld [vmem:[%s0 + $0x10] sm:$0xff]
    %v33 = vld [vmem:[%s0 + $0x18] sm:$0xff]
    %v34 = vld [vmem:[%s0 + $0x20] sm:$0xff]
    %v35 = vld [vmem:[%s0 + $0x28] sm:$0xff]
    %v36 = vld [vmem:[%s1] sm:$0xff]
    %v37 = vld [vmem:[%s1 + $0x8] sm:$0xff]
    %v38 = vld [vmem:[%s1 + $0x10] sm:$0xff]
    %v39 = vld [vmem:[%s1 + $0x18] sm:$0xff]
    %v40 = vld [vmem:[%s1 + $0x20] sm:$0xff]
    %v41 = vld [vmem:[%s1 + $0x28] sm:$0xff]
    %v42 = vld [vmem:[%s3] sm:$0xff]
    %v43 = vld [vmem:[%s3 + $0x8] sm:$0xff]
    %v44 = vld [vmem:[%s3 + $0x10] sm:$0xff]
    %v45 = vld [vmem:[%s3 + $0x18] sm:$0xff]
    %v46 = vld [vmem:[%s4] sm:$0xff]
    %v47 = vld [vmem:[%s4 + $0x8] sm:$0xff]
    %v48 = vld [vmem:[%s4 + $0x10] sm:$0xff]
    %v49 = vld [vmem:[%s4 + $0x18] sm:$0xff]
    %v50 = vld [vmem:[%s5] sm:$0xff]
    %v51 = vld [vmem:[%s5 + $0x8] sm:$0xff]
    %v52 = vld [vmem:[%s6] sm:$0xff]
    %v53 = vld [vmem:[%s6 + $0x8] sm:$0xff]
    %v54 = vld [vmem:[%s7] sm:$0xff]
    %v55 = vld [vmem:[%s7 + $0x8] sm:$0xff]
    %v56 = vld [vmem:[%s7 + $0x10] sm:$0xff]
    %v57 = vld [vmem:[%s7 + $0x18] sm:$0xff]
    %v58 = vlaneseq
    %v59 = vshrl.u32 %v58, 7
    %v60 = vadd.s32 %v59, 8
    %v61 = vlaneseq
    %v62 = vand.u32 %v61, 127
    %vm63 = vcmp.eq.s32.totalorder %v59, %v62
    %vm64 = vcmp.eq.s32.totalorder %v60, %v62
    %v65 = vsel %vm63, 1.0, 0.0
    %v66 = vsel %vm64, 1.0, 0.0
    %v67 = vperm.slane %v65, 0
    %v68 = vlaneseq
    %v69 = vshrl.u32 %v68, 7
    %71 = vset.pattern.permute.xlu0 %v69
    %72 = vperm.xlu0 %71, %v67
    %v73 = vpop.permute.xlu0 %72
    %v74 = vlaneseq
    %v75 = vshrl.u32 %v74, 7
    %v76 = vadd.s32 %v75, 8
    %77 = vset.pattern.permute.xlu0 %v76
    %78 = vperm.xlu0 %77, %v67
    %v79 = vpop.permute.xlu0 %78
    %v80 = vperm.slane %v65, 1
    %v81 = vlaneseq
    %v82 = vshrl.u32 %v81, 7
    %84 = vset.pattern.permute.xlu0 %v82
    %85 = vperm.xlu0 %84, %v80
    %v86 = vpop.permute.xlu0 %85
    %v87 = vlaneseq
    %v88 = vshrl.u32 %v87, 7
    %v89 = vadd.s32 %v88, 8
    %90 = vset.pattern.permute.xlu0 %v89
    %91 = vperm.xlu0 %90, %v80
    %v92 = vpop.permute.xlu0 %91
    %v93 = vperm.slane %v65, 2
    %v94 = vlaneseq
    %v95 = vshrl.u32 %v94, 7
    %97 = vset.pattern.permute.xlu0 %v95
    %98 = vperm.xlu0 %97, %v93
    %v99 = vpop.permute.xlu0 %98
    %v100 = vlaneseq
    %v101 = vshrl.u32 %v100, 7
    %v102 = vadd.s32 %v101, 8
    %103 = vset.pattern.permute.xlu0 %v102
    %104 = vperm.xlu0 %103, %v93
    %v105 = vpop.permute.xlu0 %104
    %v106 = vperm.slane %v65, 3
    %v107 = vlaneseq
    %v108 = vshrl.u32 %v107, 7
    %110 = vset.pattern.permute.xlu0 %v108
    %111 = vperm.xlu0 %110, %v106
    %v112 = vpop.permute.xlu0 %111
    %v113 = vlaneseq
    %v114 = vshrl.u32 %v113, 7
    %v115 = vadd.s32 %v114, 8
    %116 = vset.pattern.permute.xlu0 %v115
    %117 = vperm.xlu0 %116, %v106
    %v118 = vpop.permute.xlu0 %117
    %v119 = vperm.slane %v65, 4
    %v120 = vlaneseq
    %v121 = vshrl.u32 %v120, 7
    %123 = vset.pattern.permute.xlu0 %v121
    %124 = vperm.xlu0 %123, %v119
    %v125 = vpop.permute.xlu0 %124
    %v126 = vlaneseq
    %v127 = vshrl.u32 %v126, 7
    %v128 = vadd.s32 %v127, 8
    %129 = vset.pattern.permute.xlu0 %v128
    %130 = vperm.xlu0 %129, %v119
    %v131 = vpop.permute.xlu0 %130
    %v132 = vperm.slane %v65, 5
    %v133 = vlaneseq
    %v134 = vshrl.u32 %v133, 7
    %136 = vset.pattern.permute.xlu0 %v134
    %137 = vperm.xlu0 %136, %v132
    %v138 = vpop.permute.xlu0 %137
    %v139 = vlaneseq
    %v140 = vshrl.u32 %v139, 7
    %v141 = vadd.s32 %v140, 8
    %142 = vset.pattern.permute.xlu0 %v141
    %143 = vperm.xlu0 %142, %v132
    %v144 = vpop.permute.xlu0 %143
    %v145 = vperm.slane %v65, 6
    %v146 = vlaneseq
    %v147 = vshrl.u32 %v146, 7
    %149 = vset.pattern.permute.xlu0 %v147
    %150 = vperm.xlu0 %149, %v145
    %v151 = vpop.permute.xlu0 %150
    %v152 = vlaneseq
    %v153 = vshrl.u32 %v152, 7
    %v154 = vadd.s32 %v153, 8
    %155 = vset.pattern.permute.xlu0 %v154
    %156 = vperm.xlu0 %155, %v145
    %v157 = vpop.permute.xlu0 %156
    %v158 = vperm.slane %v65, 7
    %v159 = vlaneseq
    %v160 = vshrl.u32 %v159, 7
    %162 = vset.pattern.permute.xlu0 %v160
    %163 = vperm.xlu0 %162, %v158
    %v164 = vpop.permute.xlu0 %163
    %v165 = vlaneseq
    %v166 = vshrl.u32 %v165, 7
    %v167 = vadd.s32 %v166, 8
    %168 = vset.pattern.permute.xlu0 %v167
    %169 = vperm.xlu0 %168, %v158
    %v170 = vpop.permute.xlu0 %169
    %v171 = vperm.slane %v66, 0
    %v172 = vlaneseq
    %v173 = vshrl.u32 %v172, 7
    %175 = vset.pattern.permute.xlu0 %v173
    %176 = vperm.xlu0 %175, %v171
    %v177 = vpop.permute.xlu0 %176
    %v178 = vlaneseq
    %v179 = vshrl.u32 %v178, 7
    %v180 = vadd.s32 %v179, 8
    %181 = vset.pattern.permute.xlu0 %v180
    %182 = vperm.xlu0 %181, %v171
    %v183 = vpop.permute.xlu0 %182
    %v184 = vperm.slane %v66, 1
    %v185 = vlaneseq
    %v186 = vshrl.u32 %v185, 7
    %188 = vset.pattern.permute.xlu0 %v186
    %189 = vperm.xlu0 %188, %v184
    %v190 = vpop.permute.xlu0 %189
    %v191 = vlaneseq
    %v192 = vshrl.u32 %v191, 7
    %v193 = vadd.s32 %v192, 8
    %194 = vset.pattern.permute.xlu0 %v193
    %195 = vperm.xlu0 %194, %v184
    %v196 = vpop.permute.xlu0 %195
    %v197 = vperm.slane %v66, 2
    %v198 = vlaneseq
    %v199 = vshrl.u32 %v198, 7
    %201 = vset.pattern.permute.xlu0 %v199
    %202 = vperm.xlu0 %201, %v197
    %v203 = vpop.permute.xlu0 %202
    %v204 = vlaneseq
    %v205 = vshrl.u32 %v204, 7
    %v206 = vadd.s32 %v205, 8
    %207 = vset.pattern.permute.xlu0 %v206
    %208 = vperm.xlu0 %207, %v197
    %v209 = vpop.permute.xlu0 %208
    %v210 = vperm.slane %v66, 3
    %v211 = vlaneseq
    %v212 = vshrl.u32 %v211, 7
    %214 = vset.pattern.permute.xlu0 %v212
    %215 = vperm.xlu0 %214, %v210
    %v216 = vpop.permute.xlu0 %215
    %v217 = vlaneseq
    %v218 = vshrl.u32 %v217, 7
    %v219 = vadd.s32 %v218, 8
    %220 = vset.pattern.permute.xlu0 %v219
    %221 = vperm.xlu0 %220, %v210
    %v222 = vpop.permute.xlu0 %221
    %v223 = vperm.slane %v66, 4
    %v224 = vlaneseq
    %v225 = vshrl.u32 %v224, 7
    %227 = vset.pattern.permute.xlu0 %v225
    %228 = vperm.xlu0 %227, %v223
    %v229 = vpop.permute.xlu0 %228
    %v230 = vlaneseq
    %v231 = vshrl.u32 %v230, 7
    %v232 = vadd.s32 %v231, 8
    %233 = vset.pattern.permute.xlu0 %v232
    %234 = vperm.xlu0 %233, %v223
    %v235 = vpop.permute.xlu0 %234
    %v236 = vperm.slane %v66, 5
    %v237 = vlaneseq
    %v238 = vshrl.u32 %v237, 7
    %240 = vset.pattern.permute.xlu0 %v238
    %241 = vperm.xlu0 %240, %v236
    %v242 = vpop.permute.xlu0 %241
    %v243 = vlaneseq
    %v244 = vshrl.u32 %v243, 7
    %v245 = vadd.s32 %v244, 8
    %246 = vset.pattern.permute.xlu0 %v245
    %247 = vperm.xlu0 %246, %v236
    %v248 = vpop.permute.xlu0 %247
    %v249 = vperm.slane %v66, 6
    %v250 = vlaneseq
    %v251 = vshrl.u32 %v250, 7
    %253 = vset.pattern.permute.xlu0 %v251
    %254 = vperm.xlu0 %253, %v249
    %v255 = vpop.permute.xlu0 %254
    %v256 = vlaneseq
    %v257 = vshrl.u32 %v256, 7
    %v258 = vadd.s32 %v257, 8
    %259 = vset.pattern.permute.xlu0 %v258
    %260 = vperm.xlu0 %259, %v249
    %v261 = vpop.permute.xlu0 %260
    %v262 = vperm.slane %v66, 7
    %v263 = vlaneseq
    %v264 = vshrl.u32 %v263, 7
    %266 = vset.pattern.permute.xlu0 %v264
    %267 = vperm.xlu0 %266, %v262
    %v268 = vpop.permute.xlu0 %267
    %v269 = vlaneseq
    %v270 = vshrl.u32 %v269, 7
    %v271 = vadd.s32 %v270, 8
    %272 = vset.pattern.permute.xlu0 %v271
    %273 = vperm.xlu0 %272, %v262
    %v274 = vpop.permute.xlu0 %273
    %v275 = vperm.slane %v50, 0
    %v276 = vlaneseq
    %v277 = vshrl.u32 %v276, 7
    %279 = vset.pattern.permute.xlu0 %v277
    %280 = vperm.xlu0 %279, %v275
    %v281 = vpop.permute.xlu0 %280
    %v282 = vlaneseq
    %v283 = vshrl.u32 %v282, 7
    %v284 = vadd.s32 %v283, 8
    %285 = vset.pattern.permute.xlu0 %v284
    %286 = vperm.xlu0 %285, %v275
    %v287 = vpop.permute.xlu0 %286
    %v288 = vperm.slane %v50, 1
    %v289 = vlaneseq
    %v290 = vshrl.u32 %v289, 7
    %292 = vset.pattern.permute.xlu0 %v290
    %293 = vperm.xlu0 %292, %v288
    %v294 = vpop.permute.xlu0 %293
    %v295 = vlaneseq
    %v296 = vshrl.u32 %v295, 7
    %v297 = vadd.s32 %v296, 8
    %298 = vset.pattern.permute.xlu0 %v297
    %299 = vperm.xlu0 %298, %v288
    %v300 = vpop.permute.xlu0 %299
    %v301 = vperm.slane %v50, 2
    %v302 = vlaneseq
    %v303 = vshrl.u32 %v302, 7
    %305 = vset.pattern.permute.xlu0 %v303
    %306 = vperm.xlu0 %305, %v301
    %v307 = vpop.permute.xlu0 %306
    %v308 = vlaneseq
    %v309 = vshrl.u32 %v308, 7
    %v310 = vadd.s32 %v309, 8
    %311 = vset.pattern.permute.xlu0 %v310
    %312 = vperm.xlu0 %311, %v301
    %v313 = vpop.permute.xlu0 %312
    %v314 = vperm.slane %v50, 3
    %v315 = vlaneseq
    %v316 = vshrl.u32 %v315, 7
    %318 = vset.pattern.permute.xlu0 %v316
    %319 = vperm.xlu0 %318, %v314
    %v320 = vpop.permute.xlu0 %319
    %v321 = vlaneseq
    %v322 = vshrl.u32 %v321, 7
    %v323 = vadd.s32 %v322, 8
    %324 = vset.pattern.permute.xlu0 %v323
    %325 = vperm.xlu0 %324, %v314
    %v326 = vpop.permute.xlu0 %325
    %v327 = vperm.slane %v50, 4
    %v328 = vlaneseq
    %v329 = vshrl.u32 %v328, 7
    %331 = vset.pattern.permute.xlu0 %v329
    %332 = vperm.xlu0 %331, %v327
    %v333 = vpop.permute.xlu0 %332
    %v334 = vlaneseq
    %v335 = vshrl.u32 %v334, 7
    %v336 = vadd.s32 %v335, 8
    %337 = vset.pattern.permute.xlu0 %v336
    %338 = vperm.xlu0 %337, %v327
    %v339 = vpop.permute.xlu0 %338
    %v340 = vperm.slane %v50, 5
    %v341 = vlaneseq
    %v342 = vshrl.u32 %v341, 7
    %344 = vset.pattern.permute.xlu0 %v342
    %345 = vperm.xlu0 %344, %v340
    %v346 = vpop.permute.xlu0 %345
    %v347 = vlaneseq
    %v348 = vshrl.u32 %v347, 7
    %v349 = vadd.s32 %v348, 8
    %350 = vset.pattern.permute.xlu0 %v349
    %351 = vperm.xlu0 %350, %v340
    %v352 = vpop.permute.xlu0 %351
    %v353 = vperm.slane %v50, 6
    %v354 = vlaneseq
    %v355 = vshrl.u32 %v354, 7
    %357 = vset.pattern.permute.xlu0 %v355
    %358 = vperm.xlu0 %357, %v353
    %v359 = vpop.permute.xlu0 %358
    %v360 = vlaneseq
    %v361 = vshrl.u32 %v360, 7
    %v362 = vadd.s32 %v361, 8
    %363 = vset.pattern.permute.xlu0 %v362
    %364 = vperm.xlu0 %363, %v353
    %v365 = vpop.permute.xlu0 %364
    %v366 = vperm.slane %v50, 7
    %v367 = vlaneseq
    %v368 = vshrl.u32 %v367, 7
    %370 = vset.pattern.permute.xlu0 %v368
    %371 = vperm.xlu0 %370, %v366
    %v372 = vpop.permute.xlu0 %371
    %v373 = vlaneseq
    %v374 = vshrl.u32 %v373, 7
    %v375 = vadd.s32 %v374, 8
    %376 = vset.pattern.permute.xlu0 %v375
    %377 = vperm.xlu0 %376, %v366
    %v378 = vpop.permute.xlu0 %377
    %v379 = vperm.slane %v51, 0
    %v380 = vlaneseq
    %v381 = vshrl.u32 %v380, 7
    %383 = vset.pattern.permute.xlu0 %v381
    %384 = vperm.xlu0 %383, %v379
    %v385 = vpop.permute.xlu0 %384
    %v386 = vlaneseq
    %v387 = vshrl.u32 %v386, 7
    %v388 = vadd.s32 %v387, 8
    %389 = vset.pattern.permute.xlu0 %v388
    %390 = vperm.xlu0 %389, %v379
    %v391 = vpop.permute.xlu0 %390
    %v392 = vperm.slane %v51, 1
    %v393 = vlaneseq
    %v394 = vshrl.u32 %v393, 7
    %396 = vset.pattern.permute.xlu0 %v394
    %397 = vperm.xlu0 %396, %v392
    %v398 = vpop.permute.xlu0 %397
    %v399 = vlaneseq
    %v400 = vshrl.u32 %v399, 7
    %v401 = vadd.s32 %v400, 8
    %402 = vset.pattern.permute.xlu0 %v401
    %403 = vperm.xlu0 %402, %v392
    %v404 = vpop.permute.xlu0 %403
    %v405 = vperm.slane %v51, 2
    %v406 = vlaneseq
    %v407 = vshrl.u32 %v406, 7
    %409 = vset.pattern.permute.xlu0 %v407
    %410 = vperm.xlu0 %409, %v405
    %v411 = vpop.permute.xlu0 %410
    %v412 = vlaneseq
    %v413 = vshrl.u32 %v412, 7
    %v414 = vadd.s32 %v413, 8
    %415 = vset.pattern.permute.xlu0 %v414
    %416 = vperm.xlu0 %415, %v405
    %v417 = vpop.permute.xlu0 %416
    %v418 = vperm.slane %v51, 3
    %v419 = vlaneseq
    %v420 = vshrl.u32 %v419, 7
    %422 = vset.pattern.permute.xlu0 %v420
    %423 = vperm.xlu0 %422, %v418
    %v424 = vpop.permute.xlu0 %423
    %v425 = vlaneseq
    %v426 = vshrl.u32 %v425, 7
    %v427 = vadd.s32 %v426, 8
    %428 = vset.pattern.permute.xlu0 %v427
    %429 = vperm.xlu0 %428, %v418
    %v430 = vpop.permute.xlu0 %429
    %v431 = vperm.slane %v51, 4
    %v432 = vlaneseq
    %v433 = vshrl.u32 %v432, 7
    %435 = vset.pattern.permute.xlu0 %v433
    %436 = vperm.xlu0 %435, %v431
    %v437 = vpop.permute.xlu0 %436
    %v438 = vlaneseq
    %v439 = vshrl.u32 %v438, 7
    %v440 = vadd.s32 %v439, 8
    %441 = vset.pattern.permute.xlu0 %v440
    %442 = vperm.xlu0 %441, %v431
    %v443 = vpop.permute.xlu0 %442
    %v444 = vperm.slane %v51, 5
    %v445 = vlaneseq
    %v446 = vshrl.u32 %v445, 7
    %448 = vset.pattern.permute.xlu0 %v446
    %449 = vperm.xlu0 %448, %v444
    %v450 = vpop.permute.xlu0 %449
    %v451 = vlaneseq
    %v452 = vshrl.u32 %v451, 7
    %v453 = vadd.s32 %v452, 8
    %454 = vset.pattern.permute.xlu0 %v453
    %455 = vperm.xlu0 %454, %v444
    %v456 = vpop.permute.xlu0 %455
    %v457 = vperm.slane %v51, 6
    %v458 = vlaneseq
    %v459 = vshrl.u32 %v458, 7
    %461 = vset.pattern.permute.xlu0 %v459
    %462 = vperm.xlu0 %461, %v457
    %v463 = vpop.permute.xlu0 %462
    %v464 = vlaneseq
    %v465 = vshrl.u32 %v464, 7
    %v466 = vadd.s32 %v465, 8
    %467 = vset.pattern.permute.xlu0 %v466
    %468 = vperm.xlu0 %467, %v457
    %v469 = vpop.permute.xlu0 %468
    %v470 = vperm.slane %v51, 7
    %v471 = vlaneseq
    %v472 = vshrl.u32 %v471, 7
    %474 = vset.pattern.permute.xlu0 %v472
    %475 = vperm.xlu0 %474, %v470
    %v476 = vpop.permute.xlu0 %475
    %v477 = vlaneseq
    %v478 = vshrl.u32 %v477, 7
    %v479 = vadd.s32 %v478, 8
    %480 = vset.pattern.permute.xlu0 %v479
    %481 = vperm.xlu0 %480, %v470
    %v482 = vpop.permute.xlu0 %481
    %vm483 = vcmask 130048
    %v485 = vsel %vm483, %v42, 0
    %v488 = vsel %vm483, %v43, 0
    %v491 = vsel %vm483, %v44, 0
    %v494 = vsel %vm483, %v45, 0
    %496 = vmatpush.msra.mxu0 0.0
    %497 = vmatpush.msra.mxu0 0.0
    %498 = vmatpush.msra.mxu0 0.0
    %499 = vmatpush.msra.mxu0 0.0
    %500 = vmatpush.msra.mxu0 0.0
    %501 = vmatpush.msra.mxu0 0.0
    %502 = vmatpush.msra.mxu0 0.0
    %503 = vmatpush.msra.mxu0 0.0
    %504 = vmatpush.msra.mxu0 0.0
    %505 = vmatpush.msra.mxu0 0.0
    %506 = vmatpush.msra.mxu0 0.0
    %507 = vmatpush.msra.mxu0 0.0
    %508 = vmatpush.msra.mxu0 0.0
    %509 = vmatpush.msra.mxu0 0.0
    %510 = vmatpush.msra.mxu0 %v53
    %511 = vmatpush.msra.mxu0 %v52
    %512 = vmatmul.f32.gmra.mxu0 %v485
    %v513 = vpop.f32.mrf.mxu0
    %v514 = vadd.f32 0.0, %v513
    %515 = vmatmul.f32.gmra.mxu0 %v488
    %v516 = vpop.f32.mrf.mxu0
    %v517 = vadd.f32 0.0, %v516
    %518 = vmatmul.f32.gmra.mxu0 %v491
    %v519 = vpop.f32.mrf.mxu0
    %v520 = vadd.f32 0.0, %v519
    %521 = vmatmul.f32.gmra.mxu0 %v494
    %v522 = vpop.f32.mrf.mxu0
    %v523 = vadd.f32 0.0, %v522
    %524 = vdwg.mxu0
    %526 = vset.pattern.permute.xlu0 0
    %527 = vperm.xlu0 %526, %v514
    %v528 = vpop.permute.xlu0 %527
    %531 = vset.pattern.permute.xlu0 0
    %532 = vperm.xlu0 %531, %v517
    %v533 = vpop.permute.xlu0 %532
    %536 = vset.pattern.permute.xlu0 0
    %537 = vperm.xlu0 %536, %v520
    %v538 = vpop.permute.xlu0 %537
    %541 = vset.pattern.permute.xlu0 0
    %542 = vperm.xlu0 %541, %v523
    %v543 = vpop.permute.xlu0 %542
    %v545 = vsub.f32 %v528, %v54
    %v546 = vsub.f32 %v533, %v55
    %v547 = vsub.f32 %v538, %v56
    %v548 = vsub.f32 %v543, %v57
    %v549 = vld [vmem:[%s2] sm:$0xff]
    %v550 = vld [vmem:[%s2 + $0x8] sm:$0xff]
    %v551 = vld [vmem:[%s2 + $0x10] sm:$0xff]
    %v552 = vld [vmem:[%s2 + $0x18] sm:$0xff]
    %vm553 = vcmask 261120
    %v555 = vsel %vm553, %v549, 0
    %v558 = vsel %vm553, %v550, 0
    %v561 = vsel %vm553, %v551, 0
    %v564 = vsel %vm553, %v552, 0
    %566 = vmatpush.msra.mxu0 0.0
    %567 = vmatpush.msra.mxu0 0.0
    %568 = vmatpush.msra.mxu0 0.0
    %569 = vmatpush.msra.mxu0 0.0
    %570 = vmatpush.msra.mxu0 0.0
    %571 = vmatpush.msra.mxu0 0.0
    %572 = vmatpush.msra.mxu0 0.0
    %573 = vmatpush.msra.mxu0 0.0
    %574 = vmatpush.msra.mxu0 0.0
    %575 = vmatpush.msra.mxu0 0.0
    %576 = vmatpush.msra.mxu0 0.0
    %577 = vmatpush.msra.mxu0 0.0
    %578 = vmatpush.msra.mxu0 %v548
    %579 = vmatpush.msra.mxu0 %v547
    %580 = vmatpush.msra.mxu0 %v546
    %581 = vmatpush.msra.mxu0 %v545
    %582 = vmatmul.f32.gmra.mxu0 %v555
    %v583 = vpop.f32.mrf.mxu0
    %v584 = vadd.f32 0.0, %v583
    %585 = vmatmul.f32.gmra.mxu0 %v558
    %v586 = vpop.f32.mrf.mxu0
    %v587 = vadd.f32 0.0, %v586
    %588 = vmatmul.f32.gmra.mxu0 %v561
    %v589 = vpop.f32.mrf.mxu0
    %v590 = vadd.f32 0.0, %v589
    %591 = vmatmul.f32.gmra.mxu0 %v564
    %v592 = vpop.f32.mrf.mxu0
    %v593 = vadd.f32 0.0, %v592
    %594 = vdwg.mxu0
    %v596 = vsel %vm553, %v30, 0
    %v599 = vsel %vm553, %v31, 0
    %v602 = vsel %vm553, %v32, 0
    %v605 = vsel %vm553, %v33, 0
    %v608 = vsel %vm553, %v34, 0
    %v611 = vsel %vm553, %v35, 0
    %613 = vmatpush.msra.mxu0 0.0
    %614 = vmatpush.msra.mxu0 0.0
    %615 = vmatpush.msra.mxu0 0.0
    %616 = vmatpush.msra.mxu0 0.0
    %617 = vmatpush.msra.mxu0 0.0
    %618 = vmatpush.msra.mxu0 0.0
    %619 = vmatpush.msra.mxu0 0.0
    %620 = vmatpush.msra.mxu0 0.0
    %621 = vmatpush.msra.mxu0 0.0
    %622 = vmatpush.msra.mxu0 0.0
    %623 = vmatpush.msra.mxu0 0.0
    %624 = vmatpush.msra.mxu0 0.0
    %625 = vmatpush.msra.mxu0 %v593
    %626 = vmatpush.msra.mxu0 %v590
    %627 = vmatpush.msra.mxu0 %v587
    %628 = vmatpush.msra.mxu0 %v584
    %629 = vmatmul.f32.gmra.mxu0 %v596
    %v630 = vpop.f32.mrf.mxu0
    %631 = vmatmul.f32.gmra.mxu0 %v599
    %v632 = vpop.f32.mrf.mxu0
    %633 = vmatmul.f32.gmra.mxu0 %v602
    %v634 = vpop.f32.mrf.mxu0
    %635 = vmatmul.f32.gmra.mxu0 %v605
    %v636 = vpop.f32.mrf.mxu0
    %637 = vmatmul.f32.gmra.mxu0 %v608
    %v638 = vpop.f32.mrf.mxu0
    %v639 = vadd.f32 0.0, %v638
    %640 = vmatmul.f32.gmra.mxu0 %v611
    %v641 = vpop.f32.mrf.mxu0
    %v642 = vadd.f32 0.0, %v641
    %643 = vdwg.mxu0
    %645 = vset.pattern.permute.xlu0 0
    %646 = vperm.xlu0 %645, %v52
    %v647 = vpop.permute.xlu0 %646
    %650 = vset.pattern.permute.xlu0 0
    %651 = vperm.xlu0 %650, %v53
    %v652 = vpop.permute.xlu0 %651
    %v654 = vsub.f32 %v647, %v639
    %v655 = vsub.f32 %v652, %v642
    %v656 = vsub.f32 0.0, %v654
    %v657 = vsub.f32 0.0, %v655
    %v658 = vmin.f32 %v654, %v655
    %v659 = vrot.slane %v658, 4
    %v660 = vmin.f32 %v658, %v659
    %v661 = vrot.slane %v660, 2
    %v662 = vmin.f32 %v660, %v661
    %v663 = vrot.slane %v662, 1
    %v664 = vmin.f32 %v662, %v663
    %vm665 = vcmp.lt.f32.partialorder %v664, 1e-08
    %v666 = vsub.f32 %v654, %v664
    %v667 = vsub.f32 %v655, %v664
    %v668 = vadd.f32 %v666, 1.0
    %v669 = vadd.f32 %v667, 1.0
    %v670 = vsel %vm665, 1, 0
    %vm671 = vcmp.eq.s32.totalorder %v670, 1
    %v672 = vsel %vm671, %v668, %v654
    %v673 = vsel %vm671, %v669, %v655
    %v674 = vmin.f32 %v656, %v657
    %v675 = vrot.slane %v674, 4
    %v676 = vmin.f32 %v674, %v675
    %v677 = vrot.slane %v676, 2
    %v678 = vmin.f32 %v676, %v677
    %v679 = vrot.slane %v678, 1
    %v680 = vmin.f32 %v678, %v679
    %vm681 = vcmp.lt.f32.partialorder %v680, 1e-08
    %v682 = vsub.f32 %v656, %v680
    %v683 = vsub.f32 %v657, %v680
    %v684 = vadd.f32 %v682, 1.0
    %v685 = vadd.f32 %v683, 1.0
    %v686 = vsel %vm681, 1, 0
    %vm687 = vcmp.eq.s32.totalorder %v686, 1
    %v688 = vsel %vm687, %v684, %v656
    %v689 = vsel %vm687, %v685, %v657
    %690 = vst [vmem:[#allocation2] sm:$0xff] %v584
    %691 = vst [vmem:[#allocation2 + $0x8] sm:$0xff] %v587
    %692 = vst [vmem:[#allocation2 + $0x10] sm:$0xff] %v590
    %693 = vst [vmem:[#allocation2 + $0x18] sm:$0xff] %v593
    %694 = vst [vmem:[#allocation3] sm:$0xff] %v672
    %695 = vst [vmem:[#allocation3 + $0x8] sm:$0xff] %v673
    %696 = vst [vmem:[#allocation4] sm:$0xff] %v688
    %697 = vst [vmem:[#allocation4 + $0x8] sm:$0xff] %v689
    %698 = vst [vmem:[#allocation5] sm:$0xff] %v584
    %699 = vst [vmem:[#allocation5 + $0x8] sm:$0xff] %v587
    %700 = vst [vmem:[#allocation5 + $0x10] sm:$0xff] %v590
    %701 = vst [vmem:[#allocation5 + $0x18] sm:$0xff] %v593
    %702 = vst [vmem:[#allocation6] sm:$0x1] 1e+30
    loop: start=0, step=1, limit=20
    $region34: #{tpu_custom_call.1} parent=1 // loop_pre_header
      _
    $region35: #{tpu_custom_call.1} parent=1 // loop_header
      %s704 = sphi 0, %s708
      %p705 = scmp.ge.s32.totalorder %s704, 20
    $region36: #{tpu_custom_call.1} parent=1 // loop_header_branch
      %707 = sbr.rel (%p705) target = $region40
    $region37: #{tpu_custom_call.1} parent=1 // loop_body
      %v709 = vld [vmem:[#allocation2] sm:$0xff]
      %v710 = vld [vmem:[#allocation2 + $0x8] sm:$0xff]
      %v711 = vld [vmem:[#allocation2 + $0x10] sm:$0xff]
      %v712 = vld [vmem:[#allocation2 + $0x18] sm:$0xff]
      %v713 = vld [vmem:[#allocation3] sm:$0xff]
      %v714 = vld [vmem:[#allocation3 + $0x8] sm:$0xff]
      %v715 = vld [vmem:[#allocation4] sm:$0xff]
      %v716 = vld [vmem:[#allocation4 + $0x8] sm:$0xff]
      %717 = vmatpush.msra.mxu0 0.0
      %718 = vmatpush.msra.mxu0 0.0
      %719 = vmatpush.msra.mxu0 0.0
      %720 = vmatpush.msra.mxu0 0.0
      %721 = vmatpush.msra.mxu0 0.0
      %722 = vmatpush.msra.mxu0 0.0
      %723 = vmatpush.msra.mxu0 0.0
      %724 = vmatpush.msra.mxu0 0.0
      %725 = vmatpush.msra.mxu0 0.0
      %726 = vmatpush.msra.mxu0 0.0
      %727 = vmatpush.msra.mxu0 0.0
      %728 = vmatpush.msra.mxu0 0.0
      %729 = vmatpush.msra.mxu0 %v712
      %730 = vmatpush.msra.mxu0 %v711
      %731 = vmatpush.msra.mxu0 %v710
      %732 = vmatpush.msra.mxu0 %v709
      %733 = vmatmul.f32.gmra.mxu0 %v596
      %v734 = vpop.f32.mrf.mxu0
      %v735 = vadd.f32 0.0, %v734
      %736 = vmatmul.f32.gmra.mxu0 %v599
      %v737 = vpop.f32.mrf.mxu0
      %v738 = vadd.f32 0.0, %v737
      %739 = vmatmul.f32.gmra.mxu0 %v602
      %v740 = vpop.f32.mrf.mxu0
      %v741 = vadd.f32 0.0, %v740
      %742 = vmatmul.f32.gmra.mxu0 %v605
      %v743 = vpop.f32.mrf.mxu0
      %v744 = vadd.f32 0.0, %v743
      %745 = vmatmul.f32.gmra.mxu0 %v608
      %v746 = vpop.f32.mrf.mxu0
      %v747 = vadd.f32 0.0, %v746
      %748 = vmatmul.f32.gmra.mxu0 %v611
      %v749 = vpop.f32.mrf.mxu0
      %v750 = vadd.f32 0.0, %v749
      %751 = vdwg.mxu0
      %v752 = vadd.f32 %v735, %v54
      %v753 = vadd.f32 %v738, %v55
      %v754 = vadd.f32 %v741, %v56
      %v755 = vadd.f32 %v744, %v57
      %756 = vmatpush.msra.mxu0 0.0
      %757 = vmatpush.msra.mxu0 0.0
      %758 = vmatpush.msra.mxu0 0.0
      %759 = vmatpush.msra.mxu0 0.0
      %760 = vmatpush.msra.mxu0 0.0
      %761 = vmatpush.msra.mxu0 0.0
      %762 = vmatpush.msra.mxu0 0.0
      %763 = vmatpush.msra.mxu0 0.0
      %764 = vmatpush.msra.mxu0 0.0
      %765 = vmatpush.msra.mxu0 0.0
      %766 = vmatpush.msra.mxu0 0.0
      %767 = vmatpush.msra.mxu0 0.0
      %768 = vmatpush.msra.mxu0 0.0
      %769 = vmatpush.msra.mxu0 0.0
      %770 = vmatpush.msra.mxu0 %v716
      %771 = vmatpush.msra.mxu0 %v715
      %772 = vmatmul.f32.gmra.mxu0 %v485
      %v773 = vpop.f32.mrf.mxu0
      %v774 = vadd.f32 0.0, %v773
      %775 = vmatmul.f32.gmra.mxu0 %v488
      %v776 = vpop.f32.mrf.mxu0
      %v777 = vadd.f32 0.0, %v776
      %778 = vmatmul.f32.gmra.mxu0 %v491
      %v779 = vpop.f32.mrf.mxu0
      %v780 = vadd.f32 0.0, %v779
      %781 = vmatmul.f32.gmra.mxu0 %v494
      %v782 = vpop.f32.mrf.mxu0
      %v783 = vadd.f32 0.0, %v782
      %784 = vdwg.mxu0
      %v785 = vadd.f32 %v752, %v774
      %v786 = vadd.f32 %v753, %v777
      %v787 = vadd.f32 %v754, %v780
      %v788 = vadd.f32 %v755, %v783
      %v789 = vadd.f32 %v747, %v713
      %v790 = vadd.f32 %v750, %v714
      %v791 = vsub.f32 %v789, %v647
      %v792 = vsub.f32 %v790, %v652
      %v793 = vmul.f32 %v713, %v715
      %v794 = vmul.f32 %v714, %v716
      %v795 = vadd.f32 %v793, %v794
      %v796 = vrot.slane %v795, 4
      %v797 = vadd.f32 %v795, %v796
      %v798 = vrot.slane %v797, 2
      %v799 = vadd.f32 %v797, %v798
      %v800 = vrot.slane %v799, 1
      %v801 = vadd.f32 %v799, %v800
      %v802 = vmul.f32 %v801, 0.0625
      %v803 = vmul.f32 %v791, %v791
      %v804 = vmul.f32 %v792, %v792
      %v805 = vadd.f32 %v803, %v804
      %v806 = vrot.slane %v805, 4
      %v807 = vadd.f32 %v805, %v806
      %v808 = vrot.slane %v807, 2
      %v809 = vadd.f32 %v807, %v808
      %v810 = vrot.slane %v809, 1
      %v811 = vadd.f32 %v809, %v810
      %v812 = vrsqrt.pop %v811
      %v813 = vmul.f32 %v812, %v811
      %v814 = vmul.f32 %v813, %v812
      %v815 = vmul.f32 0.5, %v814
      %v816 = vsub.f32 1.5, %v815
      %v817 = vmul.f32 %v812, %v816
      %v818 = vmul.f32 %v811, %v817
      %vm819 = vcmp.eq.f32.partialorder %v811, inf
      %v820 = vsel %vm819, %v811, %v818
      %vm821 = vcmp.eq.f32.partialorder %v811, 0.0
      %v822 = vand.u32 %v811, 2147483648
      %v823 = vsel %vm821, %v822, %v820
      %v824 = vmul.f32 %v785, %v785
      %v825 = vmul.f32 %v786, %v786
      %v826 = vmul.f32 %v787, %v787
      %v827 = vmul.f32 %v788, %v788
      %v828 = vadd.f32 %v824, %v825
      %v829 = vadd.f32 %v828, %v826
      %v830 = vadd.f32 %v829, %v827
      %v831 = vrot.slane %v830, 4
      %v832 = vadd.f32 %v830, %v831
      %v833 = vrot.slane %v832, 2
      %v834 = vadd.f32 %v832, %v833
      %v835 = vrot.slane %v834, 1
      %v836 = vadd.f32 %v834, %v835
      %v837 = vrsqrt.pop %v836
      %v838 = vmul.f32 %v837, %v836
      %v839 = vmul.f32 %v838, %v837
      %v840 = vmul.f32 0.5, %v839
      %v841 = vsub.f32 1.5, %v840
      %v842 = vmul.f32 %v837, %v841
      %v843 = vmul.f32 %v836, %v842
      %vm844 = vcmp.eq.f32.partialorder %v836, inf
      %v845 = vsel %vm844, %v836, %v843
      %vm846 = vcmp.eq.f32.partialorder %v836, 0.0
      %v847 = vand.u32 %v836, 2147483648
      %v848 = vsel %vm846, %v847, %v845
      %v849 = vadd.f32 %v823, %v848
      %v850 = vadd.f32 %v849, %v802
      %v851 = vld [vmem:[#allocation6] sm:$0x1]
      %vm852 = vcmp.lt.f32.partialorder %v850, %v851
      %v853 = vsel %vm852, %v850, %v851
      %854 = vst [vmem:[#allocation6] sm:$0x1] %v853
      %v855 = vld [vmem:[#allocation5] sm:$0xff]
      %v856 = vld [vmem:[#allocation5 + $0x8] sm:$0xff]
      %v857 = vld [vmem:[#allocation5 + $0x10] sm:$0xff]
      %v858 = vld [vmem:[#allocation5 + $0x18] sm:$0xff]
      %v859 = vsel %vm852, 1, 0
      %v860 = vperm.slane %v859, 0
      %vm861 = vcmp.eq.s32.totalorder %v860, 1
      %v862 = vsel %vm861, %v709, %v855
      %v863 = vsel %vm861, %v710, %v856
      %v864 = vsel %vm861, %v711, %v857
      %v865 = vsel %vm861, %v712, %v858
      %866 = vst [vmem:[#allocation5] sm:$0xff] %v862
      %867 = vst [vmem:[#allocation5 + $0x8] sm:$0xff] %v863
      %868 = vst [vmem:[#allocation5 + $0x10] sm:$0xff] %v864
      %869 = vst [vmem:[#allocation5 + $0x18] sm:$0xff] %v865
      %v870 = vmax.f32 %v713, 1e-08
      %v871 = vmax.f32 %v714, 1e-08
      %v872 = vmax.f32 %v715, 1e-08
      %v873 = vmax.f32 %v716, 1e-08
      %v874 = vrcp.pop %v870
      %v875 = vmul.f32 %v870, %v874
      %v876 = vsub.f32 1.0, %v875
      %v877 = vmul.f32 %v874, %v876
      %v878 = vadd.f32 %v874, %v877
      %vm879 = vweird.f32 %v870
      %vm880 = vweird.f32 %v874
      %vm881 = vmor %vm879, %vm880
      %v882 = vsel %vm881, %v874, %v878
      %v883 = vand.u32 2147483647, %v870
      %vm884 = vcmp.eq.f32.partialorder %v883, 8.507059e+37
      %v885 = vand.u32 %v870, 2147483648
      %v886 = vor.u32 1.1754944e-38, %v885
      %v887 = vsel %vm884, %v886, %v882
      %v888 = vmul.f32 %v872, %v887
      %v889 = vrcp.pop %v871
      %v890 = vmul.f32 %v871, %v889
      %v891 = vsub.f32 1.0, %v890
      %v892 = vmul.f32 %v889, %v891
      %v893 = vadd.f32 %v889, %v892
      %vm894 = vweird.f32 %v871
      %vm895 = vweird.f32 %v889
      %vm896 = vmor %vm894, %vm895
      %v897 = vsel %vm896, %v889, %v893
      %v898 = vand.u32 2147483647, %v871
      %vm899 = vcmp.eq.f32.partialorder %v898, 8.507059e+37
      %v900 = vand.u32 %v871, 2147483648
      %v901 = vor.u32 1.1754944e-38, %v900
      %v902 = vsel %vm899, %v901, %v897
      %v903 = vmul.f32 %v873, %v902
      %v904 = vrcp.pop %v872
      %v905 = vmul.f32 %v872, %v904
      %v906 = vsub.f32 1.0, %v905
      %v907 = vmul.f32 %v904, %v906
      %v908 = vadd.f32 %v904, %v907
      %vm909 = vweird.f32 %v872
      %vm910 = vweird.f32 %v904
      %vm911 = vmor %vm909, %vm910
      %v912 = vsel %vm911, %v904, %v908
      %v913 = vand.u32 2147483647, %v872
      %vm914 = vcmp.eq.f32.partialorder %v913, 8.507059e+37
      %v915 = vand.u32 %v872, 2147483648
      %v916 = vor.u32 1.1754944e-38, %v915
      %v917 = vsel %vm914, %v916, %v912
      %v918 = vmul.f32 %v870, %v917
      %v919 = vrcp.pop %v873
      %v920 = vmul.f32 %v873, %v919
      %v921 = vsub.f32 1.0, %v920
      %v922 = vmul.f32 %v919, %v921
      %v923 = vadd.f32 %v919, %v922
      %vm924 = vweird.f32 %v873
      %vm925 = vweird.f32 %v919
      %vm926 = vmor %vm924, %vm925
      %v927 = vsel %vm926, %v919, %v923
      %v928 = vand.u32 2147483647, %v873
      %vm929 = vcmp.eq.f32.partialorder %v928, 8.507059e+37
      %v930 = vand.u32 %v873, 2147483648
      %v931 = vor.u32 1.1754944e-38, %v930
      %v932 = vsel %vm929, %v931, %v927
      %v933 = vmul.f32 %v871, %v932
      %v936 = vrot.slane %v918, 1
      %v937 = vrot.slane %v918, 2
      %v938 = vrot.slane %v918, 3
      %v939 = vrot.slane %v918, 4
      %v940 = vrot.slane %v918, 5
      %v941 = vrot.slane %v918, 6
      %v942 = vrot.slane %v918, 7
      %v943 = vrot.slane %v933, 1
      %v944 = vrot.slane %v933, 2
      %v945 = vrot.slane %v933, 3
      %v946 = vrot.slane %v933, 4
      %v947 = vrot.slane %v933, 5
      %v948 = vrot.slane %v933, 6
      %v949 = vrot.slane %v933, 7
      %v950 = vperm.slane %v918, 0
      %v951 = vperm.slane %v936, 0
      %v952 = vperm.slane %v937, 0
      %v953 = vperm.slane %v938, 0
      %v954 = vperm.slane %v939, 0
      %v955 = vperm.slane %v940, 0
      %v956 = vperm.slane %v941, 0
      %v957 = vperm.slane %v942, 0
      %v958 = vperm.slane %v933, 0
      %v959 = vperm.slane %v943, 0
      %v960 = vperm.slane %v944, 0
      %v961 = vperm.slane %v945, 0
      %v962 = vperm.slane %v946, 0
      %v963 = vperm.slane %v947, 0
      %v964 = vperm.slane %v948, 0
      %v965 = vperm.slane %v949, 0
      %v982 = vmul.f32 %v73, %v950
      %v983 = vmul.f32 %v79, %v950
      %v984 = vmul.f32 %v86, %v951
      %v985 = vmul.f32 %v92, %v951
      %v986 = vmul.f32 %v99, %v952
      %v987 = vmul.f32 %v105, %v952
      %v988 = vmul.f32 %v112, %v953
      %v989 = vmul.f32 %v118, %v953
      %v990 = vmul.f32 %v125, %v954
      %v991 = vmul.f32 %v131, %v954
      %v992 = vmul.f32 %v138, %v955
      %v993 = vmul.f32 %v144, %v955
      %v994 = vmul.f32 %v151, %v956
      %v995 = vmul.f32 %v157, %v956
      %v996 = vmul.f32 %v164, %v957
      %v997 = vmul.f32 %v170, %v957
      %v998 = vmul.f32 %v177, %v958
      %v999 = vmul.f32 %v183, %v958
      %v1000 = vmul.f32 %v190, %v959
      %v1001 = vmul.f32 %v196, %v959
      %v1002 = vmul.f32 %v203, %v960
      %v1003 = vmul.f32 %v209, %v960
      %v1004 = vmul.f32 %v216, %v961
      %v1005 = vmul.f32 %v222, %v961
      %v1006 = vmul.f32 %v229, %v962
      %v1007 = vmul.f32 %v235, %v962
      %v1008 = vmul.f32 %v242, %v963
      %v1009 = vmul.f32 %v248, %v963
      %v1010 = vmul.f32 %v255, %v964
      %v1011 = vmul.f32 %v261, %v964
      %v1012 = vmul.f32 %v268, %v965
      %v1013 = vmul.f32 %v274, %v965
      %v1014 = vadd.f32 %v281, %v982
      %v1015 = vadd.f32 %v287, %v983
      %v1016 = vadd.f32 %v294, %v984
      %v1017 = vadd.f32 %v300, %v985
      %v1018 = vadd.f32 %v307, %v986
      %v1019 = vadd.f32 %v313, %v987
      %v1020 = vadd.f32 %v320, %v988
      %v1021 = vadd.f32 %v326, %v989
      %v1022 = vadd.f32 %v333, %v990
      %v1023 = vadd.f32 %v339, %v991
      %v1024 = vadd.f32 %v346, %v992
      %v1025 = vadd.f32 %v352, %v993
      %v1026 = vadd.f32 %v359, %v994
      %v1027 = vadd.f32 %v365, %v995
      %v1028 = vadd.f32 %v372, %v996
      %v1029 = vadd.f32 %v378, %v997
      %v1030 = vadd.f32 %v385, %v998
      %v1031 = vadd.f32 %v391, %v999
      %v1032 = vadd.f32 %v398, %v1000
      %v1033 = vadd.f32 %v404, %v1001
      %v1034 = vadd.f32 %v411, %v1002
      %v1035 = vadd.f32 %v417, %v1003
      %v1036 = vadd.f32 %v424, %v1004
      %v1037 = vadd.f32 %v430, %v1005
      %v1038 = vadd.f32 %v437, %v1006
      %v1039 = vadd.f32 %v443, %v1007
      %v1040 = vadd.f32 %v450, %v1008
      %v1041 = vadd.f32 %v456, %v1009
      %v1042 = vadd.f32 %v463, %v1010
      %v1043 = vadd.f32 %v469, %v1011
      %v1044 = vadd.f32 %v476, %v1012
      %v1045 = vadd.f32 %v482, %v1013
      %1046 = vst [vmem:[#allocation7] sm:$0xff] %v1014
      %1047 = vst [vmem:[#allocation7 + $0x8] sm:$0xff] %v1015
      %1048 = vst [vmem:[#allocation7 + $0x10] sm:$0xff] %v1016
      %1049 = vst [vmem:[#allocation7 + $0x18] sm:$0xff] %v1017
      %1050 = vst [vmem:[#allocation7 + $0x20] sm:$0xff] %v1018
      %1051 = vst [vmem:[#allocation7 + $0x28] sm:$0xff] %v1019
      %1052 = vst [vmem:[#allocation7 + $0x30] sm:$0xff] %v1020
      %1053 = vst [vmem:[#allocation7 + $0x38] sm:$0xff] %v1021
      %1054 = vst [vmem:[#allocation7 + $0x40] sm:$0xff] %v1022
      %1055 = vst [vmem:[#allocation7 + $0x48] sm:$0xff] %v1023
      %1056 = vst [vmem:[#allocation7 + $0x50] sm:$0xff] %v1024
      %1057 = vst [vmem:[#allocation7 + $0x58] sm:$0xff] %v1025
      %1058 = vst [vmem:[#allocation7 + $0x60] sm:$0xff] %v1026
      %1059 = vst [vmem:[#allocation7 + $0x68] sm:$0xff] %v1027
      %1060 = vst [vmem:[#allocation7 + $0x70] sm:$0xff] %v1028
      %1061 = vst [vmem:[#allocation7 + $0x78] sm:$0xff] %v1029
      %1062 = vst [vmem:[#allocation7 + $0x80] sm:$0xff] %v1030
      %1063 = vst [vmem:[#allocation7 + $0x88] sm:$0xff] %v1031
      %1064 = vst [vmem:[#allocation7 + $0x90] sm:$0xff] %v1032
      %1065 = vst [vmem:[#allocation7 + $0x98] sm:$0xff] %v1033
      %1066 = vst [vmem:[#allocation7 + $0xa0] sm:$0xff] %v1034
      %1067 = vst [vmem:[#allocation7 + $0xa8] sm:$0xff] %v1035
      %1068 = vst [vmem:[#allocation7 + $0xb0] sm:$0xff] %v1036
      %1069 = vst [vmem:[#allocation7 + $0xb8] sm:$0xff] %v1037
      %1070 = vst [vmem:[#allocation7 + $0xc0] sm:$0xff] %v1038
      %1071 = vst [vmem:[#allocation7 + $0xc8] sm:$0xff] %v1039
      %1072 = vst [vmem:[#allocation7 + $0xd0] sm:$0xff] %v1040
      %1073 = vst [vmem:[#allocation7 + $0xd8] sm:$0xff] %v1041
      %1074 = vst [vmem:[#allocation7 + $0xe0] sm:$0xff] %v1042
      %1075 = vst [vmem:[#allocation7 + $0xe8] sm:$0xff] %v1043
      %1076 = vst [vmem:[#allocation7 + $0xf0] sm:$0xff] %v1044
      %1077 = vst [vmem:[#allocation7 + $0xf8] sm:$0xff] %v1045
      %v1078 = vld [vmem:[#allocation7] sm:$0xff]
      %v1079 = vld [vmem:[#allocation7 + $0x8] sm:$0xff]
      %v1080 = vld [vmem:[#allocation7 + $0x10] sm:$0xff]
      %v1081 = vld [vmem:[#allocation7 + $0x18] sm:$0xff]
      %v1082 = vld [vmem:[#allocation7 + $0x20] sm:$0xff]
      %v1083 = vld [vmem:[#allocation7 + $0x28] sm:$0xff]
      %v1084 = vld [vmem:[#allocation7 + $0x30] sm:$0xff]
      %v1085 = vld [vmem:[#allocation7 + $0x38] sm:$0xff]
      %v1086 = vld [vmem:[#allocation7 + $0x40] sm:$0xff]
      %v1087 = vld [vmem:[#allocation7 + $0x48] sm:$0xff]
      %v1088 = vld [vmem:[#allocation7 + $0x50] sm:$0xff]
      %v1089 = vld [vmem:[#allocation7 + $0x58] sm:$0xff]
      %v1090 = vld [vmem:[#allocation7 + $0x60] sm:$0xff]
      %v1091 = vld [vmem:[#allocation7 + $0x68] sm:$0xff]
      %v1092 = vld [vmem:[#allocation7 + $0x70] sm:$0xff]
      %v1093 = vld [vmem:[#allocation7 + $0x78] sm:$0xff]
      %v1094 = vld [vmem:[#allocation7 + $0x80] sm:$0xff]
      %v1095 = vld [vmem:[#allocation7 + $0x88] sm:$0xff]
      %v1096 = vld [vmem:[#allocation7 + $0x90] sm:$0xff]
      %v1097 = vld [vmem:[#allocation7 + $0x98] sm:$0xff]
      %v1098 = vld [vmem:[#allocation7 + $0xa0] sm:$0xff]
      %v1099 = vld [vmem:[#allocation7 + $0xa8] sm:$0xff]
      %v1100 = vld [vmem:[#allocation7 + $0xb0] sm:$0xff]
      %v1101 = vld [vmem:[#allocation7 + $0xb8] sm:$0xff]
      %v1102 = vld [vmem:[#allocation7 + $0xc0] sm:$0xff]
      %v1103 = vld [vmem:[#allocation7 + $0xc8] sm:$0xff]
      %v1104 = vld [vmem:[#allocation7 + $0xd0] sm:$0xff]
      %v1105 = vld [vmem:[#allocation7 + $0xd8] sm:$0xff]
      %v1106 = vld [vmem:[#allocation7 + $0xe0] sm:$0xff]
      %v1107 = vld [vmem:[#allocation7 + $0xe8] sm:$0xff]
      %v1108 = vld [vmem:[#allocation7 + $0xf0] sm:$0xff]
      %v1109 = vld [vmem:[#allocation7 + $0xf8] sm:$0xff]
      %v1110 = vmax.f32 %v1078, 1e-12
      %v1111 = vrcp.pop %v1110
      %v1112 = vmul.f32 %v1110, %v1111
      %v1113 = vsub.f32 1.0, %v1112
      %v1114 = vmul.f32 %v1111, %v1113
      %v1115 = vadd.f32 %v1111, %v1114
      %vm1116 = vweird.f32 %v1110
      %vm1117 = vweird.f32 %v1111
      %vm1118 = vmor %vm1116, %vm1117
      %v1119 = vsel %vm1118, %v1111, %v1115
      %v1120 = vand.u32 2147483647, %v1110
      %vm1121 = vcmp.eq.f32.partialorder %v1120, 8.507059e+37
      %v1122 = vand.u32 %v1110, 2147483648
      %v1123 = vor.u32 1.1754944e-38, %v1122
      %v1124 = vsel %vm1121, %v1123, %v1119
      %v1125 = vmul.f32 1.0, %v1124
      %v1126 = vlaneseq
      %v1127 = vshrl.u32 %v1126, 7
      %1129 = vset.pattern.permute.xlu0 %v1127
      %1130 = vperm.xlu0 %1129, %v62
      %v1131 = vpop.permute.xlu0 %1130
      %v1132 = vlaneseq
      %v1133 = vshrl.u32 %v1132, 7
      %v1134 = vadd.s32 %v1133, 8
      %1135 = vset.pattern.permute.xlu0 %v1134
      %1136 = vperm.xlu0 %1135, %v62
      %v1137 = vpop.permute.xlu0 %1136
      %vm1138 = vcmp.eq.s32.totalorder %v1131, 0
      %vm1139 = vcmp.eq.s32.totalorder %v1137, 0
      %v1140 = vperm.slane %v59, 0
      %v1141 = vperm.slane %v59, 1
      %v1142 = vperm.slane %v59, 2
      %v1143 = vperm.slane %v59, 3
      %v1144 = vperm.slane %v59, 4
      %v1145 = vperm.slane %v59, 5
      %v1146 = vperm.slane %v59, 6
      %v1147 = vperm.slane %v59, 7
      %v1148 = vperm.slane %v60, 0
      %v1149 = vperm.slane %v60, 1
      %v1150 = vperm.slane %v60, 2
      %v1151 = vperm.slane %v60, 3
      %v1152 = vperm.slane %v60, 4
      %v1153 = vperm.slane %v60, 5
      %v1154 = vperm.slane %v60, 6
      %v1155 = vperm.slane %v60, 7
      %vm1156 = vcmp.eq.s32.totalorder %v1140, 0
      %vm1157 = vcmp.eq.s32.totalorder %v1141, 0
      %vm1158 = vcmp.eq.s32.totalorder %v1142, 0
      %vm1159 = vcmp.eq.s32.totalorder %v1143, 0
      %vm1160 = vcmp.eq.s32.totalorder %v1144, 0
      %vm1161 = vcmp.eq.s32.totalorder %v1145, 0
      %vm1162 = vcmp.eq.s32.totalorder %v1146, 0
      %vm1163 = vcmp.eq.s32.totalorder %v1147, 0
      %vm1164 = vcmp.eq.s32.totalorder %v1148, 0
      %vm1165 = vcmp.eq.s32.totalorder %v1149, 0
      %vm1166 = vcmp.eq.s32.totalorder %v1150, 0
      %vm1167 = vcmp.eq.s32.totalorder %v1151, 0
      %vm1168 = vcmp.eq.s32.totalorder %v1152, 0
      %vm1169 = vcmp.eq.s32.totalorder %v1153, 0
      %vm1170 = vcmp.eq.s32.totalorder %v1154, 0
      %vm1171 = vcmp.eq.s32.totalorder %v1155, 0
      %v1172 = vperm.slane %v1125, 0
      %v1173 = vmul.f32 %v1078, %v1172
      %v1174 = vmul.f32 %v1079, %v1172
      %v1175 = vsel %vm1138, 1, 0
      %v1176 = vsel %vm1139, 1, 0
      %vm1177 = vcmp.eq.s32.totalorder %v1175, 1
      %vm1178 = vcmp.eq.s32.totalorder %v1176, 1
      %v1179 = vsel %vm1177, %v1172, %v1173
      %v1180 = vsel %vm1178, %v1172, %v1174
      %v1181 = vsel %vm1177, 0.0, %v1078
      %v1182 = vsel %vm1178, 0.0, %v1079
      %v1183 = vsel %vm1177, 0.0, %v1080
      %v1184 = vsel %vm1178, 0.0, %v1081
      %v1185 = vsel %vm1177, 0.0, %v1082
      %v1186 = vsel %vm1178, 0.0, %v1083
      %v1187 = vsel %vm1177, 0.0, %v1084
      %v1188 = vsel %vm1178, 0.0, %v1085
      %v1189 = vsel %vm1177, 0.0, %v1086
      %v1190 = vsel %vm1178, 0.0, %v1087
      %v1191 = vsel %vm1177, 0.0, %v1088
      %v1192 = vsel %vm1178, 0.0, %v1089
      %v1193 = vsel %vm1177, 0.0, %v1090
      %v1194 = vsel %vm1178, 0.0, %v1091
      %v1195 = vsel %vm1177, 0.0, %v1092
      %v1196 = vsel %vm1178, 0.0, %v1093
      %v1197 = vsel %vm1177, 0.0, %v1094
      %v1198 = vsel %vm1178, 0.0, %v1095
      %v1199 = vsel %vm1177, 0.0, %v1096
      %v1200 = vsel %vm1178, 0.0, %v1097
      %v1201 = vsel %vm1177, 0.0, %v1098
      %v1202 = vsel %vm1178, 0.0, %v1099
      %v1203 = vsel %vm1177, 0.0, %v1100
      %v1204 = vsel %vm1178, 0.0, %v1101
      %v1205 = vsel %vm1177, 0.0, %v1102
      %v1206 = vsel %vm1178, 0.0, %v1103
      %v1207 = vsel %vm1177, 0.0, %v1104
      %v1208 = vsel %vm1178, 0.0, %v1105
      %v1209 = vsel %vm1177, 0.0, %v1106
      %v1210 = vsel %vm1178, 0.0, %v1107
      %v1211 = vsel %vm1177, 0.0, %v1108
      %v1212 = vsel %vm1178, 0.0, %v1109
      %v1213 = vperm.slane %v1078, 0
      %v1214 = vperm.slane %v1080, 0
      %v1215 = vperm.slane %v1082, 0
      %v1216 = vperm.slane %v1084, 0
      %v1217 = vperm.slane %v1086, 0
      %v1218 = vperm.slane %v1088, 0
      %v1219 = vperm.slane %v1090, 0
      %v1220 = vperm.slane %v1092, 0
      %v1221 = vperm.slane %v1094, 0
      %v1222 = vperm.slane %v1096, 0
      %v1223 = vperm.slane %v1098, 0
      %v1224 = vperm.slane %v1100, 0
      %v1225 = vperm.slane %v1102, 0
      %v1226 = vperm.slane %v1104, 0
      %v1227 = vperm.slane %v1106, 0
      %v1228 = vperm.slane %v1108, 0
      %v1229 = vmul.f32 %v1213, %v1179
      %v1230 = vmul.f32 %v1213, %v1180
      %v1231 = vmul.f32 %v1214, %v1179
      %v1232 = vmul.f32 %v1214, %v1180
      %v1233 = vmul.f32 %v1215, %v1179
      %v1234 = vmul.f32 %v1215, %v1180
      %v1235 = vmul.f32 %v1216, %v1179
      %v1236 = vmul.f32 %v1216, %v1180
      %v1237 = vmul.f32 %v1217, %v1179
      %v1238 = vmul.f32 %v1217, %v1180
      %v1239 = vmul.f32 %v1218, %v1179
      %v1240 = vmul.f32 %v1218, %v1180
      %v1241 = vmul.f32 %v1219, %v1179
      %v1242 = vmul.f32 %v1219, %v1180
      %v1243 = vmul.f32 %v1220, %v1179
      %v1244 = vmul.f32 %v1220, %v1180
      %v1245 = vmul.f32 %v1221, %v1179
      %v1246 = vmul.f32 %v1221, %v1180
      %v1247 = vmul.f32 %v1222, %v1179
      %v1248 = vmul.f32 %v1222, %v1180
      %v1249 = vmul.f32 %v1223, %v1179
      %v1250 = vmul.f32 %v1223, %v1180
      %v1251 = vmul.f32 %v1224, %v1179
      %v1252 = vmul.f32 %v1224, %v1180
      %v1253 = vmul.f32 %v1225, %v1179
      %v1254 = vmul.f32 %v1225, %v1180
      %v1255 = vmul.f32 %v1226, %v1179
      %v1256 = vmul.f32 %v1226, %v1180
      %v1257 = vmul.f32 %v1227, %v1179
      %v1258 = vmul.f32 %v1227, %v1180
      %v1259 = vmul.f32 %v1228, %v1179
      %v1260 = vmul.f32 %v1228, %v1180
      %v1261 = vsub.f32 %v1181, %v1229
      %v1262 = vsub.f32 %v1182, %v1230
      %v1263 = vsub.f32 %v1183, %v1231
      %v1264 = vsub.f32 %v1184, %v1232
      %v1265 = vsub.f32 %v1185, %v1233
      %v1266 = vsub.f32 %v1186, %v1234
      %v1267 = vsub.f32 %v1187, %v1235
      %v1268 = vsub.f32 %v1188, %v1236
      %v1269 = vsub.f32 %v1189, %v1237
      %v1270 = vsub.f32 %v1190, %v1238
      %v1271 = vsub.f32 %v1191, %v1239
      %v1272 = vsub.f32 %v1192, %v1240
      %v1273 = vsub.f32 %v1193, %v1241
      %v1274 = vsub.f32 %v1194, %v1242
      %v1275 = vsub.f32 %v1195, %v1243
      %v1276 = vsub.f32 %v1196, %v1244
      %v1277 = vsub.f32 %v1197, %v1245
      %v1278 = vsub.f32 %v1198, %v1246
      %v1279 = vsub.f32 %v1199, %v1247
      %v1280 = vsub.f32 %v1200, %v1248
      %v1281 = vsub.f32 %v1201, %v1249
      %v1282 = vsub.f32 %v1202, %v1250
      %v1283 = vsub.f32 %v1203, %v1251
      %v1284 = vsub.f32 %v1204, %v1252
      %v1285 = vsub.f32 %v1205, %v1253
      %v1286 = vsub.f32 %v1206, %v1254
      %v1287 = vsub.f32 %v1207, %v1255
      %v1288 = vsub.f32 %v1208, %v1256
      %v1289 = vsub.f32 %v1209, %v1257
      %v1290 = vsub.f32 %v1210, %v1258
      %v1291 = vsub.f32 %v1211, %v1259
      %v1292 = vsub.f32 %v1212, %v1260
      %v1293 = vsel %vm1156, 1, 0
      %v1294 = vsel %vm1157, 1, 0
      %v1295 = vsel %vm1158, 1, 0
      %v1296 = vsel %vm1159, 1, 0
      %v1297 = vsel %vm1160, 1, 0
      %v1298 = vsel %vm1161, 1, 0
      %v1299 = vsel %vm1162, 1, 0
      %v1300 = vsel %vm1163, 1, 0
      %v1301 = vsel %vm1164, 1, 0
      %v1302 = vsel %vm1165, 1, 0
      %v1303 = vsel %vm1166, 1, 0
      %v1304 = vsel %vm1167, 1, 0
      %v1305 = vsel %vm1168, 1, 0
      %v1306 = vsel %vm1169, 1, 0
      %v1307 = vsel %vm1170, 1, 0
      %v1308 = vsel %vm1171, 1, 0
      %vm1309 = vcmp.eq.s32.totalorder %v1293, 1
      %vm1310 = vcmp.eq.s32.totalorder %v1294, 1
      %vm1311 = vcmp.eq.s32.totalorder %v1295, 1
      %vm1312 = vcmp.eq.s32.totalorder %v1296, 1
      %vm1313 = vcmp.eq.s32.totalorder %v1297, 1
      %vm1314 = vcmp.eq.s32.totalorder %v1298, 1
      %vm1315 = vcmp.eq.s32.totalorder %v1299, 1
      %vm1316 = vcmp.eq.s32.totalorder %v1300, 1
      %vm1317 = vcmp.eq.s32.totalorder %v1301, 1
      %vm1318 = vcmp.eq.s32.totalorder %v1302, 1
      %vm1319 = vcmp.eq.s32.totalorder %v1303, 1
      %vm1320 = vcmp.eq.s32.totalorder %v1304, 1
      %vm1321 = vcmp.eq.s32.totalorder %v1305, 1
      %vm1322 = vcmp.eq.s32.totalorder %v1306, 1
      %vm1323 = vcmp.eq.s32.totalorder %v1307, 1
      %vm1324 = vcmp.eq.s32.totalorder %v1308, 1
      %v1325 = vsel %vm1309, %v1179, %v1261
      %v1326 = vsel %vm1309, %v1180, %v1262
      %v1327 = vsel %vm1310, %v1179, %v1263
      %v1328 = vsel %vm1310, %v1180, %v1264
      %v1329 = vsel %vm1311, %v1179, %v1265
      %v1330 = vsel %vm1311, %v1180, %v1266
      %v1331 = vsel %vm1312, %v1179, %v1267
      %v1332 = vsel %vm1312, %v1180, %v1268
      %v1333 = vsel %vm1313, %v1179, %v1269
      %v1334 = vsel %vm1313, %v1180, %v1270
      %v1335 = vsel %vm1314, %v1179, %v1271
      %v1336 = vsel %vm1314, %v1180, %v1272
      %v1337 = vsel %vm1315, %v1179, %v1273
      %v1338 = vsel %vm1315, %v1180, %v1274
      %v1339 = vsel %vm1316, %v1179, %v1275
      %v1340 = vsel %vm1316, %v1180, %v1276
      %v1341 = vsel %vm1317, %v1179, %v1277
      %v1342 = vsel %vm1317, %v1180, %v1278
      %v1343 = vsel %vm1318, %v1179, %v1279
      %v1344 = vsel %vm1318, %v1180, %v1280
      %v1345 = vsel %vm1319, %v1179, %v1281
      %v1346 = vsel %vm1319, %v1180, %v1282
      %v1347 = vsel %vm1320, %v1179, %v1283
      %v1348 = vsel %vm1320, %v1180, %v1284
      %v1349 = vsel %vm1321, %v1179, %v1285
      %v1350 = vsel %vm1321, %v1180, %v1286
      %v1351 = vsel %vm1322, %v1179, %v1287
      %v1352 = vsel %vm1322, %v1180, %v1288
      %v1353 = vsel %vm1323, %v1179, %v1289
      %v1354 = vsel %vm1323, %v1180, %v1290
      %v1355 = vsel %vm1324, %v1179, %v1291
      %v1356 = vsel %vm1324, %v1180, %v1292
      %1357 = vst [vmem:[#allocation7] sm:$0xff] %v1325
      %1358 = vst [vmem:[#allocation7 + $0x8] sm:$0xff] %v1326
      %1359 = vst [vmem:[#allocation7 + $0x10] sm:$0xff] %v1327
      %1360 = vst [vmem:[#allocation7 + $0x18] sm:$0xff] %v1328
      %1361 = vst [vmem:[#allocation7 + $0x20] sm:$0xff] %v1329
      %1362 = vst [vmem:[#allocation7 + $0x28] sm:$0xff] %v1330
      %1363 = vst [vmem:[#allocation7 + $0x30] sm:$0xff] %v1331
      %1364 = vst [vmem:[#allocation7 + $0x38] sm:$0xff] %v1332
      %1365 = vst [vmem:[#allocation7 + $0x40] sm:$0xff] %v1333
      %1366 = vst [vmem:[#allocation7 + $0x48] sm:$0xff] %v1334
      %1367 = vst [vmem:[#allocation7 + $0x50] sm:$0xff] %v1335
      %1368 = vst [vmem:[#allocation7 + $0x58] sm:$0xff] %v1336
      %1369 = vst [vmem:[#allocation7 + $0x60] sm:$0xff] %v1337
      %1370 = vst [vmem:[#allocation7 + $0x68] sm:$0xff] %v1338
      %1371 = vst [vmem:[#allocation7 + $0x70] sm:$0xff] %v1339
      %1372 = vst [vmem:[#allocation7 + $0x78] sm:$0xff] %v1340
      %1373 = vst [vmem:[#allocation7 + $0x80] sm:$0xff] %v1341
      %1374 = vst [vmem:[#allocation7 + $0x88] sm:$0xff] %v1342
      %1375 = vst [vmem:[#allocation7 + $0x90] sm:$0xff] %v1343
      %1376 = vst [vmem:[#allocation7 + $0x98] sm:$0xff] %v1344
      %1377 = vst [vmem:[#allocation7 + $0xa0] sm:$0xff] %v1345
      %1378 = vst [vmem:[#allocation7 + $0xa8] sm:$0xff] %v1346
      %1379 = vst [vmem:[#allocation7 + $0xb0] sm:$0xff] %v1347
      %1380 = vst [vmem:[#allocation7 + $0xb8] sm:$0xff] %v1348
      %1381 = vst [vmem:[#allocation7 + $0xc0] sm:$0xff] %v1349
      %1382 = vst [vmem:[#allocation7 + $0xc8] sm:$0xff] %v1350
      %1383 = vst [vmem:[#allocation7 + $0xd0] sm:$0xff] %v1351
      %1384 = vst [vmem:[#allocation7 + $0xd8] sm:$0xff] %v1352
      %1385 = vst [vmem:[#allocation7 + $0xe0] sm:$0xff] %v1353
      %1386 = vst [vmem:[#allocation7 + $0xe8] sm:$0xff] %v1354
      %1387 = vst [vmem:[#allocation7 + $0xf0] sm:$0xff] %v1355
      %1388 = vst [vmem:[#allocation7 + $0xf8] sm:$0xff] %v1356
      %v1389 = vld [vmem:[#allocation7] sm:$0xff]
      %v1390 = vld [vmem:[#allocation7 + $0x8] sm:$0xff]
      %v1391 = vld [vmem:[#allocation7 + $0x10] sm:$0xff]
      %v1392 = vld [vmem:[#allocation7 + $0x18] sm:$0xff]
      %v1393 = vld [vmem:[#allocation7 + $0x20] sm:$0xff]
      %v1394 = vld [vmem:[#allocation7 + $0x28] sm:$0xff]
      %v1395 = vld [vmem:[#allocation7 + $0x30] sm:$0xff]
      %v1396 = vld [vmem:[#allocation7 + $0x38] sm:$0xff]
      %v1397 = vld [vmem:[#allocation7 + $0x40] sm:$0xff]
      %v1398 = vld [vmem:[#allocation7 + $0x48] sm:$0xff]
      %v1399 = vld [vmem:[#allocation7 + $0x50] sm:$0xff]
      %v1400 = vld [vmem:[#allocation7 + $0x58] sm:$0xff]
      %v1401 = vld [vmem:[#allocation7 + $0x60] sm:$0xff]
      %v1402 = vld [vmem:[#allocation7 + $0x68] sm:$0xff]
      %v1403 = vld [vmem:[#allocation7 + $0x70] sm:$0xff]
      %v1404 = vld [vmem:[#allocation7 + $0x78] sm:$0xff]
      %v1405 = vld [vmem:[#allocation7 + $0x80] sm:$0xff]
      %v1406 = vld [vmem:[#allocation7 + $0x88] sm:$0xff]
      %v1407 = vld [vmem:[#allocation7 + $0x90] sm:$0xff]
      %v1408 = vld [vmem:[#allocation7 + $0x98] sm:$0xff]
      %v1409 = vld [vmem:[#allocation7 + $0xa0] sm:$0xff]
      %v1410 = vld [vmem:[#allocation7 + $0xa8] sm:$0xff]
      %v1411 = vld [vmem:[#allocation7 + $0xb0] sm:$0xff]
      %v1412 = vld [vmem:[#allocation7 + $0xb8] sm:$0xff]
      %v1413 = vld [vmem:[#allocation7 + $0xc0] sm:$0xff]
      %v1414 = vld [vmem:[#allocation7 + $0xc8] sm:$0xff]
      %v1415 = vld [vmem:[#allocation7 + $0xd0] sm:$0xff]
      %v1416 = vld [vmem:[#allocation7 + $0xd8] sm:$0xff]
      %v1417 = vld [vmem:[#allocation7 + $0xe0] sm:$0xff]
      %v1418 = vld [vmem:[#allocation7 + $0xe8] sm:$0xff]
      %v1419 = vld [vmem:[#allocation7 + $0xf0] sm:$0xff]
      %v1420 = vld [vmem:[#allocation7 + $0xf8] sm:$0xff]
      %v1421 = vmax.f32 %v1391, 1e-12
      %v1422 = vrcp.pop %v1421
      %v1423 = vmul.f32 %v1421, %v1422
      %v1424 = vsub.f32 1.0, %v1423
      %v1425 = vmul.f32 %v1422, %v1424
      %v1426 = vadd.f32 %v1422, %v1425
      %vm1427 = vweird.f32 %v1421
      %vm1428 = vweird.f32 %v1422
      %vm1429 = vmor %vm1427, %vm1428
      %v1430 = vsel %vm1429, %v1422, %v1426
      %v1431 = vand.u32 2147483647, %v1421
      %vm1432 = vcmp.eq.f32.partialorder %v1431, 8.507059e+37
      %v1433 = vand.u32 %v1421, 2147483648
      %v1434 = vor.u32 1.1754944e-38, %v1433
      %v1435 = vsel %vm1432, %v1434, %v1430
      %v1436 = vmul.f32 1.0, %v1435
      %vm1437 = vcmp.eq.s32.totalorder %v1131, 1
      %vm1438 = vcmp.eq.s32.totalorder %v1137, 1
      %vm1439 = vcmp.eq.s32.totalorder %v1140, 1
      %vm1440 = vcmp.eq.s32.totalorder %v1141, 1
      %vm1441 = vcmp.eq.s32.totalorder %v1142, 1
      %vm1442 = vcmp.eq.s32.totalorder %v1143, 1
      %vm1443 = vcmp.eq.s32.totalorder %v1144, 1
      %vm1444 = vcmp.eq.s32.totalorder %v1145, 1
      %vm1445 = vcmp.eq.s32.totalorder %v1146, 1
      %vm1446 = vcmp.eq.s32.totalorder %v1147, 1
      %vm1447 = vcmp.eq.s32.totalorder %v1148, 1
      %vm1448 = vcmp.eq.s32.totalorder %v1149, 1
      %vm1449 = vcmp.eq.s32.totalorder %v1150, 1
      %vm1450 = vcmp.eq.s32.totalorder %v1151, 1
      %vm1451 = vcmp.eq.s32.totalorder %v1152, 1
      %vm1452 = vcmp.eq.s32.totalorder %v1153, 1
      %vm1453 = vcmp.eq.s32.totalorder %v1154, 1
      %vm1454 = vcmp.eq.s32.totalorder %v1155, 1
      %v1455 = vperm.slane %v1436, 1
      %v1456 = vmul.f32 %v1391, %v1455
      %v1457 = vmul.f32 %v1392, %v1455
      %v1458 = vsel %vm1437, 1, 0
      %v1459 = vsel %vm1438, 1, 0
      %vm1460 = vcmp.eq.s32.totalorder %v1458, 1
      %vm1461 = vcmp.eq.s32.totalorder %v1459, 1
      %v1462 = vsel %vm1460, %v1455, %v1456
      %v1463 = vsel %vm1461, %v1455, %v1457
      %v1464 = vsel %vm1460, 0.0, %v1389
      %v1465 = vsel %vm1461, 0.0, %v1390
      %v1466 = vsel %vm1460, 0.0, %v1391
      %v1467 = vsel %vm1461, 0.0, %v1392
      %v1468 = vsel %vm1460, 0.0, %v1393
      %v1469 = vsel %vm1461, 0.0, %v1394
      %v1470 = vsel %vm1460, 0.0, %v1395
      %v1471 = vsel %vm1461, 0.0, %v1396
      %v1472 = vsel %vm1460, 0.0, %v1397
      %v1473 = vsel %vm1461, 0.0, %v1398
      %v1474 = vsel %vm1460, 0.0, %v1399
      %v1475 = vsel %vm1461, 0.0, %v1400
      %v1476 = vsel %vm1460, 0.0, %v1401
      %v1477 = vsel %vm1461, 0.0, %v1402
      %v1478 = vsel %vm1460, 0.0, %v1403
      %v1479 = vsel %vm1461, 0.0, %v1404
      %v1480 = vsel %vm1460, 0.0, %v1405
      %v1481 = vsel %vm1461, 0.0, %v1406
      %v1482 = vsel %vm1460, 0.0, %v1407
      %v1483 = vsel %vm1461, 0.0, %v1408
      %v1484 = vsel %vm1460, 0.0, %v1409
      %v1485 = vsel %vm1461, 0.0, %v1410
      %v1486 = vsel %vm1460, 0.0, %v1411
      %v1487 = vsel %vm1461, 0.0, %v1412
      %v1488 = vsel %vm1460, 0.0, %v1413
      %v1489 = vsel %vm1461, 0.0, %v1414
      %v1490 = vsel %vm1460, 0.0, %v1415
      %v1491 = vsel %vm1461, 0.0, %v1416
      %v1492 = vsel %vm1460, 0.0, %v1417
      %v1493 = vsel %vm1461, 0.0, %v1418
      %v1494 = vsel %vm1460, 0.0, %v1419
      %v1495 = vsel %vm1461, 0.0, %v1420
      %v1496 = vperm.slane %v1389, 1
      %v1497 = vperm.slane %v1391, 1
      %v1498 = vperm.slane %v1393, 1
      %v1499 = vperm.slane %v1395, 1
      %v1500 = vperm.slane %v1397, 1
      %v1501 = vperm.slane %v1399, 1
      %v1502 = vperm.slane %v1401, 1
      %v1503 = vperm.slane %v1403, 1
      %v1504 = vperm.slane %v1405, 1
      %v1505 = vperm.slane %v1407, 1
      %v1506 = vperm.slane %v1409, 1
      %v1507 = vperm.slane %v1411, 1
      %v1508 = vperm.slane %v1413, 1
      %v1509 = vperm.slane %v1415, 1
      %v1510 = vperm.slane %v1417, 1
      %v1511 = vperm.slane %v1419, 1
      %v1512 = vmul.f32 %v1496, %v1462
      %v1513 = vmul.f32 %v1496, %v1463
      %v1514 = vmul.f32 %v1497, %v1462
      %v1515 = vmul.f32 %v1497, %v1463
      %v1516 = vmul.f32 %v1498, %v1462
      %v1517 = vmul.f32 %v1498, %v1463
      %v1518 = vmul.f32 %v1499, %v1462
      %v1519 = vmul.f32 %v1499, %v1463
      %v1520 = vmul.f32 %v1500, %v1462
      %v1521 = vmul.f32 %v1500, %v1463
      %v1522 = vmul.f32 %v1501, %v1462
      %v1523 = vmul.f32 %v1501, %v1463
      %v1524 = vmul.f32 %v1502, %v1462
      %v1525 = vmul.f32 %v1502, %v1463
      %v1526 = vmul.f32 %v1503, %v1462
      %v1527 = vmul.f32 %v1503, %v1463
      %v1528 = vmul.f32 %v1504, %v1462
      %v1529 = vmul.f32 %v1504, %v1463
      %v1530 = vmul.f32 %v1505, %v1462
      %v1531 = vmul.f32 %v1505, %v1463
      %v1532 = vmul.f32 %v1506, %v1462
      %v1533 = vmul.f32 %v1506, %v1463
      %v1534 = vmul.f32 %v1507, %v1462
      %v1535 = vmul.f32 %v1507, %v1463
      %v1536 = vmul.f32 %v1508, %v1462
      %v1537 = vmul.f32 %v1508, %v1463
      %v1538 = vmul.f32 %v1509, %v1462
      %v1539 = vmul.f32 %v1509, %v1463
      %v1540 = vmul.f32 %v1510, %v1462
      %v1541 = vmul.f32 %v1510, %v1463
      %v1542 = vmul.f32 %v1511, %v1462
      %v1543 = vmul.f32 %v1511, %v1463
      %v1544 = vsub.f32 %v1464, %v1512
      %v1545 = vsub.f32 %v1465, %v1513
      %v1546 = vsub.f32 %v1466, %v1514
      %v1547 = vsub.f32 %v1467, %v1515
      %v1548 = vsub.f32 %v1468, %v1516
      %v1549 = vsub.f32 %v1469, %v1517
      %v1550 = vsub.f32 %v1470, %v1518
      %v1551 = vsub.f32 %v1471, %v1519
      %v1552 = vsub.f32 %v1472, %v1520
      %v1553 = vsub.f32 %v1473, %v1521
      %v1554 = vsub.f32 %v1474, %v1522
      %v1555 = vsub.f32 %v1475, %v1523
      %v1556 = vsub.f32 %v1476, %v1524
      %v1557 = vsub.f32 %v1477, %v1525
      %v1558 = vsub.f32 %v1478, %v1526
      %v1559 = vsub.f32 %v1479, %v1527
      %v1560 = vsub.f32 %v1480, %v1528
      %v1561 = vsub.f32 %v1481, %v1529
      %v1562 = vsub.f32 %v1482, %v1530
      %v1563 = vsub.f32 %v1483, %v1531
      %v1564 = vsub.f32 %v1484, %v1532
      %v1565 = vsub.f32 %v1485, %v1533
      %v1566 = vsub.f32 %v1486, %v1534
      %v1567 = vsub.f32 %v1487, %v1535
      %v1568 = vsub.f32 %v1488, %v1536
      %v1569 = vsub.f32 %v1489, %v1537
      %v1570 = vsub.f32 %v1490, %v1538
      %v1571 = vsub.f32 %v1491, %v1539
      %v1572 = vsub.f32 %v1492, %v1540
      %v1573 = vsub.f32 %v1493, %v1541
      %v1574 = vsub.f32 %v1494, %v1542
      %v1575 = vsub.f32 %v1495, %v1543
      %v1576 = vsel %vm1439, 1, 0
      %v1577 = vsel %vm1440, 1, 0
      %v1578 = vsel %vm1441, 1, 0
      %v1579 = vsel %vm1442, 1, 0
      %v1580 = vsel %vm1443, 1, 0
      %v1581 = vsel %vm1444, 1, 0
      %v1582 = vsel %vm1445, 1, 0
      %v1583 = vsel %vm1446, 1, 0
      %v1584 = vsel %vm1447, 1, 0
      %v1585 = vsel %vm1448, 1, 0
      %v1586 = vsel %vm1449, 1, 0
      %v1587 = vsel %vm1450, 1, 0
      %v1588 = vsel %vm1451, 1, 0
      %v1589 = vsel %vm1452, 1, 0
      %v1590 = vsel %vm1453, 1, 0
      %v1591 = vsel %vm1454, 1, 0
      %vm1592 = vcmp.eq.s32.totalorder %v1576, 1
      %vm1593 = vcmp.eq.s32.totalorder %v1577, 1
      %vm1594 = vcmp.eq.s32.totalorder %v1578, 1
      %vm1595 = vcmp.eq.s32.totalorder %v1579, 1
      %vm1596 = vcmp.eq.s32.totalorder %v1580, 1
      %vm1597 = vcmp.eq.s32.totalorder %v1581, 1
      %vm1598 = vcmp.eq.s32.totalorder %v1582, 1
      %vm1599 = vcmp.eq.s32.totalorder %v1583, 1
      %vm1600 = vcmp.eq.s32.totalorder %v1584, 1
      %vm1601 = vcmp.eq.s32.totalorder %v1585, 1
      %vm1602 = vcmp.eq.s32.totalorder %v1586, 1
      %vm1603 = vcmp.eq.s32.totalorder %v1587, 1
      %vm1604 = vcmp.eq.s32.totalorder %v1588, 1
      %vm1605 = vcmp.eq.s32.totalorder %v1589, 1
      %vm1606 = vcmp.eq.s32.totalorder %v1590, 1
      %vm1607 = vcmp.eq.s32.totalorder %v1591, 1
      %v1608 = vsel %vm1592, %v1462, %v1544
      %v1609 = vsel %vm1592, %v1463, %v1545
      %v1610 = vsel %vm1593, %v1462, %v1546
      %v1611 = vsel %vm1593, %v1463, %v1547
      %v1612 = vsel %vm1594, %v1462, %v1548
      %v1613 = vsel %vm1594, %v1463, %v1549
      %v1614 = vsel %vm1595, %v1462, %v1550
      %v1615 = vsel %vm1595, %v1463, %v1551
      %v1616 = vsel %vm1596, %v1462, %v1552
      %v1617 = vsel %vm1596, %v1463, %v1553
      %v1618 = vsel %vm1597, %v1462, %v1554
      %v1619 = vsel %vm1597, %v1463, %v1555
      %v1620 = vsel %vm1598, %v1462, %v1556
      %v1621 = vsel %vm1598, %v1463, %v1557
      %v1622 = vsel %vm1599, %v1462, %v1558
      %v1623 = vsel %vm1599, %v1463, %v1559
      %v1624 = vsel %vm1600, %v1462, %v1560
      %v1625 = vsel %vm1600, %v1463, %v1561
      %v1626 = vsel %vm1601, %v1462, %v1562
      %v1627 = vsel %vm1601, %v1463, %v1563
      %v1628 = vsel %vm1602, %v1462, %v1564
      %v1629 = vsel %vm1602, %v1463, %v1565
      %v1630 = vsel %vm1603, %v1462, %v1566
      %v1631 = vsel %vm1603, %v1463, %v1567
      %v1632 = vsel %vm1604, %v1462, %v1568
      %v1633 = vsel %vm1604, %v1463, %v1569
      %v1634 = vsel %vm1605, %v1462, %v1570
      %v1635 = vsel %vm1605, %v1463, %v1571
      %v1636 = vsel %vm1606, %v1462, %v1572
      %v1637 = vsel %vm1606, %v1463, %v1573
      %v1638 = vsel %vm1607, %v1462, %v1574
      %v1639 = vsel %vm1607, %v1463, %v1575
      %1640 = vst [vmem:[#allocation7] sm:$0xff] %v1608
      %1641 = vst [vmem:[#allocation7 + $0x8] sm:$0xff] %v1609
      %1642 = vst [vmem:[#allocation7 + $0x10] sm:$0xff] %v1610
      %1643 = vst [vmem:[#allocation7 + $0x18] sm:$0xff] %v1611
      %1644 = vst [vmem:[#allocation7 + $0x20] sm:$0xff] %v1612
      %1645 = vst [vmem:[#allocation7 + $0x28] sm:$0xff] %v1613
      %1646 = vst [vmem:[#allocation7 + $0x30] sm:$0xff] %v1614
      %1647 = vst [vmem:[#allocation7 + $0x38] sm:$0xff] %v1615
      %1648 = vst [vmem:[#allocation7 + $0x40] sm:$0xff] %v1616
      %1649 = vst [vmem:[#allocation7 + $0x48] sm:$0xff] %v1617
      %1650 = vst [vmem:[#allocation7 + $0x50] sm:$0xff] %v1618
      %1651 = vst [vmem:[#allocation7 + $0x58] sm:$0xff] %v1619
      %1652 = vst [vmem:[#allocation7 + $0x60] sm:$0xff] %v1620
      %1653 = vst [vmem:[#allocation7 + $0x68] sm:$0xff] %v1621
      %1654 = vst [vmem:[#allocation7 + $0x70] sm:$0xff] %v1622
      %1655 = vst [vmem:[#allocation7 + $0x78] sm:$0xff] %v1623
      %1656 = vst [vmem:[#allocation7 + $0x80] sm:$0xff] %v1624
      %1657 = vst [vmem:[#allocation7 + $0x88] sm:$0xff] %v1625
      %1658 = vst [vmem:[#allocation7 + $0x90] sm:$0xff] %v1626
      %1659 = vst [vmem:[#allocation7 + $0x98] sm:$0xff] %v1627
      %1660 = vst [vmem:[#allocation7 + $0xa0] sm:$0xff] %v1628
      %1661 = vst [vmem:[#allocation7 + $0xa8] sm:$0xff] %v1629
      %1662 = vst [vmem:[#allocation7 + $0xb0] sm:$0xff] %v1630
      %1663 = vst [vmem:[#allocation7 + $0xb8] sm:$0xff] %v1631
      %1664 = vst [vmem:[#allocation7 + $0xc0] sm:$0xff] %v1632
      %1665 = vst [vmem:[#allocation7 + $0xc8] sm:$0xff] %v1633
      %1666 = vst [vmem:[#allocation7 + $0xd0] sm:$0xff] %v1634
      %1667 = vst [vmem:[#allocation7 + $0xd8] sm:$0xff] %v1635
      %1668 = vst [vmem:[#allocation7 + $0xe0] sm:$0xff] %v1636
      %1669 = vst [vmem:[#allocation7 + $0xe8] sm:$0xff] %v1637
      %1670 = vst [vmem:[#allocation7 + $0xf0] sm:$0xff] %v1638
      %1671 = vst [vmem:[#allocation7 + $0xf8] sm:$0xff] %v1639
      %v1672 = vld [vmem:[#allocation7] sm:$0xff]
      %v1673 = vld [vmem:[#allocation7 + $0x8] sm:$0xff]
      %v1674 = vld [vmem:[#allocation7 + $0x10] sm:$0xff]
      %v1675 = vld [vmem:[#allocation7 + $0x18] sm:$0xff]
      %v1676 = vld [vmem:[#allocation7 + $0x20] sm:$0xff]
      %v1677 = vld [vmem:[#allocation7 + $0x28] sm:$0xff]
      %v1678 = vld [vmem:[#allocation7 + $0x30] sm:$0xff]
      %v1679 = vld [vmem:[#allocation7 + $0x38] sm:$0xff]
      %v1680 = vld [vmem:[#allocation7 + $0x40] sm:$0xff]
      %v1681 = vld [vmem:[#allocation7 + $0x48] sm:$0xff]
      %v1682 = vld [vmem:[#allocation7 + $0x50] sm:$0xff]
      %v1683 = vld [vmem:[#allocation7 + $0x58] sm:$0xff]
      %v1684 = vld [vmem:[#allocation7 + $0x60] sm:$0xff]
      %v1685 = vld [vmem:[#allocation7 + $0x68] sm:$0xff]
      %v1686 = vld [vmem:[#allocation7 + $0x70] sm:$0xff]
      %v1687 = vld [vmem:[#allocation7 + $0x78] sm:$0xff]
      %v1688 = vld [vmem:[#allocation7 + $0x80] sm:$0xff]
      %v1689 = vld [vmem:[#allocation7 + $0x88] sm:$0xff]
      %v1690 = vld [vmem:[#allocation7 + $0x90] sm:$0xff]
      %v1691 = vld [vmem:[#allocation7 + $0x98] sm:$0xff]
      %v1692 = vld [vmem:[#allocation7 + $0xa0] sm:$0xff]
      %v1693 = vld [vmem:[#allocation7 + $0xa8] sm:$0xff]
      %v1694 = vld [vmem:[#allocation7 + $0xb0] sm:$0xff]
      %v1695 = vld [vmem:[#allocation7 + $0xb8] sm:$0xff]
      %v1696 = vld [vmem:[#allocation7 + $0xc0] sm:$0xff]
      %v1697 = vld [vmem:[#allocation7 + $0xc8] sm:$0xff]
      %v1698 = vld [vmem:[#allocation7 + $0xd0] sm:$0xff]
      %v1699 = vld [vmem:[#allocation7 + $0xd8] sm:$0xff]
      %v1700 = vld [vmem:[#allocation7 + $0xe0] sm:$0xff]
      %v1701 = vld [vmem:[#allocation7 + $0xe8] sm:$0xff]
      %v1702 = vld [vmem:[#allocation7 + $0xf0] sm:$0xff]
      %v1703 = vld [vmem:[#allocation7 + $0xf8] sm:$0xff]
      %v1704 = vmax.f32 %v1676, 1e-12
      %v1705 = vrcp.pop %v1704
      %v1706 = vmul.f32 %v1704, %v1705
      %v1707 = vsub.f32 1.0, %v1706
      %v1708 = vmul.f32 %v1705, %v1707
      %v1709 = vadd.f32 %v1705, %v1708
      %vm1710 = vweird.f32 %v1704
      %vm1711 = vweird.f32 %v1705
      %vm1712 = vmor %vm1710, %vm1711
      %v1713 = vsel %vm1712, %v1705, %v1709
      %v1714 = vand.u32 2147483647, %v1704
      %vm1715 = vcmp.eq.f32.partialorder %v1714, 8.507059e+37
      %v1716 = vand.u32 %v1704, 2147483648
      %v1717 = vor.u32 1.1754944e-38, %v1716
      %v1718 = vsel %vm1715, %v1717, %v1713
      %v1719 = vmul.f32 1.0, %v1718
      %vm1720 = vcmp.eq.s32.totalorder %v1131, 2
      %vm1721 = vcmp.eq.s32.totalorder %v1137, 2
      %vm1722 = vcmp.eq.s32.totalorder %v1140, 2
      %vm1723 = vcmp.eq.s32.totalorder %v1141, 2
      %vm1724 = vcmp.eq.s32.totalorder %v1142, 2
      %vm1725 = vcmp.eq.s32.totalorder %v1143, 2
      %vm1726 = vcmp.eq.s32.totalorder %v1144, 2
      %vm1727 = vcmp.eq.s32.totalorder %v1145, 2
      %vm1728 = vcmp.eq.s32.totalorder %v1146, 2
      %vm1729 = vcmp.eq.s32.totalorder %v1147, 2
      %vm1730 = vcmp.eq.s32.totalorder %v1148, 2
      %vm1731 = vcmp.eq.s32.totalorder %v1149, 2
      %vm1732 = vcmp.eq.s32.totalorder %v1150, 2
      %vm1733 = vcmp.eq.s32.totalorder %v1151, 2
      %vm1734 = vcmp.eq.s32.totalorder %v1152, 2
      %vm1735 = vcmp.eq.s32.totalorder %v1153, 2
      %vm1736 = vcmp.eq.s32.totalorder %v1154, 2
      %vm1737 = vcmp.eq.s32.totalorder %v1155, 2
      %v1738 = vperm.slane %v1719, 2
      %v1739 = vmul.f32 %v1676, %v1738
      %v1740 = vmul.f32 %v1677, %v1738
      %v1741 = vsel %vm1720, 1, 0
      %v1742 = vsel %vm1721, 1, 0
      %vm1743 = vcmp.eq.s32.totalorder %v1741, 1
      %vm1744 = vcmp.eq.s32.totalorder %v1742, 1
      %v1745 = vsel %vm1743, %v1738, %v1739
      %v1746 = vsel %vm1744, %v1738, %v1740
      %v1747 = vsel %vm1743, 0.0, %v1672
      %v1748 = vsel %vm1744, 0.0, %v1673
      %v1749 = vsel %vm1743, 0.0, %v1674
      %v1750 = vsel %vm1744, 0.0, %v1675
      %v1751 = vsel %vm1743, 0.0, %v1676
      %v1752 = vsel %vm1744, 0.0, %v1677
      %v1753 = vsel %vm1743, 0.0, %v1678
      %v1754 = vsel %vm1744, 0.0, %v1679
      %v1755 = vsel %vm1743, 0.0, %v1680
      %v1756 = vsel %vm1744, 0.0, %v1681
      %v1757 = vsel %vm1743, 0.0, %v1682
      %v1758 = vsel %vm1744, 0.0, %v1683
      %v1759 = vsel %vm1743, 0.0, %v1684
      %v1760 = vsel %vm1744, 0.0, %v1685
      %v1761 = vsel %vm1743, 0.0, %v1686
      %v1762 = vsel %vm1744, 0.0, %v1687
      %v1763 = vsel %vm1743, 0.0, %v1688
      %v1764 = vsel %vm1744, 0.0, %v1689
      %v1765 = vsel %vm1743, 0.0, %v1690
      %v1766 = vsel %vm1744, 0.0, %v1691
      %v1767 = vsel %vm1743, 0.0, %v1692
      %v1768 = vsel %vm1744, 0.0, %v1693
      %v1769 = vsel %vm1743, 0.0, %v1694
      %v1770 = vsel %vm1744, 0.0, %v1695
      %v1771 = vsel %vm1743, 0.0, %v1696
      %v1772 = vsel %vm1744, 0.0, %v1697
      %v1773 = vsel %vm1743, 0.0, %v1698
      %v1774 = vsel %vm1744, 0.0, %v1699
      %v1775 = vsel %vm1743, 0.0, %v1700
      %v1776 = vsel %vm1744, 0.0, %v1701
      %v1777 = vsel %vm1743, 0.0, %v1702
      %v1778 = vsel %vm1744, 0.0, %v1703
      %v1779 = vperm.slane %v1672, 2
      %v1780 = vperm.slane %v1674, 2
      %v1781 = vperm.slane %v1676, 2
      %v1782 = vperm.slane %v1678, 2
      %v1783 = vperm.slane %v1680, 2
      %v1784 = vperm.slane %v1682, 2
      %v1785 = vperm.slane %v1684, 2
      %v1786 = vperm.slane %v1686, 2
      %v1787 = vperm.slane %v1688, 2
      %v1788 = vperm.slane %v1690, 2
      %v1789 = vperm.slane %v1692, 2
      %v1790 = vperm.slane %v1694, 2
      %v1791 = vperm.slane %v1696, 2
      %v1792 = vperm.slane %v1698, 2
      %v1793 = vperm.slane %v1700, 2
      %v1794 = vperm.slane %v1702, 2
      %v1795 = vmul.f32 %v1779, %v1745
      %v1796 = vmul.f32 %v1779, %v1746
      %v1797 = vmul.f32 %v1780, %v1745
      %v1798 = vmul.f32 %v1780, %v1746
      %v1799 = vmul.f32 %v1781, %v1745
      %v1800 = vmul.f32 %v1781, %v1746
      %v1801 = vmul.f32 %v1782, %v1745
      %v1802 = vmul.f32 %v1782, %v1746
      %v1803 = vmul.f32 %v1783, %v1745
      %v1804 = vmul.f32 %v1783, %v1746
      %v1805 = vmul.f32 %v1784, %v1745
      %v1806 = vmul.f32 %v1784, %v1746
      %v1807 = vmul.f32 %v1785, %v1745
      %v1808 = vmul.f32 %v1785, %v1746
      %v1809 = vmul.f32 %v1786, %v1745
      %v1810 = vmul.f32 %v1786, %v1746
      %v1811 = vmul.f32 %v1787, %v1745
      %v1812 = vmul.f32 %v1787, %v1746
      %v1813 = vmul.f32 %v1788, %v1745
      %v1814 = vmul.f32 %v1788, %v1746
      %v1815 = vmul.f32 %v1789, %v1745
      %v1816 = vmul.f32 %v1789, %v1746
      %v1817 = vmul.f32 %v1790, %v1745
      %v1818 = vmul.f32 %v1790, %v1746
      %v1819 = vmul.f32 %v1791, %v1745
      %v1820 = vmul.f32 %v1791, %v1746
      %v1821 = vmul.f32 %v1792, %v1745
      %v1822 = vmul.f32 %v1792, %v1746
      %v1823 = vmul.f32 %v1793, %v1745
      %v1824 = vmul.f32 %v1793, %v1746
      %v1825 = vmul.f32 %v1794, %v1745
      %v1826 = vmul.f32 %v1794, %v1746
      %v1827 = vsub.f32 %v1747, %v1795
      %v1828 = vsub.f32 %v1748, %v1796
      %v1829 = vsub.f32 %v1749, %v1797
      %v1830 = vsub.f32 %v1750, %v1798
      %v1831 = vsub.f32 %v1751, %v1799
      %v1832 = vsub.f32 %v1752, %v1800
      %v1833 = vsub.f32 %v1753, %v1801
      %v1834 = vsub.f32 %v1754, %v1802
      %v1835 = vsub.f32 %v1755, %v1803
      %v1836 = vsub.f32 %v1756, %v1804
      %v1837 = vsub.f32 %v1757, %v1805
      %v1838 = vsub.f32 %v1758, %v1806
      %v1839 = vsub.f32 %v1759, %v1807
      %v1840 = vsub.f32 %v1760, %v1808
      %v1841 = vsub.f32 %v1761, %v1809
      %v1842 = vsub.f32 %v1762, %v1810
      %v1843 = vsub.f32 %v1763, %v1811
      %v1844 = vsub.f32 %v1764, %v1812
      %v1845 = vsub.f32 %v1765, %v1813
      %v1846 = vsub.f32 %v1766, %v1814
      %v1847 = vsub.f32 %v1767, %v1815
      %v1848 = vsub.f32 %v1768, %v1816
      %v1849 = vsub.f32 %v1769, %v1817
      %v1850 = vsub.f32 %v1770, %v1818
      %v1851 = vsub.f32 %v1771, %v1819
      %v1852 = vsub.f32 %v1772, %v1820
      %v1853 = vsub.f32 %v1773, %v1821
      %v1854 = vsub.f32 %v1774, %v1822
      %v1855 = vsub.f32 %v1775, %v1823
      %v1856 = vsub.f32 %v1776, %v1824
      %v1857 = vsub.f32 %v1777, %v1825
      %v1858 = vsub.f32 %v1778, %v1826
      %v1859 = vsel %vm1722, 1, 0
      %v1860 = vsel %vm1723, 1, 0
      %v1861 = vsel %vm1724, 1, 0
      %v1862 = vsel %vm1725, 1, 0
      %v1863 = vsel %vm1726, 1, 0
      %v1864 = vsel %vm1727, 1, 0
      %v1865 = vsel %vm1728, 1, 0
      %v1866 = vsel %vm1729, 1, 0
      %v1867 = vsel %vm1730, 1, 0
      %v1868 = vsel %vm1731, 1, 0
      %v1869 = vsel %vm1732, 1, 0
      %v1870 = vsel %vm1733, 1, 0
      %v1871 = vsel %vm1734, 1, 0
      %v1872 = vsel %vm1735, 1, 0
      %v1873 = vsel %vm1736, 1, 0
      %v1874 = vsel %vm1737, 1, 0
      %vm1875 = vcmp.eq.s32.totalorder %v1859, 1
      %vm1876 = vcmp.eq.s32.totalorder %v1860, 1
      %vm1877 = vcmp.eq.s32.totalorder %v1861, 1
      %vm1878 = vcmp.eq.s32.totalorder %v1862, 1
      %vm1879 = vcmp.eq.s32.totalorder %v1863, 1
      %vm1880 = vcmp.eq.s32.totalorder %v1864, 1
      %vm1881 = vcmp.eq.s32.totalorder %v1865, 1
      %vm1882 = vcmp.eq.s32.totalorder %v1866, 1
      %vm1883 = vcmp.eq.s32.totalorder %v1867, 1
      %vm1884 = vcmp.eq.s32.totalorder %v1868, 1
      %vm1885 = vcmp.eq.s32.totalorder %v1869, 1
      %vm1886 = vcmp.eq.s32.totalorder %v1870, 1
      %vm1887 = vcmp.eq.s32.totalorder %v1871, 1
      %vm1888 = vcmp.eq.s32.totalorder %v1872, 1
      %vm1889 = vcmp.eq.s32.totalorder %v1873, 1
      %vm1890 = vcmp.eq.s32.totalorder %v1874, 1
      %v1891 = vsel %vm1875, %v1745, %v1827
      %v1892 = vsel %vm1875, %v1746, %v1828
      %v1893 = vsel %vm1876, %v1745, %v1829
      %v1894 = vsel %vm1876, %v1746, %v1830
      %v1895 = vsel %vm1877, %v1745, %v1831
      %v1896 = vsel %vm1877, %v1746, %v1832
      %v1897 = vsel %vm1878, %v1745, %v1833
      %v1898 = vsel %vm1878, %v1746, %v1834
      %v1899 = vsel %vm1879, %v1745, %v1835
      %v1900 = vsel %vm1879, %v1746, %v1836
      %v1901 = vsel %vm1880, %v1745, %v1837
      %v1902 = vsel %vm1880, %v1746, %v1838
      %v1903 = vsel %vm1881, %v1745, %v1839
      %v1904 = vsel %vm1881, %v1746, %v1840
      %v1905 = vsel %vm1882, %v1745, %v1841
      %v1906 = vsel %vm1882, %v1746, %v1842
      %v1907 = vsel %vm1883, %v1745, %v1843
      %v1908 = vsel %vm1883, %v1746, %v1844
      %v1909 = vsel %vm1884, %v1745, %v1845
      %v1910 = vsel %vm1884, %v1746, %v1846
      %v1911 = vsel %vm1885, %v1745, %v1847
      %v1912 = vsel %vm1885, %v1746, %v1848
      %v1913 = vsel %vm1886, %v1745, %v1849
      %v1914 = vsel %vm1886, %v1746, %v1850
      %v1915 = vsel %vm1887, %v1745, %v1851
      %v1916 = vsel %vm1887, %v1746, %v1852
      %v1917 = vsel %vm1888, %v1745, %v1853
      %v1918 = vsel %vm1888, %v1746, %v1854
      %v1919 = vsel %vm1889, %v1745, %v1855
      %v1920 = vsel %vm1889, %v1746, %v1856
      %v1921 = vsel %vm1890, %v1745, %v1857
      %v1922 = vsel %vm1890, %v1746, %v1858
      %1923 = vst [vmem:[#allocation7] sm:$0xff] %v1891
      %1924 = vst [vmem:[#allocation7 + $0x8] sm:$0xff] %v1892
      %1925 = vst [vmem:[#allocation7 + $0x10] sm:$0xff] %v1893
      %1926 = vst [vmem:[#allocation7 + $0x18] sm:$0xff] %v1894
      %1927 = vst [vmem:[#allocation7 + $0x20] sm:$0xff] %v1895
      %1928 = vst [vmem:[#allocation7 + $0x28] sm:$0xff] %v1896
      %1929 = vst [vmem:[#allocation7 + $0x30] sm:$0xff] %v1897
      %1930 = vst [vmem:[#allocation7 + $0x38] sm:$0xff] %v1898
      %1931 = vst [vmem:[#allocation7 + $0x40] sm:$0xff] %v1899
      %1932 = vst [vmem:[#allocation7 + $0x48] sm:$0xff] %v1900
      %1933 = vst [vmem:[#allocation7 + $0x50] sm:$0xff] %v1901
      %1934 = vst [vmem:[#allocation7 + $0x58] sm:$0xff] %v1902
      %1935 = vst [vmem:[#allocation7 + $0x60] sm:$0xff] %v1903
      %1936 = vst [vmem:[#allocation7 + $0x68] sm:$0xff] %v1904
      %1937 = vst [vmem:[#allocation7 + $0x70] sm:$0xff] %v1905
      %1938 = vst [vmem:[#allocation7 + $0x78] sm:$0xff] %v1906
      %1939 = vst [vmem:[#allocation7 + $0x80] sm:$0xff] %v1907
      %1940 = vst [vmem:[#allocation7 + $0x88] sm:$0xff] %v1908
      %1941 = vst [vmem:[#allocation7 + $0x90] sm:$0xff] %v1909
      %1942 = vst [vmem:[#allocation7 + $0x98] sm:$0xff] %v1910
      %1943 = vst [vmem:[#allocation7 + $0xa0] sm:$0xff] %v1911
      %1944 = vst [vmem:[#allocation7 + $0xa8] sm:$0xff] %v1912
      %1945 = vst [vmem:[#allocation7 + $0xb0] sm:$0xff] %v1913
      %1946 = vst [vmem:[#allocation7 + $0xb8] sm:$0xff] %v1914
      %1947 = vst [vmem:[#allocation7 + $0xc0] sm:$0xff] %v1915
      %1948 = vst [vmem:[#allocation7 + $0xc8] sm:$0xff] %v1916
      %1949 = vst [vmem:[#allocation7 + $0xd0] sm:$0xff] %v1917
      %1950 = vst [vmem:[#allocation7 + $0xd8] sm:$0xff] %v1918
      %1951 = vst [vmem:[#allocation7 + $0xe0] sm:$0xff] %v1919
      %1952 = vst [vmem:[#allocation7 + $0xe8] sm:$0xff] %v1920
      %1953 = vst [vmem:[#allocation7 + $0xf0] sm:$0xff] %v1921
      %1954 = vst [vmem:[#allocation7 + $0xf8] sm:$0xff] %v1922
      %v1955 = vld [vmem:[#allocation7] sm:$0xff]
      %v1956 = vld [vmem:[#allocation7 + $0x8] sm:$0xff]
      %v1957 = vld [vmem:[#allocation7 + $0x10] sm:$0xff]
      %v1958 = vld [vmem:[#allocation7 + $0x18] sm:$0xff]
      %v1959 = vld [vmem:[#allocation7 + $0x20] sm:$0xff]
      %v1960 = vld [vmem:[#allocation7 + $0x28] sm:$0xff]
      %v1961 = vld [vmem:[#allocation7 + $0x30] sm:$0xff]
      %v1962 = vld [vmem:[#allocation7 + $0x38] sm:$0xff]
      %v1963 = vld [vmem:[#allocation7 + $0x40] sm:$0xff]
      %v1964 = vld [vmem:[#allocation7 + $0x48] sm:$0xff]
      %v1965 = vld [vmem:[#allocation7 + $0x50] sm:$0xff]
      %v1966 = vld [vmem:[#allocation7 + $0x58] sm:$0xff]
      %v1967 = vld [vmem:[#allocation7 + $0x60] sm:$0xff]
      %v1968 = vld [vmem:[#allocation7 + $0x68] sm:$0xff]
      %v1969 = vld [vmem:[#allocation7 + $0x70] sm:$0xff]
      %v1970 = vld [vmem:[#allocation7 + $0x78] sm:$0xff]
      %v1971 = vld [vmem:[#allocation7 + $0x80] sm:$0xff]
      %v1972 = vld [vmem:[#allocation7 + $0x88] sm:$0xff]
      %v1973 = vld [vmem:[#allocation7 + $0x90] sm:$0xff]
      %v1974 = vld [vmem:[#allocation7 + $0x98] sm:$0xff]
      %v1975 = vld [vmem:[#allocation7 + $0xa0] sm:$0xff]
      %v1976 = vld [vmem:[#allocation7 + $0xa8] sm:$0xff]
      %v1977 = vld [vmem:[#allocation7 + $0xb0] sm:$0xff]
      %v1978 = vld [vmem:[#allocation7 + $0xb8] sm:$0xff]
      %v1979 = vld [vmem:[#allocation7 + $0xc0] sm:$0xff]
      %v1980 = vld [vmem:[#allocation7 + $0xc8] sm:$0xff]
      %v1981 = vld [vmem:[#allocation7 + $0xd0] sm:$0xff]
      %v1982 = vld [vmem:[#allocation7 + $0xd8] sm:$0xff]
      %v1983 = vld [vmem:[#allocation7 + $0xe0] sm:$0xff]
      %v1984 = vld [vmem:[#allocation7 + $0xe8] sm:$0xff]
      %v1985 = vld [vmem:[#allocation7 + $0xf0] sm:$0xff]
      %v1986 = vld [vmem:[#allocation7 + $0xf8] sm:$0xff]
      %v1987 = vmax.f32 %v1961, 1e-12
      %v1988 = vrcp.pop %v1987
      %v1989 = vmul.f32 %v1987, %v1988
      %v1990 = vsub.f32 1.0, %v1989
      %v1991 = vmul.f32 %v1988, %v1990
      %v1992 = vadd.f32 %v1988, %v1991
      %vm1993 = vweird.f32 %v1987
      %vm1994 = vweird.f32 %v1988
      %vm1995 = vmor %vm1993, %vm1994
      %v1996 = vsel %vm1995, %v1988, %v1992
      %v1997 = vand.u32 2147483647, %v1987
      %vm1998 = vcmp.eq.f32.partialorder %v1997, 8.507059e+37
      %v1999 = vand.u32 %v1987, 2147483648
      %v2000 = vor.u32 1.1754944e-38, %v1999
      %v2001 = vsel %vm1998, %v2000, %v1996
      %v2002 = vmul.f32 1.0, %v2001
      %vm2003 = vcmp.eq.s32.totalorder %v1131, 3
      %vm2004 = vcmp.eq.s32.totalorder %v1137, 3
      %vm2005 = vcmp.eq.s32.totalorder %v1140, 3
      %vm2006 = vcmp.eq.s32.totalorder %v1141, 3
      %vm2007 = vcmp.eq.s32.totalorder %v1142, 3
      %vm2008 = vcmp.eq.s32.totalorder %v1143, 3
      %vm2009 = vcmp.eq.s32.totalorder %v1144, 3
      %vm2010 = vcmp.eq.s32.totalorder %v1145, 3
      %vm2011 = vcmp.eq.s32.totalorder %v1146, 3
      %vm2012 = vcmp.eq.s32.totalorder %v1147, 3
      %vm2013 = vcmp.eq.s32.totalorder %v1148, 3
      %vm2014 = vcmp.eq.s32.totalorder %v1149, 3
      %vm2015 = vcmp.eq.s32.totalorder %v1150, 3
      %vm2016 = vcmp.eq.s32.totalorder %v1151, 3
      %vm2017 = vcmp.eq.s32.totalorder %v1152, 3
      %vm2018 = vcmp.eq.s32.totalorder %v1153, 3
      %vm2019 = vcmp.eq.s32.totalorder %v1154, 3
      %vm2020 = vcmp.eq.s32.totalorder %v1155, 3
      %v2021 = vperm.slane %v2002, 3
      %v2022 = vmul.f32 %v1961, %v2021
      %v2023 = vmul.f32 %v1962, %v2021
      %v2024 = vsel %vm2003, 1, 0
      %v2025 = vsel %vm2004, 1, 0
      %vm2026 = vcmp.eq.s32.totalorder %v2024, 1
      %vm2027 = vcmp.eq.s32.totalorder %v2025, 1
      %v2028 = vsel %vm2026, %v2021, %v2022
      %v2029 = vsel %vm2027, %v2021, %v2023
      %v2030 = vsel %vm2026, 0.0, %v1955
      %v2031 = vsel %vm2027, 0.0, %v1956
      %v2032 = vsel %vm2026, 0.0, %v1957
      %v2033 = vsel %vm2027, 0.0, %v1958
      %v2034 = vsel %vm2026, 0.0, %v1959
      %v2035 = vsel %vm2027, 0.0, %v1960
      %v2036 = vsel %vm2026, 0.0, %v1961
      %v2037 = vsel %vm2027, 0.0, %v1962
      %v2038 = vsel %vm2026, 0.0, %v1963
      %v2039 = vsel %vm2027, 0.0, %v1964
      %v2040 = vsel %vm2026, 0.0, %v1965
      %v2041 = vsel %vm2027, 0.0, %v1966
      %v2042 = vsel %vm2026, 0.0, %v1967
      %v2043 = vsel %vm2027, 0.0, %v1968
      %v2044 = vsel %vm2026, 0.0, %v1969
      %v2045 = vsel %vm2027, 0.0, %v1970
      %v2046 = vsel %vm2026, 0.0, %v1971
      %v2047 = vsel %vm2027, 0.0, %v1972
      %v2048 = vsel %vm2026, 0.0, %v1973
      %v2049 = vsel %vm2027, 0.0, %v1974
      %v2050 = vsel %vm2026, 0.0, %v1975
      %v2051 = vsel %vm2027, 0.0, %v1976
      %v2052 = vsel %vm2026, 0.0, %v1977
      %v2053 = vsel %vm2027, 0.0, %v1978
      %v2054 = vsel %vm2026, 0.0, %v1979
      %v2055 = vsel %vm2027, 0.0, %v1980
      %v2056 = vsel %vm2026, 0.0, %v1981
      %v2057 = vsel %vm2027, 0.0, %v1982
      %v2058 = vsel %vm2026, 0.0, %v1983
      %v2059 = vsel %vm2027, 0.0, %v1984
      %v2060 = vsel %vm2026, 0.0, %v1985
      %v2061 = vsel %vm2027, 0.0, %v1986
      %v2062 = vperm.slane %v1955, 3
      %v2063 = vperm.slane %v1957, 3
      %v2064 = vperm.slane %v1959, 3
      %v2065 = vperm.slane %v1961, 3
      %v2066 = vperm.slane %v1963, 3
      %v2067 = vperm.slane %v1965, 3
      %v2068 = vperm.slane %v1967, 3
      %v2069 = vperm.slane %v1969, 3
      %v2070 = vperm.slane %v1971, 3
      %v2071 = vperm.slane %v1973, 3
      %v2072 = vperm.slane %v1975, 3
      %v2073 = vperm.slane %v1977, 3
      %v2074 = vperm.slane %v1979, 3
      %v2075 = vperm.slane %v1981, 3
      %v2076 = vperm.slane %v1983, 3
      %v2077 = vperm.slane %v1985, 3
      %v2078 = vmul.f32 %v2062, %v2028
      %v2079 = vmul.f32 %v2062, %v2029
      %v2080 = vmul.f32 %v2063, %v2028
      %v2081 = vmul.f32 %v2063, %v2029
      %v2082 = vmul.f32 %v2064, %v2028
      %v2083 = vmul.f32 %v2064, %v2029
      %v2084 = vmul.f32 %v2065, %v2028
      %v2085 = vmul.f32 %v2065, %v2029
      %v2086 = vmul.f32 %v2066, %v2028
      %v2087 = vmul.f32 %v2066, %v2029
      %v2088 = vmul.f32 %v2067, %v2028
      %v2089 = vmul.f32 %v2067, %v2029
      %v2090 = vmul.f32 %v2068, %v2028
      %v2091 = vmul.f32 %v2068, %v2029
      %v2092 = vmul.f32 %v2069, %v2028
      %v2093 = vmul.f32 %v2069, %v2029
      %v2094 = vmul.f32 %v2070, %v2028
      %v2095 = vmul.f32 %v2070, %v2029
      %v2096 = vmul.f32 %v2071, %v2028
      %v2097 = vmul.f32 %v2071, %v2029
      %v2098 = vmul.f32 %v2072, %v2028
      %v2099 = vmul.f32 %v2072, %v2029
      %v2100 = vmul.f32 %v2073, %v2028
      %v2101 = vmul.f32 %v2073, %v2029
      %v2102 = vmul.f32 %v2074, %v2028
      %v2103 = vmul.f32 %v2074, %v2029
      %v2104 = vmul.f32 %v2075, %v2028
      %v2105 = vmul.f32 %v2075, %v2029
      %v2106 = vmul.f32 %v2076, %v2028
      %v2107 = vmul.f32 %v2076, %v2029
      %v2108 = vmul.f32 %v2077, %v2028
      %v2109 = vmul.f32 %v2077, %v2029
      %v2110 = vsub.f32 %v2030, %v2078
      %v2111 = vsub.f32 %v2031, %v2079
      %v2112 = vsub.f32 %v2032, %v2080
      %v2113 = vsub.f32 %v2033, %v2081
      %v2114 = vsub.f32 %v2034, %v2082
      %v2115 = vsub.f32 %v2035, %v2083
      %v2116 = vsub.f32 %v2036, %v2084
      %v2117 = vsub.f32 %v2037, %v2085
      %v2118 = vsub.f32 %v2038, %v2086
      %v2119 = vsub.f32 %v2039, %v2087
      %v2120 = vsub.f32 %v2040, %v2088
      %v2121 = vsub.f32 %v2041, %v2089
      %v2122 = vsub.f32 %v2042, %v2090
      %v2123 = vsub.f32 %v2043, %v2091
      %v2124 = vsub.f32 %v2044, %v2092
      %v2125 = vsub.f32 %v2045, %v2093
      %v2126 = vsub.f32 %v2046, %v2094
      %v2127 = vsub.f32 %v2047, %v2095
      %v2128 = vsub.f32 %v2048, %v2096
      %v2129 = vsub.f32 %v2049, %v2097
      %v2130 = vsub.f32 %v2050, %v2098
      %v2131 = vsub.f32 %v2051, %v2099
      %v2132 = vsub.f32 %v2052, %v2100
      %v2133 = vsub.f32 %v2053, %v2101
      %v2134 = vsub.f32 %v2054, %v2102
      %v2135 = vsub.f32 %v2055, %v2103
      %v2136 = vsub.f32 %v2056, %v2104
      %v2137 = vsub.f32 %v2057, %v2105
      %v2138 = vsub.f32 %v2058, %v2106
      %v2139 = vsub.f32 %v2059, %v2107
      %v2140 = vsub.f32 %v2060, %v2108
      %v2141 = vsub.f32 %v2061, %v2109
      %v2142 = vsel %vm2005, 1, 0
      %v2143 = vsel %vm2006, 1, 0
      %v2144 = vsel %vm2007, 1, 0
      %v2145 = vsel %vm2008, 1, 0
      %v2146 = vsel %vm2009, 1, 0
      %v2147 = vsel %vm2010, 1, 0
      %v2148 = vsel %vm2011, 1, 0
      %v2149 = vsel %vm2012, 1, 0
      %v2150 = vsel %vm2013, 1, 0
      %v2151 = vsel %vm2014, 1, 0
      %v2152 = vsel %vm2015, 1, 0
      %v2153 = vsel %vm2016, 1, 0
      %v2154 = vsel %vm2017, 1, 0
      %v2155 = vsel %vm2018, 1, 0
      %v2156 = vsel %vm2019, 1, 0
      %v2157 = vsel %vm2020, 1, 0
      %vm2158 = vcmp.eq.s32.totalorder %v2142, 1
      %vm2159 = vcmp.eq.s32.totalorder %v2143, 1
      %vm2160 = vcmp.eq.s32.totalorder %v2144, 1
      %vm2161 = vcmp.eq.s32.totalorder %v2145, 1
      %vm2162 = vcmp.eq.s32.totalorder %v2146, 1
      %vm2163 = vcmp.eq.s32.totalorder %v2147, 1
      %vm2164 = vcmp.eq.s32.totalorder %v2148, 1
      %vm2165 = vcmp.eq.s32.totalorder %v2149, 1
      %vm2166 = vcmp.eq.s32.totalorder %v2150, 1
      %vm2167 = vcmp.eq.s32.totalorder %v2151, 1
      %vm2168 = vcmp.eq.s32.totalorder %v2152, 1
      %vm2169 = vcmp.eq.s32.totalorder %v2153, 1
      %vm2170 = vcmp.eq.s32.totalorder %v2154, 1
      %vm2171 = vcmp.eq.s32.totalorder %v2155, 1
      %vm2172 = vcmp.eq.s32.totalorder %v2156, 1
      %vm2173 = vcmp.eq.s32.totalorder %v2157, 1
      %v2174 = vsel %vm2158, %v2028, %v2110
      %v2175 = vsel %vm2158, %v2029, %v2111
      %v2176 = vsel %vm2159, %v2028, %v2112
      %v2177 = vsel %vm2159, %v2029, %v2113
      %v2178 = vsel %vm2160, %v2028, %v2114
      %v2179 = vsel %vm2160, %v2029, %v2115
      %v2180 = vsel %vm2161, %v2028, %v2116
      %v2181 = vsel %vm2161, %v2029, %v2117
      %v2182 = vsel %vm2162, %v2028, %v2118
      %v2183 = vsel %vm2162, %v2029, %v2119
      %v2184 = vsel %vm2163, %v2028, %v2120
      %v2185 = vsel %vm2163, %v2029, %v2121
      %v2186 = vsel %vm2164, %v2028, %v2122
      %v2187 = vsel %vm2164, %v2029, %v2123
      %v2188 = vsel %vm2165, %v2028, %v2124
      %v2189 = vsel %vm2165, %v2029, %v2125
      %v2190 = vsel %vm2166, %v2028, %v2126
      %v2191 = vsel %vm2166, %v2029, %v2127
      %v2192 = vsel %vm2167, %v2028, %v2128
      %v2193 = vsel %vm2167, %v2029, %v2129
      %v2194 = vsel %vm2168, %v2028, %v2130
      %v2195 = vsel %vm2168, %v2029, %v2131
      %v2196 = vsel %vm2169, %v2028, %v2132
      %v2197 = vsel %vm2169, %v2029, %v2133
      %v2198 = vsel %vm2170, %v2028, %v2134
      %v2199 = vsel %vm2170, %v2029, %v2135
      %v2200 = vsel %vm2171, %v2028, %v2136
      %v2201 = vsel %vm2171, %v2029, %v2137
      %v2202 = vsel %vm2172, %v2028, %v2138
      %v2203 = vsel %vm2172, %v2029, %v2139
      %v2204 = vsel %vm2173, %v2028, %v2140
      %v2205 = vsel %vm2173, %v2029, %v2141
      %2206 = vst [vmem:[#allocation7] sm:$0xff] %v2174
      %2207 = vst [vmem:[#allocation7 + $0x8] sm:$0xff] %v2175
      %2208 = vst [vmem:[#allocation7 + $0x10] sm:$0xff] %v2176
      %2209 = vst [vmem:[#allocation7 + $0x18] sm:$0xff] %v2177
      %2210 = vst [vmem:[#allocation7 + $0x20] sm:$0xff] %v2178
      %2211 = vst [vmem:[#allocation7 + $0x28] sm:$0xff] %v2179
      %2212 = vst [vmem:[#allocation7 + $0x30] sm:$0xff] %v2180
      %2213 = vst [vmem:[#allocation7 + $0x38] sm:$0xff] %v2181
      %2214 = vst [vmem:[#allocation7 + $0x40] sm:$0xff] %v2182
      %2215 = vst [vmem:[#allocation7 + $0x48] sm:$0xff] %v2183
      %2216 = vst [vmem:[#allocation7 + $0x50] sm:$0xff] %v2184
      %2217 = vst [vmem:[#allocation7 + $0x58] sm:$0xff] %v2185
      %2218 = vst [vmem:[#allocation7 + $0x60] sm:$0xff] %v2186
      %2219 = vst [vmem:[#allocation7 + $0x68] sm:$0xff] %v2187
      %2220 = vst [vmem:[#allocation7 + $0x70] sm:$0xff] %v2188
      %2221 = vst [vmem:[#allocation7 + $0x78] sm:$0xff] %v2189
      %2222 = vst [vmem:[#allocation7 + $0x80] sm:$0xff] %v2190
      %2223 = vst [vmem:[#allocation7 + $0x88] sm:$0xff] %v2191
      %2224 = vst [vmem:[#allocation7 + $0x90] sm:$0xff] %v2192
      %2225 = vst [vmem:[#allocation7 + $0x98] sm:$0xff] %v2193
      %2226 = vst [vmem:[#allocation7 + $0xa0] sm:$0xff] %v2194
      %2227 = vst [vmem:[#allocation7 + $0xa8] sm:$0xff] %v2195
      %2228 = vst [vmem:[#allocation7 + $0xb0] sm:$0xff] %v2196
      %2229 = vst [vmem:[#allocation7 + $0xb8] sm:$0xff] %v2197
      %2230 = vst [vmem:[#allocation7 + $0xc0] sm:$0xff] %v2198
      %2231 = vst [vmem:[#allocation7 + $0xc8] sm:$0xff] %v2199
      %2232 = vst [vmem:[#allocation7 + $0xd0] sm:$0xff] %v2200
      %2233 = vst [vmem:[#allocation7 + $0xd8] sm:$0xff] %v2201
      %2234 = vst [vmem:[#allocation7 + $0xe0] sm:$0xff] %v2202
      %2235 = vst [vmem:[#allocation7 + $0xe8] sm:$0xff] %v2203
      %2236 = vst [vmem:[#allocation7 + $0xf0] sm:$0xff] %v2204
      %2237 = vst [vmem:[#allocation7 + $0xf8] sm:$0xff] %v2205
      %v2238 = vld [vmem:[#allocation7] sm:$0xff]
      %v2239 = vld [vmem:[#allocation7 + $0x8] sm:$0xff]
      %v2240 = vld [vmem:[#allocation7 + $0x10] sm:$0xff]
      %v2241 = vld [vmem:[#allocation7 + $0x18] sm:$0xff]
      %v2242 = vld [vmem:[#allocation7 + $0x20] sm:$0xff]
      %v2243 = vld [vmem:[#allocation7 + $0x28] sm:$0xff]
      %v2244 = vld [vmem:[#allocation7 + $0x30] sm:$0xff]
      %v2245 = vld [vmem:[#allocation7 + $0x38] sm:$0xff]
      %v2246 = vld [vmem:[#allocation7 + $0x40] sm:$0xff]
      %v2247 = vld [vmem:[#allocation7 + $0x48] sm:$0xff]
      %v2248 = vld [vmem:[#allocation7 + $0x50] sm:$0xff]
      %v2249 = vld [vmem:[#allocation7 + $0x58] sm:$0xff]
      %v2250 = vld [vmem:[#allocation7 + $0x60] sm:$0xff]
      %v2251 = vld [vmem:[#allocation7 + $0x68] sm:$0xff]
      %v2252 = vld [vmem:[#allocation7 + $0x70] sm:$0xff]
      %v2253 = vld [vmem:[#allocation7 + $0x78] sm:$0xff]
      %v2254 = vld [vmem:[#allocation7 + $0x80] sm:$0xff]
      %v2255 = vld [vmem:[#allocation7 + $0x88] sm:$0xff]
      %v2256 = vld [vmem:[#allocation7 + $0x90] sm:$0xff]
      %v2257 = vld [vmem:[#allocation7 + $0x98] sm:$0xff]
      %v2258 = vld [vmem:[#allocation7 + $0xa0] sm:$0xff]
      %v2259 = vld [vmem:[#allocation7 + $0xa8] sm:$0xff]
      %v2260 = vld [vmem:[#allocation7 + $0xb0] sm:$0xff]
      %v2261 = vld [vmem:[#allocation7 + $0xb8] sm:$0xff]
      %v2262 = vld [vmem:[#allocation7 + $0xc0] sm:$0xff]
      %v2263 = vld [vmem:[#allocation7 + $0xc8] sm:$0xff]
      %v2264 = vld [vmem:[#allocation7 + $0xd0] sm:$0xff]
      %v2265 = vld [vmem:[#allocation7 + $0xd8] sm:$0xff]
      %v2266 = vld [vmem:[#allocation7 + $0xe0] sm:$0xff]
      %v2267 = vld [vmem:[#allocation7 + $0xe8] sm:$0xff]
      %v2268 = vld [vmem:[#allocation7 + $0xf0] sm:$0xff]
      %v2269 = vld [vmem:[#allocation7 + $0xf8] sm:$0xff]
      %v2270 = vmax.f32 %v2246, 1e-12
      %v2271 = vrcp.pop %v2270
      %v2272 = vmul.f32 %v2270, %v2271
      %v2273 = vsub.f32 1.0, %v2272
      %v2274 = vmul.f32 %v2271, %v2273
      %v2275 = vadd.f32 %v2271, %v2274
      %vm2276 = vweird.f32 %v2270
      %vm2277 = vweird.f32 %v2271
      %vm2278 = vmor %vm2276, %vm2277
      %v2279 = vsel %vm2278, %v2271, %v2275
      %v2280 = vand.u32 2147483647, %v2270
      %vm2281 = vcmp.eq.f32.partialorder %v2280, 8.507059e+37
      %v2282 = vand.u32 %v2270, 2147483648
      %v2283 = vor.u32 1.1754944e-38, %v2282
      %v2284 = vsel %vm2281, %v2283, %v2279
      %v2285 = vmul.f32 1.0, %v2284
      %vm2286 = vcmp.eq.s32.totalorder %v1131, 4
      %vm2287 = vcmp.eq.s32.totalorder %v1137, 4
      %vm2288 = vcmp.eq.s32.totalorder %v1140, 4
      %vm2289 = vcmp.eq.s32.totalorder %v1141, 4
      %vm2290 = vcmp.eq.s32.totalorder %v1142, 4
      %vm2291 = vcmp.eq.s32.totalorder %v1143, 4
      %vm2292 = vcmp.eq.s32.totalorder %v1144, 4
      %vm2293 = vcmp.eq.s32.totalorder %v1145, 4
      %vm2294 = vcmp.eq.s32.totalorder %v1146, 4
      %vm2295 = vcmp.eq.s32.totalorder %v1147, 4
      %vm2296 = vcmp.eq.s32.totalorder %v1148, 4
      %vm2297 = vcmp.eq.s32.totalorder %v1149, 4
      %vm2298 = vcmp.eq.s32.totalorder %v1150, 4
      %vm2299 = vcmp.eq.s32.totalorder %v1151, 4
      %vm2300 = vcmp.eq.s32.totalorder %v1152, 4
      %vm2301 = vcmp.eq.s32.totalorder %v1153, 4
      %vm2302 = vcmp.eq.s32.totalorder %v1154, 4
      %vm2303 = vcmp.eq.s32.totalorder %v1155, 4
      %v2304 = vperm.slane %v2285, 4
      %v2305 = vmul.f32 %v2246, %v2304
      %v2306 = vmul.f32 %v2247, %v2304
      %v2307 = vsel %vm2286, 1, 0
      %v2308 = vsel %vm2287, 1, 0
      %vm2309 = vcmp.eq.s32.totalorder %v2307, 1
      %vm2310 = vcmp.eq.s32.totalorder %v2308, 1
      %v2311 = vsel %vm2309, %v2304, %v2305
      %v2312 = vsel %vm2310, %v2304, %v2306
      %v2313 = vsel %vm2309, 0.0, %v2238
      %v2314 = vsel %vm2310, 0.0, %v2239
      %v2315 = vsel %vm2309, 0.0, %v2240
      %v2316 = vsel %vm2310, 0.0, %v2241
      %v2317 = vsel %vm2309, 0.0, %v2242
      %v2318 = vsel %vm2310, 0.0, %v2243
      %v2319 = vsel %vm2309, 0.0, %v2244
      %v2320 = vsel %vm2310, 0.0, %v2245
      %v2321 = vsel %vm2309, 0.0, %v2246
      %v2322 = vsel %vm2310, 0.0, %v2247
      %v2323 = vsel %vm2309, 0.0, %v2248
      %v2324 = vsel %vm2310, 0.0, %v2249
      %v2325 = vsel %vm2309, 0.0, %v2250
      %v2326 = vsel %vm2310, 0.0, %v2251
      %v2327 = vsel %vm2309, 0.0, %v2252
      %v2328 = vsel %vm2310, 0.0, %v2253
      %v2329 = vsel %vm2309, 0.0, %v2254
      %v2330 = vsel %vm2310, 0.0, %v2255
      %v2331 = vsel %vm2309, 0.0, %v2256
      %v2332 = vsel %vm2310, 0.0, %v2257
      %v2333 = vsel %vm2309, 0.0, %v2258
      %v2334 = vsel %vm2310, 0.0, %v2259
      %v2335 = vsel %vm2309, 0.0, %v2260
      %v2336 = vsel %vm2310, 0.0, %v2261
      %v2337 = vsel %vm2309, 0.0, %v2262
      %v2338 = vsel %vm2310, 0.0, %v2263
      %v2339 = vsel %vm2309, 0.0, %v2264
      %v2340 = vsel %vm2310, 0.0, %v2265
      %v2341 = vsel %vm2309, 0.0, %v2266
      %v2342 = vsel %vm2310, 0.0, %v2267
      %v2343 = vsel %vm2309, 0.0, %v2268
      %v2344 = vsel %vm2310, 0.0, %v2269
      %v2345 = vperm.slane %v2238, 4
      %v2346 = vperm.slane %v2240, 4
      %v2347 = vperm.slane %v2242, 4
      %v2348 = vperm.slane %v2244, 4
      %v2349 = vperm.slane %v2246, 4
      %v2350 = vperm.slane %v2248, 4
      %v2351 = vperm.slane %v2250, 4
      %v2352 = vperm.slane %v2252, 4
      %v2353 = vperm.slane %v2254, 4
      %v2354 = vperm.slane %v2256, 4
      %v2355 = vperm.slane %v2258, 4
      %v2356 = vperm.slane %v2260, 4
      %v2357 = vperm.slane %v2262, 4
      %v2358 = vperm.slane %v2264, 4
      %v2359 = vperm.slane %v2266, 4
      %v2360 = vperm.slane %v2268, 4
      %v2361 = vmul.f32 %v2345, %v2311
      %v2362 = vmul.f32 %v2345, %v2312
      %v2363 = vmul.f32 %v2346, %v2311
      %v2364 = vmul.f32 %v2346, %v2312
      %v2365 = vmul.f32 %v2347, %v2311
      %v2366 = vmul.f32 %v2347, %v2312
      %v2367 = vmul.f32 %v2348, %v2311
      %v2368 = vmul.f32 %v2348, %v2312
      %v2369 = vmul.f32 %v2349, %v2311
      %v2370 = vmul.f32 %v2349, %v2312
      %v2371 = vmul.f32 %v2350, %v2311
      %v2372 = vmul.f32 %v2350, %v2312
      %v2373 = vmul.f32 %v2351, %v2311
      %v2374 = vmul.f32 %v2351, %v2312
      %v2375 = vmul.f32 %v2352, %v2311
      %v2376 = vmul.f32 %v2352, %v2312
      %v2377 = vmul.f32 %v2353, %v2311
      %v2378 = vmul.f32 %v2353, %v2312
      %v2379 = vmul.f32 %v2354, %v2311
      %v2380 = vmul.f32 %v2354, %v2312
      %v2381 = vmul.f32 %v2355, %v2311
      %v2382 = vmul.f32 %v2355, %v2312
      %v2383 = vmul.f32 %v2356, %v2311
      %v2384 = vmul.f32 %v2356, %v2312
      %v2385 = vmul.f32 %v2357, %v2311
      %v2386 = vmul.f32 %v2357, %v2312
      %v2387 = vmul.f32 %v2358, %v2311
      %v2388 = vmul.f32 %v2358, %v2312
      %v2389 = vmul.f32 %v2359, %v2311
      %v2390 = vmul.f32 %v2359, %v2312
      %v2391 = vmul.f32 %v2360, %v2311
      %v2392 = vmul.f32 %v2360, %v2312
      %v2393 = vsub.f32 %v2313, %v2361
      %v2394 = vsub.f32 %v2314, %v2362
      %v2395 = vsub.f32 %v2315, %v2363
      %v2396 = vsub.f32 %v2316, %v2364
      %v2397 = vsub.f32 %v2317, %v2365
      %v2398 = vsub.f32 %v2318, %v2366
      %v2399 = vsub.f32 %v2319, %v2367
      %v2400 = vsub.f32 %v2320, %v2368
      %v2401 = vsub.f32 %v2321, %v2369
      %v2402 = vsub.f32 %v2322, %v2370
      %v2403 = vsub.f32 %v2323, %v2371
      %v2404 = vsub.f32 %v2324, %v2372
      %v2405 = vsub.f32 %v2325, %v2373
      %v2406 = vsub.f32 %v2326, %v2374
      %v2407 = vsub.f32 %v2327, %v2375
      %v2408 = vsub.f32 %v2328, %v2376
      %v2409 = vsub.f32 %v2329, %v2377
      %v2410 = vsub.f32 %v2330, %v2378
      %v2411 = vsub.f32 %v2331, %v2379
      %v2412 = vsub.f32 %v2332, %v2380
      %v2413 = vsub.f32 %v2333, %v2381
      %v2414 = vsub.f32 %v2334, %v2382
      %v2415 = vsub.f32 %v2335, %v2383
      %v2416 = vsub.f32 %v2336, %v2384
      %v2417 = vsub.f32 %v2337, %v2385
      %v2418 = vsub.f32 %v2338, %v2386
      %v2419 = vsub.f32 %v2339, %v2387
      %v2420 = vsub.f32 %v2340, %v2388
      %v2421 = vsub.f32 %v2341, %v2389
      %v2422 = vsub.f32 %v2342, %v2390
      %v2423 = vsub.f32 %v2343, %v2391
      %v2424 = vsub.f32 %v2344, %v2392
      %v2425 = vsel %vm2288, 1, 0
      %v2426 = vsel %vm2289, 1, 0
      %v2427 = vsel %vm2290, 1, 0
      %v2428 = vsel %vm2291, 1, 0
      %v2429 = vsel %vm2292, 1, 0
      %v2430 = vsel %vm2293, 1, 0
      %v2431 = vsel %vm2294, 1, 0
      %v2432 = vsel %vm2295, 1, 0
      %v2433 = vsel %vm2296, 1, 0
      %v2434 = vsel %vm2297, 1, 0
      %v2435 = vsel %vm2298, 1, 0
      %v2436 = vsel %vm2299, 1, 0
      %v2437 = vsel %vm2300, 1, 0
      %v2438 = vsel %vm2301, 1, 0
      %v2439 = vsel %vm2302, 1, 0
      %v2440 = vsel %vm2303, 1, 0
      %vm2441 = vcmp.eq.s32.totalorder %v2425, 1
      %vm2442 = vcmp.eq.s32.totalorder %v2426, 1
      %vm2443 = vcmp.eq.s32.totalorder %v2427, 1
      %vm2444 = vcmp.eq.s32.totalorder %v2428, 1
      %vm2445 = vcmp.eq.s32.totalorder %v2429, 1
      %vm2446 = vcmp.eq.s32.totalorder %v2430, 1
      %vm2447 = vcmp.eq.s32.totalorder %v2431, 1
      %vm2448 = vcmp.eq.s32.totalorder %v2432, 1
      %vm2449 = vcmp.eq.s32.totalorder %v2433, 1
      %vm2450 = vcmp.eq.s32.totalorder %v2434, 1
      %vm2451 = vcmp.eq.s32.totalorder %v2435, 1
      %vm2452 = vcmp.eq.s32.totalorder %v2436, 1
      %vm2453 = vcmp.eq.s32.totalorder %v2437, 1
      %vm2454 = vcmp.eq.s32.totalorder %v2438, 1
      %vm2455 = vcmp.eq.s32.totalorder %v2439, 1
      %vm2456 = vcmp.eq.s32.totalorder %v2440, 1
      %v2457 = vsel %vm2441, %v2311, %v2393
      %v2458 = vsel %vm2441, %v2312, %v2394
      %v2459 = vsel %vm2442, %v2311, %v2395
      %v2460 = vsel %vm2442, %v2312, %v2396
      %v2461 = vsel %vm2443, %v2311, %v2397
      %v2462 = vsel %vm2443, %v2312, %v2398
      %v2463 = vsel %vm2444, %v2311, %v2399
      %v2464 = vsel %vm2444, %v2312, %v2400
      %v2465 = vsel %vm2445, %v2311, %v2401
      %v2466 = vsel %vm2445, %v2312, %v2402
      %v2467 = vsel %vm2446, %v2311, %v2403
      %v2468 = vsel %vm2446, %v2312, %v2404
      %v2469 = vsel %vm2447, %v2311, %v2405
      %v2470 = vsel %vm2447, %v2312, %v2406
      %v2471 = vsel %vm2448, %v2311, %v2407
      %v2472 = vsel %vm2448, %v2312, %v2408
      %v2473 = vsel %vm2449, %v2311, %v2409
      %v2474 = vsel %vm2449, %v2312, %v2410
      %v2475 = vsel %vm2450, %v2311, %v2411
      %v2476 = vsel %vm2450, %v2312, %v2412
      %v2477 = vsel %vm2451, %v2311, %v2413
      %v2478 = vsel %vm2451, %v2312, %v2414
      %v2479 = vsel %vm2452, %v2311, %v2415
      %v2480 = vsel %vm2452, %v2312, %v2416
      %v2481 = vsel %vm2453, %v2311, %v2417
      %v2482 = vsel %vm2453, %v2312, %v2418
      %v2483 = vsel %vm2454, %v2311, %v2419
      %v2484 = vsel %vm2454, %v2312, %v2420
      %v2485 = vsel %vm2455, %v2311, %v2421
      %v2486 = vsel %vm2455, %v2312, %v2422
      %v2487 = vsel %vm2456, %v2311, %v2423
      %v2488 = vsel %vm2456, %v2312, %v2424
      %2489 = vst [vmem:[#allocation7] sm:$0xff] %v2457
      %2490 = vst [vmem:[#allocation7 + $0x8] sm:$0xff] %v2458
      %2491 = vst [vmem:[#allocation7 + $0x10] sm:$0xff] %v2459
      %2492 = vst [vmem:[#allocation7 + $0x18] sm:$0xff] %v2460
      %2493 = vst [vmem:[#allocation7 + $0x20] sm:$0xff] %v2461
      %2494 = vst [vmem:[#allocation7 + $0x28] sm:$0xff] %v2462
      %2495 = vst [vmem:[#allocation7 + $0x30] sm:$0xff] %v2463
      %2496 = vst [vmem:[#allocation7 + $0x38] sm:$0xff] %v2464
      %2497 = vst [vmem:[#allocation7 + $0x40] sm:$0xff] %v2465
      %2498 = vst [vmem:[#allocation7 + $0x48] sm:$0xff] %v2466
      %2499 = vst [vmem:[#allocation7 + $0x50] sm:$0xff] %v2467
      %2500 = vst [vmem:[#allocation7 + $0x58] sm:$0xff] %v2468
      %2501 = vst [vmem:[#allocation7 + $0x60] sm:$0xff] %v2469
      %2502 = vst [vmem:[#allocation7 + $0x68] sm:$0xff] %v2470
      %2503 = vst [vmem:[#allocation7 + $0x70] sm:$0xff] %v2471
      %2504 = vst [vmem:[#allocation7 + $0x78] sm:$0xff] %v2472
      %2505 = vst [vmem:[#allocation7 + $0x80] sm:$0xff] %v2473
      %2506 = vst [vmem:[#allocation7 + $0x88] sm:$0xff] %v2474
      %2507 = vst [vmem:[#allocation7 + $0x90] sm:$0xff] %v2475
      %2508 = vst [vmem:[#allocation7 + $0x98] sm:$0xff] %v2476
      %2509 = vst [vmem:[#allocation7 + $0xa0] sm:$0xff] %v2477
      %2510 = vst [vmem:[#allocation7 + $0xa8] sm:$0xff] %v2478
      %2511 = vst [vmem:[#allocation7 + $0xb0] sm:$0xff] %v2479
      %2512 = vst [vmem:[#allocation7 + $0xb8] sm:$0xff] %v2480
      %2513 = vst [vmem:[#allocation7 + $0xc0] sm:$0xff] %v2481
      %2514 = vst [vmem:[#allocation7 + $0xc8] sm:$0xff] %v2482
      %2515 = vst [vmem:[#allocation7 + $0xd0] sm:$0xff] %v2483
      %2516 = vst [vmem:[#allocation7 + $0xd8] sm:$0xff] %v2484
      %2517 = vst [vmem:[#allocation7 + $0xe0] sm:$0xff] %v2485
      %2518 = vst [vmem:[#allocation7 + $0xe8] sm:$0xff] %v2486
      %2519 = vst [vmem:[#allocation7 + $0xf0] sm:$0xff] %v2487
      %2520 = vst [vmem:[#allocation7 + $0xf8] sm:$0xff] %v2488
      %v2521 = vld [vmem:[#allocation7] sm:$0xff]
      %v2522 = vld [vmem:[#allocation7 + $0x8] sm:$0xff]
      %v2523 = vld [vmem:[#allocation7 + $0x10] sm:$0xff]
      %v2524 = vld [vmem:[#allocation7 + $0x18] sm:$0xff]
      %v2525 = vld [vmem:[#allocation7 + $0x20] sm:$0xff]
      %v2526 = vld [vmem:[#allocation7 + $0x28] sm:$0xff]
      %v2527 = vld [vmem:[#allocation7 + $0x30] sm:$0xff]
      %v2528 = vld [vmem:[#allocation7 + $0x38] sm:$0xff]
      %v2529 = vld [vmem:[#allocation7 + $0x40] sm:$0xff]
      %v2530 = vld [vmem:[#allocation7 + $0x48] sm:$0xff]
      %v2531 = vld [vmem:[#allocation7 + $0x50] sm:$0xff]
      %v2532 = vld [vmem:[#allocation7 + $0x58] sm:$0xff]
      %v2533 = vld [vmem:[#allocation7 + $0x60] sm:$0xff]
      %v2534 = vld [vmem:[#allocation7 + $0x68] sm:$0xff]
      %v2535 = vld [vmem:[#allocation7 + $0x70] sm:$0xff]
      %v2536 = vld [vmem:[#allocation7 + $0x78] sm:$0xff]
      %v2537 = vld [vmem:[#allocation7 + $0x80] sm:$0xff]
      %v2538 = vld [vmem:[#allocation7 + $0x88] sm:$0xff]
      %v2539 = vld [vmem:[#allocation7 + $0x90] sm:$0xff]
      %v2540 = vld [vmem:[#allocation7 + $0x98] sm:$0xff]
      %v2541 = vld [vmem:[#allocation7 + $0xa0] sm:$0xff]
      %v2542 = vld [vmem:[#allocation7 + $0xa8] sm:$0xff]
      %v2543 = vld [vmem:[#allocation7 + $0xb0] sm:$0xff]
      %v2544 = vld [vmem:[#allocation7 + $0xb8] sm:$0xff]
      %v2545 = vld [vmem:[#allocation7 + $0xc0] sm:$0xff]
      %v2546 = vld [vmem:[#allocation7 + $0xc8] sm:$0xff]
      %v2547 = vld [vmem:[#allocation7 + $0xd0] sm:$0xff]
      %v2548 = vld [vmem:[#allocation7 + $0xd8] sm:$0xff]
      %v2549 = vld [vmem:[#allocation7 + $0xe0] sm:$0xff]
      %v2550 = vld [vmem:[#allocation7 + $0xe8] sm:$0xff]
      %v2551 = vld [vmem:[#allocation7 + $0xf0] sm:$0xff]
      %v2552 = vld [vmem:[#allocation7 + $0xf8] sm:$0xff]
      %v2553 = vmax.f32 %v2531, 1e-12
      %v2554 = vrcp.pop %v2553
      %v2555 = vmul.f32 %v2553, %v2554
      %v2556 = vsub.f32 1.0, %v2555
      %v2557 = vmul.f32 %v2554, %v2556
      %v2558 = vadd.f32 %v2554, %v2557
      %vm2559 = vweird.f32 %v2553
      %vm2560 = vweird.f32 %v2554
      %vm2561 = vmor %vm2559, %vm2560
      %v2562 = vsel %vm2561, %v2554, %v2558
      %v2563 = vand.u32 2147483647, %v2553
      %vm2564 = vcmp.eq.f32.partialorder %v2563, 8.507059e+37
      %v2565 = vand.u32 %v2553, 2147483648
      %v2566 = vor.u32 1.1754944e-38, %v2565
      %v2567 = vsel %vm2564, %v2566, %v2562
      %v2568 = vmul.f32 1.0, %v2567
      %vm2569 = vcmp.eq.s32.totalorder %v1131, 5
      %vm2570 = vcmp.eq.s32.totalorder %v1137, 5
      %vm2571 = vcmp.eq.s32.totalorder %v1140, 5
      %vm2572 = vcmp.eq.s32.totalorder %v1141, 5
      %vm2573 = vcmp.eq.s32.totalorder %v1142, 5
      %vm2574 = vcmp.eq.s32.totalorder %v1143, 5
      %vm2575 = vcmp.eq.s32.totalorder %v1144, 5
      %vm2576 = vcmp.eq.s32.totalorder %v1145, 5
      %vm2577 = vcmp.eq.s32.totalorder %v1146, 5
      %vm2578 = vcmp.eq.s32.totalorder %v1147, 5
      %vm2579 = vcmp.eq.s32.totalorder %v1148, 5
      %vm2580 = vcmp.eq.s32.totalorder %v1149, 5
      %vm2581 = vcmp.eq.s32.totalorder %v1150, 5
      %vm2582 = vcmp.eq.s32.totalorder %v1151, 5
      %vm2583 = vcmp.eq.s32.totalorder %v1152, 5
      %vm2584 = vcmp.eq.s32.totalorder %v1153, 5
      %vm2585 = vcmp.eq.s32.totalorder %v1154, 5
      %vm2586 = vcmp.eq.s32.totalorder %v1155, 5
      %v2587 = vperm.slane %v2568, 5
      %v2588 = vmul.f32 %v2531, %v2587
      %v2589 = vmul.f32 %v2532, %v2587
      %v2590 = vsel %vm2569, 1, 0
      %v2591 = vsel %vm2570, 1, 0
      %vm2592 = vcmp.eq.s32.totalorder %v2590, 1
      %vm2593 = vcmp.eq.s32.totalorder %v2591, 1
      %v2594 = vsel %vm2592, %v2587, %v2588
      %v2595 = vsel %vm2593, %v2587, %v2589
      %v2596 = vsel %vm2592, 0.0, %v2521
      %v2597 = vsel %vm2593, 0.0, %v2522
      %v2598 = vsel %vm2592, 0.0, %v2523
      %v2599 = vsel %vm2593, 0.0, %v2524
      %v2600 = vsel %vm2592, 0.0, %v2525
      %v2601 = vsel %vm2593, 0.0, %v2526
      %v2602 = vsel %vm2592, 0.0, %v2527
      %v2603 = vsel %vm2593, 0.0, %v2528
      %v2604 = vsel %vm2592, 0.0, %v2529
      %v2605 = vsel %vm2593, 0.0, %v2530
      %v2606 = vsel %vm2592, 0.0, %v2531
      %v2607 = vsel %vm2593, 0.0, %v2532
      %v2608 = vsel %vm2592, 0.0, %v2533
      %v2609 = vsel %vm2593, 0.0, %v2534
      %v2610 = vsel %vm2592, 0.0, %v2535
      %v2611 = vsel %vm2593, 0.0, %v2536
      %v2612 = vsel %vm2592, 0.0, %v2537
      %v2613 = vsel %vm2593, 0.0, %v2538
      %v2614 = vsel %vm2592, 0.0, %v2539
      %v2615 = vsel %vm2593, 0.0, %v2540
      %v2616 = vsel %vm2592, 0.0, %v2541
      %v2617 = vsel %vm2593, 0.0, %v2542
      %v2618 = vsel %vm2592, 0.0, %v2543
      %v2619 = vsel %vm2593, 0.0, %v2544
      %v2620 = vsel %vm2592, 0.0, %v2545
      %v2621 = vsel %vm2593, 0.0, %v2546
      %v2622 = vsel %vm2592, 0.0, %v2547
      %v2623 = vsel %vm2593, 0.0, %v2548
      %v2624 = vsel %vm2592, 0.0, %v2549
      %v2625 = vsel %vm2593, 0.0, %v2550
      %v2626 = vsel %vm2592, 0.0, %v2551
      %v2627 = vsel %vm2593, 0.0, %v2552
      %v2628 = vperm.slane %v2521, 5
      %v2629 = vperm.slane %v2523, 5
      %v2630 = vperm.slane %v2525, 5
      %v2631 = vperm.slane %v2527, 5
      %v2632 = vperm.slane %v2529, 5
      %v2633 = vperm.slane %v2531, 5
      %v2634 = vperm.slane %v2533, 5
      %v2635 = vperm.slane %v2535, 5
      %v2636 = vperm.slane %v2537, 5
      %v2637 = vperm.slane %v2539, 5
      %v2638 = vperm.slane %v2541, 5
      %v2639 = vperm.slane %v2543, 5
      %v2640 = vperm.slane %v2545, 5
      %v2641 = vperm.slane %v2547, 5
      %v2642 = vperm.slane %v2549, 5
      %v2643 = vperm.slane %v2551, 5
      %v2644 = vmul.f32 %v2628, %v2594
      %v2645 = vmul.f32 %v2628, %v2595
      %v2646 = vmul.f32 %v2629, %v2594
      %v2647 = vmul.f32 %v2629, %v2595
      %v2648 = vmul.f32 %v2630, %v2594
      %v2649 = vmul.f32 %v2630, %v2595
      %v2650 = vmul.f32 %v2631, %v2594
      %v2651 = vmul.f32 %v2631, %v2595
      %v2652 = vmul.f32 %v2632, %v2594
      %v2653 = vmul.f32 %v2632, %v2595
      %v2654 = vmul.f32 %v2633, %v2594
      %v2655 = vmul.f32 %v2633, %v2595
      %v2656 = vmul.f32 %v2634, %v2594
      %v2657 = vmul.f32 %v2634, %v2595
      %v2658 = vmul.f32 %v2635, %v2594
      %v2659 = vmul.f32 %v2635, %v2595
      %v2660 = vmul.f32 %v2636, %v2594
      %v2661 = vmul.f32 %v2636, %v2595
      %v2662 = vmul.f32 %v2637, %v2594
      %v2663 = vmul.f32 %v2637, %v2595
      %v2664 = vmul.f32 %v2638, %v2594
      %v2665 = vmul.f32 %v2638, %v2595
      %v2666 = vmul.f32 %v2639, %v2594
      %v2667 = vmul.f32 %v2639, %v2595
      %v2668 = vmul.f32 %v2640, %v2594
      %v2669 = vmul.f32 %v2640, %v2595
      %v2670 = vmul.f32 %v2641, %v2594
      %v2671 = vmul.f32 %v2641, %v2595
      %v2672 = vmul.f32 %v2642, %v2594
      %v2673 = vmul.f32 %v2642, %v2595
      %v2674 = vmul.f32 %v2643, %v2594
      %v2675 = vmul.f32 %v2643, %v2595
      %v2676 = vsub.f32 %v2596, %v2644
      %v2677 = vsub.f32 %v2597, %v2645
      %v2678 = vsub.f32 %v2598, %v2646
      %v2679 = vsub.f32 %v2599, %v2647
      %v2680 = vsub.f32 %v2600, %v2648
      %v2681 = vsub.f32 %v2601, %v2649
      %v2682 = vsub.f32 %v2602, %v2650
      %v2683 = vsub.f32 %v2603, %v2651
      %v2684 = vsub.f32 %v2604, %v2652
      %v2685 = vsub.f32 %v2605, %v2653
      %v2686 = vsub.f32 %v2606, %v2654
      %v2687 = vsub.f32 %v2607, %v2655
      %v2688 = vsub.f32 %v2608, %v2656
      %v2689 = vsub.f32 %v2609, %v2657
      %v2690 = vsub.f32 %v2610, %v2658
      %v2691 = vsub.f32 %v2611, %v2659
      %v2692 = vsub.f32 %v2612, %v2660
      %v2693 = vsub.f32 %v2613, %v2661
      %v2694 = vsub.f32 %v2614, %v2662
      %v2695 = vsub.f32 %v2615, %v2663
      %v2696 = vsub.f32 %v2616, %v2664
      %v2697 = vsub.f32 %v2617, %v2665
      %v2698 = vsub.f32 %v2618, %v2666
      %v2699 = vsub.f32 %v2619, %v2667
      %v2700 = vsub.f32 %v2620, %v2668
      %v2701 = vsub.f32 %v2621, %v2669
      %v2702 = vsub.f32 %v2622, %v2670
      %v2703 = vsub.f32 %v2623, %v2671
      %v2704 = vsub.f32 %v2624, %v2672
      %v2705 = vsub.f32 %v2625, %v2673
      %v2706 = vsub.f32 %v2626, %v2674
      %v2707 = vsub.f32 %v2627, %v2675
      %v2708 = vsel %vm2571, 1, 0
      %v2709 = vsel %vm2572, 1, 0
      %v2710 = vsel %vm2573, 1, 0
      %v2711 = vsel %vm2574, 1, 0
      %v2712 = vsel %vm2575, 1, 0
      %v2713 = vsel %vm2576, 1, 0
      %v2714 = vsel %vm2577, 1, 0
      %v2715 = vsel %vm2578, 1, 0
      %v2716 = vsel %vm2579, 1, 0
      %v2717 = vsel %vm2580, 1, 0
      %v2718 = vsel %vm2581, 1, 0
      %v2719 = vsel %vm2582, 1, 0
      %v2720 = vsel %vm2583, 1, 0
      %v2721 = vsel %vm2584, 1, 0
      %v2722 = vsel %vm2585, 1, 0
      %v2723 = vsel %vm2586, 1, 0
      %vm2724 = vcmp.eq.s32.totalorder %v2708, 1
      %vm2725 = vcmp.eq.s32.totalorder %v2709, 1
      %vm2726 = vcmp.eq.s32.totalorder %v2710, 1
      %vm2727 = vcmp.eq.s32.totalorder %v2711, 1
      %vm2728 = vcmp.eq.s32.totalorder %v2712, 1
      %vm2729 = vcmp.eq.s32.totalorder %v2713, 1
      %vm2730 = vcmp.eq.s32.totalorder %v2714, 1
      %vm2731 = vcmp.eq.s32.totalorder %v2715, 1
      %vm2732 = vcmp.eq.s32.totalorder %v2716, 1
      %vm2733 = vcmp.eq.s32.totalorder %v2717, 1
      %vm2734 = vcmp.eq.s32.totalorder %v2718, 1
      %vm2735 = vcmp.eq.s32.totalorder %v2719, 1
      %vm2736 = vcmp.eq.s32.totalorder %v2720, 1
      %vm2737 = vcmp.eq.s32.totalorder %v2721, 1
      %vm2738 = vcmp.eq.s32.totalorder %v2722, 1
      %vm2739 = vcmp.eq.s32.totalorder %v2723, 1
      %v2740 = vsel %vm2724, %v2594, %v2676
      %v2741 = vsel %vm2724, %v2595, %v2677
      %v2742 = vsel %vm2725, %v2594, %v2678
      %v2743 = vsel %vm2725, %v2595, %v2679
      %v2744 = vsel %vm2726, %v2594, %v2680
      %v2745 = vsel %vm2726, %v2595, %v2681
      %v2746 = vsel %vm2727, %v2594, %v2682
      %v2747 = vsel %vm2727, %v2595, %v2683
      %v2748 = vsel %vm2728, %v2594, %v2684
      %v2749 = vsel %vm2728, %v2595, %v2685
      %v2750 = vsel %vm2729, %v2594, %v2686
      %v2751 = vsel %vm2729, %v2595, %v2687
      %v2752 = vsel %vm2730, %v2594, %v2688
      %v2753 = vsel %vm2730, %v2595, %v2689
      %v2754 = vsel %vm2731, %v2594, %v2690
      %v2755 = vsel %vm2731, %v2595, %v2691
      %v2756 = vsel %vm2732, %v2594, %v2692
      %v2757 = vsel %vm2732, %v2595, %v2693
      %v2758 = vsel %vm2733, %v2594, %v2694
      %v2759 = vsel %vm2733, %v2595, %v2695
      %v2760 = vsel %vm2734, %v2594, %v2696
      %v2761 = vsel %vm2734, %v2595, %v2697
      %v2762 = vsel %vm2735, %v2594, %v2698
      %v2763 = vsel %vm2735, %v2595, %v2699
      %v2764 = vsel %vm2736, %v2594, %v2700
      %v2765 = vsel %vm2736, %v2595, %v2701
      %v2766 = vsel %vm2737, %v2594, %v2702
      %v2767 = vsel %vm2737, %v2595, %v2703
      %v2768 = vsel %vm2738, %v2594, %v2704
      %v2769 = vsel %vm2738, %v2595, %v2705
      %v2770 = vsel %vm2739, %v2594, %v2706
      %v2771 = vsel %vm2739, %v2595, %v2707
      %2772 = vst [vmem:[#allocation7] sm:$0xff] %v2740
      %2773 = vst [vmem:[#allocation7 + $0x8] sm:$0xff] %v2741
      %2774 = vst [vmem:[#allocation7 + $0x10] sm:$0xff] %v2742
      %2775 = vst [vmem:[#allocation7 + $0x18] sm:$0xff] %v2743
      %2776 = vst [vmem:[#allocation7 + $0x20] sm:$0xff] %v2744
      %2777 = vst [vmem:[#allocation7 + $0x28] sm:$0xff] %v2745
      %2778 = vst [vmem:[#allocation7 + $0x30] sm:$0xff] %v2746
      %2779 = vst [vmem:[#allocation7 + $0x38] sm:$0xff] %v2747
      %2780 = vst [vmem:[#allocation7 + $0x40] sm:$0xff] %v2748
      %2781 = vst [vmem:[#allocation7 + $0x48] sm:$0xff] %v2749
      %2782 = vst [vmem:[#allocation7 + $0x50] sm:$0xff] %v2750
      %2783 = vst [vmem:[#allocation7 + $0x58] sm:$0xff] %v2751
      %2784 = vst [vmem:[#allocation7 + $0x60] sm:$0xff] %v2752
      %2785 = vst [vmem:[#allocation7 + $0x68] sm:$0xff] %v2753
      %2786 = vst [vmem:[#allocation7 + $0x70] sm:$0xff] %v2754
      %2787 = vst [vmem:[#allocation7 + $0x78] sm:$0xff] %v2755
      %2788 = vst [vmem:[#allocation7 + $0x80] sm:$0xff] %v2756
      %2789 = vst [vmem:[#allocation7 + $0x88] sm:$0xff] %v2757
      %2790 = vst [vmem:[#allocation7 + $0x90] sm:$0xff] %v2758
      %2791 = vst [vmem:[#allocation7 + $0x98] sm:$0xff] %v2759
      %2792 = vst [vmem:[#allocation7 + $0xa0] sm:$0xff] %v2760
      %2793 = vst [vmem:[#allocation7 + $0xa8] sm:$0xff] %v2761
      %2794 = vst [vmem:[#allocation7 + $0xb0] sm:$0xff] %v2762
      %2795 = vst [vmem:[#allocation7 + $0xb8] sm:$0xff] %v2763
      %2796 = vst [vmem:[#allocation7 + $0xc0] sm:$0xff] %v2764
      %2797 = vst [vmem:[#allocation7 + $0xc8] sm:$0xff] %v2765
      %2798 = vst [vmem:[#allocation7 + $0xd0] sm:$0xff] %v2766
      %2799 = vst [vmem:[#allocation7 + $0xd8] sm:$0xff] %v2767
      %2800 = vst [vmem:[#allocation7 + $0xe0] sm:$0xff] %v2768
      %2801 = vst [vmem:[#allocation7 + $0xe8] sm:$0xff] %v2769
      %2802 = vst [vmem:[#allocation7 + $0xf0] sm:$0xff] %v2770
      %2803 = vst [vmem:[#allocation7 + $0xf8] sm:$0xff] %v2771
      %v2804 = vld [vmem:[#allocation7] sm:$0xff]
      %v2805 = vld [vmem:[#allocation7 + $0x8] sm:$0xff]
      %v2806 = vld [vmem:[#allocation7 + $0x10] sm:$0xff]
      %v2807 = vld [vmem:[#allocation7 + $0x18] sm:$0xff]
      %v2808 = vld [vmem:[#allocation7 + $0x20] sm:$0xff]
      %v2809 = vld [vmem:[#allocation7 + $0x28] sm:$0xff]
      %v2810 = vld [vmem:[#allocation7 + $0x30] sm:$0xff]
      %v2811 = vld [vmem:[#allocation7 + $0x38] sm:$0xff]
      %v2812 = vld [vmem:[#allocation7 + $0x40] sm:$0xff]
      %v2813 = vld [vmem:[#allocation7 + $0x48] sm:$0xff]
      %v2814 = vld [vmem:[#allocation7 + $0x50] sm:$0xff]
      %v2815 = vld [vmem:[#allocation7 + $0x58] sm:$0xff]
      %v2816 = vld [vmem:[#allocation7 + $0x60] sm:$0xff]
      %v2817 = vld [vmem:[#allocation7 + $0x68] sm:$0xff]
      %v2818 = vld [vmem:[#allocation7 + $0x70] sm:$0xff]
      %v2819 = vld [vmem:[#allocation7 + $0x78] sm:$0xff]
      %v2820 = vld [vmem:[#allocation7 + $0x80] sm:$0xff]
      %v2821 = vld [vmem:[#allocation7 + $0x88] sm:$0xff]
      %v2822 = vld [vmem:[#allocation7 + $0x90] sm:$0xff]
      %v2823 = vld [vmem:[#allocation7 + $0x98] sm:$0xff]
      %v2824 = vld [vmem:[#allocation7 + $0xa0] sm:$0xff]
      %v2825 = vld [vmem:[#allocation7 + $0xa8] sm:$0xff]
      %v2826 = vld [vmem:[#allocation7 + $0xb0] sm:$0xff]
      %v2827 = vld [vmem:[#allocation7 + $0xb8] sm:$0xff]
      %v2828 = vld [vmem:[#allocation7 + $0xc0] sm:$0xff]
      %v2829 = vld [vmem:[#allocation7 + $0xc8] sm:$0xff]
      %v2830 = vld [vmem:[#allocation7 + $0xd0] sm:$0xff]
      %v2831 = vld [vmem:[#allocation7 + $0xd8] sm:$0xff]
      %v2832 = vld [vmem:[#allocation7 + $0xe0] sm:$0xff]
      %v2833 = vld [vmem:[#allocation7 + $0xe8] sm:$0xff]
      %v2834 = vld [vmem:[#allocation7 + $0xf0] sm:$0xff]
      %v2835 = vld [vmem:[#allocation7 + $0xf8] sm:$0xff]
      %v2836 = vmax.f32 %v2816, 1e-12
      %v2837 = vrcp.pop %v2836
      %v2838 = vmul.f32 %v2836, %v2837
      %v2839 = vsub.f32 1.0, %v2838
      %v2840 = vmul.f32 %v2837, %v2839
      %v2841 = vadd.f32 %v2837, %v2840
      %vm2842 = vweird.f32 %v2836
      %vm2843 = vweird.f32 %v2837
      %vm2844 = vmor %vm2842, %vm2843
      %v2845 = vsel %vm2844, %v2837, %v2841
      %v2846 = vand.u32 2147483647, %v2836
      %vm2847 = vcmp.eq.f32.partialorder %v2846, 8.507059e+37
      %v2848 = vand.u32 %v2836, 2147483648
      %v2849 = vor.u32 1.1754944e-38, %v2848
      %v2850 = vsel %vm2847, %v2849, %v2845
      %v2851 = vmul.f32 1.0, %v2850
      %vm2852 = vcmp.eq.s32.totalorder %v1131, 6
      %vm2853 = vcmp.eq.s32.totalorder %v1137, 6
      %vm2854 = vcmp.eq.s32.totalorder %v1140, 6
      %vm2855 = vcmp.eq.s32.totalorder %v1141, 6
      %vm2856 = vcmp.eq.s32.totalorder %v1142, 6
      %vm2857 = vcmp.eq.s32.totalorder %v1143, 6
      %vm2858 = vcmp.eq.s32.totalorder %v1144, 6
      %vm2859 = vcmp.eq.s32.totalorder %v1145, 6
      %vm2860 = vcmp.eq.s32.totalorder %v1146, 6
      %vm2861 = vcmp.eq.s32.totalorder %v1147, 6
      %vm2862 = vcmp.eq.s32.totalorder %v1148, 6
      %vm2863 = vcmp.eq.s32.totalorder %v1149, 6
      %vm2864 = vcmp.eq.s32.totalorder %v1150, 6
      %vm2865 = vcmp.eq.s32.totalorder %v1151, 6
      %vm2866 = vcmp.eq.s32.totalorder %v1152, 6
      %vm2867 = vcmp.eq.s32.totalorder %v1153, 6
      %vm2868 = vcmp.eq.s32.totalorder %v1154, 6
      %vm2869 = vcmp.eq.s32.totalorder %v1155, 6
      %v2870 = vperm.slane %v2851, 6
      %v2871 = vmul.f32 %v2816, %v2870
      %v2872 = vmul.f32 %v2817, %v2870
      %v2873 = vsel %vm2852, 1, 0
      %v2874 = vsel %vm2853, 1, 0
      %vm2875 = vcmp.eq.s32.totalorder %v2873, 1
      %vm2876 = vcmp.eq.s32.totalorder %v2874, 1
      %v2877 = vsel %vm2875, %v2870, %v2871
      %v2878 = vsel %vm2876, %v2870, %v2872
      %v2879 = vsel %vm2875, 0.0, %v2804
      %v2880 = vsel %vm2876, 0.0, %v2805
      %v2881 = vsel %vm2875, 0.0, %v2806
      %v2882 = vsel %vm2876, 0.0, %v2807
      %v2883 = vsel %vm2875, 0.0, %v2808
      %v2884 = vsel %vm2876, 0.0, %v2809
      %v2885 = vsel %vm2875, 0.0, %v2810
      %v2886 = vsel %vm2876, 0.0, %v2811
      %v2887 = vsel %vm2875, 0.0, %v2812
      %v2888 = vsel %vm2876, 0.0, %v2813
      %v2889 = vsel %vm2875, 0.0, %v2814
      %v2890 = vsel %vm2876, 0.0, %v2815
      %v2891 = vsel %vm2875, 0.0, %v2816
      %v2892 = vsel %vm2876, 0.0, %v2817
      %v2893 = vsel %vm2875, 0.0, %v2818
      %v2894 = vsel %vm2876, 0.0, %v2819
      %v2895 = vsel %vm2875, 0.0, %v2820
      %v2896 = vsel %vm2876, 0.0, %v2821
      %v2897 = vsel %vm2875, 0.0, %v2822
      %v2898 = vsel %vm2876, 0.0, %v2823
      %v2899 = vsel %vm2875, 0.0, %v2824
      %v2900 = vsel %vm2876, 0.0, %v2825
      %v2901 = vsel %vm2875, 0.0, %v2826
      %v2902 = vsel %vm2876, 0.0, %v2827
      %v2903 = vsel %vm2875, 0.0, %v2828
      %v2904 = vsel %vm2876, 0.0, %v2829
      %v2905 = vsel %vm2875, 0.0, %v2830
      %v2906 = vsel %vm2876, 0.0, %v2831
      %v2907 = vsel %vm2875, 0.0, %v2832
      %v2908 = vsel %vm2876, 0.0, %v2833
      %v2909 = vsel %vm2875, 0.0, %v2834
      %v2910 = vsel %vm2876, 0.0, %v2835
      %v2911 = vperm.slane %v2804, 6
      %v2912 = vperm.slane %v2806, 6
      %v2913 = vperm.slane %v2808, 6
      %v2914 = vperm.slane %v2810, 6
      %v2915 = vperm.slane %v2812, 6
      %v2916 = vperm.slane %v2814, 6
      %v2917 = vperm.slane %v2816, 6
      %v2918 = vperm.slane %v2818, 6
      %v2919 = vperm.slane %v2820, 6
      %v2920 = vperm.slane %v2822, 6
      %v2921 = vperm.slane %v2824, 6
      %v2922 = vperm.slane %v2826, 6
      %v2923 = vperm.slane %v2828, 6
      %v2924 = vperm.slane %v2830, 6
      %v2925 = vperm.slane %v2832, 6
      %v2926 = vperm.slane %v2834, 6
      %v2927 = vmul.f32 %v2911, %v2877
      %v2928 = vmul.f32 %v2911, %v2878
      %v2929 = vmul.f32 %v2912, %v2877
      %v2930 = vmul.f32 %v2912, %v2878
      %v2931 = vmul.f32 %v2913, %v2877
      %v2932 = vmul.f32 %v2913, %v2878
      %v2933 = vmul.f32 %v2914, %v2877
      %v2934 = vmul.f32 %v2914, %v2878
      %v2935 = vmul.f32 %v2915, %v2877
      %v2936 = vmul.f32 %v2915, %v2878
      %v2937 = vmul.f32 %v2916, %v2877
      %v2938 = vmul.f32 %v2916, %v2878
      %v2939 = vmul.f32 %v2917, %v2877
      %v2940 = vmul.f32 %v2917, %v2878
      %v2941 = vmul.f32 %v2918, %v2877
      %v2942 = vmul.f32 %v2918, %v2878
      %v2943 = vmul.f32 %v2919, %v2877
      %v2944 = vmul.f32 %v2919, %v2878
      %v2945 = vmul.f32 %v2920, %v2877
      %v2946 = vmul.f32 %v2920, %v2878
      %v2947 = vmul.f32 %v2921, %v2877
      %v2948 = vmul.f32 %v2921, %v2878
      %v2949 = vmul.f32 %v2922, %v2877
      %v2950 = vmul.f32 %v2922, %v2878
      %v2951 = vmul.f32 %v2923, %v2877
      %v2952 = vmul.f32 %v2923, %v2878
      %v2953 = vmul.f32 %v2924, %v2877
      %v2954 = vmul.f32 %v2924, %v2878
      %v2955 = vmul.f32 %v2925, %v2877
      %v2956 = vmul.f32 %v2925, %v2878
      %v2957 = vmul.f32 %v2926, %v2877
      %v2958 = vmul.f32 %v2926, %v2878
      %v2959 = vsub.f32 %v2879, %v2927
      %v2960 = vsub.f32 %v2880, %v2928
      %v2961 = vsub.f32 %v2881, %v2929
      %v2962 = vsub.f32 %v2882, %v2930
      %v2963 = vsub.f32 %v2883, %v2931
      %v2964 = vsub.f32 %v2884, %v2932
      %v2965 = vsub.f32 %v2885, %v2933
      %v2966 = vsub.f32 %v2886, %v2934
      %v2967 = vsub.f32 %v2887, %v2935
      %v2968 = vsub.f32 %v2888, %v2936
      %v2969 = vsub.f32 %v2889, %v2937
      %v2970 = vsub.f32 %v2890, %v2938
      %v2971 = vsub.f32 %v2891, %v2939
      %v2972 = vsub.f32 %v2892, %v2940
      %v2973 = vsub.f32 %v2893, %v2941
      %v2974 = vsub.f32 %v2894, %v2942
      %v2975 = vsub.f32 %v2895, %v2943
      %v2976 = vsub.f32 %v2896, %v2944
      %v2977 = vsub.f32 %v2897, %v2945
      %v2978 = vsub.f32 %v2898, %v2946
      %v2979 = vsub.f32 %v2899, %v2947
      %v2980 = vsub.f32 %v2900, %v2948
      %v2981 = vsub.f32 %v2901, %v2949
      %v2982 = vsub.f32 %v2902, %v2950
      %v2983 = vsub.f32 %v2903, %v2951
      %v2984 = vsub.f32 %v2904, %v2952
      %v2985 = vsub.f32 %v2905, %v2953
      %v2986 = vsub.f32 %v2906, %v2954
      %v2987 = vsub.f32 %v2907, %v2955
      %v2988 = vsub.f32 %v2908, %v2956
      %v2989 = vsub.f32 %v2909, %v2957
      %v2990 = vsub.f32 %v2910, %v2958
      %v2991 = vsel %vm2854, 1, 0
      %v2992 = vsel %vm2855, 1, 0
      %v2993 = vsel %vm2856, 1, 0
      %v2994 = vsel %vm2857, 1, 0
      %v2995 = vsel %vm2858, 1, 0
      %v2996 = vsel %vm2859, 1, 0
      %v2997 = vsel %vm2860, 1, 0
      %v2998 = vsel %vm2861, 1, 0
      %v2999 = vsel %vm2862, 1, 0
      %v3000 = vsel %vm2863, 1, 0
      %v3001 = vsel %vm2864, 1, 0
      %v3002 = vsel %vm2865, 1, 0
      %v3003 = vsel %vm2866, 1, 0
      %v3004 = vsel %vm2867, 1, 0
      %v3005 = vsel %vm2868, 1, 0
      %v3006 = vsel %vm2869, 1, 0
      %vm3007 = vcmp.eq.s32.totalorder %v2991, 1
      %vm3008 = vcmp.eq.s32.totalorder %v2992, 1
      %vm3009 = vcmp.eq.s32.totalorder %v2993, 1
      %vm3010 = vcmp.eq.s32.totalorder %v2994, 1
      %vm3011 = vcmp.eq.s32.totalorder %v2995, 1
      %vm3012 = vcmp.eq.s32.totalorder %v2996, 1
      %vm3013 = vcmp.eq.s32.totalorder %v2997, 1
      %vm3014 = vcmp.eq.s32.totalorder %v2998, 1
      %vm3015 = vcmp.eq.s32.totalorder %v2999, 1
      %vm3016 = vcmp.eq.s32.totalorder %v3000, 1
      %vm3017 = vcmp.eq.s32.totalorder %v3001, 1
      %vm3018 = vcmp.eq.s32.totalorder %v3002, 1
      %vm3019 = vcmp.eq.s32.totalorder %v3003, 1
      %vm3020 = vcmp.eq.s32.totalorder %v3004, 1
      %vm3021 = vcmp.eq.s32.totalorder %v3005, 1
      %vm3022 = vcmp.eq.s32.totalorder %v3006, 1
      %v3023 = vsel %vm3007, %v2877, %v2959
      %v3024 = vsel %vm3007, %v2878, %v2960
      %v3025 = vsel %vm3008, %v2877, %v2961
      %v3026 = vsel %vm3008, %v2878, %v2962
      %v3027 = vsel %vm3009, %v2877, %v2963
      %v3028 = vsel %vm3009, %v2878, %v2964
      %v3029 = vsel %vm3010, %v2877, %v2965
      %v3030 = vsel %vm3010, %v2878, %v2966
      %v3031 = vsel %vm3011, %v2877, %v2967
      %v3032 = vsel %vm3011, %v2878, %v2968
      %v3033 = vsel %vm3012, %v2877, %v2969
      %v3034 = vsel %vm3012, %v2878, %v2970
      %v3035 = vsel %vm3013, %v2877, %v2971
      %v3036 = vsel %vm3013, %v2878, %v2972
      %v3037 = vsel %vm3014, %v2877, %v2973
      %v3038 = vsel %vm3014, %v2878, %v2974
      %v3039 = vsel %vm3015, %v2877, %v2975
      %v3040 = vsel %vm3015, %v2878, %v2976
      %v3041 = vsel %vm3016, %v2877, %v2977
      %v3042 = vsel %vm3016, %v2878, %v2978
      %v3043 = vsel %vm3017, %v2877, %v2979
      %v3044 = vsel %vm3017, %v2878, %v2980
      %v3045 = vsel %vm3018, %v2877, %v2981
      %v3046 = vsel %vm3018, %v2878, %v2982
      %v3047 = vsel %vm3019, %v2877, %v2983
      %v3048 = vsel %vm3019, %v2878, %v2984
      %v3049 = vsel %vm3020, %v2877, %v2985
      %v3050 = vsel %vm3020, %v2878, %v2986
      %v3051 = vsel %vm3021, %v2877, %v2987
      %v3052 = vsel %vm3021, %v2878, %v2988
      %v3053 = vsel %vm3022, %v2877, %v2989
      %v3054 = vsel %vm3022, %v2878, %v2990
      %3055 = vst [vmem:[#allocation7] sm:$0xff] %v3023
      %3056 = vst [vmem:[#allocation7 + $0x8] sm:$0xff] %v3024
      %3057 = vst [vmem:[#allocation7 + $0x10] sm:$0xff] %v3025
      %3058 = vst [vmem:[#allocation7 + $0x18] sm:$0xff] %v3026
      %3059 = vst [vmem:[#allocation7 + $0x20] sm:$0xff] %v3027
      %3060 = vst [vmem:[#allocation7 + $0x28] sm:$0xff] %v3028
      %3061 = vst [vmem:[#allocation7 + $0x30] sm:$0xff] %v3029
      %3062 = vst [vmem:[#allocation7 + $0x38] sm:$0xff] %v3030
      %3063 = vst [vmem:[#allocation7 + $0x40] sm:$0xff] %v3031
      %3064 = vst [vmem:[#allocation7 + $0x48] sm:$0xff] %v3032
      %3065 = vst [vmem:[#allocation7 + $0x50] sm:$0xff] %v3033
      %3066 = vst [vmem:[#allocation7 + $0x58] sm:$0xff] %v3034
      %3067 = vst [vmem:[#allocation7 + $0x60] sm:$0xff] %v3035
      %3068 = vst [vmem:[#allocation7 + $0x68] sm:$0xff] %v3036
      %3069 = vst [vmem:[#allocation7 + $0x70] sm:$0xff] %v3037
      %3070 = vst [vmem:[#allocation7 + $0x78] sm:$0xff] %v3038
      %3071 = vst [vmem:[#allocation7 + $0x80] sm:$0xff] %v3039
      %3072 = vst [vmem:[#allocation7 + $0x88] sm:$0xff] %v3040
      %3073 = vst [vmem:[#allocation7 + $0x90] sm:$0xff] %v3041
      %3074 = vst [vmem:[#allocation7 + $0x98] sm:$0xff] %v3042
      %3075 = vst [vmem:[#allocation7 + $0xa0] sm:$0xff] %v3043
      %3076 = vst [vmem:[#allocation7 + $0xa8] sm:$0xff] %v3044
      %3077 = vst [vmem:[#allocation7 + $0xb0] sm:$0xff] %v3045
      %3078 = vst [vmem:[#allocation7 + $0xb8] sm:$0xff] %v3046
      %3079 = vst [vmem:[#allocation7 + $0xc0] sm:$0xff] %v3047
      %3080 = vst [vmem:[#allocation7 + $0xc8] sm:$0xff] %v3048
      %3081 = vst [vmem:[#allocation7 + $0xd0] sm:$0xff] %v3049
      %3082 = vst [vmem:[#allocation7 + $0xd8] sm:$0xff] %v3050
      %3083 = vst [vmem:[#allocation7 + $0xe0] sm:$0xff] %v3051
      %3084 = vst [vmem:[#allocation7 + $0xe8] sm:$0xff] %v3052
      %3085 = vst [vmem:[#allocation7 + $0xf0] sm:$0xff] %v3053
      %3086 = vst [vmem:[#allocation7 + $0xf8] sm:$0xff] %v3054
      %v3087 = vld [vmem:[#allocation7] sm:$0xff]
      %v3088 = vld [vmem:[#allocation7 + $0x8] sm:$0xff]
      %v3089 = vld [vmem:[#allocation7 + $0x10] sm:$0xff]
      %v3090 = vld [vmem:[#allocation7 + $0x18] sm:$0xff]
      %v3091 = vld [vmem:[#allocation7 + $0x20] sm:$0xff]
      %v3092 = vld [vmem:[#allocation7 + $0x28] sm:$0xff]
      %v3093 = vld [vmem:[#allocation7 + $0x30] sm:$0xff]
      %v3094 = vld [vmem:[#allocation7 + $0x38] sm:$0xff]
      %v3095 = vld [vmem:[#allocation7 + $0x40] sm:$0xff]
      %v3096 = vld [vmem:[#allocation7 + $0x48] sm:$0xff]
      %v3097 = vld [vmem:[#allocation7 + $0x50] sm:$0xff]
      %v3098 = vld [vmem:[#allocation7 + $0x58] sm:$0xff]
      %v3099 = vld [vmem:[#allocation7 + $0x60] sm:$0xff]
      %v3100 = vld [vmem:[#allocation7 + $0x68] sm:$0xff]
      %v3101 = vld [vmem:[#allocation7 + $0x70] sm:$0xff]
      %v3102 = vld [vmem:[#allocation7 + $0x78] sm:$0xff]
      %v3103 = vld [vmem:[#allocation7 + $0x80] sm:$0xff]
      %v3104 = vld [vmem:[#allocation7 + $0x88] sm:$0xff]
      %v3105 = vld [vmem:[#allocation7 + $0x90] sm:$0xff]
      %v3106 = vld [vmem:[#allocation7 + $0x98] sm:$0xff]
      %v3107 = vld [vmem:[#allocation7 + $0xa0] sm:$0xff]
      %v3108 = vld [vmem:[#allocation7 + $0xa8] sm:$0xff]
      %v3109 = vld [vmem:[#allocation7 + $0xb0] sm:$0xff]
      %v3110 = vld [vmem:[#allocation7 + $0xb8] sm:$0xff]
      %v3111 = vld [vmem:[#allocation7 + $0xc0] sm:$0xff]
      %v3112 = vld [vmem:[#allocation7 + $0xc8] sm:$0xff]
      %v3113 = vld [vmem:[#allocation7 + $0xd0] sm:$0xff]
      %v3114 = vld [vmem:[#allocation7 + $0xd8] sm:$0xff]
      %v3115 = vld [vmem:[#allocation7 + $0xe0] sm:$0xff]
      %v3116 = vld [vmem:[#allocation7 + $0xe8] sm:$0xff]
      %v3117 = vld [vmem:[#allocation7 + $0xf0] sm:$0xff]
      %v3118 = vld [vmem:[#allocation7 + $0xf8] sm:$0xff]
      %v3119 = vmax.f32 %v3101, 1e-12
      %v3120 = vrcp.pop %v3119
      %v3121 = vmul.f32 %v3119, %v3120
      %v3122 = vsub.f32 1.0, %v3121
      %v3123 = vmul.f32 %v3120, %v3122
      %v3124 = vadd.f32 %v3120, %v3123
      %vm3125 = vweird.f32 %v3119
      %vm3126 = vweird.f32 %v3120
      %vm3127 = vmor %vm3125, %vm3126
      %v3128 = vsel %vm3127, %v3120, %v3124
      %v3129 = vand.u32 2147483647, %v3119
      %vm3130 = vcmp.eq.f32.partialorder %v3129, 8.507059e+37
      %v3131 = vand.u32 %v3119, 2147483648
      %v3132 = vor.u32 1.1754944e-38, %v3131
      %v3133 = vsel %vm3130, %v3132, %v3128
      %v3134 = vmul.f32 1.0, %v3133
      %vm3135 = vcmp.eq.s32.totalorder %v1131, 7
      %vm3136 = vcmp.eq.s32.totalorder %v1137, 7
      %vm3137 = vcmp.eq.s32.totalorder %v1140, 7
      %vm3138 = vcmp.eq.s32.totalorder %v1141, 7
      %vm3139 = vcmp.eq.s32.totalorder %v1142, 7
      %vm3140 = vcmp.eq.s32.totalorder %v1143, 7
      %vm3141 = vcmp.eq.s32.totalorder %v1144, 7
      %vm3142 = vcmp.eq.s32.totalorder %v1145, 7
      %vm3143 = vcmp.eq.s32.totalorder %v1146, 7
      %vm3144 = vcmp.eq.s32.totalorder %v1147, 7
      %vm3145 = vcmp.eq.s32.totalorder %v1148, 7
      %vm3146 = vcmp.eq.s32.totalorder %v1149, 7
      %vm3147 = vcmp.eq.s32.totalorder %v1150, 7
      %vm3148 = vcmp.eq.s32.totalorder %v1151, 7
      %vm3149 = vcmp.eq.s32.totalorder %v1152, 7
      %vm3150 = vcmp.eq.s32.totalorder %v1153, 7
      %vm3151 = vcmp.eq.s32.totalorder %v1154, 7
      %vm3152 = vcmp.eq.s32.totalorder %v1155, 7
      %v3153 = vperm.slane %v3134, 7
      %v3154 = vmul.f32 %v3101, %v3153
      %v3155 = vmul.f32 %v3102, %v3153
      %v3156 = vsel %vm3135, 1, 0
      %v3157 = vsel %vm3136, 1, 0
      %vm3158 = vcmp.eq.s32.totalorder %v3156, 1
      %vm3159 = vcmp.eq.s32.totalorder %v3157, 1
      %v3160 = vsel %vm3158, %v3153, %v3154
      %v3161 = vsel %vm3159, %v3153, %v3155
      %v3162 = vsel %vm3158, 0.0, %v3087
      %v3163 = vsel %vm3159, 0.0, %v3088
      %v3164 = vsel %vm3158, 0.0, %v3089
      %v3165 = vsel %vm3159, 0.0, %v3090
      %v3166 = vsel %vm3158, 0.0, %v3091
      %v3167 = vsel %vm3159, 0.0, %v3092
      %v3168 = vsel %vm3158, 0.0, %v3093
      %v3169 = vsel %vm3159, 0.0, %v3094
      %v3170 = vsel %vm3158, 0.0, %v3095
      %v3171 = vsel %vm3159, 0.0, %v3096
      %v3172 = vsel %vm3158, 0.0, %v3097
      %v3173 = vsel %vm3159, 0.0, %v3098
      %v3174 = vsel %vm3158, 0.0, %v3099
      %v3175 = vsel %vm3159, 0.0, %v3100
      %v3176 = vsel %vm3158, 0.0, %v3101
      %v3177 = vsel %vm3159, 0.0, %v3102
      %v3178 = vsel %vm3158, 0.0, %v3103
      %v3179 = vsel %vm3159, 0.0, %v3104
      %v3180 = vsel %vm3158, 0.0, %v3105
      %v3181 = vsel %vm3159, 0.0, %v3106
      %v3182 = vsel %vm3158, 0.0, %v3107
      %v3183 = vsel %vm3159, 0.0, %v3108
      %v3184 = vsel %vm3158, 0.0, %v3109
      %v3185 = vsel %vm3159, 0.0, %v3110
      %v3186 = vsel %vm3158, 0.0, %v3111
      %v3187 = vsel %vm3159, 0.0, %v3112
      %v3188 = vsel %vm3158, 0.0, %v3113
      %v3189 = vsel %vm3159, 0.0, %v3114
      %v3190 = vsel %vm3158, 0.0, %v3115
      %v3191 = vsel %vm3159, 0.0, %v3116
      %v3192 = vsel %vm3158, 0.0, %v3117
      %v3193 = vsel %vm3159, 0.0, %v3118
      %v3194 = vperm.slane %v3087, 7
      %v3195 = vperm.slane %v3089, 7
      %v3196 = vperm.slane %v3091, 7
      %v3197 = vperm.slane %v3093, 7
      %v3198 = vperm.slane %v3095, 7
      %v3199 = vperm.slane %v3097, 7
      %v3200 = vperm.slane %v3099, 7
      %v3201 = vperm.slane %v3101, 7
      %v3202 = vperm.slane %v3103, 7
      %v3203 = vperm.slane %v3105, 7
      %v3204 = vperm.slane %v3107, 7
      %v3205 = vperm.slane %v3109, 7
      %v3206 = vperm.slane %v3111, 7
      %v3207 = vperm.slane %v3113, 7
      %v3208 = vperm.slane %v3115, 7
      %v3209 = vperm.slane %v3117, 7
      %v3210 = vmul.f32 %v3194, %v3160
      %v3211 = vmul.f32 %v3194, %v3161
      %v3212 = vmul.f32 %v3195, %v3160
      %v3213 = vmul.f32 %v3195, %v3161
      %v3214 = vmul.f32 %v3196, %v3160
      %v3215 = vmul.f32 %v3196, %v3161
      %v3216 = vmul.f32 %v3197, %v3160
      %v3217 = vmul.f32 %v3197, %v3161
      %v3218 = vmul.f32 %v3198, %v3160
      %v3219 = vmul.f32 %v3198, %v3161
      %v3220 = vmul.f32 %v3199, %v3160
      %v3221 = vmul.f32 %v3199, %v3161
      %v3222 = vmul.f32 %v3200, %v3160
      %v3223 = vmul.f32 %v3200, %v3161
      %v3224 = vmul.f32 %v3201, %v3160
      %v3225 = vmul.f32 %v3201, %v3161
      %v3226 = vmul.f32 %v3202, %v3160
      %v3227 = vmul.f32 %v3202, %v3161
      %v3228 = vmul.f32 %v3203, %v3160
      %v3229 = vmul.f32 %v3203, %v3161
      %v3230 = vmul.f32 %v3204, %v3160
      %v3231 = vmul.f32 %v3204, %v3161
      %v3232 = vmul.f32 %v3205, %v3160
      %v3233 = vmul.f32 %v3205, %v3161
      %v3234 = vmul.f32 %v3206, %v3160
      %v3235 = vmul.f32 %v3206, %v3161
      %v3236 = vmul.f32 %v3207, %v3160
      %v3237 = vmul.f32 %v3207, %v3161
      %v3238 = vmul.f32 %v3208, %v3160
      %v3239 = vmul.f32 %v3208, %v3161
      %v3240 = vmul.f32 %v3209, %v3160
      %v3241 = vmul.f32 %v3209, %v3161
      %v3242 = vsub.f32 %v3162, %v3210
      %v3243 = vsub.f32 %v3163, %v3211
      %v3244 = vsub.f32 %v3164, %v3212
      %v3245 = vsub.f32 %v3165, %v3213
      %v3246 = vsub.f32 %v3166, %v3214
      %v3247 = vsub.f32 %v3167, %v3215
      %v3248 = vsub.f32 %v3168, %v3216
      %v3249 = vsub.f32 %v3169, %v3217
      %v3250 = vsub.f32 %v3170, %v3218
      %v3251 = vsub.f32 %v3171, %v3219
      %v3252 = vsub.f32 %v3172, %v3220
      %v3253 = vsub.f32 %v3173, %v3221
      %v3254 = vsub.f32 %v3174, %v3222
      %v3255 = vsub.f32 %v3175, %v3223
      %v3256 = vsub.f32 %v3176, %v3224
      %v3257 = vsub.f32 %v3177, %v3225
      %v3258 = vsub.f32 %v3178, %v3226
      %v3259 = vsub.f32 %v3179, %v3227
      %v3260 = vsub.f32 %v3180, %v3228
      %v3261 = vsub.f32 %v3181, %v3229
      %v3262 = vsub.f32 %v3182, %v3230
      %v3263 = vsub.f32 %v3183, %v3231
      %v3264 = vsub.f32 %v3184, %v3232
      %v3265 = vsub.f32 %v3185, %v3233
      %v3266 = vsub.f32 %v3186, %v3234
      %v3267 = vsub.f32 %v3187, %v3235
      %v3268 = vsub.f32 %v3188, %v3236
      %v3269 = vsub.f32 %v3189, %v3237
      %v3270 = vsub.f32 %v3190, %v3238
      %v3271 = vsub.f32 %v3191, %v3239
      %v3272 = vsub.f32 %v3192, %v3240
      %v3273 = vsub.f32 %v3193, %v3241
      %v3274 = vsel %vm3137, 1, 0
      %v3275 = vsel %vm3138, 1, 0
      %v3276 = vsel %vm3139, 1, 0
      %v3277 = vsel %vm3140, 1, 0
      %v3278 = vsel %vm3141, 1, 0
      %v3279 = vsel %vm3142, 1, 0
      %v3280 = vsel %vm3143, 1, 0
      %v3281 = vsel %vm3144, 1, 0
      %v3282 = vsel %vm3145, 1, 0
      %v3283 = vsel %vm3146, 1, 0
      %v3284 = vsel %vm3147, 1, 0
      %v3285 = vsel %vm3148, 1, 0
      %v3286 = vsel %vm3149, 1, 0
      %v3287 = vsel %vm3150, 1, 0
      %v3288 = vsel %vm3151, 1, 0
      %v3289 = vsel %vm3152, 1, 0
      %vm3290 = vcmp.eq.s32.totalorder %v3274, 1
      %vm3291 = vcmp.eq.s32.totalorder %v3275, 1
      %vm3292 = vcmp.eq.s32.totalorder %v3276, 1
      %vm3293 = vcmp.eq.s32.totalorder %v3277, 1
      %vm3294 = vcmp.eq.s32.totalorder %v3278, 1
      %vm3295 = vcmp.eq.s32.totalorder %v3279, 1
      %vm3296 = vcmp.eq.s32.totalorder %v3280, 1
      %vm3297 = vcmp.eq.s32.totalorder %v3281, 1
      %vm3298 = vcmp.eq.s32.totalorder %v3282, 1
      %vm3299 = vcmp.eq.s32.totalorder %v3283, 1
      %vm3300 = vcmp.eq.s32.totalorder %v3284, 1
      %vm3301 = vcmp.eq.s32.totalorder %v3285, 1
      %vm3302 = vcmp.eq.s32.totalorder %v3286, 1
      %vm3303 = vcmp.eq.s32.totalorder %v3287, 1
      %vm3304 = vcmp.eq.s32.totalorder %v3288, 1
      %vm3305 = vcmp.eq.s32.totalorder %v3289, 1
      %v3306 = vsel %vm3290, %v3160, %v3242
      %v3307 = vsel %vm3290, %v3161, %v3243
      %v3308 = vsel %vm3291, %v3160, %v3244
      %v3309 = vsel %vm3291, %v3161, %v3245
      %v3310 = vsel %vm3292, %v3160, %v3246
      %v3311 = vsel %vm3292, %v3161, %v3247
      %v3312 = vsel %vm3293, %v3160, %v3248
      %v3313 = vsel %vm3293, %v3161, %v3249
      %v3314 = vsel %vm3294, %v3160, %v3250
      %v3315 = vsel %vm3294, %v3161, %v3251
      %v3316 = vsel %vm3295, %v3160, %v3252
      %v3317 = vsel %vm3295, %v3161, %v3253
      %v3318 = vsel %vm3296, %v3160, %v3254
      %v3319 = vsel %vm3296, %v3161, %v3255
      %v3320 = vsel %vm3297, %v3160, %v3256
      %v3321 = vsel %vm3297, %v3161, %v3257
      %v3322 = vsel %vm3298, %v3160, %v3258
      %v3323 = vsel %vm3298, %v3161, %v3259
      %v3324 = vsel %vm3299, %v3160, %v3260
      %v3325 = vsel %vm3299, %v3161, %v3261
      %v3326 = vsel %vm3300, %v3160, %v3262
      %v3327 = vsel %vm3300, %v3161, %v3263
      %v3328 = vsel %vm3301, %v3160, %v3264
      %v3329 = vsel %vm3301, %v3161, %v3265
      %v3330 = vsel %vm3302, %v3160, %v3266
      %v3331 = vsel %vm3302, %v3161, %v3267
      %v3332 = vsel %vm3303, %v3160, %v3268
      %v3333 = vsel %vm3303, %v3161, %v3269
      %v3334 = vsel %vm3304, %v3160, %v3270
      %v3335 = vsel %vm3304, %v3161, %v3271
      %v3336 = vsel %vm3305, %v3160, %v3272
      %v3337 = vsel %vm3305, %v3161, %v3273
      %3338 = vst [vmem:[#allocation7] sm:$0xff] %v3306
      %3339 = vst [vmem:[#allocation7 + $0x8] sm:$0xff] %v3307
      %3340 = vst [vmem:[#allocation7 + $0x10] sm:$0xff] %v3308
      %3341 = vst [vmem:[#allocation7 + $0x18] sm:$0xff] %v3309
      %3342 = vst [vmem:[#allocation7 + $0x20] sm:$0xff] %v3310
      %3343 = vst [vmem:[#allocation7 + $0x28] sm:$0xff] %v3311
      %3344 = vst [vmem:[#allocation7 + $0x30] sm:$0xff] %v3312
      %3345 = vst [vmem:[#allocation7 + $0x38] sm:$0xff] %v3313
      %3346 = vst [vmem:[#allocation7 + $0x40] sm:$0xff] %v3314
      %3347 = vst [vmem:[#allocation7 + $0x48] sm:$0xff] %v3315
      %3348 = vst [vmem:[#allocation7 + $0x50] sm:$0xff] %v3316
      %3349 = vst [vmem:[#allocation7 + $0x58] sm:$0xff] %v3317
      %3350 = vst [vmem:[#allocation7 + $0x60] sm:$0xff] %v3318
      %3351 = vst [vmem:[#allocation7 + $0x68] sm:$0xff] %v3319
      %3352 = vst [vmem:[#allocation7 + $0x70] sm:$0xff] %v3320
      %3353 = vst [vmem:[#allocation7 + $0x78] sm:$0xff] %v3321
      %3354 = vst [vmem:[#allocation7 + $0x80] sm:$0xff] %v3322
      %3355 = vst [vmem:[#allocation7 + $0x88] sm:$0xff] %v3323
      %3356 = vst [vmem:[#allocation7 + $0x90] sm:$0xff] %v3324
      %3357 = vst [vmem:[#allocation7 + $0x98] sm:$0xff] %v3325
      %3358 = vst [vmem:[#allocation7 + $0xa0] sm:$0xff] %v3326
      %3359 = vst [vmem:[#allocation7 + $0xa8] sm:$0xff] %v3327
      %3360 = vst [vmem:[#allocation7 + $0xb0] sm:$0xff] %v3328
      %3361 = vst [vmem:[#allocation7 + $0xb8] sm:$0xff] %v3329
      %3362 = vst [vmem:[#allocation7 + $0xc0] sm:$0xff] %v3330
      %3363 = vst [vmem:[#allocation7 + $0xc8] sm:$0xff] %v3331
      %3364 = vst [vmem:[#allocation7 + $0xd0] sm:$0xff] %v3332
      %3365 = vst [vmem:[#allocation7 + $0xd8] sm:$0xff] %v3333
      %3366 = vst [vmem:[#allocation7 + $0xe0] sm:$0xff] %v3334
      %3367 = vst [vmem:[#allocation7 + $0xe8] sm:$0xff] %v3335
      %3368 = vst [vmem:[#allocation7 + $0xf0] sm:$0xff] %v3336
      %3369 = vst [vmem:[#allocation7 + $0xf8] sm:$0xff] %v3337
      %v3370 = vld [vmem:[#allocation7] sm:$0xff]
      %v3371 = vld [vmem:[#allocation7 + $0x8] sm:$0xff]
      %v3372 = vld [vmem:[#allocation7 + $0x10] sm:$0xff]
      %v3373 = vld [vmem:[#allocation7 + $0x18] sm:$0xff]
      %v3374 = vld [vmem:[#allocation7 + $0x20] sm:$0xff]
      %v3375 = vld [vmem:[#allocation7 + $0x28] sm:$0xff]
      %v3376 = vld [vmem:[#allocation7 + $0x30] sm:$0xff]
      %v3377 = vld [vmem:[#allocation7 + $0x38] sm:$0xff]
      %v3378 = vld [vmem:[#allocation7 + $0x40] sm:$0xff]
      %v3379 = vld [vmem:[#allocation7 + $0x48] sm:$0xff]
      %v3380 = vld [vmem:[#allocation7 + $0x50] sm:$0xff]
      %v3381 = vld [vmem:[#allocation7 + $0x58] sm:$0xff]
      %v3382 = vld [vmem:[#allocation7 + $0x60] sm:$0xff]
      %v3383 = vld [vmem:[#allocation7 + $0x68] sm:$0xff]
      %v3384 = vld [vmem:[#allocation7 + $0x70] sm:$0xff]
      %v3385 = vld [vmem:[#allocation7 + $0x78] sm:$0xff]
      %v3386 = vld [vmem:[#allocation7 + $0x80] sm:$0xff]
      %v3387 = vld [vmem:[#allocation7 + $0x88] sm:$0xff]
      %v3388 = vld [vmem:[#allocation7 + $0x90] sm:$0xff]
      %v3389 = vld [vmem:[#allocation7 + $0x98] sm:$0xff]
      %v3390 = vld [vmem:[#allocation7 + $0xa0] sm:$0xff]
      %v3391 = vld [vmem:[#allocation7 + $0xa8] sm:$0xff]
      %v3392 = vld [vmem:[#allocation7 + $0xb0] sm:$0xff]
      %v3393 = vld [vmem:[#allocation7 + $0xb8] sm:$0xff]
      %v3394 = vld [vmem:[#allocation7 + $0xc0] sm:$0xff]
      %v3395 = vld [vmem:[#allocation7 + $0xc8] sm:$0xff]
      %v3396 = vld [vmem:[#allocation7 + $0xd0] sm:$0xff]
      %v3397 = vld [vmem:[#allocation7 + $0xd8] sm:$0xff]
      %v3398 = vld [vmem:[#allocation7 + $0xe0] sm:$0xff]
      %v3399 = vld [vmem:[#allocation7 + $0xe8] sm:$0xff]
      %v3400 = vld [vmem:[#allocation7 + $0xf0] sm:$0xff]
      %v3401 = vld [vmem:[#allocation7 + $0xf8] sm:$0xff]
      %v3402 = vmax.f32 %v3387, 1e-12
      %v3403 = vrcp.pop %v3402
      %v3404 = vmul.f32 %v3402, %v3403
      %v3405 = vsub.f32 1.0, %v3404
      %v3406 = vmul.f32 %v3403, %v3405
      %v3407 = vadd.f32 %v3403, %v3406
      %vm3408 = vweird.f32 %v3402
      %vm3409 = vweird.f32 %v3403
      %vm3410 = vmor %vm3408, %vm3409
      %v3411 = vsel %vm3410, %v3403, %v3407
      %v3412 = vand.u32 2147483647, %v3402
      %vm3413 = vcmp.eq.f32.partialorder %v3412, 8.507059e+37
      %v3414 = vand.u32 %v3402, 2147483648
      %v3415 = vor.u32 1.1754944e-38, %v3414
      %v3416 = vsel %vm3413, %v3415, %v3411
      %v3417 = vmul.f32 1.0, %v3416
      %vm3418 = vcmp.eq.s32.totalorder %v1131, 8
      %vm3419 = vcmp.eq.s32.totalorder %v1137, 8
      %vm3420 = vcmp.eq.s32.totalorder %v1140, 8
      %vm3421 = vcmp.eq.s32.totalorder %v1141, 8
      %vm3422 = vcmp.eq.s32.totalorder %v1142, 8
      %vm3423 = vcmp.eq.s32.totalorder %v1143, 8
      %vm3424 = vcmp.eq.s32.totalorder %v1144, 8
      %vm3425 = vcmp.eq.s32.totalorder %v1145, 8
      %vm3426 = vcmp.eq.s32.totalorder %v1146, 8
      %vm3427 = vcmp.eq.s32.totalorder %v1147, 8
      %vm3428 = vcmp.eq.s32.totalorder %v1148, 8
      %vm3429 = vcmp.eq.s32.totalorder %v1149, 8
      %vm3430 = vcmp.eq.s32.totalorder %v1150, 8
      %vm3431 = vcmp.eq.s32.totalorder %v1151, 8
      %vm3432 = vcmp.eq.s32.totalorder %v1152, 8
      %vm3433 = vcmp.eq.s32.totalorder %v1153, 8
      %vm3434 = vcmp.eq.s32.totalorder %v1154, 8
      %vm3435 = vcmp.eq.s32.totalorder %v1155, 8
      %v3436 = vperm.slane %v3417, 0
      %v3437 = vmul.f32 %v3386, %v3436
      %v3438 = vmul.f32 %v3387, %v3436
      %v3439 = vsel %vm3418, 1, 0
      %v3440 = vsel %vm3419, 1, 0
      %vm3441 = vcmp.eq.s32.totalorder %v3439, 1
      %vm3442 = vcmp.eq.s32.totalorder %v3440, 1
      %v3443 = vsel %vm3441, %v3436, %v3437
      %v3444 = vsel %vm3442, %v3436, %v3438
      %v3445 = vsel %vm3441, 0.0, %v3370
      %v3446 = vsel %vm3442, 0.0, %v3371
      %v3447 = vsel %vm3441, 0.0, %v3372
      %v3448 = vsel %vm3442, 0.0, %v3373
      %v3449 = vsel %vm3441, 0.0, %v3374
      %v3450 = vsel %vm3442, 0.0, %v3375
      %v3451 = vsel %vm3441, 0.0, %v3376
      %v3452 = vsel %vm3442, 0.0, %v3377
      %v3453 = vsel %vm3441, 0.0, %v3378
      %v3454 = vsel %vm3442, 0.0, %v3379
      %v3455 = vsel %vm3441, 0.0, %v3380
      %v3456 = vsel %vm3442, 0.0, %v3381
      %v3457 = vsel %vm3441, 0.0, %v3382
      %v3458 = vsel %vm3442, 0.0, %v3383
      %v3459 = vsel %vm3441, 0.0, %v3384
      %v3460 = vsel %vm3442, 0.0, %v3385
      %v3461 = vsel %vm3441, 0.0, %v3386
      %v3462 = vsel %vm3442, 0.0, %v3387
      %v3463 = vsel %vm3441, 0.0, %v3388
      %v3464 = vsel %vm3442, 0.0, %v3389
      %v3465 = vsel %vm3441, 0.0, %v3390
      %v3466 = vsel %vm3442, 0.0, %v3391
      %v3467 = vsel %vm3441, 0.0, %v3392
      %v3468 = vsel %vm3442, 0.0, %v3393
      %v3469 = vsel %vm3441, 0.0, %v3394
      %v3470 = vsel %vm3442, 0.0, %v3395
      %v3471 = vsel %vm3441, 0.0, %v3396
      %v3472 = vsel %vm3442, 0.0, %v3397
      %v3473 = vsel %vm3441, 0.0, %v3398
      %v3474 = vsel %vm3442, 0.0, %v3399
      %v3475 = vsel %vm3441, 0.0, %v3400
      %v3476 = vsel %vm3442, 0.0, %v3401
      %v3477 = vperm.slane %v3371, 0
      %v3478 = vperm.slane %v3373, 0
      %v3479 = vperm.slane %v3375, 0
      %v3480 = vperm.slane %v3377, 0
      %v3481 = vperm.slane %v3379, 0
      %v3482 = vperm.slane %v3381, 0
      %v3483 = vperm.slane %v3383, 0
      %v3484 = vperm.slane %v3385, 0
      %v3485 = vperm.slane %v3387, 0
      %v3486 = vperm.slane %v3389, 0
      %v3487 = vperm.slane %v3391, 0
      %v3488 = vperm.slane %v3393, 0
      %v3489 = vperm.slane %v3395, 0
      %v3490 = vperm.slane %v3397, 0
      %v3491 = vperm.slane %v3399, 0
      %v3492 = vperm.slane %v3401, 0
      %v3493 = vmul.f32 %v3477, %v3443
      %v3494 = vmul.f32 %v3477, %v3444
      %v3495 = vmul.f32 %v3478, %v3443
      %v3496 = vmul.f32 %v3478, %v3444
      %v3497 = vmul.f32 %v3479, %v3443
      %v3498 = vmul.f32 %v3479, %v3444
      %v3499 = vmul.f32 %v3480, %v3443
      %v3500 = vmul.f32 %v3480, %v3444
      %v3501 = vmul.f32 %v3481, %v3443
      %v3502 = vmul.f32 %v3481, %v3444
      %v3503 = vmul.f32 %v3482, %v3443
      %v3504 = vmul.f32 %v3482, %v3444
      %v3505 = vmul.f32 %v3483, %v3443
      %v3506 = vmul.f32 %v3483, %v3444
      %v3507 = vmul.f32 %v3484, %v3443
      %v3508 = vmul.f32 %v3484, %v3444
      %v3509 = vmul.f32 %v3485, %v3443
      %v3510 = vmul.f32 %v3485, %v3444
      %v3511 = vmul.f32 %v3486, %v3443
      %v3512 = vmul.f32 %v3486, %v3444
      %v3513 = vmul.f32 %v3487, %v3443
      %v3514 = vmul.f32 %v3487, %v3444
      %v3515 = vmul.f32 %v3488, %v3443
      %v3516 = vmul.f32 %v3488, %v3444
      %v3517 = vmul.f32 %v3489, %v3443
      %v3518 = vmul.f32 %v3489, %v3444
      %v3519 = vmul.f32 %v3490, %v3443
      %v3520 = vmul.f32 %v3490, %v3444
      %v3521 = vmul.f32 %v3491, %v3443
      %v3522 = vmul.f32 %v3491, %v3444
      %v3523 = vmul.f32 %v3492, %v3443
      %v3524 = vmul.f32 %v3492, %v3444
      %v3525 = vsub.f32 %v3445, %v3493
      %v3526 = vsub.f32 %v3446, %v3494
      %v3527 = vsub.f32 %v3447, %v3495
      %v3528 = vsub.f32 %v3448, %v3496
      %v3529 = vsub.f32 %v3449, %v3497
      %v3530 = vsub.f32 %v3450, %v3498
      %v3531 = vsub.f32 %v3451, %v3499
      %v3532 = vsub.f32 %v3452, %v3500
      %v3533 = vsub.f32 %v3453, %v3501
      %v3534 = vsub.f32 %v3454, %v3502
      %v3535 = vsub.f32 %v3455, %v3503
      %v3536 = vsub.f32 %v3456, %v3504
      %v3537 = vsub.f32 %v3457, %v3505
      %v3538 = vsub.f32 %v3458, %v3506
      %v3539 = vsub.f32 %v3459, %v3507
      %v3540 = vsub.f32 %v3460, %v3508
      %v3541 = vsub.f32 %v3461, %v3509
      %v3542 = vsub.f32 %v3462, %v3510
      %v3543 = vsub.f32 %v3463, %v3511
      %v3544 = vsub.f32 %v3464, %v3512
      %v3545 = vsub.f32 %v3465, %v3513
      %v3546 = vsub.f32 %v3466, %v3514
      %v3547 = vsub.f32 %v3467, %v3515
      %v3548 = vsub.f32 %v3468, %v3516
      %v3549 = vsub.f32 %v3469, %v3517
      %v3550 = vsub.f32 %v3470, %v3518
      %v3551 = vsub.f32 %v3471, %v3519
      %v3552 = vsub.f32 %v3472, %v3520
      %v3553 = vsub.f32 %v3473, %v3521
      %v3554 = vsub.f32 %v3474, %v3522
      %v3555 = vsub.f32 %v3475, %v3523
      %v3556 = vsub.f32 %v3476, %v3524
      %v3557 = vsel %vm3420, 1, 0
      %v3558 = vsel %vm3421, 1, 0
      %v3559 = vsel %vm3422, 1, 0
      %v3560 = vsel %vm3423, 1, 0
      %v3561 = vsel %vm3424, 1, 0
      %v3562 = vsel %vm3425, 1, 0
      %v3563 = vsel %vm3426, 1, 0
      %v3564 = vsel %vm3427, 1, 0
      %v3565 = vsel %vm3428, 1, 0
      %v3566 = vsel %vm3429, 1, 0
      %v3567 = vsel %vm3430, 1, 0
      %v3568 = vsel %vm3431, 1, 0
      %v3569 = vsel %vm3432, 1, 0
      %v3570 = vsel %vm3433, 1, 0
      %v3571 = vsel %vm3434, 1, 0
      %v3572 = vsel %vm3435, 1, 0
      %vm3573 = vcmp.eq.s32.totalorder %v3557, 1
      %vm3574 = vcmp.eq.s32.totalorder %v3558, 1
      %vm3575 = vcmp.eq.s32.totalorder %v3559, 1
      %vm3576 = vcmp.eq.s32.totalorder %v3560, 1
      %vm3577 = vcmp.eq.s32.totalorder %v3561, 1
      %vm3578 = vcmp.eq.s32.totalorder %v3562, 1
      %vm3579 = vcmp.eq.s32.totalorder %v3563, 1
      %vm3580 = vcmp.eq.s32.totalorder %v3564, 1
      %vm3581 = vcmp.eq.s32.totalorder %v3565, 1
      %vm3582 = vcmp.eq.s32.totalorder %v3566, 1
      %vm3583 = vcmp.eq.s32.totalorder %v3567, 1
      %vm3584 = vcmp.eq.s32.totalorder %v3568, 1
      %vm3585 = vcmp.eq.s32.totalorder %v3569, 1
      %vm3586 = vcmp.eq.s32.totalorder %v3570, 1
      %vm3587 = vcmp.eq.s32.totalorder %v3571, 1
      %vm3588 = vcmp.eq.s32.totalorder %v3572, 1
      %v3589 = vsel %vm3573, %v3443, %v3525
      %v3590 = vsel %vm3573, %v3444, %v3526
      %v3591 = vsel %vm3574, %v3443, %v3527
      %v3592 = vsel %vm3574, %v3444, %v3528
      %v3593 = vsel %vm3575, %v3443, %v3529
      %v3594 = vsel %vm3575, %v3444, %v3530
      %v3595 = vsel %vm3576, %v3443, %v3531
      %v3596 = vsel %vm3576, %v3444, %v3532
      %v3597 = vsel %vm3577, %v3443, %v3533
      %v3598 = vsel %vm3577, %v3444, %v3534
      %v3599 = vsel %vm3578, %v3443, %v3535
      %v3600 = vsel %vm3578, %v3444, %v3536
      %v3601 = vsel %vm3579, %v3443, %v3537
      %v3602 = vsel %vm3579, %v3444, %v3538
      %v3603 = vsel %vm3580, %v3443, %v3539
      %v3604 = vsel %vm3580, %v3444, %v3540
      %v3605 = vsel %vm3581, %v3443, %v3541
      %v3606 = vsel %vm3581, %v3444, %v3542
      %v3607 = vsel %vm3582, %v3443, %v3543
      %v3608 = vsel %vm3582, %v3444, %v3544
      %v3609 = vsel %vm3583, %v3443, %v3545
      %v3610 = vsel %vm3583, %v3444, %v3546
      %v3611 = vsel %vm3584, %v3443, %v3547
      %v3612 = vsel %vm3584, %v3444, %v3548
      %v3613 = vsel %vm3585, %v3443, %v3549
      %v3614 = vsel %vm3585, %v3444, %v3550
      %v3615 = vsel %vm3586, %v3443, %v3551
      %v3616 = vsel %vm3586, %v3444, %v3552
      %v3617 = vsel %vm3587, %v3443, %v3553
      %v3618 = vsel %vm3587, %v3444, %v3554
      %v3619 = vsel %vm3588, %v3443, %v3555
      %v3620 = vsel %vm3588, %v3444, %v3556
      %3621 = vst [vmem:[#allocation7] sm:$0xff] %v3589
      %3622 = vst [vmem:[#allocation7 + $0x8] sm:$0xff] %v3590
      %3623 = vst [vmem:[#allocation7 + $0x10] sm:$0xff] %v3591
      %3624 = vst [vmem:[#allocation7 + $0x18] sm:$0xff] %v3592
      %3625 = vst [vmem:[#allocation7 + $0x20] sm:$0xff] %v3593
      %3626 = vst [vmem:[#allocation7 + $0x28] sm:$0xff] %v3594
      %3627 = vst [vmem:[#allocation7 + $0x30] sm:$0xff] %v3595
      %3628 = vst [vmem:[#allocation7 + $0x38] sm:$0xff] %v3596
      %3629 = vst [vmem:[#allocation7 + $0x40] sm:$0xff] %v3597
      %3630 = vst [vmem:[#allocation7 + $0x48] sm:$0xff] %v3598
      %3631 = vst [vmem:[#allocation7 + $0x50] sm:$0xff] %v3599
      %3632 = vst [vmem:[#allocation7 + $0x58] sm:$0xff] %v3600
      %3633 = vst [vmem:[#allocation7 + $0x60] sm:$0xff] %v3601
      %3634 = vst [vmem:[#allocation7 + $0x68] sm:$0xff] %v3602
      %3635 = vst [vmem:[#allocation7 + $0x70] sm:$0xff] %v3603
      %3636 = vst [vmem:[#allocation7 + $0x78] sm:$0xff] %v3604
      %3637 = vst [vmem:[#allocation7 + $0x80] sm:$0xff] %v3605
      %3638 = vst [vmem:[#allocation7 + $0x88] sm:$0xff] %v3606
      %3639 = vst [vmem:[#allocation7 + $0x90] sm:$0xff] %v3607
      %3640 = vst [vmem:[#allocation7 + $0x98] sm:$0xff] %v3608
      %3641 = vst [vmem:[#allocation7 + $0xa0] sm:$0xff] %v3609
      %3642 = vst [vmem:[#allocation7 + $0xa8] sm:$0xff] %v3610
      %3643 = vst [vmem:[#allocation7 + $0xb0] sm:$0xff] %v3611
      %3644 = vst [vmem:[#allocation7 + $0xb8] sm:$0xff] %v3612
      %3645 = vst [vmem:[#allocation7 + $0xc0] sm:$0xff] %v3613
      %3646 = vst [vmem:[#allocation7 + $0xc8] sm:$0xff] %v3614
      %3647 = vst [vmem:[#allocation7 + $0xd0] sm:$0xff] %v3615
      %3648 = vst [vmem:[#allocation7 + $0xd8] sm:$0xff] %v3616
      %3649 = vst [vmem:[#allocation7 + $0xe0] sm:$0xff] %v3617
      %3650 = vst [vmem:[#allocation7 + $0xe8] sm:$0xff] %v3618
      %3651 = vst [vmem:[#allocation7 + $0xf0] sm:$0xff] %v3619
      %3652 = vst [vmem:[#allocation7 + $0xf8] sm:$0xff] %v3620
      %v3653 = vld [vmem:[#allocation7] sm:$0xff]
      %v3654 = vld [vmem:[#allocation7 + $0x8] sm:$0xff]
      %v3655 = vld [vmem:[#allocation7 + $0x10] sm:$0xff]
      %v3656 = vld [vmem:[#allocation7 + $0x18] sm:$0xff]
      %v3657 = vld [vmem:[#allocation7 + $0x20] sm:$0xff]
      %v3658 = vld [vmem:[#allocation7 + $0x28] sm:$0xff]
      %v3659 = vld [vmem:[#allocation7 + $0x30] sm:$0xff]
      %v3660 = vld [vmem:[#allocation7 + $0x38] sm:$0xff]
      %v3661 = vld [vmem:[#allocation7 + $0x40] sm:$0xff]
      %v3662 = vld [vmem:[#allocation7 + $0x48] sm:$0xff]
      %v3663 = vld [vmem:[#allocation7 + $0x50] sm:$0xff]
      %v3664 = vld [vmem:[#allocation7 + $0x58] sm:$0xff]
      %v3665 = vld [vmem:[#allocation7 + $0x60] sm:$0xff]
      %v3666 = vld [vmem:[#allocation7 + $0x68] sm:$0xff]
      %v3667 = vld [vmem:[#allocation7 + $0x70] sm:$0xff]
      %v3668 = vld [vmem:[#allocation7 + $0x78] sm:$0xff]
      %v3669 = vld [vmem:[#allocation7 + $0x80] sm:$0xff]
      %v3670 = vld [vmem:[#allocation7 + $0x88] sm:$0xff]
      %v3671 = vld [vmem:[#allocation7 + $0x90] sm:$0xff]
      %v3672 = vld [vmem:[#allocation7 + $0x98] sm:$0xff]
      %v3673 = vld [vmem:[#allocation7 + $0xa0] sm:$0xff]
      %v3674 = vld [vmem:[#allocation7 + $0xa8] sm:$0xff]
      %v3675 = vld [vmem:[#allocation7 + $0xb0] sm:$0xff]
      %v3676 = vld [vmem:[#allocation7 + $0xb8] sm:$0xff]
      %v3677 = vld [vmem:[#allocation7 + $0xc0] sm:$0xff]
      %v3678 = vld [vmem:[#allocation7 + $0xc8] sm:$0xff]
      %v3679 = vld [vmem:[#allocation7 + $0xd0] sm:$0xff]
      %v3680 = vld [vmem:[#allocation7 + $0xd8] sm:$0xff]
      %v3681 = vld [vmem:[#allocation7 + $0xe0] sm:$0xff]
      %v3682 = vld [vmem:[#allocation7 + $0xe8] sm:$0xff]
      %v3683 = vld [vmem:[#allocation7 + $0xf0] sm:$0xff]
      %v3684 = vld [vmem:[#allocation7 + $0xf8] sm:$0xff]
      %v3685 = vmax.f32 %v3672, 1e-12
      %v3686 = vrcp.pop %v3685
      %v3687 = vmul.f32 %v3685, %v3686
      %v3688 = vsub.f32 1.0, %v3687
      %v3689 = vmul.f32 %v3686, %v3688
      %v3690 = vadd.f32 %v3686, %v3689
      %vm3691 = vweird.f32 %v3685
      %vm3692 = vweird.f32 %v3686
      %vm3693 = vmor %vm3691, %vm3692
      %v3694 = vsel %vm3693, %v3686, %v3690
      %v3695 = vand.u32 2147483647, %v3685
      %vm3696 = vcmp.eq.f32.partialorder %v3695, 8.507059e+37
      %v3697 = vand.u32 %v3685, 2147483648
      %v3698 = vor.u32 1.1754944e-38, %v3697
      %v3699 = vsel %vm3696, %v3698, %v3694
      %v3700 = vmul.f32 1.0, %v3699
      %vm3701 = vcmp.eq.s32.totalorder %v1131, 9
      %vm3702 = vcmp.eq.s32.totalorder %v1137, 9
      %vm3703 = vcmp.eq.s32.totalorder %v1140, 9
      %vm3704 = vcmp.eq.s32.totalorder %v1141, 9
      %vm3705 = vcmp.eq.s32.totalorder %v1142, 9
      %vm3706 = vcmp.eq.s32.totalorder %v1143, 9
      %vm3707 = vcmp.eq.s32.totalorder %v1144, 9
      %vm3708 = vcmp.eq.s32.totalorder %v1145, 9
      %vm3709 = vcmp.eq.s32.totalorder %v1146, 9
      %vm3710 = vcmp.eq.s32.totalorder %v1147, 9
      %vm3711 = vcmp.eq.s32.totalorder %v1148, 9
      %vm3712 = vcmp.eq.s32.totalorder %v1149, 9
      %vm3713 = vcmp.eq.s32.totalorder %v1150, 9
      %vm3714 = vcmp.eq.s32.totalorder %v1151, 9
      %vm3715 = vcmp.eq.s32.totalorder %v1152, 9
      %vm3716 = vcmp.eq.s32.totalorder %v1153, 9
      %vm3717 = vcmp.eq.s32.totalorder %v1154, 9
      %vm3718 = vcmp.eq.s32.totalorder %v1155, 9
      %v3719 = vperm.slane %v3700, 1
      %v3720 = vmul.f32 %v3671, %v3719
      %v3721 = vmul.f32 %v3672, %v3719
      %v3722 = vsel %vm3701, 1, 0
      %v3723 = vsel %vm3702, 1, 0
      %vm3724 = vcmp.eq.s32.totalorder %v3722, 1
      %vm3725 = vcmp.eq.s32.totalorder %v3723, 1
      %v3726 = vsel %vm3724, %v3719, %v3720
      %v3727 = vsel %vm3725, %v3719, %v3721
      %v3728 = vsel %vm3724, 0.0, %v3653
      %v3729 = vsel %vm3725, 0.0, %v3654
      %v3730 = vsel %vm3724, 0.0, %v3655
      %v3731 = vsel %vm3725, 0.0, %v3656
      %v3732 = vsel %vm3724, 0.0, %v3657
      %v3733 = vsel %vm3725, 0.0, %v3658
      %v3734 = vsel %vm3724, 0.0, %v3659
      %v3735 = vsel %vm3725, 0.0, %v3660
      %v3736 = vsel %vm3724, 0.0, %v3661
      %v3737 = vsel %vm3725, 0.0, %v3662
      %v3738 = vsel %vm3724, 0.0, %v3663
      %v3739 = vsel %vm3725, 0.0, %v3664
      %v3740 = vsel %vm3724, 0.0, %v3665
      %v3741 = vsel %vm3725, 0.0, %v3666
      %v3742 = vsel %vm3724, 0.0, %v3667
      %v3743 = vsel %vm3725, 0.0, %v3668
      %v3744 = vsel %vm3724, 0.0, %v3669
      %v3745 = vsel %vm3725, 0.0, %v3670
      %v3746 = vsel %vm3724, 0.0, %v3671
      %v3747 = vsel %vm3725, 0.0, %v3672
      %v3748 = vsel %vm3724, 0.0, %v3673
      %v3749 = vsel %vm3725, 0.0, %v3674
      %v3750 = vsel %vm3724, 0.0, %v3675
      %v3751 = vsel %vm3725, 0.0, %v3676
      %v3752 = vsel %vm3724, 0.0, %v3677
      %v3753 = vsel %vm3725, 0.0, %v3678
      %v3754 = vsel %vm3724, 0.0, %v3679
      %v3755 = vsel %vm3725, 0.0, %v3680
      %v3756 = vsel %vm3724, 0.0, %v3681
      %v3757 = vsel %vm3725, 0.0, %v3682
      %v3758 = vsel %vm3724, 0.0, %v3683
      %v3759 = vsel %vm3725, 0.0, %v3684
      %v3760 = vperm.slane %v3654, 1
      %v3761 = vperm.slane %v3656, 1
      %v3762 = vperm.slane %v3658, 1
      %v3763 = vperm.slane %v3660, 1
      %v3764 = vperm.slane %v3662, 1
      %v3765 = vperm.slane %v3664, 1
      %v3766 = vperm.slane %v3666, 1
      %v3767 = vperm.slane %v3668, 1
      %v3768 = vperm.slane %v3670, 1
      %v3769 = vperm.slane %v3672, 1
      %v3770 = vperm.slane %v3674, 1
      %v3771 = vperm.slane %v3676, 1
      %v3772 = vperm.slane %v3678, 1
      %v3773 = vperm.slane %v3680, 1
      %v3774 = vperm.slane %v3682, 1
      %v3775 = vperm.slane %v3684, 1
      %v3776 = vmul.f32 %v3760, %v3726
      %v3777 = vmul.f32 %v3760, %v3727
      %v3778 = vmul.f32 %v3761, %v3726
      %v3779 = vmul.f32 %v3761, %v3727
      %v3780 = vmul.f32 %v3762, %v3726
      %v3781 = vmul.f32 %v3762, %v3727
      %v3782 = vmul.f32 %v3763, %v3726
      %v3783 = vmul.f32 %v3763, %v3727
      %v3784 = vmul.f32 %v3764, %v3726
      %v3785 = vmul.f32 %v3764, %v3727
      %v3786 = vmul.f32 %v3765, %v3726
      %v3787 = vmul.f32 %v3765, %v3727
      %v3788 = vmul.f32 %v3766, %v3726
      %v3789 = vmul.f32 %v3766, %v3727
      %v3790 = vmul.f32 %v3767, %v3726
      %v3791 = vmul.f32 %v3767, %v3727
      %v3792 = vmul.f32 %v3768, %v3726
      %v3793 = vmul.f32 %v3768, %v3727
      %v3794 = vmul.f32 %v3769, %v3726
      %v3795 = vmul.f32 %v3769, %v3727
      %v3796 = vmul.f32 %v3770, %v3726
      %v3797 = vmul.f32 %v3770, %v3727
      %v3798 = vmul.f32 %v3771, %v3726
      %v3799 = vmul.f32 %v3771, %v3727
      %v3800 = vmul.f32 %v3772, %v3726
      %v3801 = vmul.f32 %v3772, %v3727
      %v3802 = vmul.f32 %v3773, %v3726
      %v3803 = vmul.f32 %v3773, %v3727
      %v3804 = vmul.f32 %v3774, %v3726
      %v3805 = vmul.f32 %v3774, %v3727
      %v3806 = vmul.f32 %v3775, %v3726
      %v3807 = vmul.f32 %v3775, %v3727
      %v3808 = vsub.f32 %v3728, %v3776
      %v3809 = vsub.f32 %v3729, %v3777
      %v3810 = vsub.f32 %v3730, %v3778
      %v3811 = vsub.f32 %v3731, %v3779
      %v3812 = vsub.f32 %v3732, %v3780
      %v3813 = vsub.f32 %v3733, %v3781
      %v3814 = vsub.f32 %v3734, %v3782
      %v3815 = vsub.f32 %v3735, %v3783
      %v3816 = vsub.f32 %v3736, %v3784
      %v3817 = vsub.f32 %v3737, %v3785
      %v3818 = vsub.f32 %v3738, %v3786
      %v3819 = vsub.f32 %v3739, %v3787
      %v3820 = vsub.f32 %v3740, %v3788
      %v3821 = vsub.f32 %v3741, %v3789
      %v3822 = vsub.f32 %v3742, %v3790
      %v3823 = vsub.f32 %v3743, %v3791
      %v3824 = vsub.f32 %v3744, %v3792
      %v3825 = vsub.f32 %v3745, %v3793
      %v3826 = vsub.f32 %v3746, %v3794
      %v3827 = vsub.f32 %v3747, %v3795
      %v3828 = vsub.f32 %v3748, %v3796
      %v3829 = vsub.f32 %v3749, %v3797
      %v3830 = vsub.f32 %v3750, %v3798
      %v3831 = vsub.f32 %v3751, %v3799
      %v3832 = vsub.f32 %v3752, %v3800
      %v3833 = vsub.f32 %v3753, %v3801
      %v3834 = vsub.f32 %v3754, %v3802
      %v3835 = vsub.f32 %v3755, %v3803
      %v3836 = vsub.f32 %v3756, %v3804
      %v3837 = vsub.f32 %v3757, %v3805
      %v3838 = vsub.f32 %v3758, %v3806
      %v3839 = vsub.f32 %v3759, %v3807
      %v3840 = vsel %vm3703, 1, 0
      %v3841 = vsel %vm3704, 1, 0
      %v3842 = vsel %vm3705, 1, 0
      %v3843 = vsel %vm3706, 1, 0
      %v3844 = vsel %vm3707, 1, 0
      %v3845 = vsel %vm3708, 1, 0
      %v3846 = vsel %vm3709, 1, 0
      %v3847 = vsel %vm3710, 1, 0
      %v3848 = vsel %vm3711, 1, 0
      %v3849 = vsel %vm3712, 1, 0
      %v3850 = vsel %vm3713, 1, 0
      %v3851 = vsel %vm3714, 1, 0
      %v3852 = vsel %vm3715, 1, 0
      %v3853 = vsel %vm3716, 1, 0
      %v3854 = vsel %vm3717, 1, 0
      %v3855 = vsel %vm3718, 1, 0
      %vm3856 = vcmp.eq.s32.totalorder %v3840, 1
      %vm3857 = vcmp.eq.s32.totalorder %v3841, 1
      %vm3858 = vcmp.eq.s32.totalorder %v3842, 1
      %vm3859 = vcmp.eq.s32.totalorder %v3843, 1
      %vm3860 = vcmp.eq.s32.totalorder %v3844, 1
      %vm3861 = vcmp.eq.s32.totalorder %v3845, 1
      %vm3862 = vcmp.eq.s32.totalorder %v3846, 1
      %vm3863 = vcmp.eq.s32.totalorder %v3847, 1
      %vm3864 = vcmp.eq.s32.totalorder %v3848, 1
      %vm3865 = vcmp.eq.s32.totalorder %v3849, 1
      %vm3866 = vcmp.eq.s32.totalorder %v3850, 1
      %vm3867 = vcmp.eq.s32.totalorder %v3851, 1
      %vm3868 = vcmp.eq.s32.totalorder %v3852, 1
      %vm3869 = vcmp.eq.s32.totalorder %v3853, 1
      %vm3870 = vcmp.eq.s32.totalorder %v3854, 1
      %vm3871 = vcmp.eq.s32.totalorder %v3855, 1
      %v3872 = vsel %vm3856, %v3726, %v3808
      %v3873 = vsel %vm3856, %v3727, %v3809
      %v3874 = vsel %vm3857, %v3726, %v3810
      %v3875 = vsel %vm3857, %v3727, %v3811
      %v3876 = vsel %vm3858, %v3726, %v3812
      %v3877 = vsel %vm3858, %v3727, %v3813
      %v3878 = vsel %vm3859, %v3726, %v3814
      %v3879 = vsel %vm3859, %v3727, %v3815
      %v3880 = vsel %vm3860, %v3726, %v3816
      %v3881 = vsel %vm3860, %v3727, %v3817
      %v3882 = vsel %vm3861, %v3726, %v3818
      %v3883 = vsel %vm3861, %v3727, %v3819
      %v3884 = vsel %vm3862, %v3726, %v3820
      %v3885 = vsel %vm3862, %v3727, %v3821
      %v3886 = vsel %vm3863, %v3726, %v3822
      %v3887 = vsel %vm3863, %v3727, %v3823
      %v3888 = vsel %vm3864, %v3726, %v3824
      %v3889 = vsel %vm3864, %v3727, %v3825
      %v3890 = vsel %vm3865, %v3726, %v3826
      %v3891 = vsel %vm3865, %v3727, %v3827
      %v3892 = vsel %vm3866, %v3726, %v3828
      %v3893 = vsel %vm3866, %v3727, %v3829
      %v3894 = vsel %vm3867, %v3726, %v3830
      %v3895 = vsel %vm3867, %v3727, %v3831
      %v3896 = vsel %vm3868, %v3726, %v3832
      %v3897 = vsel %vm3868, %v3727, %v3833
      %v3898 = vsel %vm3869, %v3726, %v3834
      %v3899 = vsel %vm3869, %v3727, %v3835
      %v3900 = vsel %vm3870, %v3726, %v3836
      %v3901 = vsel %vm3870, %v3727, %v3837
      %v3902 = vsel %vm3871, %v3726, %v3838
      %v3903 = vsel %vm3871, %v3727, %v3839
      %3904 = vst [vmem:[#allocation7] sm:$0xff] %v3872
      %3905 = vst [vmem:[#allocation7 + $0x8] sm:$0xff] %v3873
      %3906 = vst [vmem:[#allocation7 + $0x10] sm:$0xff] %v3874
      %3907 = vst [vmem:[#allocation7 + $0x18] sm:$0xff] %v3875
      %3908 = vst [vmem:[#allocation7 + $0x20] sm:$0xff] %v3876
      %3909 = vst [vmem:[#allocation7 + $0x28] sm:$0xff] %v3877
      %3910 = vst [vmem:[#allocation7 + $0x30] sm:$0xff] %v3878
      %3911 = vst [vmem:[#allocation7 + $0x38] sm:$0xff] %v3879
      %3912 = vst [vmem:[#allocation7 + $0x40] sm:$0xff] %v3880
      %3913 = vst [vmem:[#allocation7 + $0x48] sm:$0xff] %v3881
      %3914 = vst [vmem:[#allocation7 + $0x50] sm:$0xff] %v3882
      %3915 = vst [vmem:[#allocation7 + $0x58] sm:$0xff] %v3883
      %3916 = vst [vmem:[#allocation7 + $0x60] sm:$0xff] %v3884
      %3917 = vst [vmem:[#allocation7 + $0x68] sm:$0xff] %v3885
      %3918 = vst [vmem:[#allocation7 + $0x70] sm:$0xff] %v3886
      %3919 = vst [vmem:[#allocation7 + $0x78] sm:$0xff] %v3887
      %3920 = vst [vmem:[#allocation7 + $0x80] sm:$0xff] %v3888
      %3921 = vst [vmem:[#allocation7 + $0x88] sm:$0xff] %v3889
      %3922 = vst [vmem:[#allocation7 + $0x90] sm:$0xff] %v3890
      %3923 = vst [vmem:[#allocation7 + $0x98] sm:$0xff] %v3891
      %3924 = vst [vmem:[#allocation7 + $0xa0] sm:$0xff] %v3892
      %3925 = vst [vmem:[#allocation7 + $0xa8] sm:$0xff] %v3893
      %3926 = vst [vmem:[#allocation7 + $0xb0] sm:$0xff] %v3894
      %3927 = vst [vmem:[#allocation7 + $0xb8] sm:$0xff] %v3895
      %3928 = vst [vmem:[#allocation7 + $0xc0] sm:$0xff] %v3896
      %3929 = vst [vmem:[#allocation7 + $0xc8] sm:$0xff] %v3897
      %3930 = vst [vmem:[#allocation7 + $0xd0] sm:$0xff] %v3898
      %3931 = vst [vmem:[#allocation7 + $0xd8] sm:$0xff] %v3899
      %3932 = vst [vmem:[#allocation7 + $0xe0] sm:$0xff] %v3900
      %3933 = vst [vmem:[#allocation7 + $0xe8] sm:$0xff] %v3901
      %3934 = vst [vmem:[#allocation7 + $0xf0] sm:$0xff] %v3902
      %3935 = vst [vmem:[#allocation7 + $0xf8] sm:$0xff] %v3903
      %v3936 = vld [vmem:[#allocation7] sm:$0xff]
      %v3937 = vld [vmem:[#allocation7 + $0x8] sm:$0xff]
      %v3938 = vld [vmem:[#allocation7 + $0x10] sm:$0xff]
      %v3939 = vld [vmem:[#allocation7 + $0x18] sm:$0xff]
      %v3940 = vld [vmem:[#allocation7 + $0x20] sm:$0xff]
      %v3941 = vld [vmem:[#allocation7 + $0x28] sm:$0xff]
      %v3942 = vld [vmem:[#allocation7 + $0x30] sm:$0xff]
      %v3943 = vld [vmem:[#allocation7 + $0x38] sm:$0xff]
      %v3944 = vld [vmem:[#allocation7 + $0x40] sm:$0xff]
      %v3945 = vld [vmem:[#allocation7 + $0x48] sm:$0xff]
      %v3946 = vld [vmem:[#allocation7 + $0x50] sm:$0xff]
      %v3947 = vld [vmem:[#allocation7 + $0x58] sm:$0xff]
      %v3948 = vld [vmem:[#allocation7 + $0x60] sm:$0xff]
      %v3949 = vld [vmem:[#allocation7 + $0x68] sm:$0xff]
      %v3950 = vld [vmem:[#allocation7 + $0x70] sm:$0xff]
      %v3951 = vld [vmem:[#allocation7 + $0x78] sm:$0xff]
      %v3952 = vld [vmem:[#allocation7 + $0x80] sm:$0xff]
      %v3953 = vld [vmem:[#allocation7 + $0x88] sm:$0xff]
      %v3954 = vld [vmem:[#allocation7 + $0x90] sm:$0xff]
      %v3955 = vld [vmem:[#allocation7 + $0x98] sm:$0xff]
      %v3956 = vld [vmem:[#allocation7 + $0xa0] sm:$0xff]
      %v3957 = vld [vmem:[#allocation7 + $0xa8] sm:$0xff]
      %v3958 = vld [vmem:[#allocation7 + $0xb0] sm:$0xff]
      %v3959 = vld [vmem:[#allocation7 + $0xb8] sm:$0xff]
      %v3960 = vld [vmem:[#allocation7 + $0xc0] sm:$0xff]
      %v3961 = vld [vmem:[#allocation7 + $0xc8] sm:$0xff]
      %v3962 = vld [vmem:[#allocation7 + $0xd0] sm:$0xff]
      %v3963 = vld [vmem:[#allocation7 + $0xd8] sm:$0xff]
      %v3964 = vld [vmem:[#allocation7 + $0xe0] sm:$0xff]
      %v3965 = vld [vmem:[#allocation7 + $0xe8] sm:$0xff]
      %v3966 = vld [vmem:[#allocation7 + $0xf0] sm:$0xff]
      %v3967 = vld [vmem:[#allocation7 + $0xf8] sm:$0xff]
      %v3968 = vmax.f32 %v3957, 1e-12
      %v3969 = vrcp.pop %v3968
      %v3970 = vmul.f32 %v3968, %v3969
      %v3971 = vsub.f32 1.0, %v3970
      %v3972 = vmul.f32 %v3969, %v3971
      %v3973 = vadd.f32 %v3969, %v3972
      %vm3974 = vweird.f32 %v3968
      %vm3975 = vweird.f32 %v3969
      %vm3976 = vmor %vm3974, %vm3975
      %v3977 = vsel %vm3976, %v3969, %v3973
      %v3978 = vand.u32 2147483647, %v3968
      %vm3979 = vcmp.eq.f32.partialorder %v3978, 8.507059e+37
      %v3980 = vand.u32 %v3968, 2147483648
      %v3981 = vor.u32 1.1754944e-38, %v3980
      %v3982 = vsel %vm3979, %v3981, %v3977
      %v3983 = vmul.f32 1.0, %v3982
      %vm3984 = vcmp.eq.s32.totalorder %v1131, 10
      %vm3985 = vcmp.eq.s32.totalorder %v1137, 10
      %vm3986 = vcmp.eq.s32.totalorder %v1140, 10
      %vm3987 = vcmp.eq.s32.totalorder %v1141, 10
      %vm3988 = vcmp.eq.s32.totalorder %v1142, 10
      %vm3989 = vcmp.eq.s32.totalorder %v1143, 10
      %vm3990 = vcmp.eq.s32.totalorder %v1144, 10
      %vm3991 = vcmp.eq.s32.totalorder %v1145, 10
      %vm3992 = vcmp.eq.s32.totalorder %v1146, 10
      %vm3993 = vcmp.eq.s32.totalorder %v1147, 10
      %vm3994 = vcmp.eq.s32.totalorder %v1148, 10
      %vm3995 = vcmp.eq.s32.totalorder %v1149, 10
      %vm3996 = vcmp.eq.s32.totalorder %v1150, 10
      %vm3997 = vcmp.eq.s32.totalorder %v1151, 10
      %vm3998 = vcmp.eq.s32.totalorder %v1152, 10
      %vm3999 = vcmp.eq.s32.totalorder %v1153, 10
      %vm4000 = vcmp.eq.s32.totalorder %v1154, 10
      %vm4001 = vcmp.eq.s32.totalorder %v1155, 10
      %v4002 = vperm.slane %v3983, 2
      %v4003 = vmul.f32 %v3956, %v4002
      %v4004 = vmul.f32 %v3957, %v4002
      %v4005 = vsel %vm3984, 1, 0
      %v4006 = vsel %vm3985, 1, 0
      %vm4007 = vcmp.eq.s32.totalorder %v4005, 1
      %vm4008 = vcmp.eq.s32.totalorder %v4006, 1
      %v4009 = vsel %vm4007, %v4002, %v4003
      %v4010 = vsel %vm4008, %v4002, %v4004
      %v4011 = vsel %vm4007, 0.0, %v3936
      %v4012 = vsel %vm4008, 0.0, %v3937
      %v4013 = vsel %vm4007, 0.0, %v3938
      %v4014 = vsel %vm4008, 0.0, %v3939
      %v4015 = vsel %vm4007, 0.0, %v3940
      %v4016 = vsel %vm4008, 0.0, %v3941
      %v4017 = vsel %vm4007, 0.0, %v3942
      %v4018 = vsel %vm4008, 0.0, %v3943
      %v4019 = vsel %vm4007, 0.0, %v3944
      %v4020 = vsel %vm4008, 0.0, %v3945
      %v4021 = vsel %vm4007, 0.0, %v3946
      %v4022 = vsel %vm4008, 0.0, %v3947
      %v4023 = vsel %vm4007, 0.0, %v3948
      %v4024 = vsel %vm4008, 0.0, %v3949
      %v4025 = vsel %vm4007, 0.0, %v3950
      %v4026 = vsel %vm4008, 0.0, %v3951
      %v4027 = vsel %vm4007, 0.0, %v3952
      %v4028 = vsel %vm4008, 0.0, %v3953
      %v4029 = vsel %vm4007, 0.0, %v3954
      %v4030 = vsel %vm4008, 0.0, %v3955
      %v4031 = vsel %vm4007, 0.0, %v3956
      %v4032 = vsel %vm4008, 0.0, %v3957
      %v4033 = vsel %vm4007, 0.0, %v3958
      %v4034 = vsel %vm4008, 0.0, %v3959
      %v4035 = vsel %vm4007, 0.0, %v3960
      %v4036 = vsel %vm4008, 0.0, %v3961
      %v4037 = vsel %vm4007, 0.0, %v3962
      %v4038 = vsel %vm4008, 0.0, %v3963
      %v4039 = vsel %vm4007, 0.0, %v3964
      %v4040 = vsel %vm4008, 0.0, %v3965
      %v4041 = vsel %vm4007, 0.0, %v3966
      %v4042 = vsel %vm4008, 0.0, %v3967
      %v4043 = vperm.slane %v3937, 2
      %v4044 = vperm.slane %v3939, 2
      %v4045 = vperm.slane %v3941, 2
      %v4046 = vperm.slane %v3943, 2
      %v4047 = vperm.slane %v3945, 2
      %v4048 = vperm.slane %v3947, 2
      %v4049 = vperm.slane %v3949, 2
      %v4050 = vperm.slane %v3951, 2
      %v4051 = vperm.slane %v3953, 2
      %v4052 = vperm.slane %v3955, 2
      %v4053 = vperm.slane %v3957, 2
      %v4054 = vperm.slane %v3959, 2
      %v4055 = vperm.slane %v3961, 2
      %v4056 = vperm.slane %v3963, 2
      %v4057 = vperm.slane %v3965, 2
      %v4058 = vperm.slane %v3967, 2
      %v4059 = vmul.f32 %v4043, %v4009
      %v4060 = vmul.f32 %v4043, %v4010
      %v4061 = vmul.f32 %v4044, %v4009
      %v4062 = vmul.f32 %v4044, %v4010
      %v4063 = vmul.f32 %v4045, %v4009
      %v4064 = vmul.f32 %v4045, %v4010
      %v4065 = vmul.f32 %v4046, %v4009
      %v4066 = vmul.f32 %v4046, %v4010
      %v4067 = vmul.f32 %v4047, %v4009
      %v4068 = vmul.f32 %v4047, %v4010
      %v4069 = vmul.f32 %v4048, %v4009
      %v4070 = vmul.f32 %v4048, %v4010
      %v4071 = vmul.f32 %v4049, %v4009
      %v4072 = vmul.f32 %v4049, %v4010
      %v4073 = vmul.f32 %v4050, %v4009
      %v4074 = vmul.f32 %v4050, %v4010
      %v4075 = vmul.f32 %v4051, %v4009
      %v4076 = vmul.f32 %v4051, %v4010
      %v4077 = vmul.f32 %v4052, %v4009
      %v4078 = vmul.f32 %v4052, %v4010
      %v4079 = vmul.f32 %v4053, %v4009
      %v4080 = vmul.f32 %v4053, %v4010
      %v4081 = vmul.f32 %v4054, %v4009
      %v4082 = vmul.f32 %v4054, %v4010
      %v4083 = vmul.f32 %v4055, %v4009
      %v4084 = vmul.f32 %v4055, %v4010
      %v4085 = vmul.f32 %v4056, %v4009
      %v4086 = vmul.f32 %v4056, %v4010
      %v4087 = vmul.f32 %v4057, %v4009
      %v4088 = vmul.f32 %v4057, %v4010
      %v4089 = vmul.f32 %v4058, %v4009
      %v4090 = vmul.f32 %v4058, %v4010
      %v4091 = vsub.f32 %v4011, %v4059
      %v4092 = vsub.f32 %v4012, %v4060
      %v4093 = vsub.f32 %v4013, %v4061
      %v4094 = vsub.f32 %v4014, %v4062
      %v4095 = vsub.f32 %v4015, %v4063
      %v4096 = vsub.f32 %v4016, %v4064
      %v4097 = vsub.f32 %v4017, %v4065
      %v4098 = vsub.f32 %v4018, %v4066
      %v4099 = vsub.f32 %v4019, %v4067
      %v4100 = vsub.f32 %v4020, %v4068
      %v4101 = vsub.f32 %v4021, %v4069
      %v4102 = vsub.f32 %v4022, %v4070
      %v4103 = vsub.f32 %v4023, %v4071
      %v4104 = vsub.f32 %v4024, %v4072
      %v4105 = vsub.f32 %v4025, %v4073
      %v4106 = vsub.f32 %v4026, %v4074
      %v4107 = vsub.f32 %v4027, %v4075
      %v4108 = vsub.f32 %v4028, %v4076
      %v4109 = vsub.f32 %v4029, %v4077
      %v4110 = vsub.f32 %v4030, %v4078
      %v4111 = vsub.f32 %v4031, %v4079
      %v4112 = vsub.f32 %v4032, %v4080
      %v4113 = vsub.f32 %v4033, %v4081
      %v4114 = vsub.f32 %v4034, %v4082
      %v4115 = vsub.f32 %v4035, %v4083
      %v4116 = vsub.f32 %v4036, %v4084
      %v4117 = vsub.f32 %v4037, %v4085
      %v4118 = vsub.f32 %v4038, %v4086
      %v4119 = vsub.f32 %v4039, %v4087
      %v4120 = vsub.f32 %v4040, %v4088
      %v4121 = vsub.f32 %v4041, %v4089
      %v4122 = vsub.f32 %v4042, %v4090
      %v4123 = vsel %vm3986, 1, 0
      %v4124 = vsel %vm3987, 1, 0
      %v4125 = vsel %vm3988, 1, 0
      %v4126 = vsel %vm3989, 1, 0
      %v4127 = vsel %vm3990, 1, 0
      %v4128 = vsel %vm3991, 1, 0
      %v4129 = vsel %vm3992, 1, 0
      %v4130 = vsel %vm3993, 1, 0
      %v4131 = vsel %vm3994, 1, 0
      %v4132 = vsel %vm3995, 1, 0
      %v4133 = vsel %vm3996, 1, 0
      %v4134 = vsel %vm3997, 1, 0
      %v4135 = vsel %vm3998, 1, 0
      %v4136 = vsel %vm3999, 1, 0
      %v4137 = vsel %vm4000, 1, 0
      %v4138 = vsel %vm4001, 1, 0
      %vm4139 = vcmp.eq.s32.totalorder %v4123, 1
      %vm4140 = vcmp.eq.s32.totalorder %v4124, 1
      %vm4141 = vcmp.eq.s32.totalorder %v4125, 1
      %vm4142 = vcmp.eq.s32.totalorder %v4126, 1
      %vm4143 = vcmp.eq.s32.totalorder %v4127, 1
      %vm4144 = vcmp.eq.s32.totalorder %v4128, 1
      %vm4145 = vcmp.eq.s32.totalorder %v4129, 1
      %vm4146 = vcmp.eq.s32.totalorder %v4130, 1
      %vm4147 = vcmp.eq.s32.totalorder %v4131, 1
      %vm4148 = vcmp.eq.s32.totalorder %v4132, 1
      %vm4149 = vcmp.eq.s32.totalorder %v4133, 1
      %vm4150 = vcmp.eq.s32.totalorder %v4134, 1
      %vm4151 = vcmp.eq.s32.totalorder %v4135, 1
      %vm4152 = vcmp.eq.s32.totalorder %v4136, 1
      %vm4153 = vcmp.eq.s32.totalorder %v4137, 1
      %vm4154 = vcmp.eq.s32.totalorder %v4138, 1
      %v4155 = vsel %vm4139, %v4009, %v4091
      %v4156 = vsel %vm4139, %v4010, %v4092
      %v4157 = vsel %vm4140, %v4009, %v4093
      %v4158 = vsel %vm4140, %v4010, %v4094
      %v4159 = vsel %vm4141, %v4009, %v4095
      %v4160 = vsel %vm4141, %v4010, %v4096
      %v4161 = vsel %vm4142, %v4009, %v4097
      %v4162 = vsel %vm4142, %v4010, %v4098
      %v4163 = vsel %vm4143, %v4009, %v4099
      %v4164 = vsel %vm4143, %v4010, %v4100
      %v4165 = vsel %vm4144, %v4009, %v4101
      %v4166 = vsel %vm4144, %v4010, %v4102
      %v4167 = vsel %vm4145, %v4009, %v4103
      %v4168 = vsel %vm4145, %v4010, %v4104
      %v4169 = vsel %vm4146, %v4009, %v4105
      %v4170 = vsel %vm4146, %v4010, %v4106
      %v4171 = vsel %vm4147, %v4009, %v4107
      %v4172 = vsel %vm4147, %v4010, %v4108
      %v4173 = vsel %vm4148, %v4009, %v4109
      %v4174 = vsel %vm4148, %v4010, %v4110
      %v4175 = vsel %vm4149, %v4009, %v4111
      %v4176 = vsel %vm4149, %v4010, %v4112
      %v4177 = vsel %vm4150, %v4009, %v4113
      %v4178 = vsel %vm4150, %v4010, %v4114
      %v4179 = vsel %vm4151, %v4009, %v4115
      %v4180 = vsel %vm4151, %v4010, %v4116
      %v4181 = vsel %vm4152, %v4009, %v4117
      %v4182 = vsel %vm4152, %v4010, %v4118
      %v4183 = vsel %vm4153, %v4009, %v4119
      %v4184 = vsel %vm4153, %v4010, %v4120
      %v4185 = vsel %vm4154, %v4009, %v4121
      %v4186 = vsel %vm4154, %v4010, %v4122
      %4187 = vst [vmem:[#allocation7] sm:$0xff] %v4155
      %4188 = vst [vmem:[#allocation7 + $0x8] sm:$0xff] %v4156
      %4189 = vst [vmem:[#allocation7 + $0x10] sm:$0xff] %v4157
      %4190 = vst [vmem:[#allocation7 + $0x18] sm:$0xff] %v4158
      %4191 = vst [vmem:[#allocation7 + $0x20] sm:$0xff] %v4159
      %4192 = vst [vmem:[#allocation7 + $0x28] sm:$0xff] %v4160
      %4193 = vst [vmem:[#allocation7 + $0x30] sm:$0xff] %v4161
      %4194 = vst [vmem:[#allocation7 + $0x38] sm:$0xff] %v4162
      %4195 = vst [vmem:[#allocation7 + $0x40] sm:$0xff] %v4163
      %4196 = vst [vmem:[#allocation7 + $0x48] sm:$0xff] %v4164
      %4197 = vst [vmem:[#allocation7 + $0x50] sm:$0xff] %v4165
      %4198 = vst [vmem:[#allocation7 + $0x58] sm:$0xff] %v4166
      %4199 = vst [vmem:[#allocation7 + $0x60] sm:$0xff] %v4167
      %4200 = vst [vmem:[#allocation7 + $0x68] sm:$0xff] %v4168
      %4201 = vst [vmem:[#allocation7 + $0x70] sm:$0xff] %v4169
      %4202 = vst [vmem:[#allocation7 + $0x78] sm:$0xff] %v4170
      %4203 = vst [vmem:[#allocation7 + $0x80] sm:$0xff] %v4171
      %4204 = vst [vmem:[#allocation7 + $0x88] sm:$0xff] %v4172
      %4205 = vst [vmem:[#allocation7 + $0x90] sm:$0xff] %v4173
      %4206 = vst [vmem:[#allocation7 + $0x98] sm:$0xff] %v4174
      %4207 = vst [vmem:[#allocation7 + $0xa0] sm:$0xff] %v4175
      %4208 = vst [vmem:[#allocation7 + $0xa8] sm:$0xff] %v4176
      %4209 = vst [vmem:[#allocation7 + $0xb0] sm:$0xff] %v4177
      %4210 = vst [vmem:[#allocation7 + $0xb8] sm:$0xff] %v4178
      %4211 = vst [vmem:[#allocation7 + $0xc0] sm:$0xff] %v4179
      %4212 = vst [vmem:[#allocation7 + $0xc8] sm:$0xff] %v4180
      %4213 = vst [vmem:[#allocation7 + $0xd0] sm:$0xff] %v4181
      %4214 = vst [vmem:[#allocation7 + $0xd8] sm:$0xff] %v4182
      %4215 = vst [vmem:[#allocation7 + $0xe0] sm:$0xff] %v4183
      %4216 = vst [vmem:[#allocation7 + $0xe8] sm:$0xff] %v4184
      %4217 = vst [vmem:[#allocation7 + $0xf0] sm:$0xff] %v4185
      %4218 = vst [vmem:[#allocation7 + $0xf8] sm:$0xff] %v4186
      %v4219 = vld [vmem:[#allocation7] sm:$0xff]
      %v4220 = vld [vmem:[#allocation7 + $0x8] sm:$0xff]
      %v4221 = vld [vmem:[#allocation7 + $0x10] sm:$0xff]
      %v4222 = vld [vmem:[#allocation7 + $0x18] sm:$0xff]
      %v4223 = vld [vmem:[#allocation7 + $0x20] sm:$0xff]
      %v4224 = vld [vmem:[#allocation7 + $0x28] sm:$0xff]
      %v4225 = vld [vmem:[#allocation7 + $0x30] sm:$0xff]
      %v4226 = vld [vmem:[#allocation7 + $0x38] sm:$0xff]
      %v4227 = vld [vmem:[#allocation7 + $0x40] sm:$0xff]
      %v4228 = vld [vmem:[#allocation7 + $0x48] sm:$0xff]
      %v4229 = vld [vmem:[#allocation7 + $0x50] sm:$0xff]
      %v4230 = vld [vmem:[#allocation7 + $0x58] sm:$0xff]
      %v4231 = vld [vmem:[#allocation7 + $0x60] sm:$0xff]
      %v4232 = vld [vmem:[#allocation7 + $0x68] sm:$0xff]
      %v4233 = vld [vmem:[#allocation7 + $0x70] sm:$0xff]
      %v4234 = vld [vmem:[#allocation7 + $0x78] sm:$0xff]
      %v4235 = vld [vmem:[#allocation7 + $0x80] sm:$0xff]
      %v4236 = vld [vmem:[#allocation7 + $0x88] sm:$0xff]
      %v4237 = vld [vmem:[#allocation7 + $0x90] sm:$0xff]
      %v4238 = vld [vmem:[#allocation7 + $0x98] sm:$0xff]
      %v4239 = vld [vmem:[#allocation7 + $0xa0] sm:$0xff]
      %v4240 = vld [vmem:[#allocation7 + $0xa8] sm:$0xff]
      %v4241 = vld [vmem:[#allocation7 + $0xb0] sm:$0xff]
      %v4242 = vld [vmem:[#allocation7 + $0xb8] sm:$0xff]
      %v4243 = vld [vmem:[#allocation7 + $0xc0] sm:$0xff]
      %v4244 = vld [vmem:[#allocation7 + $0xc8] sm:$0xff]
      %v4245 = vld [vmem:[#allocation7 + $0xd0] sm:$0xff]
      %v4246 = vld [vmem:[#allocation7 + $0xd8] sm:$0xff]
      %v4247 = vld [vmem:[#allocation7 + $0xe0] sm:$0xff]
      %v4248 = vld [vmem:[#allocation7 + $0xe8] sm:$0xff]
      %v4249 = vld [vmem:[#allocation7 + $0xf0] sm:$0xff]
      %v4250 = vld [vmem:[#allocation7 + $0xf8] sm:$0xff]
      %v4251 = vmax.f32 %v4242, 1e-12
      %v4252 = vrcp.pop %v4251
      %v4253 = vmul.f32 %v4251, %v4252
      %v4254 = vsub.f32 1.0, %v4253
      %v4255 = vmul.f32 %v4252, %v4254
      %v4256 = vadd.f32 %v4252, %v4255
      %vm4257 = vweird.f32 %v4251
      %vm4258 = vweird.f32 %v4252
      %vm4259 = vmor %vm4257, %vm4258
      %v4260 = vsel %vm4259, %v4252, %v4256
      %v4261 = vand.u32 2147483647, %v4251
      %vm4262 = vcmp.eq.f32.partialorder %v4261, 8.507059e+37
      %v4263 = vand.u32 %v4251, 2147483648
      %v4264 = vor.u32 1.1754944e-38, %v4263
      %v4265 = vsel %vm4262, %v4264, %v4260
      %v4266 = vmul.f32 1.0, %v4265
      %vm4267 = vcmp.eq.s32.totalorder %v1131, 11
      %vm4268 = vcmp.eq.s32.totalorder %v1137, 11
      %vm4269 = vcmp.eq.s32.totalorder %v1140, 11
      %vm4270 = vcmp.eq.s32.totalorder %v1141, 11
      %vm4271 = vcmp.eq.s32.totalorder %v1142, 11
      %vm4272 = vcmp.eq.s32.totalorder %v1143, 11
      %vm4273 = vcmp.eq.s32.totalorder %v1144, 11
      %vm4274 = vcmp.eq.s32.totalorder %v1145, 11
      %vm4275 = vcmp.eq.s32.totalorder %v1146, 11
      %vm4276 = vcmp.eq.s32.totalorder %v1147, 11
      %vm4277 = vcmp.eq.s32.totalorder %v1148, 11
      %vm4278 = vcmp.eq.s32.totalorder %v1149, 11
      %vm4279 = vcmp.eq.s32.totalorder %v1150, 11
      %vm4280 = vcmp.eq.s32.totalorder %v1151, 11
      %vm4281 = vcmp.eq.s32.totalorder %v1152, 11
      %vm4282 = vcmp.eq.s32.totalorder %v1153, 11
      %vm4283 = vcmp.eq.s32.totalorder %v1154, 11
      %vm4284 = vcmp.eq.s32.totalorder %v1155, 11
      %v4285 = vperm.slane %v4266, 3
      %v4286 = vmul.f32 %v4241, %v4285
      %v4287 = vmul.f32 %v4242, %v4285
      %v4288 = vsel %vm4267, 1, 0
      %v4289 = vsel %vm4268, 1, 0
      %vm4290 = vcmp.eq.s32.totalorder %v4288, 1
      %vm4291 = vcmp.eq.s32.totalorder %v4289, 1
      %v4292 = vsel %vm4290, %v4285, %v4286
      %v4293 = vsel %vm4291, %v4285, %v4287
      %v4294 = vsel %vm4290, 0.0, %v4219
      %v4295 = vsel %vm4291, 0.0, %v4220
      %v4296 = vsel %vm4290, 0.0, %v4221
      %v4297 = vsel %vm4291, 0.0, %v4222
      %v4298 = vsel %vm4290, 0.0, %v4223
      %v4299 = vsel %vm4291, 0.0, %v4224
      %v4300 = vsel %vm4290, 0.0, %v4225
      %v4301 = vsel %vm4291, 0.0, %v4226
      %v4302 = vsel %vm4290, 0.0, %v4227
      %v4303 = vsel %vm4291, 0.0, %v4228
      %v4304 = vsel %vm4290, 0.0, %v4229
      %v4305 = vsel %vm4291, 0.0, %v4230
      %v4306 = vsel %vm4290, 0.0, %v4231
      %v4307 = vsel %vm4291, 0.0, %v4232
      %v4308 = vsel %vm4290, 0.0, %v4233
      %v4309 = vsel %vm4291, 0.0, %v4234
      %v4310 = vsel %vm4290, 0.0, %v4235
      %v4311 = vsel %vm4291, 0.0, %v4236
      %v4312 = vsel %vm4290, 0.0, %v4237
      %v4313 = vsel %vm4291, 0.0, %v4238
      %v4314 = vsel %vm4290, 0.0, %v4239
      %v4315 = vsel %vm4291, 0.0, %v4240
      %v4316 = vsel %vm4290, 0.0, %v4241
      %v4317 = vsel %vm4291, 0.0, %v4242
      %v4318 = vsel %vm4290, 0.0, %v4243
      %v4319 = vsel %vm4291, 0.0, %v4244
      %v4320 = vsel %vm4290, 0.0, %v4245
      %v4321 = vsel %vm4291, 0.0, %v4246
      %v4322 = vsel %vm4290, 0.0, %v4247
      %v4323 = vsel %vm4291, 0.0, %v4248
      %v4324 = vsel %vm4290, 0.0, %v4249
      %v4325 = vsel %vm4291, 0.0, %v4250
      %v4326 = vperm.slane %v4220, 3
      %v4327 = vperm.slane %v4222, 3
      %v4328 = vperm.slane %v4224, 3
      %v4329 = vperm.slane %v4226, 3
      %v4330 = vperm.slane %v4228, 3
      %v4331 = vperm.slane %v4230, 3
      %v4332 = vperm.slane %v4232, 3
      %v4333 = vperm.slane %v4234, 3
      %v4334 = vperm.slane %v4236, 3
      %v4335 = vperm.slane %v4238, 3
      %v4336 = vperm.slane %v4240, 3
      %v4337 = vperm.slane %v4242, 3
      %v4338 = vperm.slane %v4244, 3
      %v4339 = vperm.slane %v4246, 3
      %v4340 = vperm.slane %v4248, 3
      %v4341 = vperm.slane %v4250, 3
      %v4342 = vmul.f32 %v4326, %v4292
      %v4343 = vmul.f32 %v4326, %v4293
      %v4344 = vmul.f32 %v4327, %v4292
      %v4345 = vmul.f32 %v4327, %v4293
      %v4346 = vmul.f32 %v4328, %v4292
      %v4347 = vmul.f32 %v4328, %v4293
      %v4348 = vmul.f32 %v4329, %v4292
      %v4349 = vmul.f32 %v4329, %v4293
      %v4350 = vmul.f32 %v4330, %v4292
      %v4351 = vmul.f32 %v4330, %v4293
      %v4352 = vmul.f32 %v4331, %v4292
      %v4353 = vmul.f32 %v4331, %v4293
      %v4354 = vmul.f32 %v4332, %v4292
      %v4355 = vmul.f32 %v4332, %v4293
      %v4356 = vmul.f32 %v4333, %v4292
      %v4357 = vmul.f32 %v4333, %v4293
      %v4358 = vmul.f32 %v4334, %v4292
      %v4359 = vmul.f32 %v4334, %v4293
      %v4360 = vmul.f32 %v4335, %v4292
      %v4361 = vmul.f32 %v4335, %v4293
      %v4362 = vmul.f32 %v4336, %v4292
      %v4363 = vmul.f32 %v4336, %v4293
      %v4364 = vmul.f32 %v4337, %v4292
      %v4365 = vmul.f32 %v4337, %v4293
      %v4366 = vmul.f32 %v4338, %v4292
      %v4367 = vmul.f32 %v4338, %v4293
      %v4368 = vmul.f32 %v4339, %v4292
      %v4369 = vmul.f32 %v4339, %v4293
      %v4370 = vmul.f32 %v4340, %v4292
      %v4371 = vmul.f32 %v4340, %v4293
      %v4372 = vmul.f32 %v4341, %v4292
      %v4373 = vmul.f32 %v4341, %v4293
      %v4374 = vsub.f32 %v4294, %v4342
      %v4375 = vsub.f32 %v4295, %v4343
      %v4376 = vsub.f32 %v4296, %v4344
      %v4377 = vsub.f32 %v4297, %v4345
      %v4378 = vsub.f32 %v4298, %v4346
      %v4379 = vsub.f32 %v4299, %v4347
      %v4380 = vsub.f32 %v4300, %v4348
      %v4381 = vsub.f32 %v4301, %v4349
      %v4382 = vsub.f32 %v4302, %v4350
      %v4383 = vsub.f32 %v4303, %v4351
      %v4384 = vsub.f32 %v4304, %v4352
      %v4385 = vsub.f32 %v4305, %v4353
      %v4386 = vsub.f32 %v4306, %v4354
      %v4387 = vsub.f32 %v4307, %v4355
      %v4388 = vsub.f32 %v4308, %v4356
      %v4389 = vsub.f32 %v4309, %v4357
      %v4390 = vsub.f32 %v4310, %v4358
      %v4391 = vsub.f32 %v4311, %v4359
      %v4392 = vsub.f32 %v4312, %v4360
      %v4393 = vsub.f32 %v4313, %v4361
      %v4394 = vsub.f32 %v4314, %v4362
      %v4395 = vsub.f32 %v4315, %v4363
      %v4396 = vsub.f32 %v4316, %v4364
      %v4397 = vsub.f32 %v4317, %v4365
      %v4398 = vsub.f32 %v4318, %v4366
      %v4399 = vsub.f32 %v4319, %v4367
      %v4400 = vsub.f32 %v4320, %v4368
      %v4401 = vsub.f32 %v4321, %v4369
      %v4402 = vsub.f32 %v4322, %v4370
      %v4403 = vsub.f32 %v4323, %v4371
      %v4404 = vsub.f32 %v4324, %v4372
      %v4405 = vsub.f32 %v4325, %v4373
      %v4406 = vsel %vm4269, 1, 0
      %v4407 = vsel %vm4270, 1, 0
      %v4408 = vsel %vm4271, 1, 0
      %v4409 = vsel %vm4272, 1, 0
      %v4410 = vsel %vm4273, 1, 0
      %v4411 = vsel %vm4274, 1, 0
      %v4412 = vsel %vm4275, 1, 0
      %v4413 = vsel %vm4276, 1, 0
      %v4414 = vsel %vm4277, 1, 0
      %v4415 = vsel %vm4278, 1, 0
      %v4416 = vsel %vm4279, 1, 0
      %v4417 = vsel %vm4280, 1, 0
      %v4418 = vsel %vm4281, 1, 0
      %v4419 = vsel %vm4282, 1, 0
      %v4420 = vsel %vm4283, 1, 0
      %v4421 = vsel %vm4284, 1, 0
      %vm4422 = vcmp.eq.s32.totalorder %v4406, 1
      %vm4423 = vcmp.eq.s32.totalorder %v4407, 1
      %vm4424 = vcmp.eq.s32.totalorder %v4408, 1
      %vm4425 = vcmp.eq.s32.totalorder %v4409, 1
      %vm4426 = vcmp.eq.s32.totalorder %v4410, 1
      %vm4427 = vcmp.eq.s32.totalorder %v4411, 1
      %vm4428 = vcmp.eq.s32.totalorder %v4412, 1
      %vm4429 = vcmp.eq.s32.totalorder %v4413, 1
      %vm4430 = vcmp.eq.s32.totalorder %v4414, 1
      %vm4431 = vcmp.eq.s32.totalorder %v4415, 1
      %vm4432 = vcmp.eq.s32.totalorder %v4416, 1
      %vm4433 = vcmp.eq.s32.totalorder %v4417, 1
      %vm4434 = vcmp.eq.s32.totalorder %v4418, 1
      %vm4435 = vcmp.eq.s32.totalorder %v4419, 1
      %vm4436 = vcmp.eq.s32.totalorder %v4420, 1
      %vm4437 = vcmp.eq.s32.totalorder %v4421, 1
      %v4438 = vsel %vm4422, %v4292, %v4374
      %v4439 = vsel %vm4422, %v4293, %v4375
      %v4440 = vsel %vm4423, %v4292, %v4376
      %v4441 = vsel %vm4423, %v4293, %v4377
      %v4442 = vsel %vm4424, %v4292, %v4378
      %v4443 = vsel %vm4424, %v4293, %v4379
      %v4444 = vsel %vm4425, %v4292, %v4380
      %v4445 = vsel %vm4425, %v4293, %v4381
      %v4446 = vsel %vm4426, %v4292, %v4382
      %v4447 = vsel %vm4426, %v4293, %v4383
      %v4448 = vsel %vm4427, %v4292, %v4384
      %v4449 = vsel %vm4427, %v4293, %v4385
      %v4450 = vsel %vm4428, %v4292, %v4386
      %v4451 = vsel %vm4428, %v4293, %v4387
      %v4452 = vsel %vm4429, %v4292, %v4388
      %v4453 = vsel %vm4429, %v4293, %v4389
      %v4454 = vsel %vm4430, %v4292, %v4390
      %v4455 = vsel %vm4430, %v4293, %v4391
      %v4456 = vsel %vm4431, %v4292, %v4392
      %v4457 = vsel %vm4431, %v4293, %v4393
      %v4458 = vsel %vm4432, %v4292, %v4394
      %v4459 = vsel %vm4432, %v4293, %v4395
      %v4460 = vsel %vm4433, %v4292, %v4396
      %v4461 = vsel %vm4433, %v4293, %v4397
      %v4462 = vsel %vm4434, %v4292, %v4398
      %v4463 = vsel %vm4434, %v4293, %v4399
      %v4464 = vsel %vm4435, %v4292, %v4400
      %v4465 = vsel %vm4435, %v4293, %v4401
      %v4466 = vsel %vm4436, %v4292, %v4402
      %v4467 = vsel %vm4436, %v4293, %v4403
      %v4468 = vsel %vm4437, %v4292, %v4404
      %v4469 = vsel %vm4437, %v4293, %v4405
      %4470 = vst [vmem:[#allocation7] sm:$0xff] %v4438
      %4471 = vst [vmem:[#allocation7 + $0x8] sm:$0xff] %v4439
      %4472 = vst [vmem:[#allocation7 + $0x10] sm:$0xff] %v4440
      %4473 = vst [vmem:[#allocation7 + $0x18] sm:$0xff] %v4441
      %4474 = vst [vmem:[#allocation7 + $0x20] sm:$0xff] %v4442
      %4475 = vst [vmem:[#allocation7 + $0x28] sm:$0xff] %v4443
      %4476 = vst [vmem:[#allocation7 + $0x30] sm:$0xff] %v4444
      %4477 = vst [vmem:[#allocation7 + $0x38] sm:$0xff] %v4445
      %4478 = vst [vmem:[#allocation7 + $0x40] sm:$0xff] %v4446
      %4479 = vst [vmem:[#allocation7 + $0x48] sm:$0xff] %v4447
      %4480 = vst [vmem:[#allocation7 + $0x50] sm:$0xff] %v4448
      %4481 = vst [vmem:[#allocation7 + $0x58] sm:$0xff] %v4449
      %4482 = vst [vmem:[#allocation7 + $0x60] sm:$0xff] %v4450
      %4483 = vst [vmem:[#allocation7 + $0x68] sm:$0xff] %v4451
      %4484 = vst [vmem:[#allocation7 + $0x70] sm:$0xff] %v4452
      %4485 = vst [vmem:[#allocation7 + $0x78] sm:$0xff] %v4453
      %4486 = vst [vmem:[#allocation7 + $0x80] sm:$0xff] %v4454
      %4487 = vst [vmem:[#allocation7 + $0x88] sm:$0xff] %v4455
      %4488 = vst [vmem:[#allocation7 + $0x90] sm:$0xff] %v4456
      %4489 = vst [vmem:[#allocation7 + $0x98] sm:$0xff] %v4457
      %4490 = vst [vmem:[#allocation7 + $0xa0] sm:$0xff] %v4458
      %4491 = vst [vmem:[#allocation7 + $0xa8] sm:$0xff] %v4459
      %4492 = vst [vmem:[#allocation7 + $0xb0] sm:$0xff] %v4460
      %4493 = vst [vmem:[#allocation7 + $0xb8] sm:$0xff] %v4461
      %4494 = vst [vmem:[#allocation7 + $0xc0] sm:$0xff] %v4462
      %4495 = vst [vmem:[#allocation7 + $0xc8] sm:$0xff] %v4463
      %4496 = vst [vmem:[#allocation7 + $0xd0] sm:$0xff] %v4464
      %4497 = vst [vmem:[#allocation7 + $0xd8] sm:$0xff] %v4465
      %4498 = vst [vmem:[#allocation7 + $0xe0] sm:$0xff] %v4466
      %4499 = vst [vmem:[#allocation7 + $0xe8] sm:$0xff] %v4467
      %4500 = vst [vmem:[#allocation7 + $0xf0] sm:$0xff] %v4468
      %4501 = vst [vmem:[#allocation7 + $0xf8] sm:$0xff] %v4469
      %v4502 = vld [vmem:[#allocation7] sm:$0xff]
      %v4503 = vld [vmem:[#allocation7 + $0x8] sm:$0xff]
      %v4504 = vld [vmem:[#allocation7 + $0x10] sm:$0xff]
      %v4505 = vld [vmem:[#allocation7 + $0x18] sm:$0xff]
      %v4506 = vld [vmem:[#allocation7 + $0x20] sm:$0xff]
      %v4507 = vld [vmem:[#allocation7 + $0x28] sm:$0xff]
      %v4508 = vld [vmem:[#allocation7 + $0x30] sm:$0xff]
      %v4509 = vld [vmem:[#allocation7 + $0x38] sm:$0xff]
      %v4510 = vld [vmem:[#allocation7 + $0x40] sm:$0xff]
      %v4511 = vld [vmem:[#allocation7 + $0x48] sm:$0xff]
      %v4512 = vld [vmem:[#allocation7 + $0x50] sm:$0xff]
      %v4513 = vld [vmem:[#allocation7 + $0x58] sm:$0xff]
      %v4514 = vld [vmem:[#allocation7 + $0x60] sm:$0xff]
      %v4515 = vld [vmem:[#allocation7 + $0x68] sm:$0xff]
      %v4516 = vld [vmem:[#allocation7 + $0x70] sm:$0xff]
      %v4517 = vld [vmem:[#allocation7 + $0x78] sm:$0xff]
      %v4518 = vld [vmem:[#allocation7 + $0x80] sm:$0xff]
      %v4519 = vld [vmem:[#allocation7 + $0x88] sm:$0xff]
      %v4520 = vld [vmem:[#allocation7 + $0x90] sm:$0xff]
      %v4521 = vld [vmem:[#allocation7 + $0x98] sm:$0xff]
      %v4522 = vld [vmem:[#allocation7 + $0xa0] sm:$0xff]
      %v4523 = vld [vmem:[#allocation7 + $0xa8] sm:$0xff]
      %v4524 = vld [vmem:[#allocation7 + $0xb0] sm:$0xff]
      %v4525 = vld [vmem:[#allocation7 + $0xb8] sm:$0xff]
      %v4526 = vld [vmem:[#allocation7 + $0xc0] sm:$0xff]
      %v4527 = vld [vmem:[#allocation7 + $0xc8] sm:$0xff]
      %v4528 = vld [vmem:[#allocation7 + $0xd0] sm:$0xff]
      %v4529 = vld [vmem:[#allocation7 + $0xd8] sm:$0xff]
      %v4530 = vld [vmem:[#allocation7 + $0xe0] sm:$0xff]
      %v4531 = vld [vmem:[#allocation7 + $0xe8] sm:$0xff]
      %v4532 = vld [vmem:[#allocation7 + $0xf0] sm:$0xff]
      %v4533 = vld [vmem:[#allocation7 + $0xf8] sm:$0xff]
      %v4534 = vmax.f32 %v4527, 1e-12
      %v4535 = vrcp.pop %v4534
      %v4536 = vmul.f32 %v4534, %v4535
      %v4537 = vsub.f32 1.0, %v4536
      %v4538 = vmul.f32 %v4535, %v4537
      %v4539 = vadd.f32 %v4535, %v4538
      %vm4540 = vweird.f32 %v4534
      %vm4541 = vweird.f32 %v4535
      %vm4542 = vmor %vm4540, %vm4541
      %v4543 = vsel %vm4542, %v4535, %v4539
      %v4544 = vand.u32 2147483647, %v4534
      %vm4545 = vcmp.eq.f32.partialorder %v4544, 8.507059e+37
      %v4546 = vand.u32 %v4534, 2147483648
      %v4547 = vor.u32 1.1754944e-38, %v4546
      %v4548 = vsel %vm4545, %v4547, %v4543
      %v4549 = vmul.f32 1.0, %v4548
      %vm4550 = vcmp.eq.s32.totalorder %v1131, 12
      %vm4551 = vcmp.eq.s32.totalorder %v1137, 12
      %vm4552 = vcmp.eq.s32.totalorder %v1140, 12
      %vm4553 = vcmp.eq.s32.totalorder %v1141, 12
      %vm4554 = vcmp.eq.s32.totalorder %v1142, 12
      %vm4555 = vcmp.eq.s32.totalorder %v1143, 12
      %vm4556 = vcmp.eq.s32.totalorder %v1144, 12
      %vm4557 = vcmp.eq.s32.totalorder %v1145, 12
      %vm4558 = vcmp.eq.s32.totalorder %v1146, 12
      %vm4559 = vcmp.eq.s32.totalorder %v1147, 12
      %vm4560 = vcmp.eq.s32.totalorder %v1148, 12
      %vm4561 = vcmp.eq.s32.totalorder %v1149, 12
      %vm4562 = vcmp.eq.s32.totalorder %v1150, 12
      %vm4563 = vcmp.eq.s32.totalorder %v1151, 12
      %vm4564 = vcmp.eq.s32.totalorder %v1152, 12
      %vm4565 = vcmp.eq.s32.totalorder %v1153, 12
      %vm4566 = vcmp.eq.s32.totalorder %v1154, 12
      %vm4567 = vcmp.eq.s32.totalorder %v1155, 12
      %v4568 = vperm.slane %v4549, 4
      %v4569 = vmul.f32 %v4526, %v4568
      %v4570 = vmul.f32 %v4527, %v4568
      %v4571 = vsel %vm4550, 1, 0
      %v4572 = vsel %vm4551, 1, 0
      %vm4573 = vcmp.eq.s32.totalorder %v4571, 1
      %vm4574 = vcmp.eq.s32.totalorder %v4572, 1
      %v4575 = vsel %vm4573, %v4568, %v4569
      %v4576 = vsel %vm4574, %v4568, %v4570
      %v4577 = vsel %vm4573, 0.0, %v4502
      %v4578 = vsel %vm4574, 0.0, %v4503
      %v4579 = vsel %vm4573, 0.0, %v4504
      %v4580 = vsel %vm4574, 0.0, %v4505
      %v4581 = vsel %vm4573, 0.0, %v4506
      %v4582 = vsel %vm4574, 0.0, %v4507
      %v4583 = vsel %vm4573, 0.0, %v4508
      %v4584 = vsel %vm4574, 0.0, %v4509
      %v4585 = vsel %vm4573, 0.0, %v4510
      %v4586 = vsel %vm4574, 0.0, %v4511
      %v4587 = vsel %vm4573, 0.0, %v4512
      %v4588 = vsel %vm4574, 0.0, %v4513
      %v4589 = vsel %vm4573, 0.0, %v4514
      %v4590 = vsel %vm4574, 0.0, %v4515
      %v4591 = vsel %vm4573, 0.0, %v4516
      %v4592 = vsel %vm4574, 0.0, %v4517
      %v4593 = vsel %vm4573, 0.0, %v4518
      %v4594 = vsel %vm4574, 0.0, %v4519
      %v4595 = vsel %vm4573, 0.0, %v4520
      %v4596 = vsel %vm4574, 0.0, %v4521
      %v4597 = vsel %vm4573, 0.0, %v4522
      %v4598 = vsel %vm4574, 0.0, %v4523
      %v4599 = vsel %vm4573, 0.0, %v4524
      %v4600 = vsel %vm4574, 0.0, %v4525
      %v4601 = vsel %vm4573, 0.0, %v4526
      %v4602 = vsel %vm4574, 0.0, %v4527
      %v4603 = vsel %vm4573, 0.0, %v4528
      %v4604 = vsel %vm4574, 0.0, %v4529
      %v4605 = vsel %vm4573, 0.0, %v4530
      %v4606 = vsel %vm4574, 0.0, %v4531
      %v4607 = vsel %vm4573, 0.0, %v4532
      %v4608 = vsel %vm4574, 0.0, %v4533
      %v4609 = vperm.slane %v4503, 4
      %v4610 = vperm.slane %v4505, 4
      %v4611 = vperm.slane %v4507, 4
      %v4612 = vperm.slane %v4509, 4
      %v4613 = vperm.slane %v4511, 4
      %v4614 = vperm.slane %v4513, 4
      %v4615 = vperm.slane %v4515, 4
      %v4616 = vperm.slane %v4517, 4
      %v4617 = vperm.slane %v4519, 4
      %v4618 = vperm.slane %v4521, 4
      %v4619 = vperm.slane %v4523, 4
      %v4620 = vperm.slane %v4525, 4
      %v4621 = vperm.slane %v4527, 4
      %v4622 = vperm.slane %v4529, 4
      %v4623 = vperm.slane %v4531, 4
      %v4624 = vperm.slane %v4533, 4
      %v4625 = vmul.f32 %v4609, %v4575
      %v4626 = vmul.f32 %v4609, %v4576
      %v4627 = vmul.f32 %v4610, %v4575
      %v4628 = vmul.f32 %v4610, %v4576
      %v4629 = vmul.f32 %v4611, %v4575
      %v4630 = vmul.f32 %v4611, %v4576
      %v4631 = vmul.f32 %v4612, %v4575
      %v4632 = vmul.f32 %v4612, %v4576
      %v4633 = vmul.f32 %v4613, %v4575
      %v4634 = vmul.f32 %v4613, %v4576
      %v4635 = vmul.f32 %v4614, %v4575
      %v4636 = vmul.f32 %v4614, %v4576
      %v4637 = vmul.f32 %v4615, %v4575
      %v4638 = vmul.f32 %v4615, %v4576
      %v4639 = vmul.f32 %v4616, %v4575
      %v4640 = vmul.f32 %v4616, %v4576
      %v4641 = vmul.f32 %v4617, %v4575
      %v4642 = vmul.f32 %v4617, %v4576
      %v4643 = vmul.f32 %v4618, %v4575
      %v4644 = vmul.f32 %v4618, %v4576
      %v4645 = vmul.f32 %v4619, %v4575
      %v4646 = vmul.f32 %v4619, %v4576
      %v4647 = vmul.f32 %v4620, %v4575
      %v4648 = vmul.f32 %v4620, %v4576
      %v4649 = vmul.f32 %v4621, %v4575
      %v4650 = vmul.f32 %v4621, %v4576
      %v4651 = vmul.f32 %v4622, %v4575
      %v4652 = vmul.f32 %v4622, %v4576
      %v4653 = vmul.f32 %v4623, %v4575
      %v4654 = vmul.f32 %v4623, %v4576
      %v4655 = vmul.f32 %v4624, %v4575
      %v4656 = vmul.f32 %v4624, %v4576
      %v4657 = vsub.f32 %v4577, %v4625
      %v4658 = vsub.f32 %v4578, %v4626
      %v4659 = vsub.f32 %v4579, %v4627
      %v4660 = vsub.f32 %v4580, %v4628
      %v4661 = vsub.f32 %v4581, %v4629
      %v4662 = vsub.f32 %v4582, %v4630
      %v4663 = vsub.f32 %v4583, %v4631
      %v4664 = vsub.f32 %v4584, %v4632
      %v4665 = vsub.f32 %v4585, %v4633
      %v4666 = vsub.f32 %v4586, %v4634
      %v4667 = vsub.f32 %v4587, %v4635
      %v4668 = vsub.f32 %v4588, %v4636
      %v4669 = vsub.f32 %v4589, %v4637
      %v4670 = vsub.f32 %v4590, %v4638
      %v4671 = vsub.f32 %v4591, %v4639
      %v4672 = vsub.f32 %v4592, %v4640
      %v4673 = vsub.f32 %v4593, %v4641
      %v4674 = vsub.f32 %v4594, %v4642
      %v4675 = vsub.f32 %v4595, %v4643
      %v4676 = vsub.f32 %v4596, %v4644
      %v4677 = vsub.f32 %v4597, %v4645
      %v4678 = vsub.f32 %v4598, %v4646
      %v4679 = vsub.f32 %v4599, %v4647
      %v4680 = vsub.f32 %v4600, %v4648
      %v4681 = vsub.f32 %v4601, %v4649
      %v4682 = vsub.f32 %v4602, %v4650
      %v4683 = vsub.f32 %v4603, %v4651
      %v4684 = vsub.f32 %v4604, %v4652
      %v4685 = vsub.f32 %v4605, %v4653
      %v4686 = vsub.f32 %v4606, %v4654
      %v4687 = vsub.f32 %v4607, %v4655
      %v4688 = vsub.f32 %v4608, %v4656
      %v4689 = vsel %vm4552, 1, 0
      %v4690 = vsel %vm4553, 1, 0
      %v4691 = vsel %vm4554, 1, 0
      %v4692 = vsel %vm4555, 1, 0
      %v4693 = vsel %vm4556, 1, 0
      %v4694 = vsel %vm4557, 1, 0
      %v4695 = vsel %vm4558, 1, 0
      %v4696 = vsel %vm4559, 1, 0
      %v4697 = vsel %vm4560, 1, 0
      %v4698 = vsel %vm4561, 1, 0
      %v4699 = vsel %vm4562, 1, 0
      %v4700 = vsel %vm4563, 1, 0
      %v4701 = vsel %vm4564, 1, 0
      %v4702 = vsel %vm4565, 1, 0
      %v4703 = vsel %vm4566, 1, 0
      %v4704 = vsel %vm4567, 1, 0
      %vm4705 = vcmp.eq.s32.totalorder %v4689, 1
      %vm4706 = vcmp.eq.s32.totalorder %v4690, 1
      %vm4707 = vcmp.eq.s32.totalorder %v4691, 1
      %vm4708 = vcmp.eq.s32.totalorder %v4692, 1
      %vm4709 = vcmp.eq.s32.totalorder %v4693, 1
      %vm4710 = vcmp.eq.s32.totalorder %v4694, 1
      %vm4711 = vcmp.eq.s32.totalorder %v4695, 1
      %vm4712 = vcmp.eq.s32.totalorder %v4696, 1
      %vm4713 = vcmp.eq.s32.totalorder %v4697, 1
      %vm4714 = vcmp.eq.s32.totalorder %v4698, 1
      %vm4715 = vcmp.eq.s32.totalorder %v4699, 1
      %vm4716 = vcmp.eq.s32.totalorder %v4700, 1
      %vm4717 = vcmp.eq.s32.totalorder %v4701, 1
      %vm4718 = vcmp.eq.s32.totalorder %v4702, 1
      %vm4719 = vcmp.eq.s32.totalorder %v4703, 1
      %vm4720 = vcmp.eq.s32.totalorder %v4704, 1
      %v4721 = vsel %vm4705, %v4575, %v4657
      %v4722 = vsel %vm4705, %v4576, %v4658
      %v4723 = vsel %vm4706, %v4575, %v4659
      %v4724 = vsel %vm4706, %v4576, %v4660
      %v4725 = vsel %vm4707, %v4575, %v4661
      %v4726 = vsel %vm4707, %v4576, %v4662
      %v4727 = vsel %vm4708, %v4575, %v4663
      %v4728 = vsel %vm4708, %v4576, %v4664
      %v4729 = vsel %vm4709, %v4575, %v4665
      %v4730 = vsel %vm4709, %v4576, %v4666
      %v4731 = vsel %vm4710, %v4575, %v4667
      %v4732 = vsel %vm4710, %v4576, %v4668
      %v4733 = vsel %vm4711, %v4575, %v4669
      %v4734 = vsel %vm4711, %v4576, %v4670
      %v4735 = vsel %vm4712, %v4575, %v4671
      %v4736 = vsel %vm4712, %v4576, %v4672
      %v4737 = vsel %vm4713, %v4575, %v4673
      %v4738 = vsel %vm4713, %v4576, %v4674
      %v4739 = vsel %vm4714, %v4575, %v4675
      %v4740 = vsel %vm4714, %v4576, %v4676
      %v4741 = vsel %vm4715, %v4575, %v4677
      %v4742 = vsel %vm4715, %v4576, %v4678
      %v4743 = vsel %vm4716, %v4575, %v4679
      %v4744 = vsel %vm4716, %v4576, %v4680
      %v4745 = vsel %vm4717, %v4575, %v4681
      %v4746 = vsel %vm4717, %v4576, %v4682
      %v4747 = vsel %vm4718, %v4575, %v4683
      %v4748 = vsel %vm4718, %v4576, %v4684
      %v4749 = vsel %vm4719, %v4575, %v4685
      %v4750 = vsel %vm4719, %v4576, %v4686
      %v4751 = vsel %vm4720, %v4575, %v4687
      %v4752 = vsel %vm4720, %v4576, %v4688
      %4753 = vst [vmem:[#allocation7] sm:$0xff] %v4721
      %4754 = vst [vmem:[#allocation7 + $0x8] sm:$0xff] %v4722
      %4755 = vst [vmem:[#allocation7 + $0x10] sm:$0xff] %v4723
      %4756 = vst [vmem:[#allocation7 + $0x18] sm:$0xff] %v4724
      %4757 = vst [vmem:[#allocation7 + $0x20] sm:$0xff] %v4725
      %4758 = vst [vmem:[#allocation7 + $0x28] sm:$0xff] %v4726
      %4759 = vst [vmem:[#allocation7 + $0x30] sm:$0xff] %v4727
      %4760 = vst [vmem:[#allocation7 + $0x38] sm:$0xff] %v4728
      %4761 = vst [vmem:[#allocation7 + $0x40] sm:$0xff] %v4729
      %4762 = vst [vmem:[#allocation7 + $0x48] sm:$0xff] %v4730
      %4763 = vst [vmem:[#allocation7 + $0x50] sm:$0xff] %v4731
      %4764 = vst [vmem:[#allocation7 + $0x58] sm:$0xff] %v4732
      %4765 = vst [vmem:[#allocation7 + $0x60] sm:$0xff] %v4733
      %4766 = vst [vmem:[#allocation7 + $0x68] sm:$0xff] %v4734
      %4767 = vst [vmem:[#allocation7 + $0x70] sm:$0xff] %v4735
      %4768 = vst [vmem:[#allocation7 + $0x78] sm:$0xff] %v4736
      %4769 = vst [vmem:[#allocation7 + $0x80] sm:$0xff] %v4737
      %4770 = vst [vmem:[#allocation7 + $0x88] sm:$0xff] %v4738
      %4771 = vst [vmem:[#allocation7 + $0x90] sm:$0xff] %v4739
      %4772 = vst [vmem:[#allocation7 + $0x98] sm:$0xff] %v4740
      %4773 = vst [vmem:[#allocation7 + $0xa0] sm:$0xff] %v4741
      %4774 = vst [vmem:[#allocation7 + $0xa8] sm:$0xff] %v4742
      %4775 = vst [vmem:[#allocation7 + $0xb0] sm:$0xff] %v4743
      %4776 = vst [vmem:[#allocation7 + $0xb8] sm:$0xff] %v4744
      %4777 = vst [vmem:[#allocation7 + $0xc0] sm:$0xff] %v4745
      %4778 = vst [vmem:[#allocation7 + $0xc8] sm:$0xff] %v4746
      %4779 = vst [vmem:[#allocation7 + $0xd0] sm:$0xff] %v4747
      %4780 = vst [vmem:[#allocation7 + $0xd8] sm:$0xff] %v4748
      %4781 = vst [vmem:[#allocation7 + $0xe0] sm:$0xff] %v4749
      %4782 = vst [vmem:[#allocation7 + $0xe8] sm:$0xff] %v4750
      %4783 = vst [vmem:[#allocation7 + $0xf0] sm:$0xff] %v4751
      %4784 = vst [vmem:[#allocation7 + $0xf8] sm:$0xff] %v4752
      %v4785 = vld [vmem:[#allocation7] sm:$0xff]
      %v4786 = vld [vmem:[#allocation7 + $0x8] sm:$0xff]
      %v4787 = vld [vmem:[#allocation7 + $0x10] sm:$0xff]
      %v4788 = vld [vmem:[#allocation7 + $0x18] sm:$0xff]
      %v4789 = vld [vmem:[#allocation7 + $0x20] sm:$0xff]
      %v4790 = vld [vmem:[#allocation7 + $0x28] sm:$0xff]
      %v4791 = vld [vmem:[#allocation7 + $0x30] sm:$0xff]
      %v4792 = vld [vmem:[#allocation7 + $0x38] sm:$0xff]
      %v4793 = vld [vmem:[#allocation7 + $0x40] sm:$0xff]
      %v4794 = vld [vmem:[#allocation7 + $0x48] sm:$0xff]
      %v4795 = vld [vmem:[#allocation7 + $0x50] sm:$0xff]
      %v4796 = vld [vmem:[#allocation7 + $0x58] sm:$0xff]
      %v4797 = vld [vmem:[#allocation7 + $0x60] sm:$0xff]
      %v4798 = vld [vmem:[#allocation7 + $0x68] sm:$0xff]
      %v4799 = vld [vmem:[#allocation7 + $0x70] sm:$0xff]
      %v4800 = vld [vmem:[#allocation7 + $0x78] sm:$0xff]
      %v4801 = vld [vmem:[#allocation7 + $0x80] sm:$0xff]
      %v4802 = vld [vmem:[#allocation7 + $0x88] sm:$0xff]
      %v4803 = vld [vmem:[#allocation7 + $0x90] sm:$0xff]
      %v4804 = vld [vmem:[#allocation7 + $0x98] sm:$0xff]
      %v4805 = vld [vmem:[#allocation7 + $0xa0] sm:$0xff]
      %v4806 = vld [vmem:[#allocation7 + $0xa8] sm:$0xff]
      %v4807 = vld [vmem:[#allocation7 + $0xb0] sm:$0xff]
      %v4808 = vld [vmem:[#allocation7 + $0xb8] sm:$0xff]
      %v4809 = vld [vmem:[#allocation7 + $0xc0] sm:$0xff]
      %v4810 = vld [vmem:[#allocation7 + $0xc8] sm:$0xff]
      %v4811 = vld [vmem:[#allocation7 + $0xd0] sm:$0xff]
      %v4812 = vld [vmem:[#allocation7 + $0xd8] sm:$0xff]
      %v4813 = vld [vmem:[#allocation7 + $0xe0] sm:$0xff]
      %v4814 = vld [vmem:[#allocation7 + $0xe8] sm:$0xff]
      %v4815 = vld [vmem:[#allocation7 + $0xf0] sm:$0xff]
      %v4816 = vld [vmem:[#allocation7 + $0xf8] sm:$0xff]
      %v4817 = vmax.f32 %v4812, 1e-12
      %v4818 = vrcp.pop %v4817
      %v4819 = vmul.f32 %v4817, %v4818
      %v4820 = vsub.f32 1.0, %v4819
      %v4821 = vmul.f32 %v4818, %v4820
      %v4822 = vadd.f32 %v4818, %v4821
      %vm4823 = vweird.f32 %v4817
      %vm4824 = vweird.f32 %v4818
      %vm4825 = vmor %vm4823, %vm4824
      %v4826 = vsel %vm4825, %v4818, %v4822
      %v4827 = vand.u32 2147483647, %v4817
      %vm4828 = vcmp.eq.f32.partialorder %v4827, 8.507059e+37
      %v4829 = vand.u32 %v4817, 2147483648
      %v4830 = vor.u32 1.1754944e-38, %v4829
      %v4831 = vsel %vm4828, %v4830, %v4826
      %v4832 = vmul.f32 1.0, %v4831
      %vm4833 = vcmp.eq.s32.totalorder %v1131, 13
      %vm4834 = vcmp.eq.s32.totalorder %v1137, 13
      %vm4835 = vcmp.eq.s32.totalorder %v1140, 13
      %vm4836 = vcmp.eq.s32.totalorder %v1141, 13
      %vm4837 = vcmp.eq.s32.totalorder %v1142, 13
      %vm4838 = vcmp.eq.s32.totalorder %v1143, 13
      %vm4839 = vcmp.eq.s32.totalorder %v1144, 13
      %vm4840 = vcmp.eq.s32.totalorder %v1145, 13
      %vm4841 = vcmp.eq.s32.totalorder %v1146, 13
      %vm4842 = vcmp.eq.s32.totalorder %v1147, 13
      %vm4843 = vcmp.eq.s32.totalorder %v1148, 13
      %vm4844 = vcmp.eq.s32.totalorder %v1149, 13
      %vm4845 = vcmp.eq.s32.totalorder %v1150, 13
      %vm4846 = vcmp.eq.s32.totalorder %v1151, 13
      %vm4847 = vcmp.eq.s32.totalorder %v1152, 13
      %vm4848 = vcmp.eq.s32.totalorder %v1153, 13
      %vm4849 = vcmp.eq.s32.totalorder %v1154, 13
      %vm4850 = vcmp.eq.s32.totalorder %v1155, 13
      %v4851 = vperm.slane %v4832, 5
      %v4852 = vmul.f32 %v4811, %v4851
      %v4853 = vmul.f32 %v4812, %v4851
      %v4854 = vsel %vm4833, 1, 0
      %v4855 = vsel %vm4834, 1, 0
      %vm4856 = vcmp.eq.s32.totalorder %v4854, 1
      %vm4857 = vcmp.eq.s32.totalorder %v4855, 1
      %v4858 = vsel %vm4856, %v4851, %v4852
      %v4859 = vsel %vm4857, %v4851, %v4853
      %v4860 = vsel %vm4856, 0.0, %v4785
      %v4861 = vsel %vm4857, 0.0, %v4786
      %v4862 = vsel %vm4856, 0.0, %v4787
      %v4863 = vsel %vm4857, 0.0, %v4788
      %v4864 = vsel %vm4856, 0.0, %v4789
      %v4865 = vsel %vm4857, 0.0, %v4790
      %v4866 = vsel %vm4856, 0.0, %v4791
      %v4867 = vsel %vm4857, 0.0, %v4792
      %v4868 = vsel %vm4856, 0.0, %v4793
      %v4869 = vsel %vm4857, 0.0, %v4794
      %v4870 = vsel %vm4856, 0.0, %v4795
      %v4871 = vsel %vm4857, 0.0, %v4796
      %v4872 = vsel %vm4856, 0.0, %v4797
      %v4873 = vsel %vm4857, 0.0, %v4798
      %v4874 = vsel %vm4856, 0.0, %v4799
      %v4875 = vsel %vm4857, 0.0, %v4800
      %v4876 = vsel %vm4856, 0.0, %v4801
      %v4877 = vsel %vm4857, 0.0, %v4802
      %v4878 = vsel %vm4856, 0.0, %v4803
      %v4879 = vsel %vm4857, 0.0, %v4804
      %v4880 = vsel %vm4856, 0.0, %v4805
      %v4881 = vsel %vm4857, 0.0, %v4806
      %v4882 = vsel %vm4856, 0.0, %v4807
      %v4883 = vsel %vm4857, 0.0, %v4808
      %v4884 = vsel %vm4856, 0.0, %v4809
      %v4885 = vsel %vm4857, 0.0, %v4810
      %v4886 = vsel %vm4856, 0.0, %v4811
      %v4887 = vsel %vm4857, 0.0, %v4812
      %v4888 = vsel %vm4856, 0.0, %v4813
      %v4889 = vsel %vm4857, 0.0, %v4814
      %v4890 = vsel %vm4856, 0.0, %v4815
      %v4891 = vsel %vm4857, 0.0, %v4816
      %v4892 = vperm.slane %v4786, 5
      %v4893 = vperm.slane %v4788, 5
      %v4894 = vperm.slane %v4790, 5
      %v4895 = vperm.slane %v4792, 5
      %v4896 = vperm.slane %v4794, 5
      %v4897 = vperm.slane %v4796, 5
      %v4898 = vperm.slane %v4798, 5
      %v4899 = vperm.slane %v4800, 5
      %v4900 = vperm.slane %v4802, 5
      %v4901 = vperm.slane %v4804, 5
      %v4902 = vperm.slane %v4806, 5
      %v4903 = vperm.slane %v4808, 5
      %v4904 = vperm.slane %v4810, 5
      %v4905 = vperm.slane %v4812, 5
      %v4906 = vperm.slane %v4814, 5
      %v4907 = vperm.slane %v4816, 5
      %v4908 = vmul.f32 %v4892, %v4858
      %v4909 = vmul.f32 %v4892, %v4859
      %v4910 = vmul.f32 %v4893, %v4858
      %v4911 = vmul.f32 %v4893, %v4859
      %v4912 = vmul.f32 %v4894, %v4858
      %v4913 = vmul.f32 %v4894, %v4859
      %v4914 = vmul.f32 %v4895, %v4858
      %v4915 = vmul.f32 %v4895, %v4859
      %v4916 = vmul.f32 %v4896, %v4858
      %v4917 = vmul.f32 %v4896, %v4859
      %v4918 = vmul.f32 %v4897, %v4858
      %v4919 = vmul.f32 %v4897, %v4859
      %v4920 = vmul.f32 %v4898, %v4858
      %v4921 = vmul.f32 %v4898, %v4859
      %v4922 = vmul.f32 %v4899, %v4858
      %v4923 = vmul.f32 %v4899, %v4859
      %v4924 = vmul.f32 %v4900, %v4858
      %v4925 = vmul.f32 %v4900, %v4859
      %v4926 = vmul.f32 %v4901, %v4858
      %v4927 = vmul.f32 %v4901, %v4859
      %v4928 = vmul.f32 %v4902, %v4858
      %v4929 = vmul.f32 %v4902, %v4859
      %v4930 = vmul.f32 %v4903, %v4858
      %v4931 = vmul.f32 %v4903, %v4859
      %v4932 = vmul.f32 %v4904, %v4858
      %v4933 = vmul.f32 %v4904, %v4859
      %v4934 = vmul.f32 %v4905, %v4858
      %v4935 = vmul.f32 %v4905, %v4859
      %v4936 = vmul.f32 %v4906, %v4858
      %v4937 = vmul.f32 %v4906, %v4859
      %v4938 = vmul.f32 %v4907, %v4858
      %v4939 = vmul.f32 %v4907, %v4859
      %v4940 = vsub.f32 %v4860, %v4908
      %v4941 = vsub.f32 %v4861, %v4909
      %v4942 = vsub.f32 %v4862, %v4910
      %v4943 = vsub.f32 %v4863, %v4911
      %v4944 = vsub.f32 %v4864, %v4912
      %v4945 = vsub.f32 %v4865, %v4913
      %v4946 = vsub.f32 %v4866, %v4914
      %v4947 = vsub.f32 %v4867, %v4915
      %v4948 = vsub.f32 %v4868, %v4916
      %v4949 = vsub.f32 %v4869, %v4917
      %v4950 = vsub.f32 %v4870, %v4918
      %v4951 = vsub.f32 %v4871, %v4919
      %v4952 = vsub.f32 %v4872, %v4920
      %v4953 = vsub.f32 %v4873, %v4921
      %v4954 = vsub.f32 %v4874, %v4922
      %v4955 = vsub.f32 %v4875, %v4923
      %v4956 = vsub.f32 %v4876, %v4924
      %v4957 = vsub.f32 %v4877, %v4925
      %v4958 = vsub.f32 %v4878, %v4926
      %v4959 = vsub.f32 %v4879, %v4927
      %v4960 = vsub.f32 %v4880, %v4928
      %v4961 = vsub.f32 %v4881, %v4929
      %v4962 = vsub.f32 %v4882, %v4930
      %v4963 = vsub.f32 %v4883, %v4931
      %v4964 = vsub.f32 %v4884, %v4932
      %v4965 = vsub.f32 %v4885, %v4933
      %v4966 = vsub.f32 %v4886, %v4934
      %v4967 = vsub.f32 %v4887, %v4935
      %v4968 = vsub.f32 %v4888, %v4936
      %v4969 = vsub.f32 %v4889, %v4937
      %v4970 = vsub.f32 %v4890, %v4938
      %v4971 = vsub.f32 %v4891, %v4939
      %v4972 = vsel %vm4835, 1, 0
      %v4973 = vsel %vm4836, 1, 0
      %v4974 = vsel %vm4837, 1, 0
      %v4975 = vsel %vm4838, 1, 0
      %v4976 = vsel %vm4839, 1, 0
      %v4977 = vsel %vm4840, 1, 0
      %v4978 = vsel %vm4841, 1, 0
      %v4979 = vsel %vm4842, 1, 0
      %v4980 = vsel %vm4843, 1, 0
      %v4981 = vsel %vm4844, 1, 0
      %v4982 = vsel %vm4845, 1, 0
      %v4983 = vsel %vm4846, 1, 0
      %v4984 = vsel %vm4847, 1, 0
      %v4985 = vsel %vm4848, 1, 0
      %v4986 = vsel %vm4849, 1, 0
      %v4987 = vsel %vm4850, 1, 0
      %vm4988 = vcmp.eq.s32.totalorder %v4972, 1
      %vm4989 = vcmp.eq.s32.totalorder %v4973, 1
      %vm4990 = vcmp.eq.s32.totalorder %v4974, 1
      %vm4991 = vcmp.eq.s32.totalorder %v4975, 1
      %vm4992 = vcmp.eq.s32.totalorder %v4976, 1
      %vm4993 = vcmp.eq.s32.totalorder %v4977, 1
      %vm4994 = vcmp.eq.s32.totalorder %v4978, 1
      %vm4995 = vcmp.eq.s32.totalorder %v4979, 1
      %vm4996 = vcmp.eq.s32.totalorder %v4980, 1
      %vm4997 = vcmp.eq.s32.totalorder %v4981, 1
      %vm4998 = vcmp.eq.s32.totalorder %v4982, 1
      %vm4999 = vcmp.eq.s32.totalorder %v4983, 1
      %vm5000 = vcmp.eq.s32.totalorder %v4984, 1
      %vm5001 = vcmp.eq.s32.totalorder %v4985, 1
      %vm5002 = vcmp.eq.s32.totalorder %v4986, 1
      %vm5003 = vcmp.eq.s32.totalorder %v4987, 1
      %v5004 = vsel %vm4988, %v4858, %v4940
      %v5005 = vsel %vm4988, %v4859, %v4941
      %v5006 = vsel %vm4989, %v4858, %v4942
      %v5007 = vsel %vm4989, %v4859, %v4943
      %v5008 = vsel %vm4990, %v4858, %v4944
      %v5009 = vsel %vm4990, %v4859, %v4945
      %v5010 = vsel %vm4991, %v4858, %v4946
      %v5011 = vsel %vm4991, %v4859, %v4947
      %v5012 = vsel %vm4992, %v4858, %v4948
      %v5013 = vsel %vm4992, %v4859, %v4949
      %v5014 = vsel %vm4993, %v4858, %v4950
      %v5015 = vsel %vm4993, %v4859, %v4951
      %v5016 = vsel %vm4994, %v4858, %v4952
      %v5017 = vsel %vm4994, %v4859, %v4953
      %v5018 = vsel %vm4995, %v4858, %v4954
      %v5019 = vsel %vm4995, %v4859, %v4955
      %v5020 = vsel %vm4996, %v4858, %v4956
      %v5021 = vsel %vm4996, %v4859, %v4957
      %v5022 = vsel %vm4997, %v4858, %v4958
      %v5023 = vsel %vm4997, %v4859, %v4959
      %v5024 = vsel %vm4998, %v4858, %v4960
      %v5025 = vsel %vm4998, %v4859, %v4961
      %v5026 = vsel %vm4999, %v4858, %v4962
      %v5027 = vsel %vm4999, %v4859, %v4963
      %v5028 = vsel %vm5000, %v4858, %v4964
      %v5029 = vsel %vm5000, %v4859, %v4965
      %v5030 = vsel %vm5001, %v4858, %v4966
      %v5031 = vsel %vm5001, %v4859, %v4967
      %v5032 = vsel %vm5002, %v4858, %v4968
      %v5033 = vsel %vm5002, %v4859, %v4969
      %v5034 = vsel %vm5003, %v4858, %v4970
      %v5035 = vsel %vm5003, %v4859, %v4971
      %5036 = vst [vmem:[#allocation7] sm:$0xff] %v5004
      %5037 = vst [vmem:[#allocation7 + $0x8] sm:$0xff] %v5005
      %5038 = vst [vmem:[#allocation7 + $0x10] sm:$0xff] %v5006
      %5039 = vst [vmem:[#allocation7 + $0x18] sm:$0xff] %v5007
      %5040 = vst [vmem:[#allocation7 + $0x20] sm:$0xff] %v5008
      %5041 = vst [vmem:[#allocation7 + $0x28] sm:$0xff] %v5009
      %5042 = vst [vmem:[#allocation7 + $0x30] sm:$0xff] %v5010
      %5043 = vst [vmem:[#allocation7 + $0x38] sm:$0xff] %v5011
      %5044 = vst [vmem:[#allocation7 + $0x40] sm:$0xff] %v5012
      %5045 = vst [vmem:[#allocation7 + $0x48] sm:$0xff] %v5013
      %5046 = vst [vmem:[#allocation7 + $0x50] sm:$0xff] %v5014
      %5047 = vst [vmem:[#allocation7 + $0x58] sm:$0xff] %v5015
      %5048 = vst [vmem:[#allocation7 + $0x60] sm:$0xff] %v5016
      %5049 = vst [vmem:[#allocation7 + $0x68] sm:$0xff] %v5017
      %5050 = vst [vmem:[#allocation7 + $0x70] sm:$0xff] %v5018
      %5051 = vst [vmem:[#allocation7 + $0x78] sm:$0xff] %v5019
      %5052 = vst [vmem:[#allocation7 + $0x80] sm:$0xff] %v5020
      %5053 = vst [vmem:[#allocation7 + $0x88] sm:$0xff] %v5021
      %5054 = vst [vmem:[#allocation7 + $0x90] sm:$0xff] %v5022
      %5055 = vst [vmem:[#allocation7 + $0x98] sm:$0xff] %v5023
      %5056 = vst [vmem:[#allocation7 + $0xa0] sm:$0xff] %v5024
      %5057 = vst [vmem:[#allocation7 + $0xa8] sm:$0xff] %v5025
      %5058 = vst [vmem:[#allocation7 + $0xb0] sm:$0xff] %v5026
      %5059 = vst [vmem:[#allocation7 + $0xb8] sm:$0xff] %v5027
      %5060 = vst [vmem:[#allocation7 + $0xc0] sm:$0xff] %v5028
      %5061 = vst [vmem:[#allocation7 + $0xc8] sm:$0xff] %v5029
      %5062 = vst [vmem:[#allocation7 + $0xd0] sm:$0xff] %v5030
      %5063 = vst [vmem:[#allocation7 + $0xd8] sm:$0xff] %v5031
      %5064 = vst [vmem:[#allocation7 + $0xe0] sm:$0xff] %v5032
      %5065 = vst [vmem:[#allocation7 + $0xe8] sm:$0xff] %v5033
      %5066 = vst [vmem:[#allocation7 + $0xf0] sm:$0xff] %v5034
      %5067 = vst [vmem:[#allocation7 + $0xf8] sm:$0xff] %v5035
      %v5068 = vld [vmem:[#allocation7] sm:$0xff]
      %v5069 = vld [vmem:[#allocation7 + $0x8] sm:$0xff]
      %v5070 = vld [vmem:[#allocation7 + $0x10] sm:$0xff]
      %v5071 = vld [vmem:[#allocation7 + $0x18] sm:$0xff]
      %v5072 = vld [vmem:[#allocation7 + $0x20] sm:$0xff]
      %v5073 = vld [vmem:[#allocation7 + $0x28] sm:$0xff]
      %v5074 = vld [vmem:[#allocation7 + $0x30] sm:$0xff]
      %v5075 = vld [vmem:[#allocation7 + $0x38] sm:$0xff]
      %v5076 = vld [vmem:[#allocation7 + $0x40] sm:$0xff]
      %v5077 = vld [vmem:[#allocation7 + $0x48] sm:$0xff]
      %v5078 = vld [vmem:[#allocation7 + $0x50] sm:$0xff]
      %v5079 = vld [vmem:[#allocation7 + $0x58] sm:$0xff]
      %v5080 = vld [vmem:[#allocation7 + $0x60] sm:$0xff]
      %v5081 = vld [vmem:[#allocation7 + $0x68] sm:$0xff]
      %v5082 = vld [vmem:[#allocation7 + $0x70] sm:$0xff]
      %v5083 = vld [vmem:[#allocation7 + $0x78] sm:$0xff]
      %v5084 = vld [vmem:[#allocation7 + $0x80] sm:$0xff]
      %v5085 = vld [vmem:[#allocation7 + $0x88] sm:$0xff]
      %v5086 = vld [vmem:[#allocation7 + $0x90] sm:$0xff]
      %v5087 = vld [vmem:[#allocation7 + $0x98] sm:$0xff]
      %v5088 = vld [vmem:[#allocation7 + $0xa0] sm:$0xff]
      %v5089 = vld [vmem:[#allocation7 + $0xa8] sm:$0xff]
      %v5090 = vld [vmem:[#allocation7 + $0xb0] sm:$0xff]
      %v5091 = vld [vmem:[#allocation7 + $0xb8] sm:$0xff]
      %v5092 = vld [vmem:[#allocation7 + $0xc0] sm:$0xff]
      %v5093 = vld [vmem:[#allocation7 + $0xc8] sm:$0xff]
      %v5094 = vld [vmem:[#allocation7 + $0xd0] sm:$0xff]
      %v5095 = vld [vmem:[#allocation7 + $0xd8] sm:$0xff]
      %v5096 = vld [vmem:[#allocation7 + $0xe0] sm:$0xff]
      %v5097 = vld [vmem:[#allocation7 + $0xe8] sm:$0xff]
      %v5098 = vld [vmem:[#allocation7 + $0xf0] sm:$0xff]
      %v5099 = vld [vmem:[#allocation7 + $0xf8] sm:$0xff]
      %v5100 = vmax.f32 %v5097, 1e-12
      %v5101 = vrcp.pop %v5100
      %v5102 = vmul.f32 %v5100, %v5101
      %v5103 = vsub.f32 1.0, %v5102
      %v5104 = vmul.f32 %v5101, %v5103
      %v5105 = vadd.f32 %v5101, %v5104
      %vm5106 = vweird.f32 %v5100
      %vm5107 = vweird.f32 %v5101
      %vm5108 = vmor %vm5106, %vm5107
      %v5109 = vsel %vm5108, %v5101, %v5105
      %v5110 = vand.u32 2147483647, %v5100
      %vm5111 = vcmp.eq.f32.partialorder %v5110, 8.507059e+37
      %v5112 = vand.u32 %v5100, 2147483648
      %v5113 = vor.u32 1.1754944e-38, %v5112
      %v5114 = vsel %vm5111, %v5113, %v5109
      %v5115 = vmul.f32 1.0, %v5114
      %vm5116 = vcmp.eq.s32.totalorder %v1131, 14
      %vm5117 = vcmp.eq.s32.totalorder %v1137, 14
      %vm5118 = vcmp.eq.s32.totalorder %v1140, 14
      %vm5119 = vcmp.eq.s32.totalorder %v1141, 14
      %vm5120 = vcmp.eq.s32.totalorder %v1142, 14
      %vm5121 = vcmp.eq.s32.totalorder %v1143, 14
      %vm5122 = vcmp.eq.s32.totalorder %v1144, 14
      %vm5123 = vcmp.eq.s32.totalorder %v1145, 14
      %vm5124 = vcmp.eq.s32.totalorder %v1146, 14
      %vm5125 = vcmp.eq.s32.totalorder %v1147, 14
      %vm5126 = vcmp.eq.s32.totalorder %v1148, 14
      %vm5127 = vcmp.eq.s32.totalorder %v1149, 14
      %vm5128 = vcmp.eq.s32.totalorder %v1150, 14
      %vm5129 = vcmp.eq.s32.totalorder %v1151, 14
      %vm5130 = vcmp.eq.s32.totalorder %v1152, 14
      %vm5131 = vcmp.eq.s32.totalorder %v1153, 14
      %vm5132 = vcmp.eq.s32.totalorder %v1154, 14
      %vm5133 = vcmp.eq.s32.totalorder %v1155, 14
      %v5134 = vperm.slane %v5115, 6
      %v5135 = vmul.f32 %v5096, %v5134
      %v5136 = vmul.f32 %v5097, %v5134
      %v5137 = vsel %vm5116, 1, 0
      %v5138 = vsel %vm5117, 1, 0
      %vm5139 = vcmp.eq.s32.totalorder %v5137, 1
      %vm5140 = vcmp.eq.s32.totalorder %v5138, 1
      %v5141 = vsel %vm5139, %v5134, %v5135
      %v5142 = vsel %vm5140, %v5134, %v5136
      %v5143 = vsel %vm5139, 0.0, %v5068
      %v5144 = vsel %vm5140, 0.0, %v5069
      %v5145 = vsel %vm5139, 0.0, %v5070
      %v5146 = vsel %vm5140, 0.0, %v5071
      %v5147 = vsel %vm5139, 0.0, %v5072
      %v5148 = vsel %vm5140, 0.0, %v5073
      %v5149 = vsel %vm5139, 0.0, %v5074
      %v5150 = vsel %vm5140, 0.0, %v5075
      %v5151 = vsel %vm5139, 0.0, %v5076
      %v5152 = vsel %vm5140, 0.0, %v5077
      %v5153 = vsel %vm5139, 0.0, %v5078
      %v5154 = vsel %vm5140, 0.0, %v5079
      %v5155 = vsel %vm5139, 0.0, %v5080
      %v5156 = vsel %vm5140, 0.0, %v5081
      %v5157 = vsel %vm5139, 0.0, %v5082
      %v5158 = vsel %vm5140, 0.0, %v5083
      %v5159 = vsel %vm5139, 0.0, %v5084
      %v5160 = vsel %vm5140, 0.0, %v5085
      %v5161 = vsel %vm5139, 0.0, %v5086
      %v5162 = vsel %vm5140, 0.0, %v5087
      %v5163 = vsel %vm5139, 0.0, %v5088
      %v5164 = vsel %vm5140, 0.0, %v5089
      %v5165 = vsel %vm5139, 0.0, %v5090
      %v5166 = vsel %vm5140, 0.0, %v5091
      %v5167 = vsel %vm5139, 0.0, %v5092
      %v5168 = vsel %vm5140, 0.0, %v5093
      %v5169 = vsel %vm5139, 0.0, %v5094
      %v5170 = vsel %vm5140, 0.0, %v5095
      %v5171 = vsel %vm5139, 0.0, %v5096
      %v5172 = vsel %vm5140, 0.0, %v5097
      %v5173 = vsel %vm5139, 0.0, %v5098
      %v5174 = vsel %vm5140, 0.0, %v5099
      %v5175 = vperm.slane %v5069, 6
      %v5176 = vperm.slane %v5071, 6
      %v5177 = vperm.slane %v5073, 6
      %v5178 = vperm.slane %v5075, 6
      %v5179 = vperm.slane %v5077, 6
      %v5180 = vperm.slane %v5079, 6
      %v5181 = vperm.slane %v5081, 6
      %v5182 = vperm.slane %v5083, 6
      %v5183 = vperm.slane %v5085, 6
      %v5184 = vperm.slane %v5087, 6
      %v5185 = vperm.slane %v5089, 6
      %v5186 = vperm.slane %v5091, 6
      %v5187 = vperm.slane %v5093, 6
      %v5188 = vperm.slane %v5095, 6
      %v5189 = vperm.slane %v5097, 6
      %v5190 = vperm.slane %v5099, 6
      %v5191 = vmul.f32 %v5175, %v5141
      %v5192 = vmul.f32 %v5175, %v5142
      %v5193 = vmul.f32 %v5176, %v5141
      %v5194 = vmul.f32 %v5176, %v5142
      %v5195 = vmul.f32 %v5177, %v5141
      %v5196 = vmul.f32 %v5177, %v5142
      %v5197 = vmul.f32 %v5178, %v5141
      %v5198 = vmul.f32 %v5178, %v5142
      %v5199 = vmul.f32 %v5179, %v5141
      %v5200 = vmul.f32 %v5179, %v5142
      %v5201 = vmul.f32 %v5180, %v5141
      %v5202 = vmul.f32 %v5180, %v5142
      %v5203 = vmul.f32 %v5181, %v5141
      %v5204 = vmul.f32 %v5181, %v5142
      %v5205 = vmul.f32 %v5182, %v5141
      %v5206 = vmul.f32 %v5182, %v5142
      %v5207 = vmul.f32 %v5183, %v5141
      %v5208 = vmul.f32 %v5183, %v5142
      %v5209 = vmul.f32 %v5184, %v5141
      %v5210 = vmul.f32 %v5184, %v5142
      %v5211 = vmul.f32 %v5185, %v5141
      %v5212 = vmul.f32 %v5185, %v5142
      %v5213 = vmul.f32 %v5186, %v5141
      %v5214 = vmul.f32 %v5186, %v5142
      %v5215 = vmul.f32 %v5187, %v5141
      %v5216 = vmul.f32 %v5187, %v5142
      %v5217 = vmul.f32 %v5188, %v5141
      %v5218 = vmul.f32 %v5188, %v5142
      %v5219 = vmul.f32 %v5189, %v5141
      %v5220 = vmul.f32 %v5189, %v5142
      %v5221 = vmul.f32 %v5190, %v5141
      %v5222 = vmul.f32 %v5190, %v5142
      %v5223 = vsub.f32 %v5143, %v5191
      %v5224 = vsub.f32 %v5144, %v5192
      %v5225 = vsub.f32 %v5145, %v5193
      %v5226 = vsub.f32 %v5146, %v5194
      %v5227 = vsub.f32 %v5147, %v5195
      %v5228 = vsub.f32 %v5148, %v5196
      %v5229 = vsub.f32 %v5149, %v5197
      %v5230 = vsub.f32 %v5150, %v5198
      %v5231 = vsub.f32 %v5151, %v5199
      %v5232 = vsub.f32 %v5152, %v5200
      %v5233 = vsub.f32 %v5153, %v5201
      %v5234 = vsub.f32 %v5154, %v5202
      %v5235 = vsub.f32 %v5155, %v5203
      %v5236 = vsub.f32 %v5156, %v5204
      %v5237 = vsub.f32 %v5157, %v5205
      %v5238 = vsub.f32 %v5158, %v5206
      %v5239 = vsub.f32 %v5159, %v5207
      %v5240 = vsub.f32 %v5160, %v5208
      %v5241 = vsub.f32 %v5161, %v5209
      %v5242 = vsub.f32 %v5162, %v5210
      %v5243 = vsub.f32 %v5163, %v5211
      %v5244 = vsub.f32 %v5164, %v5212
      %v5245 = vsub.f32 %v5165, %v5213
      %v5246 = vsub.f32 %v5166, %v5214
      %v5247 = vsub.f32 %v5167, %v5215
      %v5248 = vsub.f32 %v5168, %v5216
      %v5249 = vsub.f32 %v5169, %v5217
      %v5250 = vsub.f32 %v5170, %v5218
      %v5251 = vsub.f32 %v5171, %v5219
      %v5252 = vsub.f32 %v5172, %v5220
      %v5253 = vsub.f32 %v5173, %v5221
      %v5254 = vsub.f32 %v5174, %v5222
      %v5255 = vsel %vm5118, 1, 0
      %v5256 = vsel %vm5119, 1, 0
      %v5257 = vsel %vm5120, 1, 0
      %v5258 = vsel %vm5121, 1, 0
      %v5259 = vsel %vm5122, 1, 0
      %v5260 = vsel %vm5123, 1, 0
      %v5261 = vsel %vm5124, 1, 0
      %v5262 = vsel %vm5125, 1, 0
      %v5263 = vsel %vm5126, 1, 0
      %v5264 = vsel %vm5127, 1, 0
      %v5265 = vsel %vm5128, 1, 0
      %v5266 = vsel %vm5129, 1, 0
      %v5267 = vsel %vm5130, 1, 0
      %v5268 = vsel %vm5131, 1, 0
      %v5269 = vsel %vm5132, 1, 0
      %v5270 = vsel %vm5133, 1, 0
      %vm5271 = vcmp.eq.s32.totalorder %v5255, 1
      %vm5272 = vcmp.eq.s32.totalorder %v5256, 1
      %vm5273 = vcmp.eq.s32.totalorder %v5257, 1
      %vm5274 = vcmp.eq.s32.totalorder %v5258, 1
      %vm5275 = vcmp.eq.s32.totalorder %v5259, 1
      %vm5276 = vcmp.eq.s32.totalorder %v5260, 1
      %vm5277 = vcmp.eq.s32.totalorder %v5261, 1
      %vm5278 = vcmp.eq.s32.totalorder %v5262, 1
      %vm5279 = vcmp.eq.s32.totalorder %v5263, 1
      %vm5280 = vcmp.eq.s32.totalorder %v5264, 1
      %vm5281 = vcmp.eq.s32.totalorder %v5265, 1
      %vm5282 = vcmp.eq.s32.totalorder %v5266, 1
      %vm5283 = vcmp.eq.s32.totalorder %v5267, 1
      %vm5284 = vcmp.eq.s32.totalorder %v5268, 1
      %vm5285 = vcmp.eq.s32.totalorder %v5269, 1
      %vm5286 = vcmp.eq.s32.totalorder %v5270, 1
      %v5287 = vsel %vm5271, %v5141, %v5223
      %v5288 = vsel %vm5271, %v5142, %v5224
      %v5289 = vsel %vm5272, %v5141, %v5225
      %v5290 = vsel %vm5272, %v5142, %v5226
      %v5291 = vsel %vm5273, %v5141, %v5227
      %v5292 = vsel %vm5273, %v5142, %v5228
      %v5293 = vsel %vm5274, %v5141, %v5229
      %v5294 = vsel %vm5274, %v5142, %v5230
      %v5295 = vsel %vm5275, %v5141, %v5231
      %v5296 = vsel %vm5275, %v5142, %v5232
      %v5297 = vsel %vm5276, %v5141, %v5233
      %v5298 = vsel %vm5276, %v5142, %v5234
      %v5299 = vsel %vm5277, %v5141, %v5235
      %v5300 = vsel %vm5277, %v5142, %v5236
      %v5301 = vsel %vm5278, %v5141, %v5237
      %v5302 = vsel %vm5278, %v5142, %v5238
      %v5303 = vsel %vm5279, %v5141, %v5239
      %v5304 = vsel %vm5279, %v5142, %v5240
      %v5305 = vsel %vm5280, %v5141, %v5241
      %v5306 = vsel %vm5280, %v5142, %v5242
      %v5307 = vsel %vm5281, %v5141, %v5243
      %v5308 = vsel %vm5281, %v5142, %v5244
      %v5309 = vsel %vm5282, %v5141, %v5245
      %v5310 = vsel %vm5282, %v5142, %v5246
      %v5311 = vsel %vm5283, %v5141, %v5247
      %v5312 = vsel %vm5283, %v5142, %v5248
      %v5313 = vsel %vm5284, %v5141, %v5249
      %v5314 = vsel %vm5284, %v5142, %v5250
      %v5315 = vsel %vm5285, %v5141, %v5251
      %v5316 = vsel %vm5285, %v5142, %v5252
      %v5317 = vsel %vm5286, %v5141, %v5253
      %v5318 = vsel %vm5286, %v5142, %v5254
      %5319 = vst [vmem:[#allocation7] sm:$0xff] %v5287
      %5320 = vst [vmem:[#allocation7 + $0x8] sm:$0xff] %v5288
      %5321 = vst [vmem:[#allocation7 + $0x10] sm:$0xff] %v5289
      %5322 = vst [vmem:[#allocation7 + $0x18] sm:$0xff] %v5290
      %5323 = vst [vmem:[#allocation7 + $0x20] sm:$0xff] %v5291
      %5324 = vst [vmem:[#allocation7 + $0x28] sm:$0xff] %v5292
      %5325 = vst [vmem:[#allocation7 + $0x30] sm:$0xff] %v5293
      %5326 = vst [vmem:[#allocation7 + $0x38] sm:$0xff] %v5294
      %5327 = vst [vmem:[#allocation7 + $0x40] sm:$0xff] %v5295
      %5328 = vst [vmem:[#allocation7 + $0x48] sm:$0xff] %v5296
      %5329 = vst [vmem:[#allocation7 + $0x50] sm:$0xff] %v5297
      %5330 = vst [vmem:[#allocation7 + $0x58] sm:$0xff] %v5298
      %5331 = vst [vmem:[#allocation7 + $0x60] sm:$0xff] %v5299
      %5332 = vst [vmem:[#allocation7 + $0x68] sm:$0xff] %v5300
      %5333 = vst [vmem:[#allocation7 + $0x70] sm:$0xff] %v5301
      %5334 = vst [vmem:[#allocation7 + $0x78] sm:$0xff] %v5302
      %5335 = vst [vmem:[#allocation7 + $0x80] sm:$0xff] %v5303
      %5336 = vst [vmem:[#allocation7 + $0x88] sm:$0xff] %v5304
      %5337 = vst [vmem:[#allocation7 + $0x90] sm:$0xff] %v5305
      %5338 = vst [vmem:[#allocation7 + $0x98] sm:$0xff] %v5306
      %5339 = vst [vmem:[#allocation7 + $0xa0] sm:$0xff] %v5307
      %5340 = vst [vmem:[#allocation7 + $0xa8] sm:$0xff] %v5308
      %5341 = vst [vmem:[#allocation7 + $0xb0] sm:$0xff] %v5309
      %5342 = vst [vmem:[#allocation7 + $0xb8] sm:$0xff] %v5310
      %5343 = vst [vmem:[#allocation7 + $0xc0] sm:$0xff] %v5311
      %5344 = vst [vmem:[#allocation7 + $0xc8] sm:$0xff] %v5312
      %5345 = vst [vmem:[#allocation7 + $0xd0] sm:$0xff] %v5313
      %5346 = vst [vmem:[#allocation7 + $0xd8] sm:$0xff] %v5314
      %5347 = vst [vmem:[#allocation7 + $0xe0] sm:$0xff] %v5315
      %5348 = vst [vmem:[#allocation7 + $0xe8] sm:$0xff] %v5316
      %5349 = vst [vmem:[#allocation7 + $0xf0] sm:$0xff] %v5317
      %5350 = vst [vmem:[#allocation7 + $0xf8] sm:$0xff] %v5318
      %v5351 = vld [vmem:[#allocation7] sm:$0xff]
      %v5352 = vld [vmem:[#allocation7 + $0x8] sm:$0xff]
      %v5353 = vld [vmem:[#allocation7 + $0x10] sm:$0xff]
      %v5354 = vld [vmem:[#allocation7 + $0x18] sm:$0xff]
      %v5355 = vld [vmem:[#allocation7 + $0x20] sm:$0xff]
      %v5356 = vld [vmem:[#allocation7 + $0x28] sm:$0xff]
      %v5357 = vld [vmem:[#allocation7 + $0x30] sm:$0xff]
      %v5358 = vld [vmem:[#allocation7 + $0x38] sm:$0xff]
      %v5359 = vld [vmem:[#allocation7 + $0x40] sm:$0xff]
      %v5360 = vld [vmem:[#allocation7 + $0x48] sm:$0xff]
      %v5361 = vld [vmem:[#allocation7 + $0x50] sm:$0xff]
      %v5362 = vld [vmem:[#allocation7 + $0x58] sm:$0xff]
      %v5363 = vld [vmem:[#allocation7 + $0x60] sm:$0xff]
      %v5364 = vld [vmem:[#allocation7 + $0x68] sm:$0xff]
      %v5365 = vld [vmem:[#allocation7 + $0x70] sm:$0xff]
      %v5366 = vld [vmem:[#allocation7 + $0x78] sm:$0xff]
      %v5367 = vld [vmem:[#allocation7 + $0x80] sm:$0xff]
      %v5368 = vld [vmem:[#allocation7 + $0x88] sm:$0xff]
      %v5369 = vld [vmem:[#allocation7 + $0x90] sm:$0xff]
      %v5370 = vld [vmem:[#allocation7 + $0x98] sm:$0xff]
      %v5371 = vld [vmem:[#allocation7 + $0xa0] sm:$0xff]
      %v5372 = vld [vmem:[#allocation7 + $0xa8] sm:$0xff]
      %v5373 = vld [vmem:[#allocation7 + $0xb0] sm:$0xff]
      %v5374 = vld [vmem:[#allocation7 + $0xb8] sm:$0xff]
      %v5375 = vld [vmem:[#allocation7 + $0xc0] sm:$0xff]
      %v5376 = vld [vmem:[#allocation7 + $0xc8] sm:$0xff]
      %v5377 = vld [vmem:[#allocation7 + $0xd0] sm:$0xff]
      %v5378 = vld [vmem:[#allocation7 + $0xd8] sm:$0xff]
      %v5379 = vld [vmem:[#allocation7 + $0xe0] sm:$0xff]
      %v5380 = vld [vmem:[#allocation7 + $0xe8] sm:$0xff]
      %v5381 = vld [vmem:[#allocation7 + $0xf0] sm:$0xff]
      %v5382 = vld [vmem:[#allocation7 + $0xf8] sm:$0xff]
      %v5383 = vmax.f32 %v5382, 1e-12
      %v5384 = vrcp.pop %v5383
      %v5385 = vmul.f32 %v5383, %v5384
      %v5386 = vsub.f32 1.0, %v5385
      %v5387 = vmul.f32 %v5384, %v5386
      %v5388 = vadd.f32 %v5384, %v5387
      %vm5389 = vweird.f32 %v5383
      %vm5390 = vweird.f32 %v5384
      %vm5391 = vmor %vm5389, %vm5390
      %v5392 = vsel %vm5391, %v5384, %v5388
      %v5393 = vand.u32 2147483647, %v5383
      %vm5394 = vcmp.eq.f32.partialorder %v5393, 8.507059e+37
      %v5395 = vand.u32 %v5383, 2147483648
      %v5396 = vor.u32 1.1754944e-38, %v5395
      %v5397 = vsel %vm5394, %v5396, %v5392
      %v5398 = vmul.f32 1.0, %v5397
      %vm5399 = vcmp.eq.s32.totalorder %v1131, 15
      %vm5400 = vcmp.eq.s32.totalorder %v1137, 15
      %vm5401 = vcmp.eq.s32.totalorder %v1140, 15
      %vm5402 = vcmp.eq.s32.totalorder %v1141, 15
      %vm5403 = vcmp.eq.s32.totalorder %v1142, 15
      %vm5404 = vcmp.eq.s32.totalorder %v1143, 15
      %vm5405 = vcmp.eq.s32.totalorder %v1144, 15
      %vm5406 = vcmp.eq.s32.totalorder %v1145, 15
      %vm5407 = vcmp.eq.s32.totalorder %v1146, 15
      %vm5408 = vcmp.eq.s32.totalorder %v1147, 15
      %vm5409 = vcmp.eq.s32.totalorder %v1148, 15
      %vm5410 = vcmp.eq.s32.totalorder %v1149, 15
      %vm5411 = vcmp.eq.s32.totalorder %v1150, 15
      %vm5412 = vcmp.eq.s32.totalorder %v1151, 15
      %vm5413 = vcmp.eq.s32.totalorder %v1152, 15
      %vm5414 = vcmp.eq.s32.totalorder %v1153, 15
      %vm5415 = vcmp.eq.s32.totalorder %v1154, 15
      %vm5416 = vcmp.eq.s32.totalorder %v1155, 15
      %v5417 = vperm.slane %v5398, 7
      %v5418 = vmul.f32 %v5381, %v5417
      %v5419 = vmul.f32 %v5382, %v5417
      %v5420 = vsel %vm5399, 1, 0
      %v5421 = vsel %vm5400, 1, 0
      %vm5422 = vcmp.eq.s32.totalorder %v5420, 1
      %vm5423 = vcmp.eq.s32.totalorder %v5421, 1
      %v5424 = vsel %vm5422, %v5417, %v5418
      %v5425 = vsel %vm5423, %v5417, %v5419
      %v5426 = vsel %vm5422, 0.0, %v5351
      %v5427 = vsel %vm5423, 0.0, %v5352
      %v5428 = vsel %vm5422, 0.0, %v5353
      %v5429 = vsel %vm5423, 0.0, %v5354
      %v5430 = vsel %vm5422, 0.0, %v5355
      %v5431 = vsel %vm5423, 0.0, %v5356
      %v5432 = vsel %vm5422, 0.0, %v5357
      %v5433 = vsel %vm5423, 0.0, %v5358
      %v5434 = vsel %vm5422, 0.0, %v5359
      %v5435 = vsel %vm5423, 0.0, %v5360
      %v5436 = vsel %vm5422, 0.0, %v5361
      %v5437 = vsel %vm5423, 0.0, %v5362
      %v5438 = vsel %vm5422, 0.0, %v5363
      %v5439 = vsel %vm5423, 0.0, %v5364
      %v5440 = vsel %vm5422, 0.0, %v5365
      %v5441 = vsel %vm5423, 0.0, %v5366
      %v5442 = vsel %vm5422, 0.0, %v5367
      %v5443 = vsel %vm5423, 0.0, %v5368
      %v5444 = vsel %vm5422, 0.0, %v5369
      %v5445 = vsel %vm5423, 0.0, %v5370
      %v5446 = vsel %vm5422, 0.0, %v5371
      %v5447 = vsel %vm5423, 0.0, %v5372
      %v5448 = vsel %vm5422, 0.0, %v5373
      %v5449 = vsel %vm5423, 0.0, %v5374
      %v5450 = vsel %vm5422, 0.0, %v5375
      %v5451 = vsel %vm5423, 0.0, %v5376
      %v5452 = vsel %vm5422, 0.0, %v5377
      %v5453 = vsel %vm5423, 0.0, %v5378
      %v5454 = vsel %vm5422, 0.0, %v5379
      %v5455 = vsel %vm5423, 0.0, %v5380
      %v5456 = vsel %vm5422, 0.0, %v5381
      %v5457 = vsel %vm5423, 0.0, %v5382
      %v5458 = vperm.slane %v5352, 7
      %v5459 = vperm.slane %v5354, 7
      %v5460 = vperm.slane %v5356, 7
      %v5461 = vperm.slane %v5358, 7
      %v5462 = vperm.slane %v5360, 7
      %v5463 = vperm.slane %v5362, 7
      %v5464 = vperm.slane %v5364, 7
      %v5465 = vperm.slane %v5366, 7
      %v5466 = vperm.slane %v5368, 7
      %v5467 = vperm.slane %v5370, 7
      %v5468 = vperm.slane %v5372, 7
      %v5469 = vperm.slane %v5374, 7
      %v5470 = vperm.slane %v5376, 7
      %v5471 = vperm.slane %v5378, 7
      %v5472 = vperm.slane %v5380, 7
      %v5473 = vperm.slane %v5382, 7
      %v5474 = vmul.f32 %v5458, %v5424
      %v5475 = vmul.f32 %v5458, %v5425
      %v5476 = vmul.f32 %v5459, %v5424
      %v5477 = vmul.f32 %v5459, %v5425
      %v5478 = vmul.f32 %v5460, %v5424
      %v5479 = vmul.f32 %v5460, %v5425
      %v5480 = vmul.f32 %v5461, %v5424
      %v5481 = vmul.f32 %v5461, %v5425
      %v5482 = vmul.f32 %v5462, %v5424
      %v5483 = vmul.f32 %v5462, %v5425
      %v5484 = vmul.f32 %v5463, %v5424
      %v5485 = vmul.f32 %v5463, %v5425
      %v5486 = vmul.f32 %v5464, %v5424
      %v5487 = vmul.f32 %v5464, %v5425
      %v5488 = vmul.f32 %v5465, %v5424
      %v5489 = vmul.f32 %v5465, %v5425
      %v5490 = vmul.f32 %v5466, %v5424
      %v5491 = vmul.f32 %v5466, %v5425
      %v5492 = vmul.f32 %v5467, %v5424
      %v5493 = vmul.f32 %v5467, %v5425
      %v5494 = vmul.f32 %v5468, %v5424
      %v5495 = vmul.f32 %v5468, %v5425
      %v5496 = vmul.f32 %v5469, %v5424
      %v5497 = vmul.f32 %v5469, %v5425
      %v5498 = vmul.f32 %v5470, %v5424
      %v5499 = vmul.f32 %v5470, %v5425
      %v5500 = vmul.f32 %v5471, %v5424
      %v5501 = vmul.f32 %v5471, %v5425
      %v5502 = vmul.f32 %v5472, %v5424
      %v5503 = vmul.f32 %v5472, %v5425
      %v5504 = vmul.f32 %v5473, %v5424
      %v5505 = vmul.f32 %v5473, %v5425
      %v5506 = vsub.f32 %v5426, %v5474
      %v5507 = vsub.f32 %v5427, %v5475
      %v5508 = vsub.f32 %v5428, %v5476
      %v5509 = vsub.f32 %v5429, %v5477
      %v5510 = vsub.f32 %v5430, %v5478
      %v5511 = vsub.f32 %v5431, %v5479
      %v5512 = vsub.f32 %v5432, %v5480
      %v5513 = vsub.f32 %v5433, %v5481
      %v5514 = vsub.f32 %v5434, %v5482
      %v5515 = vsub.f32 %v5435, %v5483
      %v5516 = vsub.f32 %v5436, %v5484
      %v5517 = vsub.f32 %v5437, %v5485
      %v5518 = vsub.f32 %v5438, %v5486
      %v5519 = vsub.f32 %v5439, %v5487
      %v5520 = vsub.f32 %v5440, %v5488
      %v5521 = vsub.f32 %v5441, %v5489
      %v5522 = vsub.f32 %v5442, %v5490
      %v5523 = vsub.f32 %v5443, %v5491
      %v5524 = vsub.f32 %v5444, %v5492
      %v5525 = vsub.f32 %v5445, %v5493
      %v5526 = vsub.f32 %v5446, %v5494
      %v5527 = vsub.f32 %v5447, %v5495
      %v5528 = vsub.f32 %v5448, %v5496
      %v5529 = vsub.f32 %v5449, %v5497
      %v5530 = vsub.f32 %v5450, %v5498
      %v5531 = vsub.f32 %v5451, %v5499
      %v5532 = vsub.f32 %v5452, %v5500
      %v5533 = vsub.f32 %v5453, %v5501
      %v5534 = vsub.f32 %v5454, %v5502
      %v5535 = vsub.f32 %v5455, %v5503
      %v5536 = vsub.f32 %v5456, %v5504
      %v5537 = vsub.f32 %v5457, %v5505
      %v5538 = vsel %vm5401, 1, 0
      %v5539 = vsel %vm5402, 1, 0
      %v5540 = vsel %vm5403, 1, 0
      %v5541 = vsel %vm5404, 1, 0
      %v5542 = vsel %vm5405, 1, 0
      %v5543 = vsel %vm5406, 1, 0
      %v5544 = vsel %vm5407, 1, 0
      %v5545 = vsel %vm5408, 1, 0
      %v5546 = vsel %vm5409, 1, 0
      %v5547 = vsel %vm5410, 1, 0
      %v5548 = vsel %vm5411, 1, 0
      %v5549 = vsel %vm5412, 1, 0
      %v5550 = vsel %vm5413, 1, 0
      %v5551 = vsel %vm5414, 1, 0
      %v5552 = vsel %vm5415, 1, 0
      %v5553 = vsel %vm5416, 1, 0
      %vm5554 = vcmp.eq.s32.totalorder %v5538, 1
      %vm5555 = vcmp.eq.s32.totalorder %v5539, 1
      %vm5556 = vcmp.eq.s32.totalorder %v5540, 1
      %vm5557 = vcmp.eq.s32.totalorder %v5541, 1
      %vm5558 = vcmp.eq.s32.totalorder %v5542, 1
      %vm5559 = vcmp.eq.s32.totalorder %v5543, 1
      %vm5560 = vcmp.eq.s32.totalorder %v5544, 1
      %vm5561 = vcmp.eq.s32.totalorder %v5545, 1
      %vm5562 = vcmp.eq.s32.totalorder %v5546, 1
      %vm5563 = vcmp.eq.s32.totalorder %v5547, 1
      %vm5564 = vcmp.eq.s32.totalorder %v5548, 1
      %vm5565 = vcmp.eq.s32.totalorder %v5549, 1
      %vm5566 = vcmp.eq.s32.totalorder %v5550, 1
      %vm5567 = vcmp.eq.s32.totalorder %v5551, 1
      %vm5568 = vcmp.eq.s32.totalorder %v5552, 1
      %vm5569 = vcmp.eq.s32.totalorder %v5553, 1
      %v5570 = vsel %vm5554, %v5424, %v5506
      %v5571 = vsel %vm5554, %v5425, %v5507
      %v5572 = vsel %vm5555, %v5424, %v5508
      %v5573 = vsel %vm5555, %v5425, %v5509
      %v5574 = vsel %vm5556, %v5424, %v5510
      %v5575 = vsel %vm5556, %v5425, %v5511
      %v5576 = vsel %vm5557, %v5424, %v5512
      %v5577 = vsel %vm5557, %v5425, %v5513
      %v5578 = vsel %vm5558, %v5424, %v5514
      %v5579 = vsel %vm5558, %v5425, %v5515
      %v5580 = vsel %vm5559, %v5424, %v5516
      %v5581 = vsel %vm5559, %v5425, %v5517
      %v5582 = vsel %vm5560, %v5424, %v5518
      %v5583 = vsel %vm5560, %v5425, %v5519
      %v5584 = vsel %vm5561, %v5424, %v5520
      %v5585 = vsel %vm5561, %v5425, %v5521
      %v5586 = vsel %vm5562, %v5424, %v5522
      %v5587 = vsel %vm5562, %v5425, %v5523
      %v5588 = vsel %vm5563, %v5424, %v5524
      %v5589 = vsel %vm5563, %v5425, %v5525
      %v5590 = vsel %vm5564, %v5424, %v5526
      %v5591 = vsel %vm5564, %v5425, %v5527
      %v5592 = vsel %vm5565, %v5424, %v5528
      %v5593 = vsel %vm5565, %v5425, %v5529
      %v5594 = vsel %vm5566, %v5424, %v5530
      %v5595 = vsel %vm5566, %v5425, %v5531
      %v5596 = vsel %vm5567, %v5424, %v5532
      %v5597 = vsel %vm5567, %v5425, %v5533
      %v5598 = vsel %vm5568, %v5424, %v5534
      %v5599 = vsel %vm5568, %v5425, %v5535
      %v5600 = vsel %vm5569, %v5424, %v5536
      %v5601 = vsel %vm5569, %v5425, %v5537
      %5602 = vst [vmem:[#allocation7] sm:$0xff] %v5570
      %5603 = vst [vmem:[#allocation7 + $0x8] sm:$0xff] %v5571
      %5604 = vst [vmem:[#allocation7 + $0x10] sm:$0xff] %v5572
      %5605 = vst [vmem:[#allocation7 + $0x18] sm:$0xff] %v5573
      %5606 = vst [vmem:[#allocation7 + $0x20] sm:$0xff] %v5574
      %5607 = vst [vmem:[#allocation7 + $0x28] sm:$0xff] %v5575
      %5608 = vst [vmem:[#allocation7 + $0x30] sm:$0xff] %v5576
      %5609 = vst [vmem:[#allocation7 + $0x38] sm:$0xff] %v5577
      %5610 = vst [vmem:[#allocation7 + $0x40] sm:$0xff] %v5578
      %5611 = vst [vmem:[#allocation7 + $0x48] sm:$0xff] %v5579
      %5612 = vst [vmem:[#allocation7 + $0x50] sm:$0xff] %v5580
      %5613 = vst [vmem:[#allocation7 + $0x58] sm:$0xff] %v5581
      %5614 = vst [vmem:[#allocation7 + $0x60] sm:$0xff] %v5582
      %5615 = vst [vmem:[#allocation7 + $0x68] sm:$0xff] %v5583
      %5616 = vst [vmem:[#allocation7 + $0x70] sm:$0xff] %v5584
      %5617 = vst [vmem:[#allocation7 + $0x78] sm:$0xff] %v5585
      %5618 = vst [vmem:[#allocation7 + $0x80] sm:$0xff] %v5586
      %5619 = vst [vmem:[#allocation7 + $0x88] sm:$0xff] %v5587
      %5620 = vst [vmem:[#allocation7 + $0x90] sm:$0xff] %v5588
      %5621 = vst [vmem:[#allocation7 + $0x98] sm:$0xff] %v5589
      %5622 = vst [vmem:[#allocation7 + $0xa0] sm:$0xff] %v5590
      %5623 = vst [vmem:[#allocation7 + $0xa8] sm:$0xff] %v5591
      %5624 = vst [vmem:[#allocation7 + $0xb0] sm:$0xff] %v5592
      %5625 = vst [vmem:[#allocation7 + $0xb8] sm:$0xff] %v5593
      %5626 = vst [vmem:[#allocation7 + $0xc0] sm:$0xff] %v5594
      %5627 = vst [vmem:[#allocation7 + $0xc8] sm:$0xff] %v5595
      %5628 = vst [vmem:[#allocation7 + $0xd0] sm:$0xff] %v5596
      %5629 = vst [vmem:[#allocation7 + $0xd8] sm:$0xff] %v5597
      %5630 = vst [vmem:[#allocation7 + $0xe0] sm:$0xff] %v5598
      %5631 = vst [vmem:[#allocation7 + $0xe8] sm:$0xff] %v5599
      %5632 = vst [vmem:[#allocation7 + $0xf0] sm:$0xff] %v5600
      %5633 = vst [vmem:[#allocation7 + $0xf8] sm:$0xff] %v5601
      %v5634 = vmul.f32 %v888, %v791
      %v5635 = vmul.f32 %v903, %v792
      %5636 = vmatpush.msra.mxu0 0.0
      %5637 = vmatpush.msra.mxu0 0.0
      %5638 = vmatpush.msra.mxu0 0.0
      %5639 = vmatpush.msra.mxu0 0.0
      %5640 = vmatpush.msra.mxu0 0.0
      %5641 = vmatpush.msra.mxu0 0.0
      %5642 = vmatpush.msra.mxu0 0.0
      %5643 = vmatpush.msra.mxu0 0.0
      %5644 = vmatpush.msra.mxu0 0.0
      %5645 = vmatpush.msra.mxu0 0.0
      %5646 = vmatpush.msra.mxu0 0.0
      %5647 = vmatpush.msra.mxu0 0.0
      %5648 = vmatpush.msra.mxu0 0.0
      %5649 = vmatpush.msra.mxu0 0.0
      %5650 = vmatpush.msra.mxu0 %v5635
      %5651 = vmatpush.msra.mxu0 %v5634
      %5652 = vmatmul.f32.gmra.mxu0 %v485
      %v5653 = vpop.f32.mrf.mxu0
      %v5654 = vadd.f32 0.0, %v5653
      %5655 = vmatmul.f32.gmra.mxu0 %v488
      %v5656 = vpop.f32.mrf.mxu0
      %v5657 = vadd.f32 0.0, %v5656
      %5658 = vmatmul.f32.gmra.mxu0 %v491
      %v5659 = vpop.f32.mrf.mxu0
      %v5660 = vadd.f32 0.0, %v5659
      %5661 = vmatmul.f32.gmra.mxu0 %v494
      %v5662 = vpop.f32.mrf.mxu0
      %v5663 = vadd.f32 0.0, %v5662
      %5664 = vdwg.mxu0
      %v5665 = vadd.f32 %v752, %v5654
      %v5666 = vadd.f32 %v753, %v5657
      %v5667 = vadd.f32 %v754, %v5660
      %v5668 = vadd.f32 %v755, %v5663
      %v5669 = vsub.f32 0.0, %v5665
      %v5670 = vsub.f32 0.0, %v5666
      %v5671 = vsub.f32 0.0, %v5667
      %v5672 = vsub.f32 0.0, %v5668
      %v5674 = vsel %vm553, %v36, 0
      %v5677 = vsel %vm553, %v37, 0
      %v5680 = vsel %vm553, %v38, 0
      %v5683 = vsel %vm553, %v39, 0
      %v5686 = vsel %vm553, %v40, 0
      %v5689 = vsel %vm553, %v41, 0
      %5691 = vmatpush.msra.mxu0 0.0
      %5692 = vmatpush.msra.mxu0 0.0
      %5693 = vmatpush.msra.mxu0 0.0
      %5694 = vmatpush.msra.mxu0 0.0
      %5695 = vmatpush.msra.mxu0 0.0
      %5696 = vmatpush.msra.mxu0 0.0
      %5697 = vmatpush.msra.mxu0 0.0
      %5698 = vmatpush.msra.mxu0 0.0
      %5699 = vmatpush.msra.mxu0 0.0
      %5700 = vmatpush.msra.mxu0 0.0
      %5701 = vmatpush.msra.mxu0 0.0
      %5702 = vmatpush.msra.mxu0 0.0
      %5703 = vmatpush.msra.mxu0 %v5672
      %5704 = vmatpush.msra.mxu0 %v5671
      %5705 = vmatpush.msra.mxu0 %v5670
      %5706 = vmatpush.msra.mxu0 %v5669
      %5707 = vmatmul.f32.gmra.mxu0 %v5674
      %v5708 = vpop.f32.mrf.mxu0
      %5709 = vmatmul.f32.gmra.mxu0 %v5677
      %v5710 = vpop.f32.mrf.mxu0
      %5711 = vmatmul.f32.gmra.mxu0 %v5680
      %v5712 = vpop.f32.mrf.mxu0
      %5713 = vmatmul.f32.gmra.mxu0 %v5683
      %v5714 = vpop.f32.mrf.mxu0
      %5715 = vmatmul.f32.gmra.mxu0 %v5686
      %v5716 = vpop.f32.mrf.mxu0
      %v5717 = vadd.f32 0.0, %v5716
      %5718 = vmatmul.f32.gmra.mxu0 %v5689
      %v5719 = vpop.f32.mrf.mxu0
      %v5720 = vadd.f32 0.0, %v5719
      %5721 = vdwg.mxu0
      %v5722 = vld [vmem:[#allocation7] sm:$0xff]
      %v5723 = vld [vmem:[#allocation7 + $0x8] sm:$0xff]
      %v5724 = vld [vmem:[#allocation7 + $0x10] sm:$0xff]
      %v5725 = vld [vmem:[#allocation7 + $0x18] sm:$0xff]
      %v5726 = vld [vmem:[#allocation7 + $0x20] sm:$0xff]
      %v5727 = vld [vmem:[#allocation7 + $0x28] sm:$0xff]
      %v5728 = vld [vmem:[#allocation7 + $0x30] sm:$0xff]
      %v5729 = vld [vmem:[#allocation7 + $0x38] sm:$0xff]
      %v5730 = vld [vmem:[#allocation7 + $0x40] sm:$0xff]
      %v5731 = vld [vmem:[#allocation7 + $0x48] sm:$0xff]
      %v5732 = vld [vmem:[#allocation7 + $0x50] sm:$0xff]
      %v5733 = vld [vmem:[#allocation7 + $0x58] sm:$0xff]
      %v5734 = vld [vmem:[#allocation7 + $0x60] sm:$0xff]
      %v5735 = vld [vmem:[#allocation7 + $0x68] sm:$0xff]
      %v5736 = vld [vmem:[#allocation7 + $0x70] sm:$0xff]
      %v5737 = vld [vmem:[#allocation7 + $0x78] sm:$0xff]
      %v5738 = vld [vmem:[#allocation7 + $0x80] sm:$0xff]
      %v5739 = vld [vmem:[#allocation7 + $0x88] sm:$0xff]
      %v5740 = vld [vmem:[#allocation7 + $0x90] sm:$0xff]
      %v5741 = vld [vmem:[#allocation7 + $0x98] sm:$0xff]
      %v5742 = vld [vmem:[#allocation7 + $0xa0] sm:$0xff]
      %v5743 = vld [vmem:[#allocation7 + $0xa8] sm:$0xff]
      %v5744 = vld [vmem:[#allocation7 + $0xb0] sm:$0xff]
      %v5745 = vld [vmem:[#allocation7 + $0xb8] sm:$0xff]
      %v5746 = vld [vmem:[#allocation7 + $0xc0] sm:$0xff]
      %v5747 = vld [vmem:[#allocation7 + $0xc8] sm:$0xff]
      %v5748 = vld [vmem:[#allocation7 + $0xd0] sm:$0xff]
      %v5749 = vld [vmem:[#allocation7 + $0xd8] sm:$0xff]
      %v5750 = vld [vmem:[#allocation7 + $0xe0] sm:$0xff]
      %v5751 = vld [vmem:[#allocation7 + $0xe8] sm:$0xff]
      %v5752 = vld [vmem:[#allocation7 + $0xf0] sm:$0xff]
      %v5753 = vld [vmem:[#allocation7 + $0xf8] sm:$0xff]
      %v5754 = vmul.f32 %v5722, %v5717
      %v5755 = vmul.f32 %v5723, %v5720
      %v5756 = vmul.f32 %v5724, %v5717
      %v5757 = vmul.f32 %v5725, %v5720
      %v5758 = vmul.f32 %v5726, %v5717
      %v5759 = vmul.f32 %v5727, %v5720
      %v5760 = vmul.f32 %v5728, %v5717
      %v5761 = vmul.f32 %v5729, %v5720
      %v5762 = vmul.f32 %v5730, %v5717
      %v5763 = vmul.f32 %v5731, %v5720
      %v5764 = vmul.f32 %v5732, %v5717
      %v5765 = vmul.f32 %v5733, %v5720
      %v5766 = vmul.f32 %v5734, %v5717
      %v5767 = vmul.f32 %v5735, %v5720
      %v5768 = vmul.f32 %v5736, %v5717
      %v5769 = vmul.f32 %v5737, %v5720
      %v5770 = vmul.f32 %v5738, %v5717
      %v5771 = vmul.f32 %v5739, %v5720
      %v5772 = vmul.f32 %v5740, %v5717
      %v5773 = vmul.f32 %v5741, %v5720
      %v5774 = vmul.f32 %v5742, %v5717
      %v5775 = vmul.f32 %v5743, %v5720
      %v5776 = vmul.f32 %v5744, %v5717
      %v5777 = vmul.f32 %v5745, %v5720
      %v5778 = vmul.f32 %v5746, %v5717
      %v5779 = vmul.f32 %v5747, %v5720
      %v5780 = vmul.f32 %v5748, %v5717
      %v5781 = vmul.f32 %v5749, %v5720
      %v5782 = vmul.f32 %v5750, %v5717
      %v5783 = vmul.f32 %v5751, %v5720
      %v5784 = vmul.f32 %v5752, %v5717
      %v5785 = vmul.f32 %v5753, %v5720
      %v5786 = vadd.f32 %v5754, %v5755
      %v5787 = vrot.slane %v5786, 4
      %v5788 = vadd.f32 %v5786, %v5787
      %v5789 = vrot.slane %v5788, 2
      %v5790 = vadd.f32 %v5788, %v5789
      %v5791 = vrot.slane %v5790, 1
      %v5792 = vadd.f32 %v5790, %v5791
      %v5793 = vadd.f32 %v5756, %v5757
      %v5794 = vrot.slane %v5793, 4
      %v5795 = vadd.f32 %v5793, %v5794
      %v5796 = vrot.slane %v5795, 2
      %v5797 = vadd.f32 %v5795, %v5796
      %v5798 = vrot.slane %v5797, 1
      %v5799 = vadd.f32 %v5797, %v5798
      %v5800 = vadd.f32 %v5758, %v5759
      %v5801 = vrot.slane %v5800, 4
      %v5802 = vadd.f32 %v5800, %v5801
      %v5803 = vrot.slane %v5802, 2
      %v5804 = vadd.f32 %v5802, %v5803
      %v5805 = vrot.slane %v5804, 1
      %v5806 = vadd.f32 %v5804, %v5805
      %v5807 = vadd.f32 %v5760, %v5761
      %v5808 = vrot.slane %v5807, 4
      %v5809 = vadd.f32 %v5807, %v5808
      %v5810 = vrot.slane %v5809, 2
      %v5811 = vadd.f32 %v5809, %v5810
      %v5812 = vrot.slane %v5811, 1
      %v5813 = vadd.f32 %v5811, %v5812
      %v5814 = vadd.f32 %v5762, %v5763
      %v5815 = vrot.slane %v5814, 4
      %v5816 = vadd.f32 %v5814, %v5815
      %v5817 = vrot.slane %v5816, 2
      %v5818 = vadd.f32 %v5816, %v5817
      %v5819 = vrot.slane %v5818, 1
      %v5820 = vadd.f32 %v5818, %v5819
      %v5821 = vadd.f32 %v5764, %v5765
      %v5822 = vrot.slane %v5821, 4
      %v5823 = vadd.f32 %v5821, %v5822
      %v5824 = vrot.slane %v5823, 2
      %v5825 = vadd.f32 %v5823, %v5824
      %v5826 = vrot.slane %v5825, 1
      %v5827 = vadd.f32 %v5825, %v5826
      %v5828 = vadd.f32 %v5766, %v5767
      %v5829 = vrot.slane %v5828, 4
      %v5830 = vadd.f32 %v5828, %v5829
      %v5831 = vrot.slane %v5830, 2
      %v5832 = vadd.f32 %v5830, %v5831
      %v5833 = vrot.slane %v5832, 1
      %v5834 = vadd.f32 %v5832, %v5833
      %v5835 = vadd.f32 %v5768, %v5769
      %v5836 = vrot.slane %v5835, 4
      %v5837 = vadd.f32 %v5835, %v5836
      %v5838 = vrot.slane %v5837, 2
      %v5839 = vadd.f32 %v5837, %v5838
      %v5840 = vrot.slane %v5839, 1
      %v5841 = vadd.f32 %v5839, %v5840
      %v5842 = vadd.f32 %v5770, %v5771
      %v5843 = vrot.slane %v5842, 4
      %v5844 = vadd.f32 %v5842, %v5843
      %v5845 = vrot.slane %v5844, 2
      %v5846 = vadd.f32 %v5844, %v5845
      %v5847 = vrot.slane %v5846, 1
      %v5848 = vadd.f32 %v5846, %v5847
      %v5849 = vadd.f32 %v5772, %v5773
      %v5850 = vrot.slane %v5849, 4
      %v5851 = vadd.f32 %v5849, %v5850
      %v5852 = vrot.slane %v5851, 2
      %v5853 = vadd.f32 %v5851, %v5852
      %v5854 = vrot.slane %v5853, 1
      %v5855 = vadd.f32 %v5853, %v5854
      %v5856 = vadd.f32 %v5774, %v5775
      %v5857 = vrot.slane %v5856, 4
      %v5858 = vadd.f32 %v5856, %v5857
      %v5859 = vrot.slane %v5858, 2
      %v5860 = vadd.f32 %v5858, %v5859
      %v5861 = vrot.slane %v5860, 1
      %v5862 = vadd.f32 %v5860, %v5861
      %v5863 = vadd.f32 %v5776, %v5777
      %v5864 = vrot.slane %v5863, 4
      %v5865 = vadd.f32 %v5863, %v5864
      %v5866 = vrot.slane %v5865, 2
      %v5867 = vadd.f32 %v5865, %v5866
      %v5868 = vrot.slane %v5867, 1
      %v5869 = vadd.f32 %v5867, %v5868
      %v5870 = vadd.f32 %v5778, %v5779
      %v5871 = vrot.slane %v5870, 4
      %v5872 = vadd.f32 %v5870, %v5871
      %v5873 = vrot.slane %v5872, 2
      %v5874 = vadd.f32 %v5872, %v5873
      %v5875 = vrot.slane %v5874, 1
      %v5876 = vadd.f32 %v5874, %v5875
      %v5877 = vadd.f32 %v5780, %v5781
      %v5878 = vrot.slane %v5877, 4
      %v5879 = vadd.f32 %v5877, %v5878
      %v5880 = vrot.slane %v5879, 2
      %v5881 = vadd.f32 %v5879, %v5880
      %v5882 = vrot.slane %v5881, 1
      %v5883 = vadd.f32 %v5881, %v5882
      %v5884 = vadd.f32 %v5782, %v5783
      %v5885 = vrot.slane %v5884, 4
      %v5886 = vadd.f32 %v5884, %v5885
      %v5887 = vrot.slane %v5886, 2
      %v5888 = vadd.f32 %v5886, %v5887
      %v5889 = vrot.slane %v5888, 1
      %v5890 = vadd.f32 %v5888, %v5889
      %v5891 = vadd.f32 %v5784, %v5785
      %v5892 = vrot.slane %v5891, 4
      %v5893 = vadd.f32 %v5891, %v5892
      %v5894 = vrot.slane %v5893, 2
      %v5895 = vadd.f32 %v5893, %v5894
      %v5896 = vrot.slane %v5895, 1
      %v5897 = vadd.f32 %v5895, %v5896
      %vm5914 = vcmask 1041409
      %v5915 = vsel %vm5914, %v5799, %v5792
      %vm5916 = vcmask 1042434
      %v5917 = vsel %vm5916, %v5806, %v5915
      %vm5918 = vcmask 1043459
      %v5919 = vsel %vm5918, %v5813, %v5917
      %vm5920 = vcmask 1044484
      %v5921 = vsel %vm5920, %v5820, %v5919
      %vm5922 = vcmask 1045509
      %v5923 = vsel %vm5922, %v5827, %v5921
      %vm5924 = vcmask 1046534
      %v5925 = vsel %vm5924, %v5834, %v5923
      %vm5926 = vcmask 1047559
      %v5927 = vsel %vm5926, %v5841, %v5925
      %v5928 = vsel %vm5914, %v5855, %v5848
      %v5929 = vsel %vm5916, %v5862, %v5928
      %v5930 = vsel %vm5918, %v5869, %v5929
      %v5931 = vsel %vm5920, %v5876, %v5930
      %v5932 = vsel %vm5922, %v5883, %v5931
      %v5933 = vsel %vm5924, %v5890, %v5932
      %v5934 = vsel %vm5926, %v5897, %v5933
      %v5938 = vsel %vm483, %v50, 0
      %v5941 = vsel %vm483, %v51, 0
      %5943 = vmatpush.msra.mxu0 0.0
      %5944 = vmatpush.msra.mxu0 0.0
      %5945 = vmatpush.msra.mxu0 0.0
      %5946 = vmatpush.msra.mxu0 0.0
      %5947 = vmatpush.msra.mxu0 0.0
      %5948 = vmatpush.msra.mxu0 0.0
      %5949 = vmatpush.msra.mxu0 0.0
      %5950 = vmatpush.msra.mxu0 0.0
      %5951 = vmatpush.msra.mxu0 0.0
      %5952 = vmatpush.msra.mxu0 0.0
      %5953 = vmatpush.msra.mxu0 0.0
      %5954 = vmatpush.msra.mxu0 0.0
      %5955 = vmatpush.msra.mxu0 0.0
      %5956 = vmatpush.msra.mxu0 0.0
      %5957 = vmatpush.msra.mxu0 %v5934
      %5958 = vmatpush.msra.mxu0 %v5927
      %5959 = vmatmul.f32.gmra.mxu0 %v5938
      %v5960 = vpop.f32.mrf.mxu0
      %v5961 = vadd.f32 0.0, %v5960
      %5962 = vmatmul.f32.gmra.mxu0 %v5941
      %v5963 = vpop.f32.mrf.mxu0
      %v5964 = vadd.f32 0.0, %v5963
      %5965 = vdwg.mxu0
      %v5966 = vsub.f32 %v5717, %v5961
      %v5967 = vsub.f32 %v5720, %v5964
      %v5968 = vsub.f32 0.0, %v791
      %v5969 = vsub.f32 0.0, %v792
      %v5970 = vsub.f32 %v5968, %v5966
      %v5971 = vsub.f32 %v5969, %v5967
      %v5972 = vsub.f32 0.0, %v715
      %v5973 = vsub.f32 0.0, %v716
      %v5974 = vmul.f32 %v888, %v5970
      %v5975 = vmul.f32 %v903, %v5971
      %v5976 = vsub.f32 %v5972, %v5974
      %v5977 = vsub.f32 %v5973, %v5975
      %vm5978 = vcmp.lt.f32.partialorder %v5970, 0.0
      %vm5979 = vcmp.lt.f32.partialorder %v5971, 0.0
      %v5980 = vsel %vm5978, %v5970, -1.0
      %v5981 = vsel %vm5979, %v5971, -1.0
      %v5982 = vsub.f32 0.0, %v713
      %v5983 = vsub.f32 0.0, %v714
      %v5984 = vrcp.pop %v5980
      %v5985 = vmul.f32 %v5980, %v5984
      %v5986 = vsub.f32 1.0, %v5985
      %v5987 = vmul.f32 %v5984, %v5986
      %v5988 = vadd.f32 %v5984, %v5987
      %vm5989 = vweird.f32 %v5980
      %vm5990 = vweird.f32 %v5984
      %vm5991 = vmor %vm5989, %vm5990
      %v5992 = vsel %vm5991, %v5984, %v5988
      %v5993 = vand.u32 2147483647, %v5980
      %vm5994 = vcmp.eq.f32.partialorder %v5993, 8.507059e+37
      %v5995 = vand.u32 %v5980, 2147483648
      %v5996 = vor.u32 1.1754944e-38, %v5995
      %v5997 = vsel %vm5994, %v5996, %v5992
      %v5998 = vmul.f32 %v5982, %v5997
      %v5999 = vrcp.pop %v5981
      %v6000 = vmul.f32 %v5981, %v5999
      %v6001 = vsub.f32 1.0, %v6000
      %v6002 = vmul.f32 %v5999, %v6001
      %v6003 = vadd.f32 %v5999, %v6002
      %vm6004 = vweird.f32 %v5981
      %vm6005 = vweird.f32 %v5999
      %vm6006 = vmor %vm6004, %vm6005
      %v6007 = vsel %vm6006, %v5999, %v6003
      %v6008 = vand.u32 2147483647, %v5981
      %vm6009 = vcmp.eq.f32.partialorder %v6008, 8.507059e+37
      %v6010 = vand.u32 %v5981, 2147483648
      %v6011 = vor.u32 1.1754944e-38, %v6010
      %v6012 = vsel %vm6009, %v6011, %v6007
      %v6013 = vmul.f32 %v5983, %v6012
      %v6014 = vsel %vm5978, %v5998, 1e+30
      %v6015 = vsel %vm5979, %v6013, 1e+30
      %v6016 = vmin.f32 %v6014, %v6015
      %v6017 = vrot.slane %v6016, 4
      %v6018 = vmin.f32 %v6016, %v6017
      %v6019 = vrot.slane %v6018, 2
      %v6020 = vmin.f32 %v6018, %v6019
      %v6021 = vrot.slane %v6020, 1
      %v6022 = vmin.f32 %v6020, %v6021
      %vm6023 = vcmp.lt.f32.partialorder %v5976, 0.0
      %vm6024 = vcmp.lt.f32.partialorder %v5977, 0.0
      %v6025 = vsel %vm6023, %v5976, -1.0
      %v6026 = vsel %vm6024, %v5977, -1.0
      %v6027 = vrcp.pop %v6025
      %v6028 = vmul.f32 %v6025, %v6027
      %v6029 = vsub.f32 1.0, %v6028
      %v6030 = vmul.f32 %v6027, %v6029
      %v6031 = vadd.f32 %v6027, %v6030
      %vm6032 = vweird.f32 %v6025
      %vm6033 = vweird.f32 %v6027
      %vm6034 = vmor %vm6032, %vm6033
      %v6035 = vsel %vm6034, %v6027, %v6031
      %v6036 = vand.u32 2147483647, %v6025
      %vm6037 = vcmp.eq.f32.partialorder %v6036, 8.507059e+37
      %v6038 = vand.u32 %v6025, 2147483648
      %v6039 = vor.u32 1.1754944e-38, %v6038
      %v6040 = vsel %vm6037, %v6039, %v6035
      %v6041 = vmul.f32 %v5972, %v6040
      %v6042 = vrcp.pop %v6026
      %v6043 = vmul.f32 %v6026, %v6042
      %v6044 = vsub.f32 1.0, %v6043
      %v6045 = vmul.f32 %v6042, %v6044
      %v6046 = vadd.f32 %v6042, %v6045
      %vm6047 = vweird.f32 %v6026
      %vm6048 = vweird.f32 %v6042
      %vm6049 = vmor %vm6047, %vm6048
      %v6050 = vsel %vm6049, %v6042, %v6046
      %v6051 = vand.u32 2147483647, %v6026
      %vm6052 = vcmp.eq.f32.partialorder %v6051, 8.507059e+37
      %v6053 = vand.u32 %v6026, 2147483648
      %v6054 = vor.u32 1.1754944e-38, %v6053
      %v6055 = vsel %vm6052, %v6054, %v6050
      %v6056 = vmul.f32 %v5973, %v6055
      %v6057 = vsel %vm6023, %v6041, 1e+30
      %v6058 = vsel %vm6024, %v6056, 1e+30
      %v6059 = vmin.f32 %v6057, %v6058
      %v6060 = vrot.slane %v6059, 4
      %v6061 = vmin.f32 %v6059, %v6060
      %v6062 = vrot.slane %v6061, 2
      %v6063 = vmin.f32 %v6061, %v6062
      %v6064 = vrot.slane %v6063, 1
      %v6065 = vmin.f32 %v6063, %v6064
      %v6066 = vmin.f32 %v6022, %v6065
      %v6067 = vmin.f32 %v6066, 1.0
      %v6068 = vmul.f32 %v6067, %v5970
      %v6069 = vmul.f32 %v6067, %v5971
      %v6070 = vadd.f32 %v713, %v6068
      %v6071 = vadd.f32 %v714, %v6069
      %v6072 = vmul.f32 %v6067, %v5976
      %v6073 = vmul.f32 %v6067, %v5977
      %v6074 = vadd.f32 %v715, %v6072
      %v6075 = vadd.f32 %v716, %v6073
      %v6076 = vmul.f32 %v6070, %v6074
      %v6077 = vmul.f32 %v6071, %v6075
      %v6078 = vadd.f32 %v6076, %v6077
      %v6079 = vrot.slane %v6078, 4
      %v6080 = vadd.f32 %v6078, %v6079
      %v6081 = vrot.slane %v6080, 2
      %v6082 = vadd.f32 %v6080, %v6081
      %v6083 = vrot.slane %v6082, 1
      %v6084 = vadd.f32 %v6082, %v6083
      %v6085 = vmax.f32 %v801, 1e-12
      %v6086 = vrcp.pop %v6085
      %v6087 = vmul.f32 %v6085, %v6086
      %v6088 = vsub.f32 1.0, %v6087
      %v6089 = vmul.f32 %v6086, %v6088
      %v6090 = vadd.f32 %v6086, %v6089
      %vm6091 = vweird.f32 %v6085
      %vm6092 = vweird.f32 %v6086
      %vm6093 = vmor %vm6091, %vm6092
      %v6094 = vsel %vm6093, %v6086, %v6090
      %v6095 = vand.u32 2147483647, %v6085
      %vm6096 = vcmp.eq.f32.partialorder %v6095, 8.507059e+37
      %v6097 = vand.u32 %v6085, 2147483648
      %v6098 = vor.u32 1.1754944e-38, %v6097
      %v6099 = vsel %vm6096, %v6098, %v6094
      %v6100 = vmul.f32 %v6084, %v6099
      %v6101 = vmul.f32 %v6100, %v6100
      %v6102 = vmul.f32 %v6100, %v6101
      %v6103 = vmul.f32 %v5982, %v715
      %v6104 = vmul.f32 %v5983, %v716
      %v6105 = vmul.f32 %v5970, %v5976
      %v6106 = vmul.f32 %v5971, %v5977
      %v6107 = vsub.f32 %v6103, %v6105
      %v6108 = vsub.f32 %v6104, %v6106
      %v6109 = vmul.f32 %v6102, %v802
      %v6110 = vadd.f32 %v6107, %v6109
      %v6111 = vadd.f32 %v6108, %v6109
      %v6112 = vsub.f32 0.0, %v785
      %v6113 = vsub.f32 0.0, %v786
      %v6114 = vsub.f32 0.0, %v787
      %v6115 = vsub.f32 0.0, %v788
      %v6116 = vmul.f32 %v715, %v791
      %v6117 = vmul.f32 %v716, %v792
      %v6118 = vadd.f32 %v6110, %v6116
      %v6119 = vadd.f32 %v6111, %v6117
      %v6120 = vmul.f32 %v6118, %v887
      %v6121 = vmul.f32 %v6119, %v902
      %6122 = vmatpush.msra.mxu0 0.0
      %6123 = vmatpush.msra.mxu0 0.0
      %6124 = vmatpush.msra.mxu0 0.0
      %6125 = vmatpush.msra.mxu0 0.0
      %6126 = vmatpush.msra.mxu0 0.0
      %6127 = vmatpush.msra.mxu0 0.0
      %6128 = vmatpush.msra.mxu0 0.0
      %6129 = vmatpush.msra.mxu0 0.0
      %6130 = vmatpush.msra.mxu0 0.0
      %6131 = vmatpush.msra.mxu0 0.0
      %6132 = vmatpush.msra.mxu0 0.0
      %6133 = vmatpush.msra.mxu0 0.0
      %6134 = vmatpush.msra.mxu0 0.0
      %6135 = vmatpush.msra.mxu0 0.0
      %6136 = vmatpush.msra.mxu0 %v6121
      %6137 = vmatpush.msra.mxu0 %v6120
      %6138 = vmatmul.f32.gmra.mxu0 %v485
      %v6139 = vpop.f32.mrf.mxu0
      %v6140 = vadd.f32 0.0, %v6139
      %6141 = vmatmul.f32.gmra.mxu0 %v488
      %v6142 = vpop.f32.mrf.mxu0
      %v6143 = vadd.f32 0.0, %v6142
      %6144 = vmatmul.f32.gmra.mxu0 %v491
      %v6145 = vpop.f32.mrf.mxu0
      %v6146 = vadd.f32 0.0, %v6145
      %6147 = vmatmul.f32.gmra.mxu0 %v494
      %v6148 = vpop.f32.mrf.mxu0
      %v6149 = vadd.f32 0.0, %v6148
      %6150 = vdwg.mxu0
      %v6151 = vsub.f32 %v6112, %v6140
      %v6152 = vsub.f32 %v6113, %v6143
      %v6153 = vsub.f32 %v6114, %v6146
      %v6154 = vsub.f32 %v6115, %v6149
      %6155 = vmatpush.msra.mxu0 0.0
      %6156 = vmatpush.msra.mxu0 0.0
      %6157 = vmatpush.msra.mxu0 0.0
      %6158 = vmatpush.msra.mxu0 0.0
      %6159 = vmatpush.msra.mxu0 0.0
      %6160 = vmatpush.msra.mxu0 0.0
      %6161 = vmatpush.msra.mxu0 0.0
      %6162 = vmatpush.msra.mxu0 0.0
      %6163 = vmatpush.msra.mxu0 0.0
      %6164 = vmatpush.msra.mxu0 0.0
      %6165 = vmatpush.msra.mxu0 0.0
      %6166 = vmatpush.msra.mxu0 0.0
      %6167 = vmatpush.msra.mxu0 %v6154
      %6168 = vmatpush.msra.mxu0 %v6153
      %6169 = vmatpush.msra.mxu0 %v6152
      %6170 = vmatpush.msra.mxu0 %v6151
      %6171 = vmatmul.f32.gmra.mxu0 %v5674
      %v6172 = vpop.f32.mrf.mxu0
      %v6173 = vadd.f32 0.0, %v6172
      %6174 = vmatmul.f32.gmra.mxu0 %v5677
      %v6175 = vpop.f32.mrf.mxu0
      %v6176 = vadd.f32 0.0, %v6175
      %6177 = vmatmul.f32.gmra.mxu0 %v5680
      %v6178 = vpop.f32.mrf.mxu0
      %v6179 = vadd.f32 0.0, %v6178
      %6180 = vmatmul.f32.gmra.mxu0 %v5683
      %v6181 = vpop.f32.mrf.mxu0
      %v6182 = vadd.f32 0.0, %v6181
      %6183 = vmatmul.f32.gmra.mxu0 %v5686
      %v6184 = vpop.f32.mrf.mxu0
      %v6185 = vadd.f32 0.0, %v6184
      %6186 = vmatmul.f32.gmra.mxu0 %v5689
      %v6187 = vpop.f32.mrf.mxu0
      %v6188 = vadd.f32 0.0, %v6187
      %6189 = vdwg.mxu0
      %v6190 = vmul.f32 %v5722, %v6185
      %v6191 = vmul.f32 %v5723, %v6188
      %v6192 = vmul.f32 %v5724, %v6185
      %v6193 = vmul.f32 %v5725, %v6188
      %v6194 = vmul.f32 %v5726, %v6185
      %v6195 = vmul.f32 %v5727, %v6188
      %v6196 = vmul.f32 %v5728, %v6185
      %v6197 = vmul.f32 %v5729, %v6188
      %v6198 = vmul.f32 %v5730, %v6185
      %v6199 = vmul.f32 %v5731, %v6188
      %v6200 = vmul.f32 %v5732, %v6185
      %v6201 = vmul.f32 %v5733, %v6188
      %v6202 = vmul.f32 %v5734, %v6185
      %v6203 = vmul.f32 %v5735, %v6188
      %v6204 = vmul.f32 %v5736, %v6185
      %v6205 = vmul.f32 %v5737, %v6188
      %v6206 = vmul.f32 %v5738, %v6185
      %v6207 = vmul.f32 %v5739, %v6188
      %v6208 = vmul.f32 %v5740, %v6185
      %v6209 = vmul.f32 %v5741, %v6188
      %v6210 = vmul.f32 %v5742, %v6185
      %v6211 = vmul.f32 %v5743, %v6188
      %v6212 = vmul.f32 %v5744, %v6185
      %v6213 = vmul.f32 %v5745, %v6188
      %v6214 = vmul.f32 %v5746, %v6185
      %v6215 = vmul.f32 %v5747, %v6188
      %v6216 = vmul.f32 %v5748, %v6185
      %v6217 = vmul.f32 %v5749, %v6188
      %v6218 = vmul.f32 %v5750, %v6185
      %v6219 = vmul.f32 %v5751, %v6188
      %v6220 = vmul.f32 %v5752, %v6185
      %v6221 = vmul.f32 %v5753, %v6188
      %v6222 = vadd.f32 %v6190, %v6191
      %v6223 = vrot.slane %v6222, 4
      %v6224 = vadd.f32 %v6222, %v6223
      %v6225 = vrot.slane %v6224, 2
      %v6226 = vadd.f32 %v6224, %v6225
      %v6227 = vrot.slane %v6226, 1
      %v6228 = vadd.f32 %v6226, %v6227
      %v6229 = vadd.f32 %v6192, %v6193
      %v6230 = vrot.slane %v6229, 4
      %v6231 = vadd.f32 %v6229, %v6230
      %v6232 = vrot.slane %v6231, 2
      %v6233 = vadd.f32 %v6231, %v6232
      %v6234 = vrot.slane %v6233, 1
      %v6235 = vadd.f32 %v6233, %v6234
      %v6236 = vadd.f32 %v6194, %v6195
      %v6237 = vrot.slane %v6236, 4
      %v6238 = vadd.f32 %v6236, %v6237
      %v6239 = vrot.slane %v6238, 2
      %v6240 = vadd.f32 %v6238, %v6239
      %v6241 = vrot.slane %v6240, 1
      %v6242 = vadd.f32 %v6240, %v6241
      %v6243 = vadd.f32 %v6196, %v6197
      %v6244 = vrot.slane %v6243, 4
      %v6245 = vadd.f32 %v6243, %v6244
      %v6246 = vrot.slane %v6245, 2
      %v6247 = vadd.f32 %v6245, %v6246
      %v6248 = vrot.slane %v6247, 1
      %v6249 = vadd.f32 %v6247, %v6248
      %v6250 = vadd.f32 %v6198, %v6199
      %v6251 = vrot.slane %v6250, 4
      %v6252 = vadd.f32 %v6250, %v6251
      %v6253 = vrot.slane %v6252, 2
      %v6254 = vadd.f32 %v6252, %v6253
      %v6255 = vrot.slane %v6254, 1
      %v6256 = vadd.f32 %v6254, %v6255
      %v6257 = vadd.f32 %v6200, %v6201
      %v6258 = vrot.slane %v6257, 4
      %v6259 = vadd.f32 %v6257, %v6258
      %v6260 = vrot.slane %v6259, 2
      %v6261 = vadd.f32 %v6259, %v6260
      %v6262 = vrot.slane %v6261, 1
      %v6263 = vadd.f32 %v6261, %v6262
      %v6264 = vadd.f32 %v6202, %v6203
      %v6265 = vrot.slane %v6264, 4
      %v6266 = vadd.f32 %v6264, %v6265
      %v6267 = vrot.slane %v6266, 2
      %v6268 = vadd.f32 %v6266, %v6267
      %v6269 = vrot.slane %v6268, 1
      %v6270 = vadd.f32 %v6268, %v6269
      %v6271 = vadd.f32 %v6204, %v6205
      %v6272 = vrot.slane %v6271, 4
      %v6273 = vadd.f32 %v6271, %v6272
      %v6274 = vrot.slane %v6273, 2
      %v6275 = vadd.f32 %v6273, %v6274
      %v6276 = vrot.slane %v6275, 1
      %v6277 = vadd.f32 %v6275, %v6276
      %v6278 = vadd.f32 %v6206, %v6207
      %v6279 = vrot.slane %v6278, 4
      %v6280 = vadd.f32 %v6278, %v6279
      %v6281 = vrot.slane %v6280, 2
      %v6282 = vadd.f32 %v6280, %v6281
      %v6283 = vrot.slane %v6282, 1
      %v6284 = vadd.f32 %v6282, %v6283
      %v6285 = vadd.f32 %v6208, %v6209
      %v6286 = vrot.slane %v6285, 4
      %v6287 = vadd.f32 %v6285, %v6286
      %v6288 = vrot.slane %v6287, 2
      %v6289 = vadd.f32 %v6287, %v6288
      %v6290 = vrot.slane %v6289, 1
      %v6291 = vadd.f32 %v6289, %v6290
      %v6292 = vadd.f32 %v6210, %v6211
      %v6293 = vrot.slane %v6292, 4
      %v6294 = vadd.f32 %v6292, %v6293
      %v6295 = vrot.slane %v6294, 2
      %v6296 = vadd.f32 %v6294, %v6295
      %v6297 = vrot.slane %v6296, 1
      %v6298 = vadd.f32 %v6296, %v6297
      %v6299 = vadd.f32 %v6212, %v6213
      %v6300 = vrot.slane %v6299, 4
      %v6301 = vadd.f32 %v6299, %v6300
      %v6302 = vrot.slane %v6301, 2
      %v6303 = vadd.f32 %v6301, %v6302
      %v6304 = vrot.slane %v6303, 1
      %v6305 = vadd.f32 %v6303, %v6304
      %v6306 = vadd.f32 %v6214, %v6215
      %v6307 = vrot.slane %v6306, 4
      %v6308 = vadd.f32 %v6306, %v6307
      %v6309 = vrot.slane %v6308, 2
      %v6310 = vadd.f32 %v6308, %v6309
      %v6311 = vrot.slane %v6310, 1
      %v6312 = vadd.f32 %v6310, %v6311
      %v6313 = vadd.f32 %v6216, %v6217
      %v6314 = vrot.slane %v6313, 4
      %v6315 = vadd.f32 %v6313, %v6314
      %v6316 = vrot.slane %v6315, 2
      %v6317 = vadd.f32 %v6315, %v6316
      %v6318 = vrot.slane %v6317, 1
      %v6319 = vadd.f32 %v6317, %v6318
      %v6320 = vadd.f32 %v6218, %v6219
      %v6321 = vrot.slane %v6320, 4
      %v6322 = vadd.f32 %v6320, %v6321
      %v6323 = vrot.slane %v6322, 2
      %v6324 = vadd.f32 %v6322, %v6323
      %v6325 = vrot.slane %v6324, 1
      %v6326 = vadd.f32 %v6324, %v6325
      %v6327 = vadd.f32 %v6220, %v6221
      %v6328 = vrot.slane %v6327, 4
      %v6329 = vadd.f32 %v6327, %v6328
      %v6330 = vrot.slane %v6329, 2
      %v6331 = vadd.f32 %v6329, %v6330
      %v6332 = vrot.slane %v6331, 1
      %v6333 = vadd.f32 %v6331, %v6332
      %v6350 = vsel %vm5914, %v6235, %v6228
      %v6351 = vsel %vm5916, %v6242, %v6350
      %v6352 = vsel %vm5918, %v6249, %v6351
      %v6353 = vsel %vm5920, %v6256, %v6352
      %v6354 = vsel %vm5922, %v6263, %v6353
      %v6355 = vsel %vm5924, %v6270, %v6354
      %v6356 = vsel %vm5926, %v6277, %v6355
      %v6357 = vsel %vm5914, %v6291, %v6284
      %v6358 = vsel %vm5916, %v6298, %v6357
      %v6359 = vsel %vm5918, %v6305, %v6358
      %v6360 = vsel %vm5920, %v6312, %v6359
      %v6361 = vsel %vm5922, %v6319, %v6360
      %v6362 = vsel %vm5924, %v6326, %v6361
      %v6363 = vsel %vm5926, %v6333, %v6362
      %v6367 = vsel %vm483, %v46, 0
      %v6370 = vsel %vm483, %v47, 0
      %v6373 = vsel %vm483, %v48, 0
      %v6376 = vsel %vm483, %v49, 0
      %6378 = vmatpush.msra.mxu0 0.0
      %6379 = vmatpush.msra.mxu0 0.0
      %6380 = vmatpush.msra.mxu0 0.0
      %6381 = vmatpush.msra.mxu0 0.0
      %6382 = vmatpush.msra.mxu0 0.0
      %6383 = vmatpush.msra.mxu0 0.0
      %6384 = vmatpush.msra.mxu0 0.0
      %6385 = vmatpush.msra.mxu0 0.0
      %6386 = vmatpush.msra.mxu0 0.0
      %6387 = vmatpush.msra.mxu0 0.0
      %6388 = vmatpush.msra.mxu0 0.0
      %6389 = vmatpush.msra.mxu0 0.0
      %6390 = vmatpush.msra.mxu0 0.0
      %6391 = vmatpush.msra.mxu0 0.0
      %6392 = vmatpush.msra.mxu0 %v6363
      %6393 = vmatpush.msra.mxu0 %v6356
      %6394 = vmatmul.f32.gmra.mxu0 %v6367
      %v6395 = vpop.f32.mrf.mxu0
      %v6396 = vadd.f32 0.0, %v6395
      %6397 = vmatmul.f32.gmra.mxu0 %v6370
      %v6398 = vpop.f32.mrf.mxu0
      %v6399 = vadd.f32 0.0, %v6398
      %6400 = vmatmul.f32.gmra.mxu0 %v6373
      %v6401 = vpop.f32.mrf.mxu0
      %v6402 = vadd.f32 0.0, %v6401
      %6403 = vmatmul.f32.gmra.mxu0 %v6376
      %v6404 = vpop.f32.mrf.mxu0
      %v6405 = vadd.f32 0.0, %v6404
      %6406 = vdwg.mxu0
      %v6407 = vsub.f32 %v6173, %v6396
      %v6408 = vsub.f32 %v6176, %v6399
      %v6409 = vsub.f32 %v6179, %v6402
      %v6410 = vsub.f32 %v6182, %v6405
      %6411 = vmatpush.msra.mxu0 0.0
      %6412 = vmatpush.msra.mxu0 0.0
      %6413 = vmatpush.msra.mxu0 0.0
      %6414 = vmatpush.msra.mxu0 0.0
      %6415 = vmatpush.msra.mxu0 0.0
      %6416 = vmatpush.msra.mxu0 0.0
      %6417 = vmatpush.msra.mxu0 0.0
      %6418 = vmatpush.msra.mxu0 0.0
      %6419 = vmatpush.msra.mxu0 0.0
      %6420 = vmatpush.msra.mxu0 0.0
      %6421 = vmatpush.msra.mxu0 0.0
      %6422 = vmatpush.msra.mxu0 0.0
      %6423 = vmatpush.msra.mxu0 0.0
      %6424 = vmatpush.msra.mxu0 0.0
      %6425 = vmatpush.msra.mxu0 %v6363
      %6426 = vmatpush.msra.mxu0 %v6356
      %6427 = vmatmul.f32.gmra.mxu0 %v5938
      %v6428 = vpop.f32.mrf.mxu0
      %v6429 = vadd.f32 0.0, %v6428
      %6430 = vmatmul.f32.gmra.mxu0 %v5941
      %v6431 = vpop.f32.mrf.mxu0
      %v6432 = vadd.f32 0.0, %v6431
      %6433 = vdwg.mxu0
      %v6434 = vsub.f32 %v6185, %v6429
      %v6435 = vsub.f32 %v6188, %v6432
      %v6436 = vsub.f32 %v5968, %v6434
      %v6437 = vsub.f32 %v5969, %v6435
      %v6438 = vmul.f32 %v715, %v6436
      %v6439 = vmul.f32 %v716, %v6437
      %v6440 = vsub.f32 %v6110, %v6438
      %v6441 = vsub.f32 %v6111, %v6439
      %v6442 = vmul.f32 %v6440, %v887
      %v6443 = vmul.f32 %v6441, %v902
      %vm6444 = vcmp.lt.f32.partialorder %v6436, 0.0
      %vm6445 = vcmp.lt.f32.partialorder %v6437, 0.0
      %v6446 = vsel %vm6444, %v6436, -1.0
      %v6447 = vsel %vm6445, %v6437, -1.0
      %v6448 = vrcp.pop %v6446
      %v6449 = vmul.f32 %v6446, %v6448
      %v6450 = vsub.f32 1.0, %v6449
      %v6451 = vmul.f32 %v6448, %v6450
      %v6452 = vadd.f32 %v6448, %v6451
      %vm6453 = vweird.f32 %v6446
      %vm6454 = vweird.f32 %v6448
      %vm6455 = vmor %vm6453, %vm6454
      %v6456 = vsel %vm6455, %v6448, %v6452
      %v6457 = vand.u32 2147483647, %v6446
      %vm6458 = vcmp.eq.f32.partialorder %v6457, 8.507059e+37
      %v6459 = vand.u32 %v6446, 2147483648
      %v6460 = vor.u32 1.1754944e-38, %v6459
      %v6461 = vsel %vm6458, %v6460, %v6456
      %v6462 = vmul.f32 %v5982, %v6461
      %v6463 = vrcp.pop %v6447
      %v6464 = vmul.f32 %v6447, %v6463
      %v6465 = vsub.f32 1.0, %v6464
      %v6466 = vmul.f32 %v6463, %v6465
      %v6467 = vadd.f32 %v6463, %v6466
      %vm6468 = vweird.f32 %v6447
      %vm6469 = vweird.f32 %v6463
      %vm6470 = vmor %vm6468, %vm6469
      %v6471 = vsel %vm6470, %v6463, %v6467
      %v6472 = vand.u32 2147483647, %v6447
      %vm6473 = vcmp.eq.f32.partialorder %v6472, 8.507059e+37
      %v6474 = vand.u32 %v6447, 2147483648
      %v6475 = vor.u32 1.1754944e-38, %v6474
      %v6476 = vsel %vm6473, %v6475, %v6471
      %v6477 = vmul.f32 %v5983, %v6476
      %v6478 = vsel %vm6444, %v6462, 1e+30
      %v6479 = vsel %vm6445, %v6477, 1e+30
      %v6480 = vmin.f32 %v6478, %v6479
      %v6481 = vrot.slane %v6480, 4
      %v6482 = vmin.f32 %v6480, %v6481
      %v6483 = vrot.slane %v6482, 2
      %v6484 = vmin.f32 %v6482, %v6483
      %v6485 = vrot.slane %v6484, 1
      %v6486 = vmin.f32 %v6484, %v6485
      %vm6487 = vcmp.lt.f32.partialorder %v6442, 0.0
      %vm6488 = vcmp.lt.f32.partialorder %v6443, 0.0
      %v6489 = vsel %vm6487, %v6442, -1.0
      %v6490 = vsel %vm6488, %v6443, -1.0
      %v6491 = vrcp.pop %v6489
      %v6492 = vmul.f32 %v6489, %v6491
      %v6493 = vsub.f32 1.0, %v6492
      %v6494 = vmul.f32 %v6491, %v6493
      %v6495 = vadd.f32 %v6491, %v6494
      %vm6496 = vweird.f32 %v6489
      %vm6497 = vweird.f32 %v6491
      %vm6498 = vmor %vm6496, %vm6497
      %v6499 = vsel %vm6498, %v6491, %v6495
      %v6500 = vand.u32 2147483647, %v6489
      %vm6501 = vcmp.eq.f32.partialorder %v6500, 8.507059e+37
      %v6502 = vand.u32 %v6489, 2147483648
      %v6503 = vor.u32 1.1754944e-38, %v6502
      %v6504 = vsel %vm6501, %v6503, %v6499
      %v6505 = vmul.f32 %v5972, %v6504
      %v6506 = vrcp.pop %v6490
      %v6507 = vmul.f32 %v6490, %v6506
      %v6508 = vsub.f32 1.0, %v6507
      %v6509 = vmul.f32 %v6506, %v6508
      %v6510 = vadd.f32 %v6506, %v6509
      %vm6511 = vweird.f32 %v6490
      %vm6512 = vweird.f32 %v6506
      %vm6513 = vmor %vm6511, %vm6512
      %v6514 = vsel %vm6513, %v6506, %v6510
      %v6515 = vand.u32 2147483647, %v6490
      %vm6516 = vcmp.eq.f32.partialorder %v6515, 8.507059e+37
      %v6517 = vand.u32 %v6490, 2147483648
      %v6518 = vor.u32 1.1754944e-38, %v6517
      %v6519 = vsel %vm6516, %v6518, %v6514
      %v6520 = vmul.f32 %v5973, %v6519
      %v6521 = vsel %vm6487, %v6505, 1e+30
      %v6522 = vsel %vm6488, %v6520, 1e+30
      %v6523 = vmin.f32 %v6521, %v6522
      %v6524 = vrot.slane %v6523, 4
      %v6525 = vmin.f32 %v6523, %v6524
      %v6526 = vrot.slane %v6525, 2
      %v6527 = vmin.f32 %v6525, %v6526
      %v6528 = vrot.slane %v6527, 1
      %v6529 = vmin.f32 %v6527, %v6528
      %v6530 = vmin.f32 %v6486, %v6529
      %v6531 = vmul.f32 %v6530, 0.999
      %v6532 = vmin.f32 %v6531, 1.0
      %v6533 = vmul.f32 %v6532, %v6407
      %v6534 = vmul.f32 %v6532, %v6408
      %v6535 = vmul.f32 %v6532, %v6409
      %v6536 = vmul.f32 %v6532, %v6410
      %v6537 = vadd.f32 %v709, %v6533
      %v6538 = vadd.f32 %v710, %v6534
      %v6539 = vadd.f32 %v711, %v6535
      %v6540 = vadd.f32 %v712, %v6536
      %6541 = vst [vmem:[#allocation2] sm:$0xff] %v6537
      %6542 = vst [vmem:[#allocation2 + $0x8] sm:$0xff] %v6538
      %6543 = vst [vmem:[#allocation2 + $0x10] sm:$0xff] %v6539
      %6544 = vst [vmem:[#allocation2 + $0x18] sm:$0xff] %v6540
      %v6545 = vmul.f32 %v6532, %v6436
      %v6546 = vmul.f32 %v6532, %v6437
      %v6547 = vadd.f32 %v713, %v6545
      %v6548 = vadd.f32 %v714, %v6546
      %6549 = vst [vmem:[#allocation3] sm:$0xff] %v6547
      %6550 = vst [vmem:[#allocation3 + $0x8] sm:$0xff] %v6548
      %v6551 = vmul.f32 %v6532, %v6442
      %v6552 = vmul.f32 %v6532, %v6443
      %v6553 = vadd.f32 %v715, %v6551
      %v6554 = vadd.f32 %v716, %v6552
      %6555 = vst [vmem:[#allocation4] sm:$0xff] %v6553
      %6556 = vst [vmem:[#allocation4 + $0x8] sm:$0xff] %v6554
    $region38: #{tpu_custom_call.1} parent=1 // loop_footer
      %s708 = sadd.s32 1, %s704
    $region39: #{tpu_custom_call.1} parent=1 // loop_footer_branch
      %703 = sbr.rel target = $region35
    $region40: #{tpu_custom_call.1} parent=1 // loop_exit
      _
    %v6557 = vld [vmem:[#allocation2] sm:$0xff]
    %v6558 = vld [vmem:[#allocation2 + $0x8] sm:$0xff]
    %v6559 = vld [vmem:[#allocation2 + $0x10] sm:$0xff]
    %v6560 = vld [vmem:[#allocation2 + $0x18] sm:$0xff]
    %v6561 = vld [vmem:[#allocation3] sm:$0xff]
    %v6562 = vld [vmem:[#allocation3 + $0x8] sm:$0xff]
    %v6563 = vld [vmem:[#allocation4] sm:$0xff]
    %v6564 = vld [vmem:[#allocation4 + $0x8] sm:$0xff]
    %6565 = vmatpush.msra.mxu0 0.0
    %6566 = vmatpush.msra.mxu0 0.0
    %6567 = vmatpush.msra.mxu0 0.0
    %6568 = vmatpush.msra.mxu0 0.0
    %6569 = vmatpush.msra.mxu0 0.0
    %6570 = vmatpush.msra.mxu0 0.0
    %6571 = vmatpush.msra.mxu0 0.0
    %6572 = vmatpush.msra.mxu0 0.0
    %6573 = vmatpush.msra.mxu0 0.0
    %6574 = vmatpush.msra.mxu0 0.0
    %6575 = vmatpush.msra.mxu0 0.0
    %6576 = vmatpush.msra.mxu0 0.0
    %6577 = vmatpush.msra.mxu0 %v6560
    %6578 = vmatpush.msra.mxu0 %v6559
    %6579 = vmatpush.msra.mxu0 %v6558
    %6580 = vmatpush.msra.mxu0 %v6557
    %6581 = vmatmul.f32.gmra.mxu0 %v596
    %v6582 = vpop.f32.mrf.mxu0
    %v6583 = vadd.f32 0.0, %v6582
    %6584 = vmatmul.f32.gmra.mxu0 %v599
    %v6585 = vpop.f32.mrf.mxu0
    %v6586 = vadd.f32 0.0, %v6585
    %6587 = vmatmul.f32.gmra.mxu0 %v602
    %v6588 = vpop.f32.mrf.mxu0
    %v6589 = vadd.f32 0.0, %v6588
    %6590 = vmatmul.f32.gmra.mxu0 %v605
    %v6591 = vpop.f32.mrf.mxu0
    %v6592 = vadd.f32 0.0, %v6591
    %6593 = vmatmul.f32.gmra.mxu0 %v608
    %v6594 = vpop.f32.mrf.mxu0
    %v6595 = vadd.f32 0.0, %v6594
    %6596 = vmatmul.f32.gmra.mxu0 %v611
    %v6597 = vpop.f32.mrf.mxu0
    %v6598 = vadd.f32 0.0, %v6597
    %6599 = vdwg.mxu0
    %v6600 = vadd.f32 %v6583, %v54
    %v6601 = vadd.f32 %v6586, %v55
    %v6602 = vadd.f32 %v6589, %v56
    %v6603 = vadd.f32 %v6592, %v57
    %6604 = vmatpush.msra.mxu0 0.0
    %6605 = vmatpush.msra.mxu0 0.0
    %6606 = vmatpush.msra.mxu0 0.0
    %6607 = vmatpush.msra.mxu0 0.0
    %6608 = vmatpush.msra.mxu0 0.0
    %6609 = vmatpush.msra.mxu0 0.0
    %6610 = vmatpush.msra.mxu0 0.0
    %6611 = vmatpush.msra.mxu0 0.0
    %6612 = vmatpush.msra.mxu0 0.0
    %6613 = vmatpush.msra.mxu0 0.0
    %6614 = vmatpush.msra.mxu0 0.0
    %6615 = vmatpush.msra.mxu0 0.0
    %6616 = vmatpush.msra.mxu0 0.0
    %6617 = vmatpush.msra.mxu0 0.0
    %6618 = vmatpush.msra.mxu0 %v6564
    %6619 = vmatpush.msra.mxu0 %v6563
    %6620 = vmatmul.f32.gmra.mxu0 %v485
    %v6621 = vpop.f32.mrf.mxu0
    %v6622 = vadd.f32 0.0, %v6621
    %6623 = vmatmul.f32.gmra.mxu0 %v488
    %v6624 = vpop.f32.mrf.mxu0
    %v6625 = vadd.f32 0.0, %v6624
    %6626 = vmatmul.f32.gmra.mxu0 %v491
    %v6627 = vpop.f32.mrf.mxu0
    %v6628 = vadd.f32 0.0, %v6627
    %6629 = vmatmul.f32.gmra.mxu0 %v494
    %v6630 = vpop.f32.mrf.mxu0
    %v6631 = vadd.f32 0.0, %v6630
    %6632 = vdwg.mxu0
    %v6633 = vadd.f32 %v6600, %v6622
    %v6634 = vadd.f32 %v6601, %v6625
    %v6635 = vadd.f32 %v6602, %v6628
    %v6636 = vadd.f32 %v6603, %v6631
    %v6637 = vadd.f32 %v6595, %v6561
    %v6638 = vadd.f32 %v6598, %v6562
    %v6639 = vsub.f32 %v6637, %v647
    %v6640 = vsub.f32 %v6638, %v652
    %v6641 = vmul.f32 %v6561, %v6563
    %v6642 = vmul.f32 %v6562, %v6564
    %v6643 = vadd.f32 %v6641, %v6642
    %v6644 = vrot.slane %v6643, 4
    %v6645 = vadd.f32 %v6643, %v6644
    %v6646 = vrot.slane %v6645, 2
    %v6647 = vadd.f32 %v6645, %v6646
    %v6648 = vrot.slane %v6647, 1
    %v6649 = vadd.f32 %v6647, %v6648
    %v6650 = vmul.f32 %v6649, 0.0625
    %v6651 = vmul.f32 %v6639, %v6639
    %v6652 = vmul.f32 %v6640, %v6640
    %v6653 = vadd.f32 %v6651, %v6652
    %v6654 = vrot.slane %v6653, 4
    %v6655 = vadd.f32 %v6653, %v6654
    %v6656 = vrot.slane %v6655, 2
    %v6657 = vadd.f32 %v6655, %v6656
    %v6658 = vrot.slane %v6657, 1
    %v6659 = vadd.f32 %v6657, %v6658
    %v6660 = vrsqrt.pop %v6659
    %v6661 = vmul.f32 %v6660, %v6659
    %v6662 = vmul.f32 %v6661, %v6660
    %v6663 = vmul.f32 0.5, %v6662
    %v6664 = vsub.f32 1.5, %v6663
    %v6665 = vmul.f32 %v6660, %v6664
    %v6666 = vmul.f32 %v6659, %v6665
    %vm6667 = vcmp.eq.f32.partialorder %v6659, inf
    %v6668 = vsel %vm6667, %v6659, %v6666
    %vm6669 = vcmp.eq.f32.partialorder %v6659, 0.0
    %v6670 = vand.u32 %v6659, 2147483648
    %v6671 = vsel %vm6669, %v6670, %v6668
    %v6672 = vmul.f32 %v6633, %v6633
    %v6673 = vmul.f32 %v6634, %v6634
    %v6674 = vmul.f32 %v6635, %v6635
    %v6675 = vmul.f32 %v6636, %v6636
    %v6676 = vadd.f32 %v6672, %v6673
    %v6677 = vadd.f32 %v6676, %v6674
    %v6678 = vadd.f32 %v6677, %v6675
    %v6679 = vrot.slane %v6678, 4
    %v6680 = vadd.f32 %v6678, %v6679
    %v6681 = vrot.slane %v6680, 2
    %v6682 = vadd.f32 %v6680, %v6681
    %v6683 = vrot.slane %v6682, 1
    %v6684 = vadd.f32 %v6682, %v6683
    %v6685 = vrsqrt.pop %v6684
    %v6686 = vmul.f32 %v6685, %v6684
    %v6687 = vmul.f32 %v6686, %v6685
    %v6688 = vmul.f32 0.5, %v6687
    %v6689 = vsub.f32 1.5, %v6688
    %v6690 = vmul.f32 %v6685, %v6689
    %v6691 = vmul.f32 %v6684, %v6690
    %vm6692 = vcmp.eq.f32.partialorder %v6684, inf
    %v6693 = vsel %vm6692, %v6684, %v6691
    %vm6694 = vcmp.eq.f32.partialorder %v6684, 0.0
    %v6695 = vand.u32 %v6684, 2147483648
    %v6696 = vsel %vm6694, %v6695, %v6693
    %v6697 = vadd.f32 %v6671, %v6696
    %v6698 = vadd.f32 %v6697, %v6650
    %v6699 = vld [vmem:[#allocation6] sm:$0x1]
    %vm6700 = vcmp.lt.f32.partialorder %v6698, %v6699
    %v6701 = vld [vmem:[#allocation5] sm:$0xff]
    %v6702 = vld [vmem:[#allocation5 + $0x8] sm:$0xff]
    %v6703 = vld [vmem:[#allocation5 + $0x10] sm:$0xff]
    %v6704 = vld [vmem:[#allocation5 + $0x18] sm:$0xff]
    %v6705 = vsel %vm6700, 1, 0
    %v6706 = vperm.slane %v6705, 0
    %vm6707 = vcmp.eq.s32.totalorder %v6706, 1
    %v6708 = vsel %vm6707, %v6557, %v6701
    %v6709 = vsel %vm6707, %v6558, %v6702
    %v6710 = vsel %vm6707, %v6559, %v6703
    %v6711 = vsel %vm6707, %v6560, %v6704
    %6712 = vst [vmem:[#allocation8] sm:$0xff] %v6708
    %6713 = vst [vmem:[#allocation8 + $0x8] sm:$0xff] %v6709
    %6714 = vst [vmem:[#allocation8 + $0x10] sm:$0xff] %v6710
    %6715 = vst [vmem:[#allocation8 + $0x18] sm:$0xff] %v6711
    // Predicated region
    $region41: #{tpu_custom_call.1} parent=1 // pred_check
      _
    $region42: #{tpu_custom_call.1} parent=1 // pred_check_branch
      %6717 = sbr.rel (0) target = $region44
    $region43: #{tpu_custom_call.1} parent=1 // pred_region
      %6719 = vsyncadd [#allocation9], 0
      %s6720 = sshll.u32 [#allocation8], 4
      %s6721 = int_to_ptr.vmem [resolvable:$true] %s6720
      %s6722 = sshll.u32 %s8, 4
      %s6723 = int_to_ptr.hbm [resolvable:$true] %s6722
      %6728 = dma.vmem_to_hbm [thread:$0]  %s6721, 512, %s6723, [#allocation9], 128, 128, 8
    $region44: #{tpu_custom_call.1} parent=1 // pred_fallthru
      _
    // Predicated region
    $region45: #{tpu_custom_call.1} parent=1 // pred_check
      _
    $region46: #{tpu_custom_call.1} parent=1 // pred_check_branch
      %6730 = sbr.rel (0) target = $region48
    $region47: #{tpu_custom_call.1} parent=1 // pred_region
      %6732 = dma.done [#allocation9], 512
    $region48: #{tpu_custom_call.1} parent=1 // pred_fallthru
      _
    %6733 = vsyncpa [#allocation9], 1

</llo_original>
